<compile_context>
chip_gen: v7x
topology: tpu7x:2x2x1
jax: 0.10.0
libtpu: 0.0.40
codegen_flags: <defaults>
</compile_context>

<pallas_src>
import functools

import jax
import jax.numpy as jnp
from jax import lax
from jax.experimental import pallas as pl
from jax.experimental.pallas import tpu as pltpu

P_HALO = 4  # halo required by the 5x5 dilation-2 depthwise conv (pad=4)


def frf_kernel(x_ref, valid_ref,
               gate_w_ref, gate_b_ref,
               dw0_w_ref, dw0_b_ref,
               A_br_ref, gbr_g_ref, gbr_b_ref,
               dw1_w_ref, dw1_b_ref,
               dw2_w_ref, dw2_b_ref,
               A4_ref, gpw_g_ref, gpw_b_ref, pw_w_ref, pw_b_ref,
               A2_ref, g2g_g_ref, g2g_b_ref, g2v_g_ref, g2v_b_ref,
               p2_wg_ref, p2_wv_ref, p2_b_ref,
               out_ref, ext_ref,
               *, S, Wp, M, mm_dtype, approx_silu):
    C = x_ref.shape[1]
    x = x_ref[0]                                   # (C, S) f32, zero off-image
    m = valid_ref[...]                             # (1, S) 1.0 on valid pixels
    mask = m > 0.5

    # The conv scratch's halo columns must read as zero.  The interior
    # [M, M+S) is fully rewritten before every conv and the margins are never
    # written, so zeroing the two thin margin strips once per grid step is
    # enough (safe under "parallel" scheduling of the batch axis, unlike a
    # program_id==0 one-shot init).
    zeros_margin = jnp.zeros((C, M), jnp.float32)
    ext_ref[:, :M] = zeros_margin
    ext_ref[:, M + S:] = zeros_margin

    def mm(w_ref, a):                              # 1x1 conv == (C,C)@(C,S) MXU
        return jnp.dot(w_ref[...], a.astype(mm_dtype),
                       preferred_element_type=jnp.float32)

    def silu(y):
        return y * pl.reciprocal(1.0 + jnp.exp(-y), approx=approx_silu)

    def gn_silu(u, A_ref, gamma_ref, beta_ref, eps=1e-5):
        # One-pass GroupNorm: per-channel sum / sum-of-squares over the valid
        # columns, then a tiny (C,C)@(C,2) group-average matmul broadcasts the
        # per-group mean / E[x^2] back to every channel.
        um = jnp.where(mask, u, 0.0)
        s = jnp.sum(um, axis=1, keepdims=True)                 # (C, 1)
        ss = jnp.sum(um * u, axis=1, keepdims=True)            # (C, 1)
        gs = jnp.dot(A_ref[...], jnp.concatenate([s, ss], axis=1),
                     preferred_element_type=jnp.float32)       # (C, 2)
        mean = gs[:, 0:1]
        var = jnp.maximum(gs[:, 1:2] - mean * mean, 0.0)
        y = (u - mean) * (lax.rsqrt(var + eps) * gamma_ref[...]) + beta_ref[...]
        return silu(y)

    def dwconv(w_ref, b_ref, k, dil, pad):
        # Depthwise 'same' conv over the flattened padded plane; every tap is a
        # contiguous lane slice of the extended scratch (static offsets).
        acc = None
        for i in range(k):
            for j in range(k):
                off = M + (i * dil - pad) * Wp + (j * dil - pad)
                t = i * k + j
                tap = ext_ref[:, off:off + S] * w_ref[:, t:t + 1]
                acc = tap if acc is None else acc + tap
        return acc + b_ref[...]

    # ----- gate: 1x1 conv -----
    g = mm(gate_w_ref, x) + gate_b_ref[...]

    # ----- value = DPW -----
    ext_ref[:, M:M + S] = x                        # already zero off-image
    x0 = dwconv(dw0_w_ref, dw0_b_ref, 3, 1, 1)     # depthwise 3x3, pad 1

    # gn1 (channels [0,C0)) and gn2 ([C0,C)) merged into one masked GN+SiLU.
    a = gn_silu(x0, A_br_ref, gbr_g_ref, gbr_b_ref)
    ext_ref[:, M:M + S] = jnp.where(mask, a, 0.0)  # shared by dw1 and dw2
    x1 = dwconv(dw1_w_ref, dw1_b_ref, 3, 1, 1)     # weights zero outside [0,C0)
    x2 = dwconv(dw2_w_ref, dw2_b_ref, 5, 2, 4)     # weights zero outside [C0,C)
    xcat = x1 + x2                                 # == torch.cat over channels

    # PW_conv: GN(4,C) + SiLU + 1x1
    v = mm(pw_w_ref, gn_silu(xcat, A4_ref, gpw_g_ref, gpw_b_ref)) + pw_b_ref[...]

    # proj_2 on cat([g, v]): GN(4, 2C) factors into two 2-group norms because
    # no group straddles the g/v boundary; the 1x1 conv splits column-wise.
    gng = gn_silu(g, A2_ref, g2g_g_ref, g2g_b_ref)
    gnv = gn_silu(v, A2_ref, g2v_g_ref, g2v_b_ref)
    proj = mm(p2_wg_ref, gng) + mm(p2_wv_ref, gnv) + p2_b_ref[...]

    out_ref[0] = (proj + x).astype(out_ref.dtype)  # residual


def frf_forward(x_nchw, kp, *, precise=False):
    """x_nchw: (B, C, H, W) float32; kp: kernel-layout params from make_kernel_params."""
    B, C, H, W = x_nchw.shape
    # The PyTorch module itself needs GroupNorm(4, C/4) / (4, 3C/4) to be valid.
    assert C % 16 == 0, "FRF channel split [1,3] + GroupNorm(4, .) needs C % 16 == 0"

    P = P_HALO
    Hp, Wp = H + 2 * P, W + 2 * P
    S = Hp * Wp
    M = P * Wp + P                  # flat offset of pixel (0,0) inside the halo
    SE = S + 2 * M                  # extended length so every tap slice fits

    mm_dtype = jnp.float32 if precise else jnp.bfloat16

    # Zero-pad once on the host side -> kernel input is already the "wide" layout.
    xw = jnp.pad(x_nchw.astype(jnp.float32),
                 ((0, 0), (0, 0), (P, P), (P, P))).reshape(B, C, S)

    pos = jnp.arange(S)
    r, c = pos // Wp, pos % Wp
    valid = (((r >= P) & (r < P + H) & (c >= P) & (c < P + W))
             .astype(jnp.float32).reshape(1, S))

    def cast_mm(a):
        return a.astype(mm_dtype)

    flat_args = [
        valid,
        cast_mm(kp['gate_w']), kp['gate_b'],
        kp['dw0_w'], kp['dw0_b'],
        kp['A_br'], kp['gbr_g'], kp['gbr_b'],
        kp['dw1_w'], kp['dw1_b'],
        kp['dw2_w'], kp['dw2_b'],
        kp['A4'], kp['gpw_g'], kp['gpw_b'], cast_mm(kp['pw_w']), kp['pw_b'],
        kp['A2'], kp['g2g_g'], kp['g2g_b'], kp['g2v_g'], kp['g2v_b'],
        cast_mm(kp['p2_wg']), cast_mm(kp['p2_wv']), kp['p2_b'],
    ]

    in_specs = [pl.BlockSpec((1, C, S), lambda b: (b, 0, 0))]
    in_specs += [pl.BlockSpec(a.shape, lambda b: (0, 0)) for a in flat_args]

    kernel = functools.partial(frf_kernel, S=S, Wp=Wp, M=M,
                               mm_dtype=mm_dtype, approx_silu=not precise)

    # Explicit VMEM budget: per-step live f32 intermediates + extended conv
    # scratch + double-buffered in/out blocks, clamped below v7x's 64 MiB.
    # For very large H*W*C, row-tile with a P-row halo instead of raising this.
    est = 4 * C * (24 * S + 2 * SE)
    vmem_limit = int(min(60 * 2**20, max(32 * 2**20, 2 * est)))

    out_wide = pl.pallas_call(
        kernel,
        out_shape=jax.ShapeDtypeStruct((B, C, S), jnp.float32),
        grid_spec=pltpu.PrefetchScalarGridSpec(
            num_scalar_prefetch=0,
            grid=(B,),
            in_specs=in_specs,
            out_specs=pl.BlockSpec((1, C, S), lambda b: (b, 0, 0)),
            scratch_shapes=[pltpu.VMEM((C, SE), jnp.float32)],
        ),
        compiler_params=pltpu.CompilerParams(
            dimension_semantics=("parallel",),      # batch items are independent
            vmem_limit_bytes=vmem_limit),
    )(xw, *flat_args)

    # Back to NCHW: drop the halo/gap columns.
    return out_wide.reshape(B, C, Hp, Wp)[:, :, P:P + H, P:P + W]


def make_kernel_params(tp, C, C0, H, W):
    """Convert PyTorch-layout params to the kernel's (C, ...) wide layout."""
    C1 = C - C0
    HW = float(H * W)
    f32 = jnp.float32

    def col(a):
        return jnp.asarray(a, f32).reshape(-1, 1)

    ch = jnp.arange(C)

    def group_avg_matrix(gid, cpg):
        same = (gid[:, None] == gid[None, :]).astype(f32)
        return same / (HW * cpg.astype(f32))[:, None]

    cpg0, cpg1 = C0 // 4, C1 // 4
    gid_br = jnp.where(ch < C0, ch // cpg0, 4 + (ch - C0) // cpg1)
    cnt_br = jnp.where(ch < C0, cpg0, cpg1)
    A_br = group_avg_matrix(gid_br, cnt_br)
    A4 = group_avg_matrix(ch // (C // 4), jnp.full((C,), C // 4))
    A2 = group_avg_matrix(ch // (C // 2), jnp.full((C,), C // 2))

    def dw_flat(w, off, k):                       # (Cg,1,k,k) -> zero-padded (C,k*k)
        out = jnp.zeros((C, k * k), f32)
        return out.at[off:off + w.shape[0]].set(
            jnp.asarray(w[:, 0], f32).reshape(w.shape[0], k * k))

    def padc(v, off):
        out = jnp.zeros((C,), f32)
        return out.at[off:off + v.shape[0]].set(jnp.asarray(v, f32))

    return dict(
        gate_w=jnp.asarray(tp['gate_w'][:, :, 0, 0], f32),
        gate_b=col(tp['gate_b']),
        dw0_w=dw_flat(tp['dw0_w'], 0, 3),
        dw0_b=col(tp['dw0_b']),
        A_br=A_br,
        gbr_g=col(jnp.concatenate([tp['gn1_gamma'], tp['gn2_gamma']])),
        gbr_b=col(jnp.concatenate([tp['gn1_beta'], tp['gn2_beta']])),
        dw1_w=dw_flat(tp['dw1_w'], 0, 3),
        dw1_b=col(padc(tp['dw1_b'], 0)),
        dw2_w=dw_flat(tp['dw2_w'], C0, 5),
        dw2_b=col(padc(tp['dw2_b'], C0)),
        A4=A4,
        gpw_g=col(tp['gnpw_gamma']), gpw_b=col(tp['gnpw_beta']),
        pw_w=jnp.asarray(tp['pw_w'][:, :, 0, 0], f32),
        pw_b=col(tp['pw_b']),
        A2=A2,
        g2g_g=col(tp['gnp2_gamma'][:C]), g2g_b=col(tp['gnp2_beta'][:C]),
        g2v_g=col(tp['gnp2_gamma'][C:]), g2v_b=col(tp['gnp2_beta'][C:]),
        p2_wg=jnp.asarray(tp['p2_w'][:, :C, 0, 0], f32),
        p2_wv=jnp.asarray(tp['p2_w'][:, C:, 0, 0], f32),
        p2_b=col(tp['p2_b']),
    )


# ----------------------------- pure-JAX reference -----------------------------
def ref_forward(x, tp, C0):
    HI = lax.Precision.HIGHEST

    def conv1x1(x, w, b):                      # w: (Cout, Cin, 1, 1)
        return (jnp.einsum('bchw,oc->bohw', x, w[:, :, 0, 0], precision=HI)
                + b[None, :, None, None])

    def dwconv(x, w, b, dilation, pad):        # w: (Cg, 1, k, k)
        y = lax.conv_general_dilated(
            x, w, window_strides=(1, 1), padding=[(pad, pad), (pad, pad)],
            rhs_dilation=(dilation, dilation),
            dimension_numbers=('NCHW', 'OIHW', 'NCHW'),
            feature_group_count=x.shape[1], precision=HI)
        return y + b[None, :, None, None]

    def gn_silu(x, gamma, beta, groups=4, eps=1e-5):
        B, C, H, W = x.shape
        xg = x.reshape(B, groups, C // groups, H, W)
        mu = xg.mean(axis=(2, 3, 4), keepdims=True)
        var = ((xg - mu) ** 2).mean(axis=(2, 3, 4), keepdims=True)
        xn = ((xg - mu) / jnp.sqrt(var + eps)).reshape(B, C, H, W)
        y = xn * gamma[None, :, None, None] + beta[None, :, None, None]
        return y / (1.0 + jnp.exp(-y))

    shortcut = x
    g = conv1x1(x, tp['gate_w'], tp['gate_b'])
    x0 = dwconv(x, tp['dw0_w'], tp['dw0_b'], 1, 1)
    x1 = gn_silu(x0[:, :C0], tp['gn1_gamma'], tp['gn1_beta'])
    x1 = dwconv(x1, tp['dw1_w'], tp['dw1_b'], 1, 1)
    x2 = gn_silu(x0[:, C0:], tp['gn2_gamma'], tp['gn2_beta'])
    x2 = dwconv(x2, tp['dw2_w'], tp['dw2_b'], 2, 4)
    xc = jnp.concatenate([x1, x2], axis=1)
    v = conv1x1(gn_silu(xc, tp['gnpw_gamma'], tp['gnpw_beta']),
                tp['pw_w'], tp['pw_b'])
    gv = gn_silu(jnp.concatenate([g, v], axis=1),
                 tp['gnp2_gamma'], tp['gnp2_beta'])
    return conv1x1(gv, tp['p2_w'], tp['p2_b']) + shortcut


if __name__ == "__main__":
    B, C, H, W = 2, 16, 16, 16      # embed_dims=16 so GroupNorm(4, C/4) is valid
    C0, C1 = C // 4, C - C // 4

    key = jax.random.PRNGKey(0)
    ks = iter(jax.random.split(key, 32))

    def nrm(shape, scale=0.1):
        return scale * jax.random.normal(next(ks), shape, dtype=jnp.float32)

    # PyTorch-layout parameters (deterministic synthetic init)
    tp = dict(
        gate_w=nrm((C, C, 1, 1)), gate_b=nrm((C,)),
        dw0_w=nrm((C, 1, 3, 3), 0.3), dw0_b=nrm((C,)),
        gn1_gamma=1.0 + nrm((C0,)), gn1_beta=nrm((C0,)),
        dw1_w=nrm((C0, 1, 3, 3), 0.3), dw1_b=nrm((C0,)),
        gn2_gamma=1.0 + nrm((C1,)), gn2_beta=nrm((C1,)),
        dw2_w=nrm((C1, 1, 5, 5), 0.3), dw2_b=nrm((C1,)),
        gnpw_gamma=1.0 + nrm((C,)), gnpw_beta=nrm((C,)),
        pw_w=nrm((C, C, 1, 1)), pw_b=nrm((C,)),
        gnp2_gamma=1.0 + nrm((2 * C,)), gnp2_beta=nrm((2 * C,)),
        p2_w=nrm((C, 2 * C, 1, 1)), p2_b=nrm((C,)),
    )

    x = jax.random.normal(next(ks), (B, C, H, W), dtype=jnp.float32)
    kp = make_kernel_params(tp, C, C0, H, W)
    ref = ref_forward(x, tp, C0)

    # Precise path: f32 MXU matmuls + exact SiLU divide -> tight check.
    out_f32 = jax.block_until_ready(frf_forward(x, kp, precise=True))
    assert out_f32.shape == x.shape and out_f32.dtype == jnp.float32
    err_f32 = float(jnp.max(jnp.abs(out_f32 - ref)))
    if not (err_f32 < 3e-3):
        raise AssertionError(f"f32 kernel/reference mismatch: max abs err = {err_f32}")

    # Fast path (default): bf16 MXU matmuls + approx-reciprocal SiLU.
    out_bf16 = jax.block_until_ready(frf_forward(x, kp, precise=False))
    err_bf16 = float(jnp.max(jnp.abs(out_bf16 - ref)))
    if not (err_bf16 < 1.5e-1):
        raise AssertionError(f"bf16 kernel/reference mismatch: max abs err = {err_bf16}")

    print("KERNEL_OK")
</pallas_src>

<mosaic_0001>
module attributes {stable_mosaic.version = 11 : i64} {
  func.func @frf_kernel(%arg0: i32, %arg1: memref<1x16x576xf32, #tpu.memory_space<vmem>>, %arg2: memref<1x576xf32, #tpu.memory_space<vmem>>, %arg3: memref<16x16xf32, #tpu.memory_space<vmem>>, %arg4: memref<16x1xf32, #tpu.memory_space<vmem>>, %arg5: memref<16x9xf32, #tpu.memory_space<vmem>>, %arg6: memref<16x1xf32, #tpu.memory_space<vmem>>, %arg7: memref<16x16xf32, #tpu.memory_space<vmem>>, %arg8: memref<16x1xf32, #tpu.memory_space<vmem>>, %arg9: memref<16x1xf32, #tpu.memory_space<vmem>>, %arg10: memref<16x9xf32, #tpu.memory_space<vmem>>, %arg11: memref<16x1xf32, #tpu.memory_space<vmem>>, %arg12: memref<16x25xf32, #tpu.memory_space<vmem>>, %arg13: memref<16x1xf32, #tpu.memory_space<vmem>>, %arg14: memref<16x16xf32, #tpu.memory_space<vmem>>, %arg15: memref<16x1xf32, #tpu.memory_space<vmem>>, %arg16: memref<16x1xf32, #tpu.memory_space<vmem>>, %arg17: memref<16x16xf32, #tpu.memory_space<vmem>>, %arg18: memref<16x1xf32, #tpu.memory_space<vmem>>, %arg19: memref<16x16xf32, #tpu.memory_space<vmem>>, %arg20: memref<16x1xf32, #tpu.memory_space<vmem>>, %arg21: memref<16x1xf32, #tpu.memory_space<vmem>>, %arg22: memref<16x1xf32, #tpu.memory_space<vmem>>, %arg23: memref<16x1xf32, #tpu.memory_space<vmem>>, %arg24: memref<16x16xf32, #tpu.memory_space<vmem>>, %arg25: memref<16x16xf32, #tpu.memory_space<vmem>>, %arg26: memref<16x1xf32, #tpu.memory_space<vmem>>, %arg27: memref<1x16x576xf32, #tpu.memory_space<vmem>>, %arg28: memref<16x776xf32, #tpu.memory_space<vmem>>) attributes {dimension_semantics = [#tpu.dimension_semantics<parallel>], iteration_bounds = array<i64: 2>, scalar_prefetch = 0 : i64, scratch_operands = 1 : i64, tpu.core_type = #tpu.core_type<tc>, window_params = [{transform_indices = @transform_0, window_bounds = array<i64: 1, 16, 576>}, {pipeline_mode = #tpu.pipeline_mode<synchronous>, transform_indices = @transform_1, window_bounds = array<i64: 1, 576>}, {pipeline_mode = #tpu.pipeline_mode<synchronous>, transform_indices = @transform_2, window_bounds = array<i64: 16, 16>}, {pipeline_mode = #tpu.pipeline_mode<synchronous>, transform_indices = @transform_3, window_bounds = array<i64: 16, 1>}, {pipeline_mode = #tpu.pipeline_mode<synchronous>, transform_indices = @transform_4, window_bounds = array<i64: 16, 9>}, {pipeline_mode = #tpu.pipeline_mode<synchronous>, transform_indices = @transform_5, window_bounds = array<i64: 16, 1>}, {pipeline_mode = #tpu.pipeline_mode<synchronous>, transform_indices = @transform_6, window_bounds = array<i64: 16, 16>}, {pipeline_mode = #tpu.pipeline_mode<synchronous>, transform_indices = @transform_7, window_bounds = array<i64: 16, 1>}, {pipeline_mode = #tpu.pipeline_mode<synchronous>, transform_indices = @transform_8, window_bounds = array<i64: 16, 1>}, {pipeline_mode = #tpu.pipeline_mode<synchronous>, transform_indices = @transform_9, window_bounds = array<i64: 16, 9>}, {pipeline_mode = #tpu.pipeline_mode<synchronous>, transform_indices = @transform_10, window_bounds = array<i64: 16, 1>}, {pipeline_mode = #tpu.pipeline_mode<synchronous>, transform_indices = @transform_11, window_bounds = array<i64: 16, 25>}, {pipeline_mode = #tpu.pipeline_mode<synchronous>, transform_indices = @transform_12, window_bounds = array<i64: 16, 1>}, {pipeline_mode = #tpu.pipeline_mode<synchronous>, transform_indices = @transform_13, window_bounds = array<i64: 16, 16>}, {pipeline_mode = #tpu.pipeline_mode<synchronous>, transform_indices = @transform_14, window_bounds = array<i64: 16, 1>}, {pipeline_mode = #tpu.pipeline_mode<synchronous>, transform_indices = @transform_15, window_bounds = array<i64: 16, 1>}, {pipeline_mode = #tpu.pipeline_mode<synchronous>, transform_indices = @transform_16, window_bounds = array<i64: 16, 16>}, {pipeline_mode = #tpu.pipeline_mode<synchronous>, transform_indices = @transform_17, window_bounds = array<i64: 16, 1>}, {pipeline_mode = #tpu.pipeline_mode<synchronous>, transform_indices = @transform_18, window_bounds = array<i64: 16, 16>}, {pipeline_mode = #tpu.pipeline_mode<synchronous>, transform_indices = @transform_19, window_bounds = array<i64: 16, 1>}, {pipeline_mode = #tpu.pipeline_mode<synchronous>, transform_indices = @transform_20, window_bounds = array<i64: 16, 1>}, {pipeline_mode = #tpu.pipeline_mode<synchronous>, transform_indices = @transform_21, window_bounds = array<i64: 16, 1>}, {pipeline_mode = #tpu.pipeline_mode<synchronous>, transform_indices = @transform_22, window_bounds = array<i64: 16, 1>}, {pipeline_mode = #tpu.pipeline_mode<synchronous>, transform_indices = @transform_23, window_bounds = array<i64: 16, 16>}, {pipeline_mode = #tpu.pipeline_mode<synchronous>, transform_indices = @transform_24, window_bounds = array<i64: 16, 16>}, {pipeline_mode = #tpu.pipeline_mode<synchronous>, transform_indices = @transform_25, window_bounds = array<i64: 16, 1>}, {transform_indices = @transform_26, window_bounds = array<i64: 1, 16, 576>}]} {
    %c0 = arith.constant 0 : index
    %c0_0 = arith.constant 0 : index
    %c0_1 = arith.constant 0 : index
    %0 = vector.load %arg1[%c0, %c0_0, %c0_1] : memref<1x16x576xf32, #tpu.memory_space<vmem>>, vector<1x16x576xf32>
    %1 = vector.shape_cast %0 : vector<1x16x576xf32> to vector<16x576xf32>
    %c0_2 = arith.constant 0 : index
    %c0_3 = arith.constant 0 : index
    %2 = vector.load %arg2[%c0_2, %c0_3] : memref<1x576xf32, #tpu.memory_space<vmem>>, vector<1x576xf32>
    %cst = arith.constant 5.000000e-01 : f32
    %3 = vector.broadcast %cst : f32 to vector<1x576xf32>
    %4 = arith.cmpf ogt, %2, %3 : vector<1x576xf32>
    %cst_4 = arith.constant 0.000000e+00 : f32
    %5 = vector.broadcast %cst_4 : f32 to vector<16x100xf32>
    %c0_5 = arith.constant 0 : index
    %c0_6 = arith.constant 0 : index
    %6 = vector.load %arg28[%c0_5, %c0_6] : memref<16x776xf32, #tpu.memory_space<vmem>>, vector<16x100xf32>
    tpu.vector_store %arg28[%c0_5, %c0_6], %5 {strides = array<i32>} : memref<16x776xf32, #tpu.memory_space<vmem>>, vector<16x100xf32>,
    %c0_7 = arith.constant 0 : index
    %c676 = arith.constant 676 : index
    %7 = vector.load %arg28[%c0_7, %c676] : memref<16x776xf32, #tpu.memory_space<vmem>>, vector<16x100xf32>
    tpu.vector_store %arg28[%c0_7, %c676], %5 {strides = array<i32>} : memref<16x776xf32, #tpu.memory_space<vmem>>, vector<16x100xf32>,
    %c0_8 = arith.constant 0 : index
    %c0_9 = arith.constant 0 : index
    %8 = vector.load %arg3[%c0_8, %c0_9] : memref<16x16xf32, #tpu.memory_space<vmem>>, vector<16x16xf32>
    %cst_10 = arith.constant dense<0.000000e+00> : vector<16x576xf32>
    %9 = tpu.matmul %8, %1, %cst_10 {dimension_numbers = #tpu.dot_dimension_numbers<[1], [0], [0], [1], [0, 0, 1, 1], [], []>} : vector<16x16xf32>, vector<16x576xf32>, vector<16x576xf32> -> vector<16x576xf32>
    %c0_11 = arith.constant 0 : index
    %c0_12 = arith.constant 0 : index
    %10 = vector.load %arg4[%c0_11, %c0_12] : memref<16x1xf32, #tpu.memory_space<vmem>>, vector<16x1xf32>
    %11 = vector.broadcast %10 : vector<16x1xf32> to vector<16x576xf32>
    %12 = arith.addf %9, %11 : vector<16x576xf32>
    %c0_13 = arith.constant 0 : index
    %c100 = arith.constant 100 : index
    %13 = vector.load %arg28[%c0_13, %c100] : memref<16x776xf32, #tpu.memory_space<vmem>>, vector<16x576xf32>
    tpu.vector_store %arg28[%c0_13, %c100], %1 {strides = array<i32>} : memref<16x776xf32, #tpu.memory_space<vmem>>, vector<16x576xf32>,
    %c0_14 = arith.constant 0 : index
    %c75 = arith.constant 75 : index
    %14 = vector.load %arg28[%c0_14, %c75] : memref<16x776xf32, #tpu.memory_space<vmem>>, vector<16x576xf32>
    %c0_15 = arith.constant 0 : index
    %c0_16 = arith.constant 0 : index
    %15 = vector.load %arg5[%c0_15, %c0_16] : memref<16x9xf32, #tpu.memory_space<vmem>>, vector<16x1xf32>
    %16 = vector.broadcast %15 : vector<16x1xf32> to vector<16x576xf32>
    %17 = arith.mulf %14, %16 : vector<16x576xf32>
    %c0_17 = arith.constant 0 : index
    %c76 = arith.constant 76 : index
    %18 = vector.load %arg28[%c0_17, %c76] : memref<16x776xf32, #tpu.memory_space<vmem>>, vector<16x576xf32>
    %c0_18 = arith.constant 0 : index
    %c1 = arith.constant 1 : index
    %19 = vector.load %arg5[%c0_18, %c1] : memref<16x9xf32, #tpu.memory_space<vmem>>, vector<16x1xf32>
    %20 = vector.broadcast %19 : vector<16x1xf32> to vector<16x576xf32>
    %21 = arith.mulf %18, %20 : vector<16x576xf32>
    %22 = arith.addf %17, %21 : vector<16x576xf32>
    %c0_19 = arith.constant 0 : index
    %c77 = arith.constant 77 : index
    %23 = vector.load %arg28[%c0_19, %c77] : memref<16x776xf32, #tpu.memory_space<vmem>>, vector<16x576xf32>
    %c0_20 = arith.constant 0 : index
    %c2 = arith.constant 2 : index
    %24 = vector.load %arg5[%c0_20, %c2] : memref<16x9xf32, #tpu.memory_space<vmem>>, vector<16x1xf32>
    %25 = vector.broadcast %24 : vector<16x1xf32> to vector<16x576xf32>
    %26 = arith.mulf %23, %25 : vector<16x576xf32>
    %27 = arith.addf %22, %26 : vector<16x576xf32>
    %c0_21 = arith.constant 0 : index
    %c99 = arith.constant 99 : index
    %28 = vector.load %arg28[%c0_21, %c99] : memref<16x776xf32, #tpu.memory_space<vmem>>, vector<16x576xf32>
    %c0_22 = arith.constant 0 : index
    %c3 = arith.constant 3 : index
    %29 = vector.load %arg5[%c0_22, %c3] : memref<16x9xf32, #tpu.memory_space<vmem>>, vector<16x1xf32>
    %30 = vector.broadcast %29 : vector<16x1xf32> to vector<16x576xf32>
    %31 = arith.mulf %28, %30 : vector<16x576xf32>
    %32 = arith.addf %27, %31 : vector<16x576xf32>
    %c0_23 = arith.constant 0 : index
    %c100_24 = arith.constant 100 : index
    %33 = vector.load %arg28[%c0_23, %c100_24] : memref<16x776xf32, #tpu.memory_space<vmem>>, vector<16x576xf32>
    %c0_25 = arith.constant 0 : index
    %c4 = arith.constant 4 : index
    %34 = vector.load %arg5[%c0_25, %c4] : memref<16x9xf32, #tpu.memory_space<vmem>>, vector<16x1xf32>
    %35 = vector.broadcast %34 : vector<16x1xf32> to vector<16x576xf32>
    %36 = arith.mulf %33, %35 : vector<16x576xf32>
    %37 = arith.addf %32, %36 : vector<16x576xf32>
    %c0_26 = arith.constant 0 : index
    %c101 = arith.constant 101 : index
    %38 = vector.load %arg28[%c0_26, %c101] : memref<16x776xf32, #tpu.memory_space<vmem>>, vector<16x576xf32>
    %c0_27 = arith.constant 0 : index
    %c5 = arith.constant 5 : index
    %39 = vector.load %arg5[%c0_27, %c5] : memref<16x9xf32, #tpu.memory_space<vmem>>, vector<16x1xf32>
    %40 = vector.broadcast %39 : vector<16x1xf32> to vector<16x576xf32>
    %41 = arith.mulf %38, %40 : vector<16x576xf32>
    %42 = arith.addf %37, %41 : vector<16x576xf32>
    %c0_28 = arith.constant 0 : index
    %c123 = arith.constant 123 : index
    %43 = vector.load %arg28[%c0_28, %c123] : memref<16x776xf32, #tpu.memory_space<vmem>>, vector<16x576xf32>
    %c0_29 = arith.constant 0 : index
    %c6 = arith.constant 6 : index
    %44 = vector.load %arg5[%c0_29, %c6] : memref<16x9xf32, #tpu.memory_space<vmem>>, vector<16x1xf32>
    %45 = vector.broadcast %44 : vector<16x1xf32> to vector<16x576xf32>
    %46 = arith.mulf %43, %45 : vector<16x576xf32>
    %47 = arith.addf %42, %46 : vector<16x576xf32>
    %c0_30 = arith.constant 0 : index
    %c124 = arith.constant 124 : index
    %48 = vector.load %arg28[%c0_30, %c124] : memref<16x776xf32, #tpu.memory_space<vmem>>, vector<16x576xf32>
    %c0_31 = arith.constant 0 : index
    %c7 = arith.constant 7 : index
    %49 = vector.load %arg5[%c0_31, %c7] : memref<16x9xf32, #tpu.memory_space<vmem>>, vector<16x1xf32>
    %50 = vector.broadcast %49 : vector<16x1xf32> to vector<16x576xf32>
    %51 = arith.mulf %48, %50 : vector<16x576xf32>
    %52 = arith.addf %47, %51 : vector<16x576xf32>
    %c0_32 = arith.constant 0 : index
    %c125 = arith.constant 125 : index
    %53 = vector.load %arg28[%c0_32, %c125] : memref<16x776xf32, #tpu.memory_space<vmem>>, vector<16x576xf32>
    %c0_33 = arith.constant 0 : index
    %c8 = arith.constant 8 : index
    %54 = vector.load %arg5[%c0_33, %c8] : memref<16x9xf32, #tpu.memory_space<vmem>>, vector<16x1xf32>
    %55 = vector.broadcast %54 : vector<16x1xf32> to vector<16x576xf32>
    %56 = arith.mulf %53, %55 : vector<16x576xf32>
    %57 = arith.addf %52, %56 : vector<16x576xf32>
    %c0_34 = arith.constant 0 : index
    %c0_35 = arith.constant 0 : index
    %58 = vector.load %arg6[%c0_34, %c0_35] : memref<16x1xf32, #tpu.memory_space<vmem>>, vector<16x1xf32>
    %59 = vector.broadcast %58 : vector<16x1xf32> to vector<16x576xf32>
    %60 = arith.addf %57, %59 : vector<16x576xf32>
    %cst_36 = arith.constant 0.000000e+00 : f32
    %61 = vector.shape_cast %4 : vector<1x576xi1> to vector<1x576xi1>
    %62 = vector.broadcast %61 : vector<1x576xi1> to vector<16x576xi1>
    %63 = vector.broadcast %cst_36 : f32 to vector<16x576xf32>
    %64 = arith.select %62, %60, %63 : vector<16x576xi1>, vector<16x576xf32>
    %cst_37 = arith.constant dense<0.000000e+00> : vector<16xf32>
    %65 = vector.multi_reduction <add>, %64, %cst_37 [1] : vector<16x576xf32> to vector<16xf32>
    %66 = vector.shape_cast %65 : vector<16xf32> to vector<16x1xf32>
    %67 = arith.mulf %64, %60 : vector<16x576xf32>
    %cst_38 = arith.constant dense<0.000000e+00> : vector<16xf32>
    %68 = vector.multi_reduction <add>, %67, %cst_38 [1] : vector<16x576xf32> to vector<16xf32>
    %69 = vector.shape_cast %68 : vector<16xf32> to vector<16x1xf32>
    %c0_39 = arith.constant 0 : index
    %c0_40 = arith.constant 0 : index
    %70 = vector.load %arg7[%c0_39, %c0_40] : memref<16x16xf32, #tpu.memory_space<vmem>>, vector<16x16xf32>
    %71 = tpu.concatenate %66, %69 in 1 : vector<16x1xf32>, vector<16x1xf32> -> vector<16x2xf32>
    %cst_41 = arith.constant dense<0.000000e+00> : vector<16x2xf32>
    %72 = tpu.matmul %70, %71, %cst_41 {dimension_numbers = #tpu.dot_dimension_numbers<[1], [0], [0], [1], [0, 0, 1, 1], [], []>} : vector<16x16xf32>, vector<16x2xf32>, vector<16x2xf32> -> vector<16x2xf32>
    %73 = vector.extract_strided_slice %72 {offsets = [0, 0], sizes = [16, 1], strides = [1, 1]} : vector<16x2xf32> to vector<16x1xf32>
    %74 = vector.extract_strided_slice %72 {offsets = [0, 1], sizes = [16, 1], strides = [1, 1]} : vector<16x2xf32> to vector<16x1xf32>
    %75 = arith.mulf %73, %73 : vector<16x1xf32>
    %76 = arith.subf %74, %75 : vector<16x1xf32>
    %cst_42 = arith.constant 0.000000e+00 : f32
    %77 = vector.broadcast %cst_42 : f32 to vector<16x1xf32>
    %78 = arith.maximumf %76, %77 : vector<16x1xf32>
    %79 = vector.broadcast %73 : vector<16x1xf32> to vector<16x576xf32>
    %80 = arith.subf %60, %79 : vector<16x576xf32>
    %cst_43 = arith.constant 9.99999974E-6 : f32
    %81 = vector.broadcast %cst_43 : f32 to vector<16x1xf32>
    %82 = arith.addf %78, %81 : vector<16x1xf32>
    %83 = math.rsqrt %82 : vector<16x1xf32>
    %c0_44 = arith.constant 0 : index
    %c0_45 = arith.constant 0 : index
    %84 = vector.load %arg8[%c0_44, %c0_45] : memref<16x1xf32, #tpu.memory_space<vmem>>, vector<16x1xf32>
    %85 = arith.mulf %83, %84 : vector<16x1xf32>
    %86 = vector.broadcast %85 : vector<16x1xf32> to vector<16x576xf32>
    %87 = arith.mulf %80, %86 : vector<16x576xf32>
    %c0_46 = arith.constant 0 : index
    %c0_47 = arith.constant 0 : index
    %88 = vector.load %arg9[%c0_46, %c0_47] : memref<16x1xf32, #tpu.memory_space<vmem>>, vector<16x1xf32>
    %89 = vector.broadcast %88 : vector<16x1xf32> to vector<16x576xf32>
    %90 = arith.addf %87, %89 : vector<16x576xf32>
    %cst_48 = arith.constant 0.000000e+00 : f32
    %91 = vector.broadcast %cst_48 : f32 to vector<16x576xf32>
    %92 = arith.subf %91, %90 : vector<16x576xf32>
    %93 = math.exp %92 : vector<16x576xf32>
    %cst_49 = arith.constant 1.000000e+00 : f32
    %94 = vector.broadcast %cst_49 : f32 to vector<16x576xf32>
    %95 = arith.addf %94, %93 : vector<16x576xf32>
    %96 = tpu.reciprocal %95 : vector<16x576xf32> -> vector<16x576xf32>
    %97 = arith.mulf %90, %96 : vector<16x576xf32>
    %cst_50 = arith.constant 0.000000e+00 : f32
    %98 = vector.shape_cast %4 : vector<1x576xi1> to vector<1x576xi1>
    %99 = vector.broadcast %98 : vector<1x576xi1> to vector<16x576xi1>
    %100 = vector.broadcast %cst_50 : f32 to vector<16x576xf32>
    %101 = arith.select %99, %97, %100 : vector<16x576xi1>, vector<16x576xf32>
    %c0_51 = arith.constant 0 : index
    %c100_52 = arith.constant 100 : index
    %102 = vector.load %arg28[%c0_51, %c100_52] : memref<16x776xf32, #tpu.memory_space<vmem>>, vector<16x576xf32>
    tpu.vector_store %arg28[%c0_51, %c100_52], %101 {strides = array<i32>} : memref<16x776xf32, #tpu.memory_space<vmem>>, vector<16x576xf32>,
    %c0_53 = arith.constant 0 : index
    %c75_54 = arith.constant 75 : index
    %103 = vector.load %arg28[%c0_53, %c75_54] : memref<16x776xf32, #tpu.memory_space<vmem>>, vector<16x576xf32>
    %c0_55 = arith.constant 0 : index
    %c0_56 = arith.constant 0 : index
    %104 = vector.load %arg10[%c0_55, %c0_56] : memref<16x9xf32, #tpu.memory_space<vmem>>, vector<16x1xf32>
    %105 = vector.broadcast %104 : vector<16x1xf32> to vector<16x576xf32>
    %106 = arith.mulf %103, %105 : vector<16x576xf32>
    %c0_57 = arith.constant 0 : index
    %c76_58 = arith.constant 76 : index
    %107 = vector.load %arg28[%c0_57, %c76_58] : memref<16x776xf32, #tpu.memory_space<vmem>>, vector<16x576xf32>
    %c0_59 = arith.constant 0 : index
    %c1_60 = arith.constant 1 : index
    %108 = vector.load %arg10[%c0_59, %c1_60] : memref<16x9xf32, #tpu.memory_space<vmem>>, vector<16x1xf32>
    %109 = vector.broadcast %108 : vector<16x1xf32> to vector<16x576xf32>
    %110 = arith.mulf %107, %109 : vector<16x576xf32>
    %111 = arith.addf %106, %110 : vector<16x576xf32>
    %c0_61 = arith.constant 0 : index
    %c77_62 = arith.constant 77 : index
    %112 = vector.load %arg28[%c0_61, %c77_62] : memref<16x776xf32, #tpu.memory_space<vmem>>, vector<16x576xf32>
    %c0_63 = arith.constant 0 : index
    %c2_64 = arith.constant 2 : index
    %113 = vector.load %arg10[%c0_63, %c2_64] : memref<16x9xf32, #tpu.memory_space<vmem>>, vector<16x1xf32>
    %114 = vector.broadcast %113 : vector<16x1xf32> to vector<16x576xf32>
    %115 = arith.mulf %112, %114 : vector<16x576xf32>
    %116 = arith.addf %111, %115 : vector<16x576xf32>
    %c0_65 = arith.constant 0 : index
    %c99_66 = arith.constant 99 : index
    %117 = vector.load %arg28[%c0_65, %c99_66] : memref<16x776xf32, #tpu.memory_space<vmem>>, vector<16x576xf32>
    %c0_67 = arith.constant 0 : index
    %c3_68 = arith.constant 3 : index
    %118 = vector.load %arg10[%c0_67, %c3_68] : memref<16x9xf32, #tpu.memory_space<vmem>>, vector<16x1xf32>
    %119 = vector.broadcast %118 : vector<16x1xf32> to vector<16x576xf32>
    %120 = arith.mulf %117, %119 : vector<16x576xf32>
    %121 = arith.addf %116, %120 : vector<16x576xf32>
    %c0_69 = arith.constant 0 : index
    %c100_70 = arith.constant 100 : index
    %122 = vector.load %arg28[%c0_69, %c100_70] : memref<16x776xf32, #tpu.memory_space<vmem>>, vector<16x576xf32>
    %c0_71 = arith.constant 0 : index
    %c4_72 = arith.constant 4 : index
    %123 = vector.load %arg10[%c0_71, %c4_72] : memref<16x9xf32, #tpu.memory_space<vmem>>, vector<16x1xf32>
    %124 = vector.broadcast %123 : vector<16x1xf32> to vector<16x576xf32>
    %125 = arith.mulf %122, %124 : vector<16x576xf32>
    %126 = arith.addf %121, %125 : vector<16x576xf32>
    %c0_73 = arith.constant 0 : index
    %c101_74 = arith.constant 101 : index
    %127 = vector.load %arg28[%c0_73, %c101_74] : memref<16x776xf32, #tpu.memory_space<vmem>>, vector<16x576xf32>
    %c0_75 = arith.constant 0 : index
    %c5_76 = arith.constant 5 : index
    %128 = vector.load %arg10[%c0_75, %c5_76] : memref<16x9xf32, #tpu.memory_space<vmem>>, vector<16x1xf32>
    %129 = vector.broadcast %128 : vector<16x1xf32> to vector<16x576xf32>
    %130 = arith.mulf %127, %129 : vector<16x576xf32>
    %131 = arith.addf %126, %130 : vector<16x576xf32>
    %c0_77 = arith.constant 0 : index
    %c123_78 = arith.constant 123 : index
    %132 = vector.load %arg28[%c0_77, %c123_78] : memref<16x776xf32, #tpu.memory_space<vmem>>, vector<16x576xf32>
    %c0_79 = arith.constant 0 : index
    %c6_80 = arith.constant 6 : index
    %133 = vector.load %arg10[%c0_79, %c6_80] : memref<16x9xf32, #tpu.memory_space<vmem>>, vector<16x1xf32>
    %134 = vector.broadcast %133 : vector<16x1xf32> to vector<16x576xf32>
    %135 = arith.mulf %132, %134 : vector<16x576xf32>
    %136 = arith.addf %131, %135 : vector<16x576xf32>
    %c0_81 = arith.constant 0 : index
    %c124_82 = arith.constant 124 : index
    %137 = vector.load %arg28[%c0_81, %c124_82] : memref<16x776xf32, #tpu.memory_space<vmem>>, vector<16x576xf32>
    %c0_83 = arith.constant 0 : index
    %c7_84 = arith.constant 7 : index
    %138 = vector.load %arg10[%c0_83, %c7_84] : memref<16x9xf32, #tpu.memory_space<vmem>>, vector<16x1xf32>
    %139 = vector.broadcast %138 : vector<16x1xf32> to vector<16x576xf32>
    %140 = arith.mulf %137, %139 : vector<16x576xf32>
    %141 = arith.addf %136, %140 : vector<16x576xf32>
    %c0_85 = arith.constant 0 : index
    %c125_86 = arith.constant 125 : index
    %142 = vector.load %arg28[%c0_85, %c125_86] : memref<16x776xf32, #tpu.memory_space<vmem>>, vector<16x576xf32>
    %c0_87 = arith.constant 0 : index
    %c8_88 = arith.constant 8 : index
    %143 = vector.load %arg10[%c0_87, %c8_88] : memref<16x9xf32, #tpu.memory_space<vmem>>, vector<16x1xf32>
    %144 = vector.broadcast %143 : vector<16x1xf32> to vector<16x576xf32>
    %145 = arith.mulf %142, %144 : vector<16x576xf32>
    %146 = arith.addf %141, %145 : vector<16x576xf32>
    %c0_89 = arith.constant 0 : index
    %c0_90 = arith.constant 0 : index
    %147 = vector.load %arg11[%c0_89, %c0_90] : memref<16x1xf32, #tpu.memory_space<vmem>>, vector<16x1xf32>
    %148 = vector.broadcast %147 : vector<16x1xf32> to vector<16x576xf32>
    %149 = arith.addf %146, %148 : vector<16x576xf32>
    %c0_91 = arith.constant 0 : index
    %c0_92 = arith.constant 0 : index
    %150 = vector.load %arg28[%c0_91, %c0_92] : memref<16x776xf32, #tpu.memory_space<vmem>>, vector<16x576xf32>
    %c0_93 = arith.constant 0 : index
    %c0_94 = arith.constant 0 : index
    %151 = vector.load %arg12[%c0_93, %c0_94] : memref<16x25xf32, #tpu.memory_space<vmem>>, vector<16x1xf32>
    %152 = vector.broadcast %151 : vector<16x1xf32> to vector<16x576xf32>
    %153 = arith.mulf %150, %152 : vector<16x576xf32>
    %c0_95 = arith.constant 0 : index
    %c2_96 = arith.constant 2 : index
    %154 = vector.load %arg28[%c0_95, %c2_96] : memref<16x776xf32, #tpu.memory_space<vmem>>, vector<16x576xf32>
    %c0_97 = arith.constant 0 : index
    %c1_98 = arith.constant 1 : index
    %155 = vector.load %arg12[%c0_97, %c1_98] : memref<16x25xf32, #tpu.memory_space<vmem>>, vector<16x1xf32>
    %156 = vector.broadcast %155 : vector<16x1xf32> to vector<16x576xf32>
    %157 = arith.mulf %154, %156 : vector<16x576xf32>
    %158 = arith.addf %153, %157 : vector<16x576xf32>
    %c0_99 = arith.constant 0 : index
    %c4_100 = arith.constant 4 : index
    %159 = vector.load %arg28[%c0_99, %c4_100] : memref<16x776xf32, #tpu.memory_space<vmem>>, vector<16x576xf32>
    %c0_101 = arith.constant 0 : index
    %c2_102 = arith.constant 2 : index
    %160 = vector.load %arg12[%c0_101, %c2_102] : memref<16x25xf32, #tpu.memory_space<vmem>>, vector<16x1xf32>
    %161 = vector.broadcast %160 : vector<16x1xf32> to vector<16x576xf32>
    %162 = arith.mulf %159, %161 : vector<16x576xf32>
    %163 = arith.addf %158, %162 : vector<16x576xf32>
    %c0_103 = arith.constant 0 : index
    %c6_104 = arith.constant 6 : index
    %164 = vector.load %arg28[%c0_103, %c6_104] : memref<16x776xf32, #tpu.memory_space<vmem>>, vector<16x576xf32>
    %c0_105 = arith.constant 0 : index
    %c3_106 = arith.constant 3 : index
    %165 = vector.load %arg12[%c0_105, %c3_106] : memref<16x25xf32, #tpu.memory_space<vmem>>, vector<16x1xf32>
    %166 = vector.broadcast %165 : vector<16x1xf32> to vector<16x576xf32>
    %167 = arith.mulf %164, %166 : vector<16x576xf32>
    %168 = arith.addf %163, %167 : vector<16x576xf32>
    %c0_107 = arith.constant 0 : index
    %c8_108 = arith.constant 8 : index
    %169 = vector.load %arg28[%c0_107, %c8_108] : memref<16x776xf32, #tpu.memory_space<vmem>>, vector<16x576xf32>
    %c0_109 = arith.constant 0 : index
    %c4_110 = arith.constant 4 : index
    %170 = vector.load %arg12[%c0_109, %c4_110] : memref<16x25xf32, #tpu.memory_space<vmem>>, vector<16x1xf32>
    %171 = vector.broadcast %170 : vector<16x1xf32> to vector<16x576xf32>
    %172 = arith.mulf %169, %171 : vector<16x576xf32>
    %173 = arith.addf %168, %172 : vector<16x576xf32>
    %c0_111 = arith.constant 0 : index
    %c48 = arith.constant 48 : index
    %174 = vector.load %arg28[%c0_111, %c48] : memref<16x776xf32, #tpu.memory_space<vmem>>, vector<16x576xf32>
    %c0_112 = arith.constant 0 : index
    %c5_113 = arith.constant 5 : index
    %175 = vector.load %arg12[%c0_112, %c5_113] : memref<16x25xf32, #tpu.memory_space<vmem>>, vector<16x1xf32>
    %176 = vector.broadcast %175 : vector<16x1xf32> to vector<16x576xf32>
    %177 = arith.mulf %174, %176 : vector<16x576xf32>
    %178 = arith.addf %173, %177 : vector<16x576xf32>
    %c0_114 = arith.constant 0 : index
    %c50 = arith.constant 50 : index
    %179 = vector.load %arg28[%c0_114, %c50] : memref<16x776xf32, #tpu.memory_space<vmem>>, vector<16x576xf32>
    %c0_115 = arith.constant 0 : index
    %c6_116 = arith.constant 6 : index
    %180 = vector.load %arg12[%c0_115, %c6_116] : memref<16x25xf32, #tpu.memory_space<vmem>>, vector<16x1xf32>
    %181 = vector.broadcast %180 : vector<16x1xf32> to vector<16x576xf32>
    %182 = arith.mulf %179, %181 : vector<16x576xf32>
    %183 = arith.addf %178, %182 : vector<16x576xf32>
    %c0_117 = arith.constant 0 : index
    %c52 = arith.constant 52 : index
    %184 = vector.load %arg28[%c0_117, %c52] : memref<16x776xf32, #tpu.memory_space<vmem>>, vector<16x576xf32>
    %c0_118 = arith.constant 0 : index
    %c7_119 = arith.constant 7 : index
    %185 = vector.load %arg12[%c0_118, %c7_119] : memref<16x25xf32, #tpu.memory_space<vmem>>, vector<16x1xf32>
    %186 = vector.broadcast %185 : vector<16x1xf32> to vector<16x576xf32>
    %187 = arith.mulf %184, %186 : vector<16x576xf32>
    %188 = arith.addf %183, %187 : vector<16x576xf32>
    %c0_120 = arith.constant 0 : index
    %c54 = arith.constant 54 : index
    %189 = vector.load %arg28[%c0_120, %c54] : memref<16x776xf32, #tpu.memory_space<vmem>>, vector<16x576xf32>
    %c0_121 = arith.constant 0 : index
    %c8_122 = arith.constant 8 : index
    %190 = vector.load %arg12[%c0_121, %c8_122] : memref<16x25xf32, #tpu.memory_space<vmem>>, vector<16x1xf32>
    %191 = vector.broadcast %190 : vector<16x1xf32> to vector<16x576xf32>
    %192 = arith.mulf %189, %191 : vector<16x576xf32>
    %193 = arith.addf %188, %192 : vector<16x576xf32>
    %c0_123 = arith.constant 0 : index
    %c56 = arith.constant 56 : index
    %194 = vector.load %arg28[%c0_123, %c56] : memref<16x776xf32, #tpu.memory_space<vmem>>, vector<16x576xf32>
    %c0_124 = arith.constant 0 : index
    %c9 = arith.constant 9 : index
    %195 = vector.load %arg12[%c0_124, %c9] : memref<16x25xf32, #tpu.memory_space<vmem>>, vector<16x1xf32>
    %196 = vector.broadcast %195 : vector<16x1xf32> to vector<16x576xf32>
    %197 = arith.mulf %194, %196 : vector<16x576xf32>
    %198 = arith.addf %193, %197 : vector<16x576xf32>
    %c0_125 = arith.constant 0 : index
    %c96 = arith.constant 96 : index
    %199 = vector.load %arg28[%c0_125, %c96] : memref<16x776xf32, #tpu.memory_space<vmem>>, vector<16x576xf32>
    %c0_126 = arith.constant 0 : index
    %c10 = arith.constant 10 : index
    %200 = vector.load %arg12[%c0_126, %c10] : memref<16x25xf32, #tpu.memory_space<vmem>>, vector<16x1xf32>
    %201 = vector.broadcast %200 : vector<16x1xf32> to vector<16x576xf32>
    %202 = arith.mulf %199, %201 : vector<16x576xf32>
    %203 = arith.addf %198, %202 : vector<16x576xf32>
    %c0_127 = arith.constant 0 : index
    %c98 = arith.constant 98 : index
    %204 = vector.load %arg28[%c0_127, %c98] : memref<16x776xf32, #tpu.memory_space<vmem>>, vector<16x576xf32>
    %c0_128 = arith.constant 0 : index
    %c11 = arith.constant 11 : index
    %205 = vector.load %arg12[%c0_128, %c11] : memref<16x25xf32, #tpu.memory_space<vmem>>, vector<16x1xf32>
    %206 = vector.broadcast %205 : vector<16x1xf32> to vector<16x576xf32>
    %207 = arith.mulf %204, %206 : vector<16x576xf32>
    %208 = arith.addf %203, %207 : vector<16x576xf32>
    %c0_129 = arith.constant 0 : index
    %c100_130 = arith.constant 100 : index
    %209 = vector.load %arg28[%c0_129, %c100_130] : memref<16x776xf32, #tpu.memory_space<vmem>>, vector<16x576xf32>
    %c0_131 = arith.constant 0 : index
    %c12 = arith.constant 12 : index
    %210 = vector.load %arg12[%c0_131, %c12] : memref<16x25xf32, #tpu.memory_space<vmem>>, vector<16x1xf32>
    %211 = vector.broadcast %210 : vector<16x1xf32> to vector<16x576xf32>
    %212 = arith.mulf %209, %211 : vector<16x576xf32>
    %213 = arith.addf %208, %212 : vector<16x576xf32>
    %c0_132 = arith.constant 0 : index
    %c102 = arith.constant 102 : index
    %214 = vector.load %arg28[%c0_132, %c102] : memref<16x776xf32, #tpu.memory_space<vmem>>, vector<16x576xf32>
    %c0_133 = arith.constant 0 : index
    %c13 = arith.constant 13 : index
    %215 = vector.load %arg12[%c0_133, %c13] : memref<16x25xf32, #tpu.memory_space<vmem>>, vector<16x1xf32>
    %216 = vector.broadcast %215 : vector<16x1xf32> to vector<16x576xf32>
    %217 = arith.mulf %214, %216 : vector<16x576xf32>
    %218 = arith.addf %213, %217 : vector<16x576xf32>
    %c0_134 = arith.constant 0 : index
    %c104 = arith.constant 104 : index
    %219 = vector.load %arg28[%c0_134, %c104] : memref<16x776xf32, #tpu.memory_space<vmem>>, vector<16x576xf32>
    %c0_135 = arith.constant 0 : index
    %c14 = arith.constant 14 : index
    %220 = vector.load %arg12[%c0_135, %c14] : memref<16x25xf32, #tpu.memory_space<vmem>>, vector<16x1xf32>
    %221 = vector.broadcast %220 : vector<16x1xf32> to vector<16x576xf32>
    %222 = arith.mulf %219, %221 : vector<16x576xf32>
    %223 = arith.addf %218, %222 : vector<16x576xf32>
    %c0_136 = arith.constant 0 : index
    %c144 = arith.constant 144 : index
    %224 = vector.load %arg28[%c0_136, %c144] : memref<16x776xf32, #tpu.memory_space<vmem>>, vector<16x576xf32>
    %c0_137 = arith.constant 0 : index
    %c15 = arith.constant 15 : index
    %225 = vector.load %arg12[%c0_137, %c15] : memref<16x25xf32, #tpu.memory_space<vmem>>, vector<16x1xf32>
    %226 = vector.broadcast %225 : vector<16x1xf32> to vector<16x576xf32>
    %227 = arith.mulf %224, %226 : vector<16x576xf32>
    %228 = arith.addf %223, %227 : vector<16x576xf32>
    %c0_138 = arith.constant 0 : index
    %c146 = arith.constant 146 : index
    %229 = vector.load %arg28[%c0_138, %c146] : memref<16x776xf32, #tpu.memory_space<vmem>>, vector<16x576xf32>
    %c0_139 = arith.constant 0 : index
    %c16 = arith.constant 16 : index
    %230 = vector.load %arg12[%c0_139, %c16] : memref<16x25xf32, #tpu.memory_space<vmem>>, vector<16x1xf32>
    %231 = vector.broadcast %230 : vector<16x1xf32> to vector<16x576xf32>
    %232 = arith.mulf %229, %231 : vector<16x576xf32>
    %233 = arith.addf %228, %232 : vector<16x576xf32>
    %c0_140 = arith.constant 0 : index
    %c148 = arith.constant 148 : index
    %234 = vector.load %arg28[%c0_140, %c148] : memref<16x776xf32, #tpu.memory_space<vmem>>, vector<16x576xf32>
    %c0_141 = arith.constant 0 : index
    %c17 = arith.constant 17 : index
    %235 = vector.load %arg12[%c0_141, %c17] : memref<16x25xf32, #tpu.memory_space<vmem>>, vector<16x1xf32>
    %236 = vector.broadcast %235 : vector<16x1xf32> to vector<16x576xf32>
    %237 = arith.mulf %234, %236 : vector<16x576xf32>
    %238 = arith.addf %233, %237 : vector<16x576xf32>
    %c0_142 = arith.constant 0 : index
    %c150 = arith.constant 150 : index
    %239 = vector.load %arg28[%c0_142, %c150] : memref<16x776xf32, #tpu.memory_space<vmem>>, vector<16x576xf32>
    %c0_143 = arith.constant 0 : index
    %c18 = arith.constant 18 : index
    %240 = vector.load %arg12[%c0_143, %c18] : memref<16x25xf32, #tpu.memory_space<vmem>>, vector<16x1xf32>
    %241 = vector.broadcast %240 : vector<16x1xf32> to vector<16x576xf32>
    %242 = arith.mulf %239, %241 : vector<16x576xf32>
    %243 = arith.addf %238, %242 : vector<16x576xf32>
    %c0_144 = arith.constant 0 : index
    %c152 = arith.constant 152 : index
    %244 = vector.load %arg28[%c0_144, %c152] : memref<16x776xf32, #tpu.memory_space<vmem>>, vector<16x576xf32>
    %c0_145 = arith.constant 0 : index
    %c19 = arith.constant 19 : index
    %245 = vector.load %arg12[%c0_145, %c19] : memref<16x25xf32, #tpu.memory_space<vmem>>, vector<16x1xf32>
    %246 = vector.broadcast %245 : vector<16x1xf32> to vector<16x576xf32>
    %247 = arith.mulf %244, %246 : vector<16x576xf32>
    %248 = arith.addf %243, %247 : vector<16x576xf32>
    %c0_146 = arith.constant 0 : index
    %c192 = arith.constant 192 : index
    %249 = vector.load %arg28[%c0_146, %c192] : memref<16x776xf32, #tpu.memory_space<vmem>>, vector<16x576xf32>
    %c0_147 = arith.constant 0 : index
    %c20 = arith.constant 20 : index
    %250 = vector.load %arg12[%c0_147, %c20] : memref<16x25xf32, #tpu.memory_space<vmem>>, vector<16x1xf32>
    %251 = vector.broadcast %250 : vector<16x1xf32> to vector<16x576xf32>
    %252 = arith.mulf %249, %251 : vector<16x576xf32>
    %253 = arith.addf %248, %252 : vector<16x576xf32>
    %c0_148 = arith.constant 0 : index
    %c194 = arith.constant 194 : index
    %254 = vector.load %arg28[%c0_148, %c194] : memref<16x776xf32, #tpu.memory_space<vmem>>, vector<16x576xf32>
    %c0_149 = arith.constant 0 : index
    %c21 = arith.constant 21 : index
    %255 = vector.load %arg12[%c0_149, %c21] : memref<16x25xf32, #tpu.memory_space<vmem>>, vector<16x1xf32>
    %256 = vector.broadcast %255 : vector<16x1xf32> to vector<16x576xf32>
    %257 = arith.mulf %254, %256 : vector<16x576xf32>
    %258 = arith.addf %253, %257 : vector<16x576xf32>
    %c0_150 = arith.constant 0 : index
    %c196 = arith.constant 196 : index
    %259 = vector.load %arg28[%c0_150, %c196] : memref<16x776xf32, #tpu.memory_space<vmem>>, vector<16x576xf32>
    %c0_151 = arith.constant 0 : index
    %c22 = arith.constant 22 : index
    %260 = vector.load %arg12[%c0_151, %c22] : memref<16x25xf32, #tpu.memory_space<vmem>>, vector<16x1xf32>
    %261 = vector.broadcast %260 : vector<16x1xf32> to vector<16x576xf32>
    %262 = arith.mulf %259, %261 : vector<16x576xf32>
    %263 = arith.addf %258, %262 : vector<16x576xf32>
    %c0_152 = arith.constant 0 : index
    %c198 = arith.constant 198 : index
    %264 = vector.load %arg28[%c0_152, %c198] : memref<16x776xf32, #tpu.memory_space<vmem>>, vector<16x576xf32>
    %c0_153 = arith.constant 0 : index
    %c23 = arith.constant 23 : index
    %265 = vector.load %arg12[%c0_153, %c23] : memref<16x25xf32, #tpu.memory_space<vmem>>, vector<16x1xf32>
    %266 = vector.broadcast %265 : vector<16x1xf32> to vector<16x576xf32>
    %267 = arith.mulf %264, %266 : vector<16x576xf32>
    %268 = arith.addf %263, %267 : vector<16x576xf32>
    %c0_154 = arith.constant 0 : index
    %c200 = arith.constant 200 : index
    %269 = vector.load %arg28[%c0_154, %c200] : memref<16x776xf32, #tpu.memory_space<vmem>>, vector<16x576xf32>
    %c0_155 = arith.constant 0 : index
    %c24 = arith.constant 24 : index
    %270 = vector.load %arg12[%c0_155, %c24] : memref<16x25xf32, #tpu.memory_space<vmem>>, vector<16x1xf32>
    %271 = vector.broadcast %270 : vector<16x1xf32> to vector<16x576xf32>
    %272 = arith.mulf %269, %271 : vector<16x576xf32>
    %273 = arith.addf %268, %272 : vector<16x576xf32>
    %c0_156 = arith.constant 0 : index
    %c0_157 = arith.constant 0 : index
    %274 = vector.load %arg13[%c0_156, %c0_157] : memref<16x1xf32, #tpu.memory_space<vmem>>, vector<16x1xf32>
    %275 = vector.broadcast %274 : vector<16x1xf32> to vector<16x576xf32>
    %276 = arith.addf %273, %275 : vector<16x576xf32>
    %277 = arith.addf %149, %276 : vector<16x576xf32>
    %cst_158 = arith.constant 0.000000e+00 : f32
    %278 = vector.shape_cast %4 : vector<1x576xi1> to vector<1x576xi1>
    %279 = vector.broadcast %278 : vector<1x576xi1> to vector<16x576xi1>
    %280 = vector.broadcast %cst_158 : f32 to vector<16x576xf32>
    %281 = arith.select %279, %277, %280 : vector<16x576xi1>, vector<16x576xf32>
    %cst_159 = arith.constant dense<0.000000e+00> : vector<16xf32>
    %282 = vector.multi_reduction <add>, %281, %cst_159 [1] : vector<16x576xf32> to vector<16xf32>
    %283 = vector.shape_cast %282 : vector<16xf32> to vector<16x1xf32>
    %284 = arith.mulf %281, %277 : vector<16x576xf32>
    %cst_160 = arith.constant dense<0.000000e+00> : vector<16xf32>
    %285 = vector.multi_reduction <add>, %284, %cst_160 [1] : vector<16x576xf32> to vector<16xf32>
    %286 = vector.shape_cast %285 : vector<16xf32> to vector<16x1xf32>
    %c0_161 = arith.constant 0 : index
    %c0_162 = arith.constant 0 : index
    %287 = vector.load %arg14[%c0_161, %c0_162] : memref<16x16xf32, #tpu.memory_space<vmem>>, vector<16x16xf32>
    %288 = tpu.concatenate %283, %286 in 1 : vector<16x1xf32>, vector<16x1xf32> -> vector<16x2xf32>
    %cst_163 = arith.constant dense<0.000000e+00> : vector<16x2xf32>
    %289 = tpu.matmul %287, %288, %cst_163 {dimension_numbers = #tpu.dot_dimension_numbers<[1], [0], [0], [1], [0, 0, 1, 1], [], []>} : vector<16x16xf32>, vector<16x2xf32>, vector<16x2xf32> -> vector<16x2xf32>
    %290 = vector.extract_strided_slice %289 {offsets = [0, 0], sizes = [16, 1], strides = [1, 1]} : vector<16x2xf32> to vector<16x1xf32>
    %291 = vector.extract_strided_slice %289 {offsets = [0, 1], sizes = [16, 1], strides = [1, 1]} : vector<16x2xf32> to vector<16x1xf32>
    %292 = arith.mulf %290, %290 : vector<16x1xf32>
    %293 = arith.subf %291, %292 : vector<16x1xf32>
    %cst_164 = arith.constant 0.000000e+00 : f32
    %294 = vector.broadcast %cst_164 : f32 to vector<16x1xf32>
    %295 = arith.maximumf %293, %294 : vector<16x1xf32>
    %296 = vector.broadcast %290 : vector<16x1xf32> to vector<16x576xf32>
    %297 = arith.subf %277, %296 : vector<16x576xf32>
    %cst_165 = arith.constant 9.99999974E-6 : f32
    %298 = vector.broadcast %cst_165 : f32 to vector<16x1xf32>
    %299 = arith.addf %295, %298 : vector<16x1xf32>
    %300 = math.rsqrt %299 : vector<16x1xf32>
    %c0_166 = arith.constant 0 : index
    %c0_167 = arith.constant 0 : index
    %301 = vector.load %arg15[%c0_166, %c0_167] : memref<16x1xf32, #tpu.memory_space<vmem>>, vector<16x1xf32>
    %302 = arith.mulf %300, %301 : vector<16x1xf32>
    %303 = vector.broadcast %302 : vector<16x1xf32> to vector<16x576xf32>
    %304 = arith.mulf %297, %303 : vector<16x576xf32>
    %c0_168 = arith.constant 0 : index
    %c0_169 = arith.constant 0 : index
    %305 = vector.load %arg16[%c0_168, %c0_169] : memref<16x1xf32, #tpu.memory_space<vmem>>, vector<16x1xf32>
    %306 = vector.broadcast %305 : vector<16x1xf32> to vector<16x576xf32>
    %307 = arith.addf %304, %306 : vector<16x576xf32>
    %cst_170 = arith.constant 0.000000e+00 : f32
    %308 = vector.broadcast %cst_170 : f32 to vector<16x576xf32>
    %309 = arith.subf %308, %307 : vector<16x576xf32>
    %310 = math.exp %309 : vector<16x576xf32>
    %cst_171 = arith.constant 1.000000e+00 : f32
    %311 = vector.broadcast %cst_171 : f32 to vector<16x576xf32>
    %312 = arith.addf %311, %310 : vector<16x576xf32>
    %313 = tpu.reciprocal %312 : vector<16x576xf32> -> vector<16x576xf32>
    %314 = arith.mulf %307, %313 : vector<16x576xf32>
    %c0_172 = arith.constant 0 : index
    %c0_173 = arith.constant 0 : index
    %315 = vector.load %arg17[%c0_172, %c0_173] : memref<16x16xf32, #tpu.memory_space<vmem>>, vector<16x16xf32>
    %cst_174 = arith.constant dense<0.000000e+00> : vector<16x576xf32>
    %316 = tpu.matmul %315, %314, %cst_174 {dimension_numbers = #tpu.dot_dimension_numbers<[1], [0], [0], [1], [0, 0, 1, 1], [], []>} : vector<16x16xf32>, vector<16x576xf32>, vector<16x576xf32> -> vector<16x576xf32>
    %c0_175 = arith.constant 0 : index
    %c0_176 = arith.constant 0 : index
    %317 = vector.load %arg18[%c0_175, %c0_176] : memref<16x1xf32, #tpu.memory_space<vmem>>, vector<16x1xf32>
    %318 = vector.broadcast %317 : vector<16x1xf32> to vector<16x576xf32>
    %319 = arith.addf %316, %318 : vector<16x576xf32>
    %cst_177 = arith.constant 0.000000e+00 : f32
    %320 = vector.shape_cast %4 : vector<1x576xi1> to vector<1x576xi1>
    %321 = vector.broadcast %320 : vector<1x576xi1> to vector<16x576xi1>
    %322 = vector.broadcast %cst_177 : f32 to vector<16x576xf32>
    %323 = arith.select %321, %12, %322 : vector<16x576xi1>, vector<16x576xf32>
    %cst_178 = arith.constant dense<0.000000e+00> : vector<16xf32>
    %324 = vector.multi_reduction <add>, %323, %cst_178 [1] : vector<16x576xf32> to vector<16xf32>
    %325 = vector.shape_cast %324 : vector<16xf32> to vector<16x1xf32>
    %326 = arith.mulf %323, %12 : vector<16x576xf32>
    %cst_179 = arith.constant dense<0.000000e+00> : vector<16xf32>
    %327 = vector.multi_reduction <add>, %326, %cst_179 [1] : vector<16x576xf32> to vector<16xf32>
    %328 = vector.shape_cast %327 : vector<16xf32> to vector<16x1xf32>
    %c0_180 = arith.constant 0 : index
    %c0_181 = arith.constant 0 : index
    %329 = vector.load %arg19[%c0_180, %c0_181] : memref<16x16xf32, #tpu.memory_space<vmem>>, vector<16x16xf32>
    %330 = tpu.concatenate %325, %328 in 1 : vector<16x1xf32>, vector<16x1xf32> -> vector<16x2xf32>
    %cst_182 = arith.constant dense<0.000000e+00> : vector<16x2xf32>
    %331 = tpu.matmul %329, %330, %cst_182 {dimension_numbers = #tpu.dot_dimension_numbers<[1], [0], [0], [1], [0, 0, 1, 1], [], []>} : vector<16x16xf32>, vector<16x2xf32>, vector<16x2xf32> -> vector<16x2xf32>
    %332 = vector.extract_strided_slice %331 {offsets = [0, 0], sizes = [16, 1], strides = [1, 1]} : vector<16x2xf32> to vector<16x1xf32>
    %333 = vector.extract_strided_slice %331 {offsets = [0, 1], sizes = [16, 1], strides = [1, 1]} : vector<16x2xf32> to vector<16x1xf32>
    %334 = arith.mulf %332, %332 : vector<16x1xf32>
    %335 = arith.subf %333, %334 : vector<16x1xf32>
    %cst_183 = arith.constant 0.000000e+00 : f32
    %336 = vector.broadcast %cst_183 : f32 to vector<16x1xf32>
    %337 = arith.maximumf %335, %336 : vector<16x1xf32>
    %338 = vector.broadcast %332 : vector<16x1xf32> to vector<16x576xf32>
    %339 = arith.subf %12, %338 : vector<16x576xf32>
    %cst_184 = arith.constant 9.99999974E-6 : f32
    %340 = vector.broadcast %cst_184 : f32 to vector<16x1xf32>
    %341 = arith.addf %337, %340 : vector<16x1xf32>
    %342 = math.rsqrt %341 : vector<16x1xf32>
    %c0_185 = arith.constant 0 : index
    %c0_186 = arith.constant 0 : index
    %343 = vector.load %arg20[%c0_185, %c0_186] : memref<16x1xf32, #tpu.memory_space<vmem>>, vector<16x1xf32>
    %344 = arith.mulf %342, %343 : vector<16x1xf32>
    %345 = vector.broadcast %344 : vector<16x1xf32> to vector<16x576xf32>
    %346 = arith.mulf %339, %345 : vector<16x576xf32>
    %c0_187 = arith.constant 0 : index
    %c0_188 = arith.constant 0 : index
    %347 = vector.load %arg21[%c0_187, %c0_188] : memref<16x1xf32, #tpu.memory_space<vmem>>, vector<16x1xf32>
    %348 = vector.broadcast %347 : vector<16x1xf32> to vector<16x576xf32>
    %349 = arith.addf %346, %348 : vector<16x576xf32>
    %cst_189 = arith.constant 0.000000e+00 : f32
    %350 = vector.broadcast %cst_189 : f32 to vector<16x576xf32>
    %351 = arith.subf %350, %349 : vector<16x576xf32>
    %352 = math.exp %351 : vector<16x576xf32>
    %cst_190 = arith.constant 1.000000e+00 : f32
    %353 = vector.broadcast %cst_190 : f32 to vector<16x576xf32>
    %354 = arith.addf %353, %352 : vector<16x576xf32>
    %355 = tpu.reciprocal %354 : vector<16x576xf32> -> vector<16x576xf32>
    %356 = arith.mulf %349, %355 : vector<16x576xf32>
    %cst_191 = arith.constant 0.000000e+00 : f32
    %357 = vector.shape_cast %4 : vector<1x576xi1> to vector<1x576xi1>
    %358 = vector.broadcast %357 : vector<1x576xi1> to vector<16x576xi1>
    %359 = vector.broadcast %cst_191 : f32 to vector<16x576xf32>
    %360 = arith.select %358, %319, %359 : vector<16x576xi1>, vector<16x576xf32>
    %cst_192 = arith.constant dense<0.000000e+00> : vector<16xf32>
    %361 = vector.multi_reduction <add>, %360, %cst_192 [1] : vector<16x576xf32> to vector<16xf32>
    %362 = vector.shape_cast %361 : vector<16xf32> to vector<16x1xf32>
    %363 = arith.mulf %360, %319 : vector<16x576xf32>
    %cst_193 = arith.constant dense<0.000000e+00> : vector<16xf32>
    %364 = vector.multi_reduction <add>, %363, %cst_193 [1] : vector<16x576xf32> to vector<16xf32>
    %365 = vector.shape_cast %364 : vector<16xf32> to vector<16x1xf32>
    %c0_194 = arith.constant 0 : index
    %c0_195 = arith.constant 0 : index
    %366 = vector.load %arg19[%c0_194, %c0_195] : memref<16x16xf32, #tpu.memory_space<vmem>>, vector<16x16xf32>
    %367 = tpu.concatenate %362, %365 in 1 : vector<16x1xf32>, vector<16x1xf32> -> vector<16x2xf32>
    %cst_196 = arith.constant dense<0.000000e+00> : vector<16x2xf32>
    %368 = tpu.matmul %366, %367, %cst_196 {dimension_numbers = #tpu.dot_dimension_numbers<[1], [0], [0], [1], [0, 0, 1, 1], [], []>} : vector<16x16xf32>, vector<16x2xf32>, vector<16x2xf32> -> vector<16x2xf32>
    %369 = vector.extract_strided_slice %368 {offsets = [0, 0], sizes = [16, 1], strides = [1, 1]} : vector<16x2xf32> to vector<16x1xf32>
    %370 = vector.extract_strided_slice %368 {offsets = [0, 1], sizes = [16, 1], strides = [1, 1]} : vector<16x2xf32> to vector<16x1xf32>
    %371 = arith.mulf %369, %369 : vector<16x1xf32>
    %372 = arith.subf %370, %371 : vector<16x1xf32>
    %cst_197 = arith.constant 0.000000e+00 : f32
    %373 = vector.broadcast %cst_197 : f32 to vector<16x1xf32>
    %374 = arith.maximumf %372, %373 : vector<16x1xf32>
    %375 = vector.broadcast %369 : vector<16x1xf32> to vector<16x576xf32>
    %376 = arith.subf %319, %375 : vector<16x576xf32>
    %cst_198 = arith.constant 9.99999974E-6 : f32
    %377 = vector.broadcast %cst_198 : f32 to vector<16x1xf32>
    %378 = arith.addf %374, %377 : vector<16x1xf32>
    %379 = math.rsqrt %378 : vector<16x1xf32>
    %c0_199 = arith.constant 0 : index
    %c0_200 = arith.constant 0 : index
    %380 = vector.load %arg22[%c0_199, %c0_200] : memref<16x1xf32, #tpu.memory_space<vmem>>, vector<16x1xf32>
    %381 = arith.mulf %379, %380 : vector<16x1xf32>
    %382 = vector.broadcast %381 : vector<16x1xf32> to vector<16x576xf32>
    %383 = arith.mulf %376, %382 : vector<16x576xf32>
    %c0_201 = arith.constant 0 : index
    %c0_202 = arith.constant 0 : index
    %384 = vector.load %arg23[%c0_201, %c0_202] : memref<16x1xf32, #tpu.memory_space<vmem>>, vector<16x1xf32>
    %385 = vector.broadcast %384 : vector<16x1xf32> to vector<16x576xf32>
    %386 = arith.addf %383, %385 : vector<16x576xf32>
    %cst_203 = arith.constant 0.000000e+00 : f32
    %387 = vector.broadcast %cst_203 : f32 to vector<16x576xf32>
    %388 = arith.subf %387, %386 : vector<16x576xf32>
    %389 = math.exp %388 : vector<16x576xf32>
    %cst_204 = arith.constant 1.000000e+00 : f32
    %390 = vector.broadcast %cst_204 : f32 to vector<16x576xf32>
    %391 = arith.addf %390, %389 : vector<16x576xf32>
    %392 = tpu.reciprocal %391 : vector<16x576xf32> -> vector<16x576xf32>
    %393 = arith.mulf %386, %392 : vector<16x576xf32>
    %c0_205 = arith.constant 0 : index
    %c0_206 = arith.constant 0 : index
    %394 = vector.load %arg24[%c0_205, %c0_206] : memref<16x16xf32, #tpu.memory_space<vmem>>, vector<16x16xf32>
    %cst_207 = arith.constant dense<0.000000e+00> : vector<16x576xf32>
    %395 = tpu.matmul %394, %356, %cst_207 {dimension_numbers = #tpu.dot_dimension_numbers<[1], [0], [0], [1], [0, 0, 1, 1], [], []>} : vector<16x16xf32>, vector<16x576xf32>, vector<16x576xf32> -> vector<16x576xf32>
    %c0_208 = arith.constant 0 : index
    %c0_209 = arith.constant 0 : index
    %396 = vector.load %arg25[%c0_208, %c0_209] : memref<16x16xf32, #tpu.memory_space<vmem>>, vector<16x16xf32>
    %cst_210 = arith.constant dense<0.000000e+00> : vector<16x576xf32>
    %397 = tpu.matmul %396, %393, %cst_210 {dimension_numbers = #tpu.dot_dimension_numbers<[1], [0], [0], [1], [0, 0, 1, 1], [], []>} : vector<16x16xf32>, vector<16x576xf32>, vector<16x576xf32> -> vector<16x576xf32>
    %398 = arith.addf %395, %397 : vector<16x576xf32>
    %c0_211 = arith.constant 0 : index
    %c0_212 = arith.constant 0 : index
    %399 = vector.load %arg26[%c0_211, %c0_212] : memref<16x1xf32, #tpu.memory_space<vmem>>, vector<16x1xf32>
    %400 = vector.broadcast %399 : vector<16x1xf32> to vector<16x576xf32>
    %401 = arith.addf %398, %400 : vector<16x576xf32>
    %402 = arith.addf %401, %1 : vector<16x576xf32>
    %c0_213 = arith.constant 0 : index
    %c0_214 = arith.constant 0 : index
    %c0_215 = arith.constant 0 : index
    %403 = vector.load %arg27[%c0_213, %c0_214, %c0_215] : memref<1x16x576xf32, #tpu.memory_space<vmem>>, vector<1x16x576xf32>
    %404 = vector.shape_cast %403 : vector<1x16x576xf32> to vector<16x576xf32>
    %405 = vector.shape_cast %402 : vector<16x576xf32> to vector<1x16x576xf32>
    tpu.vector_store %arg27[%c0_213, %c0_214, %c0_215], %405 {strides = array<i32>} : memref<1x16x576xf32, #tpu.memory_space<vmem>>, vector<1x16x576xf32>,
    return
  }
  func.func @transform_0(%arg0: i32) -> (i32, i32, i32) {
    %c0_i32 = arith.constant 0 : i32
    %c0_i32_0 = arith.constant 0 : i32
    %c0_i32_1 = arith.constant 0 : i32
    return %arg0, %c0_i32, %c0_i32_0 : i32, i32, i32
  }
  func.func @transform_1(%arg0: i32) -> (i32, i32) {
    %c0_i32 = arith.constant 0 : i32
    %c0_i32_0 = arith.constant 0 : i32
    %c0_i32_1 = arith.constant 0 : i32
    return %c0_i32, %c0_i32_0 : i32, i32
  }
  func.func @transform_2(%arg0: i32) -> (i32, i32) {
    %c0_i32 = arith.constant 0 : i32
    %c0_i32_0 = arith.constant 0 : i32
    %c0_i32_1 = arith.constant 0 : i32
    return %c0_i32, %c0_i32_0 : i32, i32
  }
  func.func @transform_3(%arg0: i32) -> (i32, i32) {
    %c0_i32 = arith.constant 0 : i32
    %c0_i32_0 = arith.constant 0 : i32
    %c0_i32_1 = arith.constant 0 : i32
    return %c0_i32, %c0_i32_0 : i32, i32
  }
  func.func @transform_4(%arg0: i32) -> (i32, i32) {
    %c0_i32 = arith.constant 0 : i32
    %c0_i32_0 = arith.constant 0 : i32
    %c0_i32_1 = arith.constant 0 : i32
    return %c0_i32, %c0_i32_0 : i32, i32
  }
  func.func @transform_5(%arg0: i32) -> (i32, i32) {
    %c0_i32 = arith.constant 0 : i32
    %c0_i32_0 = arith.constant 0 : i32
    %c0_i32_1 = arith.constant 0 : i32
    return %c0_i32, %c0_i32_0 : i32, i32
  }
  func.func @transform_6(%arg0: i32) -> (i32, i32) {
    %c0_i32 = arith.constant 0 : i32
    %c0_i32_0 = arith.constant 0 : i32
    %c0_i32_1 = arith.constant 0 : i32
    return %c0_i32, %c0_i32_0 : i32, i32
  }
  func.func @transform_7(%arg0: i32) -> (i32, i32) {
    %c0_i32 = arith.constant 0 : i32
    %c0_i32_0 = arith.constant 0 : i32
    %c0_i32_1 = arith.constant 0 : i32
    return %c0_i32, %c0_i32_0 : i32, i32
  }
  func.func @transform_8(%arg0: i32) -> (i32, i32) {
    %c0_i32 = arith.constant 0 : i32
    %c0_i32_0 = arith.constant 0 : i32
    %c0_i32_1 = arith.constant 0 : i32
    return %c0_i32, %c0_i32_0 : i32, i32
  }
  func.func @transform_9(%arg0: i32) -> (i32, i32) {
    %c0_i32 = arith.constant 0 : i32
    %c0_i32_0 = arith.constant 0 : i32
    %c0_i32_1 = arith.constant 0 : i32
    return %c0_i32, %c0_i32_0 : i32, i32
  }
  func.func @transform_10(%arg0: i32) -> (i32, i32) {
    %c0_i32 = arith.constant 0 : i32
    %c0_i32_0 = arith.constant 0 : i32
    %c0_i32_1 = arith.constant 0 : i32
    return %c0_i32, %c0_i32_0 : i32, i32
  }
  func.func @transform_11(%arg0: i32) -> (i32, i32) {
    %c0_i32 = arith.constant 0 : i32
    %c0_i32_0 = arith.constant 0 : i32
    %c0_i32_1 = arith.constant 0 : i32
    return %c0_i32, %c0_i32_0 : i32, i32
  }
  func.func @transform_12(%arg0: i32) -> (i32, i32) {
    %c0_i32 = arith.constant 0 : i32
    %c0_i32_0 = arith.constant 0 : i32
    %c0_i32_1 = arith.constant 0 : i32
    return %c0_i32, %c0_i32_0 : i32, i32
  }
  func.func @transform_13(%arg0: i32) -> (i32, i32) {
    %c0_i32 = arith.constant 0 : i32
    %c0_i32_0 = arith.constant 0 : i32
    %c0_i32_1 = arith.constant 0 : i32
    return %c0_i32, %c0_i32_0 : i32, i32
  }
  func.func @transform_14(%arg0: i32) -> (i32, i32) {
    %c0_i32 = arith.constant 0 : i32
    %c0_i32_0 = arith.constant 0 : i32
    %c0_i32_1 = arith.constant 0 : i32
    return %c0_i32, %c0_i32_0 : i32, i32
  }
  func.func @transform_15(%arg0: i32) -> (i32, i32) {
    %c0_i32 = arith.constant 0 : i32
    %c0_i32_0 = arith.constant 0 : i32
    %c0_i32_1 = arith.constant 0 : i32
    return %c0_i32, %c0_i32_0 : i32, i32
  }
  func.func @transform_16(%arg0: i32) -> (i32, i32) {
    %c0_i32 = arith.constant 0 : i32
    %c0_i32_0 = arith.constant 0 : i32
    %c0_i32_1 = arith.constant 0 : i32
    return %c0_i32, %c0_i32_0 : i32, i32
  }
  func.func @transform_17(%arg0: i32) -> (i32, i32) {
    %c0_i32 = arith.constant 0 : i32
    %c0_i32_0 = arith.constant 0 : i32
    %c0_i32_1 = arith.constant 0 : i32
    return %c0_i32, %c0_i32_0 : i32, i32
  }
  func.func @transform_18(%arg0: i32) -> (i32, i32) {
    %c0_i32 = arith.constant 0 : i32
    %c0_i32_0 = arith.constant 0 : i32
    %c0_i32_1 = arith.constant 0 : i32
    return %c0_i32, %c0_i32_0 : i32, i32
  }
  func.func @transform_19(%arg0: i32) -> (i32, i32) {
    %c0_i32 = arith.constant 0 : i32
    %c0_i32_0 = arith.constant 0 : i32
    %c0_i32_1 = arith.constant 0 : i32
    return %c0_i32, %c0_i32_0 : i32, i32
  }
  func.func @transform_20(%arg0: i32) -> (i32, i32) {
    %c0_i32 = arith.constant 0 : i32
    %c0_i32_0 = arith.constant 0 : i32
    %c0_i32_1 = arith.constant 0 : i32
    return %c0_i32, %c0_i32_0 : i32, i32
  }
  func.func @transform_21(%arg0: i32) -> (i32, i32) {
    %c0_i32 = arith.constant 0 : i32
    %c0_i32_0 = arith.constant 0 : i32
    %c0_i32_1 = arith.constant 0 : i32
    return %c0_i32, %c0_i32_0 : i32, i32
  }
  func.func @transform_22(%arg0: i32) -> (i32, i32) {
    %c0_i32 = arith.constant 0 : i32
    %c0_i32_0 = arith.constant 0 : i32
    %c0_i32_1 = arith.constant 0 : i32
    return %c0_i32, %c0_i32_0 : i32, i32
  }
  func.func @transform_23(%arg0: i32) -> (i32, i32) {
    %c0_i32 = arith.constant 0 : i32
    %c0_i32_0 = arith.constant 0 : i32
    %c0_i32_1 = arith.constant 0 : i32
    return %c0_i32, %c0_i32_0 : i32, i32
  }
  func.func @transform_24(%arg0: i32) -> (i32, i32) {
    %c0_i32 = arith.constant 0 : i32
    %c0_i32_0 = arith.constant 0 : i32
    %c0_i32_1 = arith.constant 0 : i32
    return %c0_i32, %c0_i32_0 : i32, i32
  }
  func.func @transform_25(%arg0: i32) -> (i32, i32) {
    %c0_i32 = arith.constant 0 : i32
    %c0_i32_0 = arith.constant 0 : i32
    %c0_i32_1 = arith.constant 0 : i32
    return %c0_i32, %c0_i32_0 : i32, i32
  }
  func.func @transform_26(%arg0: i32) -> (i32, i32, i32) {
    %c0_i32 = arith.constant 0 : i32
    %c0_i32_0 = arith.constant 0 : i32
    %c0_i32_1 = arith.constant 0 : i32
    return %arg0, %c0_i32, %c0_i32_0 : i32, i32, i32
  }
}

</mosaic_0001>

<llo_original>
// kernel: tpu_custom_call.1
$region0: #{tpu_custom_call.1}
  #allocation0 [shape = 'u32[]', space=smem, size = 0x4, offset = 0x4, fixed_abs, tag = 'smem constant byte address 0x4 - core index']
  #allocation1 [shape = 'u32[144,128]{1,0:T(1,128)}', space=vmem, size = 0x12000, scoped, tag = 'internal scratch']
  #allocation2 [shape = 'f32[16,776]{1,0:T(8,128)}', space=vmem, size = 0xe000, scoped, tag = 'scratch operand']
  %s0 = inlined_call_operand.vmem [shape: f32[2,16,576], index: 0, kind: input, shape index: {}]
  %s1 = inlined_call_operand.hbm [shape: f32[1,576], index: 1, kind: input, shape index: {}]
  %s2 = inlined_call_operand.vmem [shape: f32[16,16], index: 2, kind: input, shape index: {}]
  %s3 = inlined_call_operand.vmem [shape: f32[16,1], index: 3, kind: input, shape index: {}]
  %s4 = inlined_call_operand.vmem [shape: f32[16,9], index: 4, kind: input, shape index: {}]
  %s5 = inlined_call_operand.vmem [shape: f32[16,1], index: 5, kind: input, shape index: {}]
  %s6 = inlined_call_operand.vmem [shape: f32[16,16], index: 6, kind: input, shape index: {}]
  %s7 = inlined_call_operand.vmem [shape: f32[16,1], index: 7, kind: input, shape index: {}]
  %s8 = inlined_call_operand.vmem [shape: f32[16,1], index: 8, kind: input, shape index: {}]
  %s9 = inlined_call_operand.vmem [shape: f32[16,9], index: 9, kind: input, shape index: {}]
  %s10 = inlined_call_operand.vmem [shape: f32[16,1], index: 10, kind: input, shape index: {}]
  %s11 = inlined_call_operand.vmem [shape: f32[16,25], index: 11, kind: input, shape index: {}]
  %s12 = inlined_call_operand.vmem [shape: f32[16,1], index: 12, kind: input, shape index: {}]
  %s13 = inlined_call_operand.vmem [shape: f32[16,16], index: 13, kind: input, shape index: {}]
  %s14 = inlined_call_operand.vmem [shape: f32[16,1], index: 14, kind: input, shape index: {}]
  %s15 = inlined_call_operand.vmem [shape: f32[16,1], index: 15, kind: input, shape index: {}]
  %s16 = inlined_call_operand.vmem [shape: f32[16,16], index: 16, kind: input, shape index: {}]
  %s17 = inlined_call_operand.vmem [shape: f32[16,1], index: 17, kind: input, shape index: {}]
  %s18 = inlined_call_operand.vmem [shape: f32[16,16], index: 18, kind: input, shape index: {}]
  %s19 = inlined_call_operand.vmem [shape: f32[16,1], index: 19, kind: input, shape index: {}]
  %s20 = inlined_call_operand.vmem [shape: f32[16,1], index: 20, kind: input, shape index: {}]
  %s21 = inlined_call_operand.vmem [shape: f32[16,1], index: 21, kind: input, shape index: {}]
  %s22 = inlined_call_operand.vmem [shape: f32[16,1], index: 22, kind: input, shape index: {}]
  %s23 = inlined_call_operand.vmem [shape: f32[16,16], index: 23, kind: input, shape index: {}]
  %s24 = inlined_call_operand.vmem [shape: f32[16,16], index: 24, kind: input, shape index: {}]
  %s25 = inlined_call_operand.vmem [shape: f32[16,1], index: 25, kind: input, shape index: {}]
  %s26 = inlined_call_operand.hbm [shape: f32[2,16,576], index: 26, kind: output, shape index: {}]
  %s27 = sld [smem:[#allocation0]]
  $region141: #{tpu_custom_call.1} parent=0
    _
  %s29 = ssub.s32 1, %s27
  %s30 = scalar_select 0, %s29, %s27
  $region1: #{tpu_custom_call.1} parent=0
    #allocation3 [shape = 'u8[2560]{0}', space=vmem, size = 0xc00, scoped, tag = 'input window, operand 1, single buffered']
    #allocation4 [shape = 's32[2]{0}', space=sflag, size = 0x8, scoped, tag = 'scoped memory for tpu_custom_call.1']
    #allocation5 [shape = 's32[2]{0}', space=sflag, size = 0x8, scoped, tag = 'scoped memory for tpu_custom_call.1']
    #allocation6 [shape = 'u8[81920]{0}', space=vmem, size = 0x14000, scoped, tag = 'output window, operand 0']
    %31 = vsyncpa [#allocation4], 0
    %32 = vsyncpa [#allocation5], 0
    %s33 = scalar_lea.sflag [#allocation5], 1
    %34 = vsyncpa %s33, 0
    loop: start=0, step=1, limit=4
    $region2: #{tpu_custom_call.1} parent=1 // loop_pre_header
      _
    $region3: #{tpu_custom_call.1} parent=1 // loop_header
      %s36 = sphi 0, %s40
      %p37 = scmp.ge.s32.totalorder %s36, 4
      %s46 = sphi 0, %s48
      %s49 = sphi 0, %s46
      %s50 = sphi 0, %s49
      %s66 = sphi 0, %s50
      %s70 = sphi 0, %s70
      %s72 = sphi 0, %s70
      %s73 = sphi 0, %s72
      %s87 = sphi 0, %s73
      %s91 = sphi 0, %s91
      %s93 = sphi 0, %s91
      %s94 = sphi 0, %s93
      %s108 = sphi 0, %s94
      %s112 = sphi 0, %s112
      %s114 = sphi 0, %s112
      %s115 = sphi 0, %s114
      %s129 = sphi 0, %s115
      %s133 = sphi 0, %s133
      %s135 = sphi 0, %s133
      %s136 = sphi 0, %s135
      %s150 = sphi 0, %s136
      %s154 = sphi 0, %s154
      %s156 = sphi 0, %s154
      %s157 = sphi 0, %s156
      %s171 = sphi 0, %s157
      %s175 = sphi 0, %s175
      %s177 = sphi 0, %s175
      %s178 = sphi 0, %s177
      %s192 = sphi 0, %s178
      %s196 = sphi 0, %s196
      %s198 = sphi 0, %s196
      %s199 = sphi 0, %s198
      %s213 = sphi 0, %s199
      %s217 = sphi 0, %s217
      %s219 = sphi 0, %s217
      %s220 = sphi 0, %s219
      %s234 = sphi 0, %s220
      %s238 = sphi 0, %s238
      %s240 = sphi 0, %s238
      %s241 = sphi 0, %s240
      %s255 = sphi 0, %s241
      %s259 = sphi 0, %s259
      %s261 = sphi 0, %s259
      %s262 = sphi 0, %s261
      %s276 = sphi 0, %s262
      %s280 = sphi 0, %s280
      %s282 = sphi 0, %s280
      %s283 = sphi 0, %s282
      %s297 = sphi 0, %s283
      %s301 = sphi 0, %s301
      %s303 = sphi 0, %s301
      %s304 = sphi 0, %s303
      %s318 = sphi 0, %s304
      %s322 = sphi 0, %s322
      %s324 = sphi 0, %s322
      %s325 = sphi 0, %s324
      %s339 = sphi 0, %s325
      %s343 = sphi 0, %s343
      %s345 = sphi 0, %s343
      %s346 = sphi 0, %s345
      %s360 = sphi 0, %s346
      %s364 = sphi 0, %s364
      %s366 = sphi 0, %s364
      %s367 = sphi 0, %s366
      %s381 = sphi 0, %s367
      %s385 = sphi 0, %s385
      %s387 = sphi 0, %s385
      %s388 = sphi 0, %s387
      %s402 = sphi 0, %s388
      %s406 = sphi 0, %s406
      %s408 = sphi 0, %s406
      %s409 = sphi 0, %s408
      %s423 = sphi 0, %s409
      %s427 = sphi 0, %s427
      %s429 = sphi 0, %s427
      %s430 = sphi 0, %s429
      %s444 = sphi 0, %s430
      %s448 = sphi 0, %s448
      %s450 = sphi 0, %s448
      %s451 = sphi 0, %s450
      %s465 = sphi 0, %s451
      %s469 = sphi 0, %s469
      %s471 = sphi 0, %s469
      %s472 = sphi 0, %s471
      %s486 = sphi 0, %s472
      %s490 = sphi 0, %s490
      %s492 = sphi 0, %s490
      %s493 = sphi 0, %s492
      %s507 = sphi 0, %s493
      %s511 = sphi 0, %s511
      %s513 = sphi 0, %s511
      %s514 = sphi 0, %s513
      %s528 = sphi 0, %s514
      %s532 = sphi 0, %s532
      %s534 = sphi 0, %s532
      %s535 = sphi 0, %s534
      %s549 = sphi 0, %s535
      %s553 = sphi 0, %s553
      %s555 = sphi 0, %s553
      %s556 = sphi 0, %s555
      %s570 = sphi 0, %s556
      %s574 = sphi 0, %s574
      %s576 = sphi 0, %s574
      %s577 = sphi 0, %s576
      %s591 = sphi 0, %s577
      %s597 = sphi 0, %s599
      %s600 = sphi 0, %s597
      %s601 = sphi 0, %s600
      %s617 = sphi 0, %s601
    $region4: #{tpu_custom_call.1} parent=1 // loop_header_branch
      %39 = sbr.rel (%p37) target = $region8
    $region5: #{tpu_custom_call.1} parent=1 // loop_body
      %s41 = ssub.s32 %s36, 1
      %s42 = ssub.s32 %s36, 2
      %s43 = sadd.s32 %s36, 1
      %s44 = ssub.s32 %s36, %s43
      %p45 = scmp.eq.s32.totalorder %s44, 0
      %s47 = sadd.s32 %s46, 1
      %s48 = scalar_select %p45, %s46, %s47
      %p51 = pneg %p45
      %p52 = scmp.eq.s32.totalorder %s36, 1
      %p53 = por %p51, %p52
      %p54 = scmp.ne.s32.totalorder %s46, %s49
      %p55 = scmp.eq.s32.totalorder %s36, 0
      %p56 = por %p54, %p55
      %p57 = scmp.ne.s32.totalorder %s46, %s49
      %p58 = scmp.eq.s32.totalorder %s41, 1
      %p59 = por %p57, %p58
      %p60 = scmp.ne.s32.totalorder %s49, %s50
      %p61 = scmp.eq.s32.totalorder %s41, 0
      %p62 = por %p60, %p61
      %p63 = scmp.ne.s32.totalorder %s49, %s50
      %p64 = scmp.eq.s32.totalorder %s42, 1
      %p65 = por %p63, %p64
      %p67 = scmp.ne.s32.totalorder %s50, %s66
      %p68 = scmp.eq.s32.totalorder %s42, 0
      %p69 = por %p67, %p68
      %s71 = sadd.s32 %s70, 1
      %p74 = scmp.eq.s32.totalorder %s36, 1
      %p75 = scmp.ne.s32.totalorder %s70, %s72
      %p76 = scmp.eq.s32.totalorder %s36, 0
      %p77 = por %p75, %p76
      %p78 = scmp.ne.s32.totalorder %s70, %s72
      %p79 = scmp.eq.s32.totalorder %s41, 1
      %p80 = por %p78, %p79
      %p81 = scmp.ne.s32.totalorder %s72, %s73
      %p82 = scmp.eq.s32.totalorder %s41, 0
      %p83 = por %p81, %p82
      %p84 = scmp.ne.s32.totalorder %s72, %s73
      %p85 = scmp.eq.s32.totalorder %s42, 1
      %p86 = por %p84, %p85
      %p88 = scmp.ne.s32.totalorder %s73, %s87
      %p89 = scmp.eq.s32.totalorder %s42, 0
      %p90 = por %p88, %p89
      %s92 = sadd.s32 %s91, 1
      %p95 = scmp.eq.s32.totalorder %s36, 1
      %p96 = scmp.ne.s32.totalorder %s91, %s93
      %p97 = scmp.eq.s32.totalorder %s36, 0
      %p98 = por %p96, %p97
      %p99 = scmp.ne.s32.totalorder %s91, %s93
      %p100 = scmp.eq.s32.totalorder %s41, 1
      %p101 = por %p99, %p100
      %p102 = scmp.ne.s32.totalorder %s93, %s94
      %p103 = scmp.eq.s32.totalorder %s41, 0
      %p104 = por %p102, %p103
      %p105 = scmp.ne.s32.totalorder %s93, %s94
      %p106 = scmp.eq.s32.totalorder %s42, 1
      %p107 = por %p105, %p106
      %p109 = scmp.ne.s32.totalorder %s94, %s108
      %p110 = scmp.eq.s32.totalorder %s42, 0
      %p111 = por %p109, %p110
      %s113 = sadd.s32 %s112, 1
      %p116 = scmp.eq.s32.totalorder %s36, 1
      %p117 = scmp.ne.s32.totalorder %s112, %s114
      %p118 = scmp.eq.s32.totalorder %s36, 0
      %p119 = por %p117, %p118
      %p120 = scmp.ne.s32.totalorder %s112, %s114
      %p121 = scmp.eq.s32.totalorder %s41, 1
      %p122 = por %p120, %p121
      %p123 = scmp.ne.s32.totalorder %s114, %s115
      %p124 = scmp.eq.s32.totalorder %s41, 0
      %p125 = por %p123, %p124
      %p126 = scmp.ne.s32.totalorder %s114, %s115
      %p127 = scmp.eq.s32.totalorder %s42, 1
      %p128 = por %p126, %p127
      %p130 = scmp.ne.s32.totalorder %s115, %s129
      %p131 = scmp.eq.s32.totalorder %s42, 0
      %p132 = por %p130, %p131
      %s134 = sadd.s32 %s133, 1
      %p137 = scmp.eq.s32.totalorder %s36, 1
      %p138 = scmp.ne.s32.totalorder %s133, %s135
      %p139 = scmp.eq.s32.totalorder %s36, 0
      %p140 = por %p138, %p139
      %p141 = scmp.ne.s32.totalorder %s133, %s135
      %p142 = scmp.eq.s32.totalorder %s41, 1
      %p143 = por %p141, %p142
      %p144 = scmp.ne.s32.totalorder %s135, %s136
      %p145 = scmp.eq.s32.totalorder %s41, 0
      %p146 = por %p144, %p145
      %p147 = scmp.ne.s32.totalorder %s135, %s136
      %p148 = scmp.eq.s32.totalorder %s42, 1
      %p149 = por %p147, %p148
      %p151 = scmp.ne.s32.totalorder %s136, %s150
      %p152 = scmp.eq.s32.totalorder %s42, 0
      %p153 = por %p151, %p152
      %s155 = sadd.s32 %s154, 1
      %p158 = scmp.eq.s32.totalorder %s36, 1
      %p159 = scmp.ne.s32.totalorder %s154, %s156
      %p160 = scmp.eq.s32.totalorder %s36, 0
      %p161 = por %p159, %p160
      %p162 = scmp.ne.s32.totalorder %s154, %s156
      %p163 = scmp.eq.s32.totalorder %s41, 1
      %p164 = por %p162, %p163
      %p165 = scmp.ne.s32.totalorder %s156, %s157
      %p166 = scmp.eq.s32.totalorder %s41, 0
      %p167 = por %p165, %p166
      %p168 = scmp.ne.s32.totalorder %s156, %s157
      %p169 = scmp.eq.s32.totalorder %s42, 1
      %p170 = por %p168, %p169
      %p172 = scmp.ne.s32.totalorder %s157, %s171
      %p173 = scmp.eq.s32.totalorder %s42, 0
      %p174 = por %p172, %p173
      %s176 = sadd.s32 %s175, 1
      %p179 = scmp.eq.s32.totalorder %s36, 1
      %p180 = scmp.ne.s32.totalorder %s175, %s177
      %p181 = scmp.eq.s32.totalorder %s36, 0
      %p182 = por %p180, %p181
      %p183 = scmp.ne.s32.totalorder %s175, %s177
      %p184 = scmp.eq.s32.totalorder %s41, 1
      %p185 = por %p183, %p184
      %p186 = scmp.ne.s32.totalorder %s177, %s178
      %p187 = scmp.eq.s32.totalorder %s41, 0
      %p188 = por %p186, %p187
      %p189 = scmp.ne.s32.totalorder %s177, %s178
      %p190 = scmp.eq.s32.totalorder %s42, 1
      %p191 = por %p189, %p190
      %p193 = scmp.ne.s32.totalorder %s178, %s192
      %p194 = scmp.eq.s32.totalorder %s42, 0
      %p195 = por %p193, %p194
      %s197 = sadd.s32 %s196, 1
      %p200 = scmp.eq.s32.totalorder %s36, 1
      %p201 = scmp.ne.s32.totalorder %s196, %s198
      %p202 = scmp.eq.s32.totalorder %s36, 0
      %p203 = por %p201, %p202
      %p204 = scmp.ne.s32.totalorder %s196, %s198
      %p205 = scmp.eq.s32.totalorder %s41, 1
      %p206 = por %p204, %p205
      %p207 = scmp.ne.s32.totalorder %s198, %s199
      %p208 = scmp.eq.s32.totalorder %s41, 0
      %p209 = por %p207, %p208
      %p210 = scmp.ne.s32.totalorder %s198, %s199
      %p211 = scmp.eq.s32.totalorder %s42, 1
      %p212 = por %p210, %p211
      %p214 = scmp.ne.s32.totalorder %s199, %s213
      %p215 = scmp.eq.s32.totalorder %s42, 0
      %p216 = por %p214, %p215
      %s218 = sadd.s32 %s217, 1
      %p221 = scmp.eq.s32.totalorder %s36, 1
      %p222 = scmp.ne.s32.totalorder %s217, %s219
      %p223 = scmp.eq.s32.totalorder %s36, 0
      %p224 = por %p222, %p223
      %p225 = scmp.ne.s32.totalorder %s217, %s219
      %p226 = scmp.eq.s32.totalorder %s41, 1
      %p227 = por %p225, %p226
      %p228 = scmp.ne.s32.totalorder %s219, %s220
      %p229 = scmp.eq.s32.totalorder %s41, 0
      %p230 = por %p228, %p229
      %p231 = scmp.ne.s32.totalorder %s219, %s220
      %p232 = scmp.eq.s32.totalorder %s42, 1
      %p233 = por %p231, %p232
      %p235 = scmp.ne.s32.totalorder %s220, %s234
      %p236 = scmp.eq.s32.totalorder %s42, 0
      %p237 = por %p235, %p236
      %s239 = sadd.s32 %s238, 1
      %p242 = scmp.eq.s32.totalorder %s36, 1
      %p243 = scmp.ne.s32.totalorder %s238, %s240
      %p244 = scmp.eq.s32.totalorder %s36, 0
      %p245 = por %p243, %p244
      %p246 = scmp.ne.s32.totalorder %s238, %s240
      %p247 = scmp.eq.s32.totalorder %s41, 1
      %p248 = por %p246, %p247
      %p249 = scmp.ne.s32.totalorder %s240, %s241
      %p250 = scmp.eq.s32.totalorder %s41, 0
      %p251 = por %p249, %p250
      %p252 = scmp.ne.s32.totalorder %s240, %s241
      %p253 = scmp.eq.s32.totalorder %s42, 1
      %p254 = por %p252, %p253
      %p256 = scmp.ne.s32.totalorder %s241, %s255
      %p257 = scmp.eq.s32.totalorder %s42, 0
      %p258 = por %p256, %p257
      %s260 = sadd.s32 %s259, 1
      %p263 = scmp.eq.s32.totalorder %s36, 1
      %p264 = scmp.ne.s32.totalorder %s259, %s261
      %p265 = scmp.eq.s32.totalorder %s36, 0
      %p266 = por %p264, %p265
      %p267 = scmp.ne.s32.totalorder %s259, %s261
      %p268 = scmp.eq.s32.totalorder %s41, 1
      %p269 = por %p267, %p268
      %p270 = scmp.ne.s32.totalorder %s261, %s262
      %p271 = scmp.eq.s32.totalorder %s41, 0
      %p272 = por %p270, %p271
      %p273 = scmp.ne.s32.totalorder %s261, %s262
      %p274 = scmp.eq.s32.totalorder %s42, 1
      %p275 = por %p273, %p274
      %p277 = scmp.ne.s32.totalorder %s262, %s276
      %p278 = scmp.eq.s32.totalorder %s42, 0
      %p279 = por %p277, %p278
      %s281 = sadd.s32 %s280, 1
      %p284 = scmp.eq.s32.totalorder %s36, 1
      %p285 = scmp.ne.s32.totalorder %s280, %s282
      %p286 = scmp.eq.s32.totalorder %s36, 0
      %p287 = por %p285, %p286
      %p288 = scmp.ne.s32.totalorder %s280, %s282
      %p289 = scmp.eq.s32.totalorder %s41, 1
      %p290 = por %p288, %p289
      %p291 = scmp.ne.s32.totalorder %s282, %s283
      %p292 = scmp.eq.s32.totalorder %s41, 0
      %p293 = por %p291, %p292
      %p294 = scmp.ne.s32.totalorder %s282, %s283
      %p295 = scmp.eq.s32.totalorder %s42, 1
      %p296 = por %p294, %p295
      %p298 = scmp.ne.s32.totalorder %s283, %s297
      %p299 = scmp.eq.s32.totalorder %s42, 0
      %p300 = por %p298, %p299
      %s302 = sadd.s32 %s301, 1
      %p305 = scmp.eq.s32.totalorder %s36, 1
      %p306 = scmp.ne.s32.totalorder %s301, %s303
      %p307 = scmp.eq.s32.totalorder %s36, 0
      %p308 = por %p306, %p307
      %p309 = scmp.ne.s32.totalorder %s301, %s303
      %p310 = scmp.eq.s32.totalorder %s41, 1
      %p311 = por %p309, %p310
      %p312 = scmp.ne.s32.totalorder %s303, %s304
      %p313 = scmp.eq.s32.totalorder %s41, 0
      %p314 = por %p312, %p313
      %p315 = scmp.ne.s32.totalorder %s303, %s304
      %p316 = scmp.eq.s32.totalorder %s42, 1
      %p317 = por %p315, %p316
      %p319 = scmp.ne.s32.totalorder %s304, %s318
      %p320 = scmp.eq.s32.totalorder %s42, 0
      %p321 = por %p319, %p320
      %s323 = sadd.s32 %s322, 1
      %p326 = scmp.eq.s32.totalorder %s36, 1
      %p327 = scmp.ne.s32.totalorder %s322, %s324
      %p328 = scmp.eq.s32.totalorder %s36, 0
      %p329 = por %p327, %p328
      %p330 = scmp.ne.s32.totalorder %s322, %s324
      %p331 = scmp.eq.s32.totalorder %s41, 1
      %p332 = por %p330, %p331
      %p333 = scmp.ne.s32.totalorder %s324, %s325
      %p334 = scmp.eq.s32.totalorder %s41, 0
      %p335 = por %p333, %p334
      %p336 = scmp.ne.s32.totalorder %s324, %s325
      %p337 = scmp.eq.s32.totalorder %s42, 1
      %p338 = por %p336, %p337
      %p340 = scmp.ne.s32.totalorder %s325, %s339
      %p341 = scmp.eq.s32.totalorder %s42, 0
      %p342 = por %p340, %p341
      %s344 = sadd.s32 %s343, 1
      %p347 = scmp.eq.s32.totalorder %s36, 1
      %p348 = scmp.ne.s32.totalorder %s343, %s345
      %p349 = scmp.eq.s32.totalorder %s36, 0
      %p350 = por %p348, %p349
      %p351 = scmp.ne.s32.totalorder %s343, %s345
      %p352 = scmp.eq.s32.totalorder %s41, 1
      %p353 = por %p351, %p352
      %p354 = scmp.ne.s32.totalorder %s345, %s346
      %p355 = scmp.eq.s32.totalorder %s41, 0
      %p356 = por %p354, %p355
      %p357 = scmp.ne.s32.totalorder %s345, %s346
      %p358 = scmp.eq.s32.totalorder %s42, 1
      %p359 = por %p357, %p358
      %p361 = scmp.ne.s32.totalorder %s346, %s360
      %p362 = scmp.eq.s32.totalorder %s42, 0
      %p363 = por %p361, %p362
      %s365 = sadd.s32 %s364, 1
      %p368 = scmp.eq.s32.totalorder %s36, 1
      %p369 = scmp.ne.s32.totalorder %s364, %s366
      %p370 = scmp.eq.s32.totalorder %s36, 0
      %p371 = por %p369, %p370
      %p372 = scmp.ne.s32.totalorder %s364, %s366
      %p373 = scmp.eq.s32.totalorder %s41, 1
      %p374 = por %p372, %p373
      %p375 = scmp.ne.s32.totalorder %s366, %s367
      %p376 = scmp.eq.s32.totalorder %s41, 0
      %p377 = por %p375, %p376
      %p378 = scmp.ne.s32.totalorder %s366, %s367
      %p379 = scmp.eq.s32.totalorder %s42, 1
      %p380 = por %p378, %p379
      %p382 = scmp.ne.s32.totalorder %s367, %s381
      %p383 = scmp.eq.s32.totalorder %s42, 0
      %p384 = por %p382, %p383
      %s386 = sadd.s32 %s385, 1
      %p389 = scmp.eq.s32.totalorder %s36, 1
      %p390 = scmp.ne.s32.totalorder %s385, %s387
      %p391 = scmp.eq.s32.totalorder %s36, 0
      %p392 = por %p390, %p391
      %p393 = scmp.ne.s32.totalorder %s385, %s387
      %p394 = scmp.eq.s32.totalorder %s41, 1
      %p395 = por %p393, %p394
      %p396 = scmp.ne.s32.totalorder %s387, %s388
      %p397 = scmp.eq.s32.totalorder %s41, 0
      %p398 = por %p396, %p397
      %p399 = scmp.ne.s32.totalorder %s387, %s388
      %p400 = scmp.eq.s32.totalorder %s42, 1
      %p401 = por %p399, %p400
      %p403 = scmp.ne.s32.totalorder %s388, %s402
      %p404 = scmp.eq.s32.totalorder %s42, 0
      %p405 = por %p403, %p404
      %s407 = sadd.s32 %s406, 1
      %p410 = scmp.eq.s32.totalorder %s36, 1
      %p411 = scmp.ne.s32.totalorder %s406, %s408
      %p412 = scmp.eq.s32.totalorder %s36, 0
      %p413 = por %p411, %p412
      %p414 = scmp.ne.s32.totalorder %s406, %s408
      %p415 = scmp.eq.s32.totalorder %s41, 1
      %p416 = por %p414, %p415
      %p417 = scmp.ne.s32.totalorder %s408, %s409
      %p418 = scmp.eq.s32.totalorder %s41, 0
      %p419 = por %p417, %p418
      %p420 = scmp.ne.s32.totalorder %s408, %s409
      %p421 = scmp.eq.s32.totalorder %s42, 1
      %p422 = por %p420, %p421
      %p424 = scmp.ne.s32.totalorder %s409, %s423
      %p425 = scmp.eq.s32.totalorder %s42, 0
      %p426 = por %p424, %p425
      %s428 = sadd.s32 %s427, 1
      %p431 = scmp.eq.s32.totalorder %s36, 1
      %p432 = scmp.ne.s32.totalorder %s427, %s429
      %p433 = scmp.eq.s32.totalorder %s36, 0
      %p434 = por %p432, %p433
      %p435 = scmp.ne.s32.totalorder %s427, %s429
      %p436 = scmp.eq.s32.totalorder %s41, 1
      %p437 = por %p435, %p436
      %p438 = scmp.ne.s32.totalorder %s429, %s430
      %p439 = scmp.eq.s32.totalorder %s41, 0
      %p440 = por %p438, %p439
      %p441 = scmp.ne.s32.totalorder %s429, %s430
      %p442 = scmp.eq.s32.totalorder %s42, 1
      %p443 = por %p441, %p442
      %p445 = scmp.ne.s32.totalorder %s430, %s444
      %p446 = scmp.eq.s32.totalorder %s42, 0
      %p447 = por %p445, %p446
      %s449 = sadd.s32 %s448, 1
      %p452 = scmp.eq.s32.totalorder %s36, 1
      %p453 = scmp.ne.s32.totalorder %s448, %s450
      %p454 = scmp.eq.s32.totalorder %s36, 0
      %p455 = por %p453, %p454
      %p456 = scmp.ne.s32.totalorder %s448, %s450
      %p457 = scmp.eq.s32.totalorder %s41, 1
      %p458 = por %p456, %p457
      %p459 = scmp.ne.s32.totalorder %s450, %s451
      %p460 = scmp.eq.s32.totalorder %s41, 0
      %p461 = por %p459, %p460
      %p462 = scmp.ne.s32.totalorder %s450, %s451
      %p463 = scmp.eq.s32.totalorder %s42, 1
      %p464 = por %p462, %p463
      %p466 = scmp.ne.s32.totalorder %s451, %s465
      %p467 = scmp.eq.s32.totalorder %s42, 0
      %p468 = por %p466, %p467
      %s470 = sadd.s32 %s469, 1
      %p473 = scmp.eq.s32.totalorder %s36, 1
      %p474 = scmp.ne.s32.totalorder %s469, %s471
      %p475 = scmp.eq.s32.totalorder %s36, 0
      %p476 = por %p474, %p475
      %p477 = scmp.ne.s32.totalorder %s469, %s471
      %p478 = scmp.eq.s32.totalorder %s41, 1
      %p479 = por %p477, %p478
      %p480 = scmp.ne.s32.totalorder %s471, %s472
      %p481 = scmp.eq.s32.totalorder %s41, 0
      %p482 = por %p480, %p481
      %p483 = scmp.ne.s32.totalorder %s471, %s472
      %p484 = scmp.eq.s32.totalorder %s42, 1
      %p485 = por %p483, %p484
      %p487 = scmp.ne.s32.totalorder %s472, %s486
      %p488 = scmp.eq.s32.totalorder %s42, 0
      %p489 = por %p487, %p488
      %s491 = sadd.s32 %s490, 1
      %p494 = scmp.eq.s32.totalorder %s36, 1
      %p495 = scmp.ne.s32.totalorder %s490, %s492
      %p496 = scmp.eq.s32.totalorder %s36, 0
      %p497 = por %p495, %p496
      %p498 = scmp.ne.s32.totalorder %s490, %s492
      %p499 = scmp.eq.s32.totalorder %s41, 1
      %p500 = por %p498, %p499
      %p501 = scmp.ne.s32.totalorder %s492, %s493
      %p502 = scmp.eq.s32.totalorder %s41, 0
      %p503 = por %p501, %p502
      %p504 = scmp.ne.s32.totalorder %s492, %s493
      %p505 = scmp.eq.s32.totalorder %s42, 1
      %p506 = por %p504, %p505
      %p508 = scmp.ne.s32.totalorder %s493, %s507
      %p509 = scmp.eq.s32.totalorder %s42, 0
      %p510 = por %p508, %p509
      %s512 = sadd.s32 %s511, 1
      %p515 = scmp.eq.s32.totalorder %s36, 1
      %p516 = scmp.ne.s32.totalorder %s511, %s513
      %p517 = scmp.eq.s32.totalorder %s36, 0
      %p518 = por %p516, %p517
      %p519 = scmp.ne.s32.totalorder %s511, %s513
      %p520 = scmp.eq.s32.totalorder %s41, 1
      %p521 = por %p519, %p520
      %p522 = scmp.ne.s32.totalorder %s513, %s514
      %p523 = scmp.eq.s32.totalorder %s41, 0
      %p524 = por %p522, %p523
      %p525 = scmp.ne.s32.totalorder %s513, %s514
      %p526 = scmp.eq.s32.totalorder %s42, 1
      %p527 = por %p525, %p526
      %p529 = scmp.ne.s32.totalorder %s514, %s528
      %p530 = scmp.eq.s32.totalorder %s42, 0
      %p531 = por %p529, %p530
      %s533 = sadd.s32 %s532, 1
      %p536 = scmp.eq.s32.totalorder %s36, 1
      %p537 = scmp.ne.s32.totalorder %s532, %s534
      %p538 = scmp.eq.s32.totalorder %s36, 0
      %p539 = por %p537, %p538
      %p540 = scmp.ne.s32.totalorder %s532, %s534
      %p541 = scmp.eq.s32.totalorder %s41, 1
      %p542 = por %p540, %p541
      %p543 = scmp.ne.s32.totalorder %s534, %s535
      %p544 = scmp.eq.s32.totalorder %s41, 0
      %p545 = por %p543, %p544
      %p546 = scmp.ne.s32.totalorder %s534, %s535
      %p547 = scmp.eq.s32.totalorder %s42, 1
      %p548 = por %p546, %p547
      %p550 = scmp.ne.s32.totalorder %s535, %s549
      %p551 = scmp.eq.s32.totalorder %s42, 0
      %p552 = por %p550, %p551
      %s554 = sadd.s32 %s553, 1
      %p557 = scmp.eq.s32.totalorder %s36, 1
      %p558 = scmp.ne.s32.totalorder %s553, %s555
      %p559 = scmp.eq.s32.totalorder %s36, 0
      %p560 = por %p558, %p559
      %p561 = scmp.ne.s32.totalorder %s553, %s555
      %p562 = scmp.eq.s32.totalorder %s41, 1
      %p563 = por %p561, %p562
      %p564 = scmp.ne.s32.totalorder %s555, %s556
      %p565 = scmp.eq.s32.totalorder %s41, 0
      %p566 = por %p564, %p565
      %p567 = scmp.ne.s32.totalorder %s555, %s556
      %p568 = scmp.eq.s32.totalorder %s42, 1
      %p569 = por %p567, %p568
      %p571 = scmp.ne.s32.totalorder %s556, %s570
      %p572 = scmp.eq.s32.totalorder %s42, 0
      %p573 = por %p571, %p572
      %s575 = sadd.s32 %s574, 1
      %p578 = scmp.eq.s32.totalorder %s36, 1
      %p579 = scmp.ne.s32.totalorder %s574, %s576
      %p580 = scmp.eq.s32.totalorder %s36, 0
      %p581 = por %p579, %p580
      %p582 = scmp.ne.s32.totalorder %s574, %s576
      %p583 = scmp.eq.s32.totalorder %s41, 1
      %p584 = por %p582, %p583
      %p585 = scmp.ne.s32.totalorder %s576, %s577
      %p586 = scmp.eq.s32.totalorder %s41, 0
      %p587 = por %p585, %p586
      %p588 = scmp.ne.s32.totalorder %s576, %s577
      %p589 = scmp.eq.s32.totalorder %s42, 1
      %p590 = por %p588, %p589
      %p592 = scmp.ne.s32.totalorder %s577, %s591
      %p593 = scmp.eq.s32.totalorder %s42, 0
      %p594 = por %p592, %p593
      %s595 = ssub.s32 %s36, %s43
      %p596 = scmp.eq.s32.totalorder %s595, 0
      %s598 = sadd.s32 %s597, 1
      %s599 = scalar_select %p596, %s597, %s598
      %p602 = pneg %p596
      %p603 = scmp.eq.s32.totalorder %s36, 1
      %p604 = por %p602, %p603
      %p605 = scmp.ne.s32.totalorder %s597, %s600
      %p606 = scmp.eq.s32.totalorder %s36, 0
      %p607 = por %p605, %p606
      %p608 = scmp.ne.s32.totalorder %s597, %s600
      %p609 = scmp.eq.s32.totalorder %s41, 1
      %p610 = por %p608, %p609
      %p611 = scmp.ne.s32.totalorder %s600, %s601
      %p612 = scmp.eq.s32.totalorder %s41, 0
      %p613 = por %p611, %p612
      %p614 = scmp.ne.s32.totalorder %s600, %s601
      %p615 = scmp.eq.s32.totalorder %s42, 1
      %p616 = por %p614, %p615
      %p618 = scmp.ne.s32.totalorder %s601, %s617
      %p619 = scmp.eq.s32.totalorder %s42, 0
      %p620 = por %p618, %p619
      %p621 = scmp.le.s32.totalorder 1, %s36
      %p622 = scmp.lt.s32.totalorder %s36, 3
      %p623 = pnand %p621, %p622
      %p624 = pneg %p623
      // Predicated region
      $region9: #{tpu_custom_call.1} parent=5 // pred_check
        _
      $region10: #{tpu_custom_call.1} parent=5 // pred_check_branch
        %626 = sbr.rel (%p623) target = $region12
      $region11: #{tpu_custom_call.1} parent=5 // pred_region
        %s627 = ssub.s32 %s36, 1
        // Predicated region
        $region13: #{tpu_custom_call.1} parent=11 // pred_check
          %p628 = pneg %p83
        $region14: #{tpu_custom_call.1} parent=11 // pred_check_branch
          %630 = sbr.rel (%p628) target = $region16
        $region15: #{tpu_custom_call.1} parent=11 // pred_region
          %s632 = ssub.s32 80, 80
          %633 = vsyncadd [#allocation4], %s632
          %s635 = sshll.u32 [#allocation3], 4
          %s636 = int_to_ptr.vmem [resolvable:$true] %s635
          %638 = dma.hbm_to_vmem [thread:$0]  %s1, 80, %s636, [#allocation4]
        $region16: #{tpu_custom_call.1} parent=11 // pred_fallthru
          _
        // Predicated region
        $region17: #{tpu_custom_call.1} parent=11 // pred_check
          %p639 = pneg %p104
        $region18: #{tpu_custom_call.1} parent=11 // pred_check_branch
          %641 = sbr.rel (%p639) target = $region20
        $region19: #{tpu_custom_call.1} parent=11 // pred_region
          _
        $region20: #{tpu_custom_call.1} parent=11 // pred_fallthru
          _
        // Predicated region
        $region21: #{tpu_custom_call.1} parent=11 // pred_check
          %p642 = pneg %p125
        $region22: #{tpu_custom_call.1} parent=11 // pred_check_branch
          %644 = sbr.rel (%p642) target = $region24
        $region23: #{tpu_custom_call.1} parent=11 // pred_region
          _
        $region24: #{tpu_custom_call.1} parent=11 // pred_fallthru
          _
        // Predicated region
        $region25: #{tpu_custom_call.1} parent=11 // pred_check
          %p645 = pneg %p146
        $region26: #{tpu_custom_call.1} parent=11 // pred_check_branch
          %647 = sbr.rel (%p645) target = $region28
        $region27: #{tpu_custom_call.1} parent=11 // pred_region
          _
        $region28: #{tpu_custom_call.1} parent=11 // pred_fallthru
          _
        // Predicated region
        $region29: #{tpu_custom_call.1} parent=11 // pred_check
          %p648 = pneg %p167
        $region30: #{tpu_custom_call.1} parent=11 // pred_check_branch
          %650 = sbr.rel (%p648) target = $region32
        $region31: #{tpu_custom_call.1} parent=11 // pred_region
          _
        $region32: #{tpu_custom_call.1} parent=11 // pred_fallthru
          _
        // Predicated region
        $region33: #{tpu_custom_call.1} parent=11 // pred_check
          %p651 = pneg %p188
        $region34: #{tpu_custom_call.1} parent=11 // pred_check_branch
          %653 = sbr.rel (%p651) target = $region36
        $region35: #{tpu_custom_call.1} parent=11 // pred_region
          _
        $region36: #{tpu_custom_call.1} parent=11 // pred_fallthru
          _
        // Predicated region
        $region37: #{tpu_custom_call.1} parent=11 // pred_check
          %p654 = pneg %p209
        $region38: #{tpu_custom_call.1} parent=11 // pred_check_branch
          %656 = sbr.rel (%p654) target = $region40
        $region39: #{tpu_custom_call.1} parent=11 // pred_region
          _
        $region40: #{tpu_custom_call.1} parent=11 // pred_fallthru
          _
        // Predicated region
        $region41: #{tpu_custom_call.1} parent=11 // pred_check
          %p657 = pneg %p230
        $region42: #{tpu_custom_call.1} parent=11 // pred_check_branch
          %659 = sbr.rel (%p657) target = $region44
        $region43: #{tpu_custom_call.1} parent=11 // pred_region
          _
        $region44: #{tpu_custom_call.1} parent=11 // pred_fallthru
          _
        // Predicated region
        $region45: #{tpu_custom_call.1} parent=11 // pred_check
          %p660 = pneg %p251
        $region46: #{tpu_custom_call.1} parent=11 // pred_check_branch
          %662 = sbr.rel (%p660) target = $region48
        $region47: #{tpu_custom_call.1} parent=11 // pred_region
          _
        $region48: #{tpu_custom_call.1} parent=11 // pred_fallthru
          _
        // Predicated region
        $region49: #{tpu_custom_call.1} parent=11 // pred_check
          %p663 = pneg %p272
        $region50: #{tpu_custom_call.1} parent=11 // pred_check_branch
          %665 = sbr.rel (%p663) target = $region52
        $region51: #{tpu_custom_call.1} parent=11 // pred_region
          _
        $region52: #{tpu_custom_call.1} parent=11 // pred_fallthru
          _
        // Predicated region
        $region53: #{tpu_custom_call.1} parent=11 // pred_check
          %p666 = pneg %p293
        $region54: #{tpu_custom_call.1} parent=11 // pred_check_branch
          %668 = sbr.rel (%p666) target = $region56
        $region55: #{tpu_custom_call.1} parent=11 // pred_region
          _
        $region56: #{tpu_custom_call.1} parent=11 // pred_fallthru
          _
        // Predicated region
        $region57: #{tpu_custom_call.1} parent=11 // pred_check
          %p669 = pneg %p314
        $region58: #{tpu_custom_call.1} parent=11 // pred_check_branch
          %671 = sbr.rel (%p669) target = $region60
        $region59: #{tpu_custom_call.1} parent=11 // pred_region
          _
        $region60: #{tpu_custom_call.1} parent=11 // pred_fallthru
          _
        // Predicated region
        $region61: #{tpu_custom_call.1} parent=11 // pred_check
          %p672 = pneg %p335
        $region62: #{tpu_custom_call.1} parent=11 // pred_check_branch
          %674 = sbr.rel (%p672) target = $region64
        $region63: #{tpu_custom_call.1} parent=11 // pred_region
          _
        $region64: #{tpu_custom_call.1} parent=11 // pred_fallthru
          _
        // Predicated region
        $region65: #{tpu_custom_call.1} parent=11 // pred_check
          %p675 = pneg %p356
        $region66: #{tpu_custom_call.1} parent=11 // pred_check_branch
          %677 = sbr.rel (%p675) target = $region68
        $region67: #{tpu_custom_call.1} parent=11 // pred_region
          _
        $region68: #{tpu_custom_call.1} parent=11 // pred_fallthru
          _
        // Predicated region
        $region69: #{tpu_custom_call.1} parent=11 // pred_check
          %p678 = pneg %p377
        $region70: #{tpu_custom_call.1} parent=11 // pred_check_branch
          %680 = sbr.rel (%p678) target = $region72
        $region71: #{tpu_custom_call.1} parent=11 // pred_region
          _
        $region72: #{tpu_custom_call.1} parent=11 // pred_fallthru
          _
        // Predicated region
        $region73: #{tpu_custom_call.1} parent=11 // pred_check
          %p681 = pneg %p398
        $region74: #{tpu_custom_call.1} parent=11 // pred_check_branch
          %683 = sbr.rel (%p681) target = $region76
        $region75: #{tpu_custom_call.1} parent=11 // pred_region
          _
        $region76: #{tpu_custom_call.1} parent=11 // pred_fallthru
          _
        // Predicated region
        $region77: #{tpu_custom_call.1} parent=11 // pred_check
          %p684 = pneg %p419
        $region78: #{tpu_custom_call.1} parent=11 // pred_check_branch
          %686 = sbr.rel (%p684) target = $region80
        $region79: #{tpu_custom_call.1} parent=11 // pred_region
          _
        $region80: #{tpu_custom_call.1} parent=11 // pred_fallthru
          _
        // Predicated region
        $region81: #{tpu_custom_call.1} parent=11 // pred_check
          %p687 = pneg %p440
        $region82: #{tpu_custom_call.1} parent=11 // pred_check_branch
          %689 = sbr.rel (%p687) target = $region84
        $region83: #{tpu_custom_call.1} parent=11 // pred_region
          _
        $region84: #{tpu_custom_call.1} parent=11 // pred_fallthru
          _
        // Predicated region
        $region85: #{tpu_custom_call.1} parent=11 // pred_check
          %p690 = pneg %p461
        $region86: #{tpu_custom_call.1} parent=11 // pred_check_branch
          %692 = sbr.rel (%p690) target = $region88
        $region87: #{tpu_custom_call.1} parent=11 // pred_region
          _
        $region88: #{tpu_custom_call.1} parent=11 // pred_fallthru
          _
        // Predicated region
        $region89: #{tpu_custom_call.1} parent=11 // pred_check
          %p693 = pneg %p482
        $region90: #{tpu_custom_call.1} parent=11 // pred_check_branch
          %695 = sbr.rel (%p693) target = $region92
        $region91: #{tpu_custom_call.1} parent=11 // pred_region
          _
        $region92: #{tpu_custom_call.1} parent=11 // pred_fallthru
          _
        // Predicated region
        $region93: #{tpu_custom_call.1} parent=11 // pred_check
          %p696 = pneg %p503
        $region94: #{tpu_custom_call.1} parent=11 // pred_check_branch
          %698 = sbr.rel (%p696) target = $region96
        $region95: #{tpu_custom_call.1} parent=11 // pred_region
          _
        $region96: #{tpu_custom_call.1} parent=11 // pred_fallthru
          _
        // Predicated region
        $region97: #{tpu_custom_call.1} parent=11 // pred_check
          %p699 = pneg %p524
        $region98: #{tpu_custom_call.1} parent=11 // pred_check_branch
          %701 = sbr.rel (%p699) target = $region100
        $region99: #{tpu_custom_call.1} parent=11 // pred_region
          _
        $region100: #{tpu_custom_call.1} parent=11 // pred_fallthru
          _
        // Predicated region
        $region101: #{tpu_custom_call.1} parent=11 // pred_check
          %p702 = pneg %p545
        $region102: #{tpu_custom_call.1} parent=11 // pred_check_branch
          %704 = sbr.rel (%p702) target = $region104
        $region103: #{tpu_custom_call.1} parent=11 // pred_region
          _
        $region104: #{tpu_custom_call.1} parent=11 // pred_fallthru
          _
        // Predicated region
        $region105: #{tpu_custom_call.1} parent=11 // pred_check
          %p705 = pneg %p566
        $region106: #{tpu_custom_call.1} parent=11 // pred_check_branch
          %707 = sbr.rel (%p705) target = $region108
        $region107: #{tpu_custom_call.1} parent=11 // pred_region
          _
        $region108: #{tpu_custom_call.1} parent=11 // pred_fallthru
          _
        // Predicated region
        $region109: #{tpu_custom_call.1} parent=11 // pred_check
          %p708 = pneg %p587
        $region110: #{tpu_custom_call.1} parent=11 // pred_check_branch
          %710 = sbr.rel (%p708) target = $region112
        $region111: #{tpu_custom_call.1} parent=11 // pred_region
          _
        $region112: #{tpu_custom_call.1} parent=11 // pred_fallthru
          _
      $region12: #{tpu_custom_call.1} parent=5 // pred_fallthru
        _
      %p711 = scmp.lt.s32.totalorder %s36, 2
      // Predicated region
      $region113: #{tpu_custom_call.1} parent=5 // pred_check
        %p712 = pneg %p711
      $region114: #{tpu_custom_call.1} parent=5 // pred_check_branch
        %714 = sbr.rel (%p712) target = $region116
      $region115: #{tpu_custom_call.1} parent=5 // pred_region
        // Predicated region
        $region117: #{tpu_custom_call.1} parent=115 // pred_check
          %p715 = pneg %p56
        $region118: #{tpu_custom_call.1} parent=115 // pred_check_branch
          %717 = sbr.rel (%p715) target = $region120
        $region119: #{tpu_custom_call.1} parent=115 // pred_region
          %p718 = scmp.lt.s32.totalorder %s36, 1
          %s719 = scalar_select %p718, %s36, 1
          %s720 = smul.addr %s719, 10
          %s721 = smul.addr %s720, 8
          %s722 = scalar_lea.vmem %s0, %s721
        $region120: #{tpu_custom_call.1} parent=115 // pred_fallthru
          _
      $region116: #{tpu_custom_call.1} parent=5 // pred_fallthru
        _
      %p723 = scmp.le.s32.totalorder 1, %s36
      %p724 = scmp.lt.s32.totalorder %s36, 3
      %p725 = pnand %p723, %p724
      %p726 = pneg %p725
      // Predicated region
      $region121: #{tpu_custom_call.1} parent=5 // pred_check
        _
      $region122: #{tpu_custom_call.1} parent=5 // pred_check_branch
        %728 = sbr.rel (%p725) target = $region124
      $region123: #{tpu_custom_call.1} parent=5 // pred_region
        %s729 = ssub.s32 %s36, 1
        // Predicated region
        $region125: #{tpu_custom_call.1} parent=123 // pred_check
          %p730 = pneg %p83
        $region126: #{tpu_custom_call.1} parent=123 // pred_check_branch
          %732 = sbr.rel (%p730) target = $region128
        $region127: #{tpu_custom_call.1} parent=123 // pred_region
          %733 = dma.done [#allocation4], 80
        $region128: #{tpu_custom_call.1} parent=123 // pred_fallthru
          _
        %p734 = scmp.lt.s32.totalorder %s41, 1
        %s735 = scalar_select %p734, %s41, 1
        %s736 = smul.addr %s735, 10
        %s737 = smul.addr %s736, 8
        %s738 = scalar_lea.vmem %s0, %s737
        %p739 = pneg %p62
        %p740 = pneg %p59
        %p741 = pneg %p83
        %p742 = pneg %p80
        %p743 = pneg %p104
        %p744 = pneg %p101
        %p745 = pneg %p125
        %p746 = pneg %p122
        %p747 = pneg %p146
        %p748 = pneg %p143
        %p749 = pneg %p167
        %p750 = pneg %p164
        %p751 = pneg %p188
        %p752 = pneg %p185
        %p753 = pneg %p209
        %p754 = pneg %p206
        %p755 = pneg %p230
        %p756 = pneg %p227
        %p757 = pneg %p251
        %p758 = pneg %p248
        %p759 = pneg %p272
        %p760 = pneg %p269
        %p761 = pneg %p293
        %p762 = pneg %p290
        %p763 = pneg %p314
        %p764 = pneg %p311
        %p765 = pneg %p335
        %p766 = pneg %p332
        %p767 = pneg %p356
        %p768 = pneg %p353
        %p769 = pneg %p377
        %p770 = pneg %p374
        %p771 = pneg %p398
        %p772 = pneg %p395
        %p773 = pneg %p419
        %p774 = pneg %p416
        %p775 = pneg %p440
        %p776 = pneg %p437
        %p777 = pneg %p461
        %p778 = pneg %p458
        %p779 = pneg %p482
        %p780 = pneg %p479
        %p781 = pneg %p503
        %p782 = pneg %p500
        %p783 = pneg %p524
        %p784 = pneg %p521
        %p785 = pneg %p545
        %p786 = pneg %p542
        %p787 = pneg %p566
        %p788 = pneg %p563
        %p789 = pneg %p587
        %p790 = pneg %p584
        %p791 = pneg %p613
        %p792 = pneg %p610
        %s793 = sand.u32 %s600, 1
        %s794 = scalar_lea.sflag [#allocation5], %s793
        %s795 = sand.u32 %s600, 1
        %s796 = smul.addr %s795, 80
        %s797 = scalar_lea.vmem [#allocation6], %s796
        %p798 = scmp.lt.s32.totalorder %s41, 1
        %s799 = scalar_select %p798, %s41, 1
        %s800 = smul.addr %s799, 10
        %s801 = smul.addr %s800, 8
        %s802 = scalar_lea.vmem %s0, %s801
        %v803 = vld [vmem:[%s802] sm:$0xff]
        %v804 = vld [vmem:[%s802 + $0x8] sm:$0xff]
        %v805 = vld [vmem:[%s802 + $0x10] sm:$0xff]
        %v806 = vld [vmem:[%s802 + $0x18] sm:$0xff]
        %v807 = vld [vmem:[%s802 + $0x20] sm:$0xff]
        %v808 = vld [vmem:[%s802 + $0x28] sm:$0xff]
        %v809 = vld [vmem:[%s802 + $0x30] sm:$0xff]
        %v810 = vld [vmem:[%s802 + $0x38] sm:$0xff]
        %v811 = vld [vmem:[%s802 + $0x40] sm:$0xff]
        %v812 = vld [vmem:[%s802 + $0x48] sm:$0xff]
        %v813 = vld [vmem:[#allocation3] sm:$0x1f]
        %vm814 = vcmp.gt.f32.partialorder %v813, 0.5
        %vm815 = vcmask 818176
        %816 = vst.msk [vmem:[#allocation2] sm:$0xff] %vm815, 0.0
        %817 = vst.msk [vmem:[#allocation2 + $0x38] sm:$0xff] %vm815, 0.0
        %vm818 = vcmask 1047840
        %819 = vst.msk [vmem:[#allocation2 + $0x28] sm:$0xff] %vm818, 0.0
        %vm820 = vcmask 64512
        %821 = vst.msk [vmem:[#allocation2 + $0x30] sm:$0xff] %vm820, 0.0
        %822 = vst.msk [vmem:[#allocation2 + $0x60] sm:$0xff] %vm818, 0.0
        %823 = vst.msk [vmem:[#allocation2 + $0x68] sm:$0xff] %vm820, 0.0
        %v824 = vld [vmem:[%s2] sm:$0xff]
        %v825 = vld [vmem:[%s2 + $0x8] sm:$0xff]
        %v826 = vld [vmem:[%s3] sm:$0xff]
        %v827 = vld [vmem:[%s3 + $0x8] sm:$0xff]
        %829 = vset.pattern.permute.xlu0 0
        %830 = vperm.xlu0 %829, %v826
        %v831 = vpop.permute.xlu0 %830
        %834 = vset.pattern.permute.xlu0 0
        %835 = vperm.xlu0 %834, %v827
        %v836 = vpop.permute.xlu0 %835
        %vm838 = vcmask 130048
        %v840 = vsel %vm838, %v824, 0
        %v843 = vsel %vm838, %v825, 0
        %845 = vmatprep.subr.mxu0 %v804
        %846 = vmatpush1.msra.mxu0 %v803
        %847 = vmatprep.subr.mxu0 %v809
        %848 = vmatpush1.msra.mxu0 %v808
        %849 = vmatprep.subr.mxu0 0.0
        %850 = vmatpush1.msra.mxu0 0.0
        %851 = vmatprep.subr.mxu0 0.0
        %852 = vmatpush1.msra.mxu0 0.0
        %853 = vmatprep.subr.mxu0 0.0
        %854 = vmatpush1.msra.mxu0 0.0
        %855 = vmatprep.subr.mxu0 0.0
        %856 = vmatpush1.msra.mxu0 0.0
        %857 = vmatprep.subr.mxu0 0.0
        %858 = vmatpush1.msra.mxu0 0.0
        %859 = vmatprep.subr.mxu0 0.0
        %860 = vmatpush1.msra.mxu0 0.0
        %861 = vmatprep.subr.mxu0 0.0
        %862 = vmatpush1.msra.mxu0 0.0
        %863 = vmatprep.subr.mxu0 0.0
        %864 = vmatpush1.msra.mxu0 0.0
        %865 = vmatprep.subr.mxu0 0.0
        %866 = vmatpush1.msra.mxu0 0.0
        %867 = vmatprep.subr.mxu0 0.0
        %868 = vmatpush1.msra.mxu0 0.0
        %869 = vmatprep.subr.mxu0 0.0
        %870 = vmatpush1.msra.mxu0 0.0
        %871 = vmatprep.subr.mxu0 0.0
        %872 = vmatpush1.msra.mxu0 0.0
        %873 = vmatprep.subr.mxu0 0.0
        %874 = vmatpush1.msra.mxu0 0.0
        %875 = vmatprep.subr.mxu0 0.0
        %876 = vmatpush1.msra.mxu0 0.0
        %877 = vmatprep.subr.mxu0 0.0
        %878 = vmatpush1.msra.mxu0 0.0
        %879 = vmatprep.subr.mxu0 0.0
        %880 = vmatpush1.msra.mxu0 0.0
        %881 = vmatprep.subr.mxu0 0.0
        %882 = vmatpush1.msra.mxu0 0.0
        %883 = vmatprep.subr.mxu0 0.0
        %884 = vmatpush1.msra.mxu0 0.0
        %885 = vmatprep.subr.mxu0 0.0
        %886 = vmatpush1.msra.mxu0 0.0
        %887 = vmatprep.subr.mxu0 0.0
        %888 = vmatpush1.msra.mxu0 0.0
        %889 = vmatprep.subr.mxu0 0.0
        %890 = vmatpush1.msra.mxu0 0.0
        %891 = vmatprep.subr.mxu0 0.0
        %892 = vmatpush1.msra.mxu0 0.0
        %893 = vmatprep.subr.mxu0 0.0
        %894 = vmatpush1.msra.mxu0 0.0
        %895 = vmatprep.subr.mxu0 0.0
        %896 = vmatpush1.msra.mxu0 0.0
        %897 = vmatprep.subr.mxu0 0.0
        %898 = vmatpush1.msra.mxu0 0.0
        %899 = vmatprep.subr.mxu0 0.0
        %900 = vmatpush1.msra.mxu0 0.0
        %901 = vmatprep.subr.mxu0 0.0
        %902 = vmatpush1.msra.mxu0 0.0
        %903 = vmatprep.subr.mxu0 0.0
        %904 = vmatpush1.msra.mxu0 0.0
        %905 = vmatprep.subr.mxu0 0.0
        %906 = vmatpush1.msra.mxu0 0.0
        %907 = vmatprep.subr.mxu0 0.0
        %908 = vmatpush1.msra.mxu0 0.0
        %909 = vmatprep.mubr.f32.mxu0 0.0
        %910 = vmatmul.mubr.f32.gmra.mrb[0].mxu0 %v840
        %v911 = vpop.f32.mrb[0].mxu0
        %v912 = vadd.f32 %v831, %v911
        %v913 = vpop.f32.mrb[0].mxu0
        %v914 = vadd.f32 %v831, %v913
        %915 = vmatprep.mubr.f32.mxu0 0.0
        %916 = vmatmul.mubr.f32.gmra.mrb[0].mxu0 %v843
        %v917 = vpop.f32.mrb[0].mxu0
        %v918 = vadd.f32 %v836, %v917
        %v919 = vpop.f32.mrb[0].mxu0
        %v920 = vadd.f32 %v836, %v919
        %921 = vdwg.mxu0
        %922 = vmatprep.subr.mxu0 %v806
        %923 = vmatpush1.msra.mxu0 %v805
        %924 = vmatprep.subr.mxu0 %v811
        %925 = vmatpush1.msra.mxu0 %v810
        %926 = vmatprep.subr.mxu0 0.0
        %927 = vmatpush1.msra.mxu0 0.0
        %928 = vmatprep.subr.mxu0 0.0
        %929 = vmatpush1.msra.mxu0 0.0
        %930 = vmatprep.subr.mxu0 0.0
        %931 = vmatpush1.msra.mxu0 0.0
        %932 = vmatprep.subr.mxu0 0.0
        %933 = vmatpush1.msra.mxu0 0.0
        %934 = vmatprep.subr.mxu0 0.0
        %935 = vmatpush1.msra.mxu0 0.0
        %936 = vmatprep.subr.mxu0 0.0
        %937 = vmatpush1.msra.mxu0 0.0
        %938 = vmatprep.subr.mxu0 0.0
        %939 = vmatpush1.msra.mxu0 0.0
        %940 = vmatprep.subr.mxu0 0.0
        %941 = vmatpush1.msra.mxu0 0.0
        %942 = vmatprep.subr.mxu0 0.0
        %943 = vmatpush1.msra.mxu0 0.0
        %944 = vmatprep.subr.mxu0 0.0
        %945 = vmatpush1.msra.mxu0 0.0
        %946 = vmatprep.subr.mxu0 0.0
        %947 = vmatpush1.msra.mxu0 0.0
        %948 = vmatprep.subr.mxu0 0.0
        %949 = vmatpush1.msra.mxu0 0.0
        %950 = vmatprep.subr.mxu0 0.0
        %951 = vmatpush1.msra.mxu0 0.0
        %952 = vmatprep.subr.mxu0 0.0
        %953 = vmatpush1.msra.mxu0 0.0
        %954 = vmatprep.subr.mxu0 0.0
        %955 = vmatpush1.msra.mxu0 0.0
        %956 = vmatprep.subr.mxu0 0.0
        %957 = vmatpush1.msra.mxu0 0.0
        %958 = vmatprep.subr.mxu0 0.0
        %959 = vmatpush1.msra.mxu0 0.0
        %960 = vmatprep.subr.mxu0 0.0
        %961 = vmatpush1.msra.mxu0 0.0
        %962 = vmatprep.subr.mxu0 0.0
        %963 = vmatpush1.msra.mxu0 0.0
        %964 = vmatprep.subr.mxu0 0.0
        %965 = vmatpush1.msra.mxu0 0.0
        %966 = vmatprep.subr.mxu0 0.0
        %967 = vmatpush1.msra.mxu0 0.0
        %968 = vmatprep.subr.mxu0 0.0
        %969 = vmatpush1.msra.mxu0 0.0
        %970 = vmatprep.subr.mxu0 0.0
        %971 = vmatpush1.msra.mxu0 0.0
        %972 = vmatprep.subr.mxu0 0.0
        %973 = vmatpush1.msra.mxu0 0.0
        %974 = vmatprep.subr.mxu0 0.0
        %975 = vmatpush1.msra.mxu0 0.0
        %976 = vmatprep.subr.mxu0 0.0
        %977 = vmatpush1.msra.mxu0 0.0
        %978 = vmatprep.subr.mxu0 0.0
        %979 = vmatpush1.msra.mxu0 0.0
        %980 = vmatprep.subr.mxu0 0.0
        %981 = vmatpush1.msra.mxu0 0.0
        %982 = vmatprep.subr.mxu0 0.0
        %983 = vmatpush1.msra.mxu0 0.0
        %984 = vmatprep.subr.mxu0 0.0
        %985 = vmatpush1.msra.mxu0 0.0
        %986 = vmatprep.mubr.f32.mxu0 0.0
        %987 = vmatmul.mubr.f32.gmra.mrb[0].mxu0 %v840
        %v988 = vpop.f32.mrb[0].mxu0
        %v989 = vadd.f32 %v831, %v988
        %v990 = vpop.f32.mrb[0].mxu0
        %v991 = vadd.f32 %v831, %v990
        %992 = vmatprep.mubr.f32.mxu0 0.0
        %993 = vmatmul.mubr.f32.gmra.mrb[0].mxu0 %v843
        %v994 = vpop.f32.mrb[0].mxu0
        %v995 = vadd.f32 %v836, %v994
        %v996 = vpop.f32.mrb[0].mxu0
        %v997 = vadd.f32 %v836, %v996
        %998 = vdwg.mxu0
        %999 = vmatprep.subr.mxu0 0.0
        %1000 = vmatpush1.msra.mxu0 %v807
        %1001 = vmatprep.subr.mxu0 0.0
        %1002 = vmatpush1.msra.mxu0 %v812
        %1003 = vmatprep.subr.mxu0 0.0
        %1004 = vmatpush1.msra.mxu0 0.0
        %1005 = vmatprep.subr.mxu0 0.0
        %1006 = vmatpush1.msra.mxu0 0.0
        %1007 = vmatprep.subr.mxu0 0.0
        %1008 = vmatpush1.msra.mxu0 0.0
        %1009 = vmatprep.subr.mxu0 0.0
        %1010 = vmatpush1.msra.mxu0 0.0
        %1011 = vmatprep.subr.mxu0 0.0
        %1012 = vmatpush1.msra.mxu0 0.0
        %1013 = vmatprep.subr.mxu0 0.0
        %1014 = vmatpush1.msra.mxu0 0.0
        %1015 = vmatprep.subr.mxu0 0.0
        %1016 = vmatpush1.msra.mxu0 0.0
        %1017 = vmatprep.subr.mxu0 0.0
        %1018 = vmatpush1.msra.mxu0 0.0
        %1019 = vmatprep.subr.mxu0 0.0
        %1020 = vmatpush1.msra.mxu0 0.0
        %1021 = vmatprep.subr.mxu0 0.0
        %1022 = vmatpush1.msra.mxu0 0.0
        %1023 = vmatprep.subr.mxu0 0.0
        %1024 = vmatpush1.msra.mxu0 0.0
        %1025 = vmatprep.subr.mxu0 0.0
        %1026 = vmatpush1.msra.mxu0 0.0
        %1027 = vmatprep.subr.mxu0 0.0
        %1028 = vmatpush1.msra.mxu0 0.0
        %1029 = vmatprep.subr.mxu0 0.0
        %1030 = vmatpush1.msra.mxu0 0.0
        %1031 = vmatprep.subr.mxu0 0.0
        %1032 = vmatpush1.msra.mxu0 0.0
        %1033 = vmatprep.subr.mxu0 0.0
        %1034 = vmatpush1.msra.mxu0 0.0
        %1035 = vmatprep.subr.mxu0 0.0
        %1036 = vmatpush1.msra.mxu0 0.0
        %1037 = vmatprep.subr.mxu0 0.0
        %1038 = vmatpush1.msra.mxu0 0.0
        %1039 = vmatprep.subr.mxu0 0.0
        %1040 = vmatpush1.msra.mxu0 0.0
        %1041 = vmatprep.subr.mxu0 0.0
        %1042 = vmatpush1.msra.mxu0 0.0
        %1043 = vmatprep.subr.mxu0 0.0
        %1044 = vmatpush1.msra.mxu0 0.0
        %1045 = vmatprep.subr.mxu0 0.0
        %1046 = vmatpush1.msra.mxu0 0.0
        %1047 = vmatprep.subr.mxu0 0.0
        %1048 = vmatpush1.msra.mxu0 0.0
        %1049 = vmatprep.subr.mxu0 0.0
        %1050 = vmatpush1.msra.mxu0 0.0
        %1051 = vmatprep.subr.mxu0 0.0
        %1052 = vmatpush1.msra.mxu0 0.0
        %1053 = vmatprep.subr.mxu0 0.0
        %1054 = vmatpush1.msra.mxu0 0.0
        %1055 = vmatprep.subr.mxu0 0.0
        %1056 = vmatpush1.msra.mxu0 0.0
        %1057 = vmatprep.subr.mxu0 0.0
        %1058 = vmatpush1.msra.mxu0 0.0
        %1059 = vmatprep.subr.mxu0 0.0
        %1060 = vmatpush1.msra.mxu0 0.0
        %1061 = vmatprep.subr.mxu0 0.0
        %1062 = vmatpush1.msra.mxu0 0.0
        %1063 = vmatprep.mubr.f32.mxu0 0.0
        %1064 = vmatmul.mubr.f32.gmra.mrb[0].mxu0 %v840
        %v1065 = vpop.f32.mrb[0].mxu0
        %v1066 = vadd.f32 %v831, %v1065
        %v1067 = vpop.f32.mrb[0].mxu0
        %1068 = vmatprep.mubr.f32.mxu0 0.0
        %1069 = vmatmul.mubr.f32.gmra.mrb[0].mxu0 %v843
        %v1070 = vpop.f32.mrb[0].mxu0
        %v1071 = vadd.f32 %v836, %v1070
        %v1072 = vpop.f32.mrb[0].mxu0
        %1073 = vdwg.mxu0
        %1084 = vrot.lane.b32.xlu0 %v803, 100
        %v1085 = vpop.permute.xlu0 %1084
        %1086 = vrot.lane.b32.xlu0 %v804, 100
        %v1087 = vpop.permute.xlu0 %1086
        %1088 = vrot.lane.b32.xlu0 %v805, 100
        %v1089 = vpop.permute.xlu0 %1088
        %1090 = vrot.lane.b32.xlu0 %v806, 100
        %v1091 = vpop.permute.xlu0 %1090
        %1092 = vrot.lane.b32.xlu0 %v807, 100
        %v1093 = vpop.permute.xlu0 %1092
        %1094 = vrot.lane.b32.xlu0 %v808, 100
        %v1095 = vpop.permute.xlu0 %1094
        %1096 = vrot.lane.b32.xlu0 %v809, 100
        %v1097 = vpop.permute.xlu0 %1096
        %1098 = vrot.lane.b32.xlu0 %v810, 100
        %v1099 = vpop.permute.xlu0 %1098
        %1100 = vrot.lane.b32.xlu0 %v811, 100
        %v1101 = vpop.permute.xlu0 %1100
        %1102 = vrot.lane.b32.xlu0 %v812, 100
        %v1103 = vpop.permute.xlu0 %1102
        %v1104 = vsel %vm815, %v1085, %v1087
        %v1105 = vsel %vm815, %v1087, %v1089
        %v1106 = vsel %vm815, %v1089, %v1091
        %v1107 = vsel %vm815, %v1091, %v1093
        %v1108 = vsel %vm815, %v1095, %v1097
        %v1109 = vsel %vm815, %v1097, %v1099
        %v1110 = vsel %vm815, %v1099, %v1101
        %v1111 = vsel %vm815, %v1101, %v1103
        %vm1124 = vcmask 1048352
        %1125 = vst.msk [vmem:[#allocation2] sm:$0xff] %vm1124, %v1085
        %1126 = vst [vmem:[#allocation2 + $0x8] sm:$0xff] %v1104
        %1127 = vst [vmem:[#allocation2 + $0x10] sm:$0xff] %v1105
        %1128 = vst [vmem:[#allocation2 + $0x18] sm:$0xff] %v1106
        %1129 = vst [vmem:[#allocation2 + $0x20] sm:$0xff] %v1107
        %vm1130 = vcmask 293888
        %1131 = vst.msk [vmem:[#allocation2 + $0x28] sm:$0xff] %vm1130, %v1093
        %1132 = vst.msk [vmem:[#allocation2 + $0x38] sm:$0xff] %vm1124, %v1095
        %1133 = vst [vmem:[#allocation2 + $0x40] sm:$0xff] %v1108
        %1134 = vst [vmem:[#allocation2 + $0x48] sm:$0xff] %v1109
        %1135 = vst [vmem:[#allocation2 + $0x50] sm:$0xff] %v1110
        %1136 = vst [vmem:[#allocation2 + $0x58] sm:$0xff] %v1111
        %1137 = vst.msk [vmem:[#allocation2 + $0x60] sm:$0xff] %vm1130, %v1103
        %v1138 = vld [vmem:[#allocation2] sm:$0xff]
        %v1139 = vld [vmem:[#allocation2 + $0x8] sm:$0xff]
        %v1140 = vld [vmem:[#allocation2 + $0x10] sm:$0xff]
        %v1141 = vld [vmem:[#allocation2 + $0x18] sm:$0xff]
        %v1142 = vld [vmem:[#allocation2 + $0x20] sm:$0xff]
        %v1143 = vld [vmem:[#allocation2 + $0x28] sm:$0xff]
        %v1144 = vld [vmem:[#allocation2 + $0x38] sm:$0xff]
        %v1145 = vld [vmem:[#allocation2 + $0x40] sm:$0xff]
        %v1146 = vld [vmem:[#allocation2 + $0x48] sm:$0xff]
        %v1147 = vld [vmem:[#allocation2 + $0x50] sm:$0xff]
        %v1148 = vld [vmem:[#allocation2 + $0x58] sm:$0xff]
        %v1149 = vld [vmem:[#allocation2 + $0x60] sm:$0xff]
        %v1150 = vld [vmem:[%s4] sm:$0xff]
        %v1151 = vld [vmem:[%s4 + $0x8] sm:$0xff]
        %1153 = vset.pattern.permute.xlu0 0
        %1154 = vperm.xlu0 %1153, %v1150
        %v1155 = vpop.permute.xlu0 %1154
        %1158 = vset.pattern.permute.xlu0 0
        %1159 = vperm.xlu0 %1158, %v1151
        %v1160 = vpop.permute.xlu0 %1159
        %v1162 = vmul.f32 %v1138, %v1155
        %v1163 = vmul.f32 %v1139, %v1155
        %v1164 = vmul.f32 %v1140, %v1155
        %v1165 = vmul.f32 %v1141, %v1155
        %v1166 = vmul.f32 %v1142, %v1155
        %v1167 = vmul.f32 %v1143, %v1155
        %v1168 = vmul.f32 %v1144, %v1160
        %v1169 = vmul.f32 %v1145, %v1160
        %v1170 = vmul.f32 %v1146, %v1160
        %v1171 = vmul.f32 %v1147, %v1160
        %v1172 = vmul.f32 %v1148, %v1160
        %v1173 = vmul.f32 %v1149, %v1160
        %1174 = vset.pattern.permute.xlu0 1
        %1175 = vperm.xlu0 %1174, %v1150
        %v1176 = vpop.permute.xlu0 %1175
        %1178 = vset.pattern.permute.xlu0 1
        %1179 = vperm.xlu0 %1178, %v1151
        %v1180 = vpop.permute.xlu0 %1179
        %v1182 = vmul.f32 %v1138, %v1176
        %v1183 = vmul.f32 %v1139, %v1176
        %v1184 = vmul.f32 %v1140, %v1176
        %v1185 = vmul.f32 %v1141, %v1176
        %v1186 = vmul.f32 %v1142, %v1176
        %v1187 = vmul.f32 %v1143, %v1176
        %v1188 = vmul.f32 %v1144, %v1180
        %v1189 = vmul.f32 %v1145, %v1180
        %v1190 = vmul.f32 %v1146, %v1180
        %v1191 = vmul.f32 %v1147, %v1180
        %v1192 = vmul.f32 %v1148, %v1180
        %v1193 = vmul.f32 %v1149, %v1180
        %1206 = vrot.lane.b32.xlu0 %v1182, 127
        %v1207 = vpop.permute.xlu0 %1206
        %1208 = vrot.lane.b32.xlu0 %v1183, 127
        %v1209 = vpop.permute.xlu0 %1208
        %1210 = vrot.lane.b32.xlu0 %v1184, 127
        %v1211 = vpop.permute.xlu0 %1210
        %1212 = vrot.lane.b32.xlu0 %v1185, 127
        %v1213 = vpop.permute.xlu0 %1212
        %1214 = vrot.lane.b32.xlu0 %v1186, 127
        %v1215 = vpop.permute.xlu0 %1214
        %1216 = vrot.lane.b32.xlu0 %v1187, 127
        %v1217 = vpop.permute.xlu0 %1216
        %1218 = vrot.lane.b32.xlu0 %v1188, 127
        %v1219 = vpop.permute.xlu0 %1218
        %1220 = vrot.lane.b32.xlu0 %v1189, 127
        %v1221 = vpop.permute.xlu0 %1220
        %1222 = vrot.lane.b32.xlu0 %v1190, 127
        %v1223 = vpop.permute.xlu0 %1222
        %1224 = vrot.lane.b32.xlu0 %v1191, 127
        %v1225 = vpop.permute.xlu0 %1224
        %1226 = vrot.lane.b32.xlu0 %v1192, 127
        %v1227 = vpop.permute.xlu0 %1226
        %1228 = vrot.lane.b32.xlu0 %v1193, 127
        %v1229 = vpop.permute.xlu0 %1228
        %vm1230 = vcmask 1039360
        %v1231 = vsel %vm1230, %v1207, %v1209
        %v1232 = vsel %vm1230, %v1209, %v1211
        %v1233 = vsel %vm1230, %v1211, %v1213
        %v1234 = vsel %vm1230, %v1213, %v1215
        %v1235 = vsel %vm1230, %v1215, %v1217
        %v1236 = vsel %vm1230, %v1219, %v1221
        %v1237 = vsel %vm1230, %v1221, %v1223
        %v1238 = vsel %vm1230, %v1223, %v1225
        %v1239 = vsel %vm1230, %v1225, %v1227
        %v1240 = vsel %vm1230, %v1227, %v1229
        %v1253 = vadd.f32 %v1162, %v1231
        %v1254 = vadd.f32 %v1163, %v1232
        %v1255 = vadd.f32 %v1164, %v1233
        %v1256 = vadd.f32 %v1165, %v1234
        %v1257 = vadd.f32 %v1166, %v1235
        %v1258 = vadd.f32 %v1167, %v1217
        %v1259 = vadd.f32 %v1168, %v1236
        %v1260 = vadd.f32 %v1169, %v1237
        %v1261 = vadd.f32 %v1170, %v1238
        %v1262 = vadd.f32 %v1171, %v1239
        %v1263 = vadd.f32 %v1172, %v1240
        %v1264 = vadd.f32 %v1173, %v1229
        %1265 = vset.pattern.permute.xlu0 2
        %1266 = vperm.xlu0 %1265, %v1150
        %v1267 = vpop.permute.xlu0 %1266
        %1269 = vset.pattern.permute.xlu0 2
        %1270 = vperm.xlu0 %1269, %v1151
        %v1271 = vpop.permute.xlu0 %1270
        %v1273 = vmul.f32 %v1138, %v1267
        %v1274 = vmul.f32 %v1139, %v1267
        %v1275 = vmul.f32 %v1140, %v1267
        %v1276 = vmul.f32 %v1141, %v1267
        %v1277 = vmul.f32 %v1142, %v1267
        %v1278 = vmul.f32 %v1143, %v1267
        %v1279 = vmul.f32 %v1144, %v1271
        %v1280 = vmul.f32 %v1145, %v1271
        %v1281 = vmul.f32 %v1146, %v1271
        %v1282 = vmul.f32 %v1147, %v1271
        %v1283 = vmul.f32 %v1148, %v1271
        %v1284 = vmul.f32 %v1149, %v1271
        %1297 = vrot.lane.b32.xlu0 %v1273, 126
        %v1298 = vpop.permute.xlu0 %1297
        %1299 = vrot.lane.b32.xlu0 %v1274, 126
        %v1300 = vpop.permute.xlu0 %1299
        %1301 = vrot.lane.b32.xlu0 %v1275, 126
        %v1302 = vpop.permute.xlu0 %1301
        %1303 = vrot.lane.b32.xlu0 %v1276, 126
        %v1304 = vpop.permute.xlu0 %1303
        %1305 = vrot.lane.b32.xlu0 %v1277, 126
        %v1306 = vpop.permute.xlu0 %1305
        %1307 = vrot.lane.b32.xlu0 %v1278, 126
        %v1308 = vpop.permute.xlu0 %1307
        %1309 = vrot.lane.b32.xlu0 %v1279, 126
        %v1310 = vpop.permute.xlu0 %1309
        %1311 = vrot.lane.b32.xlu0 %v1280, 126
        %v1312 = vpop.permute.xlu0 %1311
        %1313 = vrot.lane.b32.xlu0 %v1281, 126
        %v1314 = vpop.permute.xlu0 %1313
        %1315 = vrot.lane.b32.xlu0 %v1282, 126
        %v1316 = vpop.permute.xlu0 %1315
        %1317 = vrot.lane.b32.xlu0 %v1283, 126
        %v1318 = vpop.permute.xlu0 %1317
        %1319 = vrot.lane.b32.xlu0 %v1284, 126
        %v1320 = vpop.permute.xlu0 %1319
        %vm1321 = vcmask 1031168
        %v1322 = vsel %vm1321, %v1298, %v1300
        %v1323 = vsel %vm1321, %v1300, %v1302
        %v1324 = vsel %vm1321, %v1302, %v1304
        %v1325 = vsel %vm1321, %v1304, %v1306
        %v1326 = vsel %vm1321, %v1306, %v1308
        %v1327 = vsel %vm1321, %v1310, %v1312
        %v1328 = vsel %vm1321, %v1312, %v1314
        %v1329 = vsel %vm1321, %v1314, %v1316
        %v1330 = vsel %vm1321, %v1316, %v1318
        %v1331 = vsel %vm1321, %v1318, %v1320
        %v1344 = vadd.f32 %v1253, %v1322
        %v1345 = vadd.f32 %v1254, %v1323
        %v1346 = vadd.f32 %v1255, %v1324
        %v1347 = vadd.f32 %v1256, %v1325
        %v1348 = vadd.f32 %v1257, %v1326
        %v1349 = vadd.f32 %v1258, %v1308
        %v1350 = vadd.f32 %v1259, %v1327
        %v1351 = vadd.f32 %v1260, %v1328
        %v1352 = vadd.f32 %v1261, %v1329
        %v1353 = vadd.f32 %v1262, %v1330
        %v1354 = vadd.f32 %v1263, %v1331
        %v1355 = vadd.f32 %v1264, %v1320
        %1356 = vset.pattern.permute.xlu0 3
        %1357 = vperm.xlu0 %1356, %v1150
        %v1358 = vpop.permute.xlu0 %1357
        %1360 = vset.pattern.permute.xlu0 3
        %1361 = vperm.xlu0 %1360, %v1151
        %v1362 = vpop.permute.xlu0 %1361
        %v1364 = vmul.f32 %v1138, %v1358
        %v1365 = vmul.f32 %v1139, %v1358
        %v1366 = vmul.f32 %v1140, %v1358
        %v1367 = vmul.f32 %v1141, %v1358
        %v1368 = vmul.f32 %v1142, %v1358
        %v1369 = vmul.f32 %v1143, %v1358
        %v1370 = vmul.f32 %v1144, %v1362
        %v1371 = vmul.f32 %v1145, %v1362
        %v1372 = vmul.f32 %v1146, %v1362
        %v1373 = vmul.f32 %v1147, %v1362
        %v1374 = vmul.f32 %v1148, %v1362
        %v1375 = vmul.f32 %v1149, %v1362
        %1388 = vrot.lane.b32.xlu0 %v1364, 104
        %v1389 = vpop.permute.xlu0 %1388
        %1390 = vrot.lane.b32.xlu0 %v1365, 104
        %v1391 = vpop.permute.xlu0 %1390
        %1392 = vrot.lane.b32.xlu0 %v1366, 104
        %v1393 = vpop.permute.xlu0 %1392
        %1394 = vrot.lane.b32.xlu0 %v1367, 104
        %v1395 = vpop.permute.xlu0 %1394
        %1396 = vrot.lane.b32.xlu0 %v1368, 104
        %v1397 = vpop.permute.xlu0 %1396
        %1398 = vrot.lane.b32.xlu0 %v1369, 104
        %v1399 = vpop.permute.xlu0 %1398
        %1400 = vrot.lane.b32.xlu0 %v1370, 104
        %v1401 = vpop.permute.xlu0 %1400
        %1402 = vrot.lane.b32.xlu0 %v1371, 104
        %v1403 = vpop.permute.xlu0 %1402
        %1404 = vrot.lane.b32.xlu0 %v1372, 104
        %v1405 = vpop.permute.xlu0 %1404
        %1406 = vrot.lane.b32.xlu0 %v1373, 104
        %v1407 = vpop.permute.xlu0 %1406
        %1408 = vrot.lane.b32.xlu0 %v1374, 104
        %v1409 = vpop.permute.xlu0 %1408
        %1410 = vrot.lane.b32.xlu0 %v1375, 104
        %v1411 = vpop.permute.xlu0 %1410
        %vm1412 = vcmask 850944
        %v1413 = vsel %vm1412, %v1389, %v1391
        %v1414 = vsel %vm1412, %v1391, %v1393
        %v1415 = vsel %vm1412, %v1393, %v1395
        %v1416 = vsel %vm1412, %v1395, %v1397
        %v1417 = vsel %vm1412, %v1397, %v1399
        %v1418 = vsel %vm1412, %v1401, %v1403
        %v1419 = vsel %vm1412, %v1403, %v1405
        %v1420 = vsel %vm1412, %v1405, %v1407
        %v1421 = vsel %vm1412, %v1407, %v1409
        %v1422 = vsel %vm1412, %v1409, %v1411
        %v1435 = vadd.f32 %v1344, %v1413
        %v1436 = vadd.f32 %v1345, %v1414
        %v1437 = vadd.f32 %v1346, %v1415
        %v1438 = vadd.f32 %v1347, %v1416
        %v1439 = vadd.f32 %v1348, %v1417
        %v1440 = vadd.f32 %v1349, %v1399
        %v1441 = vadd.f32 %v1350, %v1418
        %v1442 = vadd.f32 %v1351, %v1419
        %v1443 = vadd.f32 %v1352, %v1420
        %v1444 = vadd.f32 %v1353, %v1421
        %v1445 = vadd.f32 %v1354, %v1422
        %v1446 = vadd.f32 %v1355, %v1411
        %1447 = vset.pattern.permute.xlu0 4
        %1448 = vperm.xlu0 %1447, %v1150
        %v1449 = vpop.permute.xlu0 %1448
        %1451 = vset.pattern.permute.xlu0 4
        %1452 = vperm.xlu0 %1451, %v1151
        %v1453 = vpop.permute.xlu0 %1452
        %v1455 = vmul.f32 %v1138, %v1449
        %v1456 = vmul.f32 %v1139, %v1449
        %v1457 = vmul.f32 %v1140, %v1449
        %v1458 = vmul.f32 %v1141, %v1449
        %v1459 = vmul.f32 %v1142, %v1449
        %v1460 = vmul.f32 %v1143, %v1449
        %v1461 = vmul.f32 %v1144, %v1453
        %v1462 = vmul.f32 %v1145, %v1453
        %v1463 = vmul.f32 %v1146, %v1453
        %v1464 = vmul.f32 %v1147, %v1453
        %v1465 = vmul.f32 %v1148, %v1453
        %v1466 = vmul.f32 %v1149, %v1453
        %1479 = vrot.lane.b32.xlu0 %v1455, 103
        %v1480 = vpop.permute.xlu0 %1479
        %1481 = vrot.lane.b32.xlu0 %v1456, 103
        %v1482 = vpop.permute.xlu0 %1481
        %1483 = vrot.lane.b32.xlu0 %v1457, 103
        %v1484 = vpop.permute.xlu0 %1483
        %1485 = vrot.lane.b32.xlu0 %v1458, 103
        %v1486 = vpop.permute.xlu0 %1485
        %1487 = vrot.lane.b32.xlu0 %v1459, 103
        %v1488 = vpop.permute.xlu0 %1487
        %1489 = vrot.lane.b32.xlu0 %v1460, 103
        %v1490 = vpop.permute.xlu0 %1489
        %1491 = vrot.lane.b32.xlu0 %v1461, 103
        %v1492 = vpop.permute.xlu0 %1491
        %1493 = vrot.lane.b32.xlu0 %v1462, 103
        %v1494 = vpop.permute.xlu0 %1493
        %1495 = vrot.lane.b32.xlu0 %v1463, 103
        %v1496 = vpop.permute.xlu0 %1495
        %1497 = vrot.lane.b32.xlu0 %v1464, 103
        %v1498 = vpop.permute.xlu0 %1497
        %1499 = vrot.lane.b32.xlu0 %v1465, 103
        %v1500 = vpop.permute.xlu0 %1499
        %1501 = vrot.lane.b32.xlu0 %v1466, 103
        %v1502 = vpop.permute.xlu0 %1501
        %vm1503 = vcmask 842752
        %v1504 = vsel %vm1503, %v1480, %v1482
        %v1505 = vsel %vm1503, %v1482, %v1484
        %v1506 = vsel %vm1503, %v1484, %v1486
        %v1507 = vsel %vm1503, %v1486, %v1488
        %v1508 = vsel %vm1503, %v1488, %v1490
        %v1509 = vsel %vm1503, %v1492, %v1494
        %v1510 = vsel %vm1503, %v1494, %v1496
        %v1511 = vsel %vm1503, %v1496, %v1498
        %v1512 = vsel %vm1503, %v1498, %v1500
        %v1513 = vsel %vm1503, %v1500, %v1502
        %v1526 = vadd.f32 %v1435, %v1504
        %v1527 = vadd.f32 %v1436, %v1505
        %v1528 = vadd.f32 %v1437, %v1506
        %v1529 = vadd.f32 %v1438, %v1507
        %v1530 = vadd.f32 %v1439, %v1508
        %v1531 = vadd.f32 %v1440, %v1490
        %v1532 = vadd.f32 %v1441, %v1509
        %v1533 = vadd.f32 %v1442, %v1510
        %v1534 = vadd.f32 %v1443, %v1511
        %v1535 = vadd.f32 %v1444, %v1512
        %v1536 = vadd.f32 %v1445, %v1513
        %v1537 = vadd.f32 %v1446, %v1502
        %1538 = vset.pattern.permute.xlu0 5
        %1539 = vperm.xlu0 %1538, %v1150
        %v1540 = vpop.permute.xlu0 %1539
        %1542 = vset.pattern.permute.xlu0 5
        %1543 = vperm.xlu0 %1542, %v1151
        %v1544 = vpop.permute.xlu0 %1543
        %v1546 = vmul.f32 %v1138, %v1540
        %v1547 = vmul.f32 %v1139, %v1540
        %v1548 = vmul.f32 %v1140, %v1540
        %v1549 = vmul.f32 %v1141, %v1540
        %v1550 = vmul.f32 %v1142, %v1540
        %v1551 = vmul.f32 %v1143, %v1540
        %v1552 = vmul.f32 %v1144, %v1544
        %v1553 = vmul.f32 %v1145, %v1544
        %v1554 = vmul.f32 %v1146, %v1544
        %v1555 = vmul.f32 %v1147, %v1544
        %v1556 = vmul.f32 %v1148, %v1544
        %v1557 = vmul.f32 %v1149, %v1544
        %1570 = vrot.lane.b32.xlu0 %v1546, 102
        %v1571 = vpop.permute.xlu0 %1570
        %1572 = vrot.lane.b32.xlu0 %v1547, 102
        %v1573 = vpop.permute.xlu0 %1572
        %1574 = vrot.lane.b32.xlu0 %v1548, 102
        %v1575 = vpop.permute.xlu0 %1574
        %1576 = vrot.lane.b32.xlu0 %v1549, 102
        %v1577 = vpop.permute.xlu0 %1576
        %1578 = vrot.lane.b32.xlu0 %v1550, 102
        %v1579 = vpop.permute.xlu0 %1578
        %1580 = vrot.lane.b32.xlu0 %v1551, 102
        %v1581 = vpop.permute.xlu0 %1580
        %1582 = vrot.lane.b32.xlu0 %v1552, 102
        %v1583 = vpop.permute.xlu0 %1582
        %1584 = vrot.lane.b32.xlu0 %v1553, 102
        %v1585 = vpop.permute.xlu0 %1584
        %1586 = vrot.lane.b32.xlu0 %v1554, 102
        %v1587 = vpop.permute.xlu0 %1586
        %1588 = vrot.lane.b32.xlu0 %v1555, 102
        %v1589 = vpop.permute.xlu0 %1588
        %1590 = vrot.lane.b32.xlu0 %v1556, 102
        %v1591 = vpop.permute.xlu0 %1590
        %1592 = vrot.lane.b32.xlu0 %v1557, 102
        %v1593 = vpop.permute.xlu0 %1592
        %vm1594 = vcmask 834560
        %v1595 = vsel %vm1594, %v1571, %v1573
        %v1596 = vsel %vm1594, %v1573, %v1575
        %v1597 = vsel %vm1594, %v1575, %v1577
        %v1598 = vsel %vm1594, %v1577, %v1579
        %v1599 = vsel %vm1594, %v1579, %v1581
        %v1600 = vsel %vm1594, %v1583, %v1585
        %v1601 = vsel %vm1594, %v1585, %v1587
        %v1602 = vsel %vm1594, %v1587, %v1589
        %v1603 = vsel %vm1594, %v1589, %v1591
        %v1604 = vsel %vm1594, %v1591, %v1593
        %v1617 = vadd.f32 %v1526, %v1595
        %v1618 = vadd.f32 %v1527, %v1596
        %v1619 = vadd.f32 %v1528, %v1597
        %v1620 = vadd.f32 %v1529, %v1598
        %v1621 = vadd.f32 %v1530, %v1599
        %v1622 = vadd.f32 %v1531, %v1581
        %v1623 = vadd.f32 %v1532, %v1600
        %v1624 = vadd.f32 %v1533, %v1601
        %v1625 = vadd.f32 %v1534, %v1602
        %v1626 = vadd.f32 %v1535, %v1603
        %v1627 = vadd.f32 %v1536, %v1604
        %v1628 = vadd.f32 %v1537, %v1593
        %1629 = vset.pattern.permute.xlu0 6
        %1630 = vperm.xlu0 %1629, %v1150
        %v1631 = vpop.permute.xlu0 %1630
        %1633 = vset.pattern.permute.xlu0 6
        %1634 = vperm.xlu0 %1633, %v1151
        %v1635 = vpop.permute.xlu0 %1634
        %v1637 = vmul.f32 %v1138, %v1631
        %v1638 = vmul.f32 %v1139, %v1631
        %v1639 = vmul.f32 %v1140, %v1631
        %v1640 = vmul.f32 %v1141, %v1631
        %v1641 = vmul.f32 %v1142, %v1631
        %v1642 = vmul.f32 %v1143, %v1631
        %v1643 = vmul.f32 %v1144, %v1635
        %v1644 = vmul.f32 %v1145, %v1635
        %v1645 = vmul.f32 %v1146, %v1635
        %v1646 = vmul.f32 %v1147, %v1635
        %v1647 = vmul.f32 %v1148, %v1635
        %v1648 = vmul.f32 %v1149, %v1635
        %1661 = vrot.lane.b32.xlu0 %v1637, 80
        %v1662 = vpop.permute.xlu0 %1661
        %1663 = vrot.lane.b32.xlu0 %v1638, 80
        %v1664 = vpop.permute.xlu0 %1663
        %1665 = vrot.lane.b32.xlu0 %v1639, 80
        %v1666 = vpop.permute.xlu0 %1665
        %1667 = vrot.lane.b32.xlu0 %v1640, 80
        %v1668 = vpop.permute.xlu0 %1667
        %1669 = vrot.lane.b32.xlu0 %v1641, 80
        %v1670 = vpop.permute.xlu0 %1669
        %1671 = vrot.lane.b32.xlu0 %v1642, 80
        %v1672 = vpop.permute.xlu0 %1671
        %1673 = vrot.lane.b32.xlu0 %v1643, 80
        %v1674 = vpop.permute.xlu0 %1673
        %1675 = vrot.lane.b32.xlu0 %v1644, 80
        %v1676 = vpop.permute.xlu0 %1675
        %1677 = vrot.lane.b32.xlu0 %v1645, 80
        %v1678 = vpop.permute.xlu0 %1677
        %1679 = vrot.lane.b32.xlu0 %v1646, 80
        %v1680 = vpop.permute.xlu0 %1679
        %1681 = vrot.lane.b32.xlu0 %v1647, 80
        %v1682 = vpop.permute.xlu0 %1681
        %1683 = vrot.lane.b32.xlu0 %v1648, 80
        %v1684 = vpop.permute.xlu0 %1683
        %vm1685 = vcmask 654336
        %v1686 = vsel %vm1685, %v1662, %v1664
        %v1687 = vsel %vm1685, %v1664, %v1666
        %v1688 = vsel %vm1685, %v1666, %v1668
        %v1689 = vsel %vm1685, %v1668, %v1670
        %v1690 = vsel %vm1685, %v1670, %v1672
        %v1691 = vsel %vm1685, %v1674, %v1676
        %v1692 = vsel %vm1685, %v1676, %v1678
        %v1693 = vsel %vm1685, %v1678, %v1680
        %v1694 = vsel %vm1685, %v1680, %v1682
        %v1695 = vsel %vm1685, %v1682, %v1684
        %v1708 = vadd.f32 %v1617, %v1686
        %v1709 = vadd.f32 %v1618, %v1687
        %v1710 = vadd.f32 %v1619, %v1688
        %v1711 = vadd.f32 %v1620, %v1689
        %v1712 = vadd.f32 %v1621, %v1690
        %v1713 = vadd.f32 %v1622, %v1672
        %v1714 = vadd.f32 %v1623, %v1691
        %v1715 = vadd.f32 %v1624, %v1692
        %v1716 = vadd.f32 %v1625, %v1693
        %v1717 = vadd.f32 %v1626, %v1694
        %v1718 = vadd.f32 %v1627, %v1695
        %v1719 = vadd.f32 %v1628, %v1684
        %1720 = vset.pattern.permute.xlu0 7
        %1721 = vperm.xlu0 %1720, %v1150
        %v1722 = vpop.permute.xlu0 %1721
        %1724 = vset.pattern.permute.xlu0 7
        %1725 = vperm.xlu0 %1724, %v1151
        %v1726 = vpop.permute.xlu0 %1725
        %v1728 = vmul.f32 %v1138, %v1722
        %v1729 = vmul.f32 %v1139, %v1722
        %v1730 = vmul.f32 %v1140, %v1722
        %v1731 = vmul.f32 %v1141, %v1722
        %v1732 = vmul.f32 %v1142, %v1722
        %v1733 = vmul.f32 %v1143, %v1722
        %v1734 = vmul.f32 %v1144, %v1726
        %v1735 = vmul.f32 %v1145, %v1726
        %v1736 = vmul.f32 %v1146, %v1726
        %v1737 = vmul.f32 %v1147, %v1726
        %v1738 = vmul.f32 %v1148, %v1726
        %v1739 = vmul.f32 %v1149, %v1726
        %1752 = vrot.lane.b32.xlu0 %v1728, 79
        %v1753 = vpop.permute.xlu0 %1752
        %1754 = vrot.lane.b32.xlu0 %v1729, 79
        %v1755 = vpop.permute.xlu0 %1754
        %1756 = vrot.lane.b32.xlu0 %v1730, 79
        %v1757 = vpop.permute.xlu0 %1756
        %1758 = vrot.lane.b32.xlu0 %v1731, 79
        %v1759 = vpop.permute.xlu0 %1758
        %1760 = vrot.lane.b32.xlu0 %v1732, 79
        %v1761 = vpop.permute.xlu0 %1760
        %1762 = vrot.lane.b32.xlu0 %v1733, 79
        %v1763 = vpop.permute.xlu0 %1762
        %1764 = vrot.lane.b32.xlu0 %v1734, 79
        %v1765 = vpop.permute.xlu0 %1764
        %1766 = vrot.lane.b32.xlu0 %v1735, 79
        %v1767 = vpop.permute.xlu0 %1766
        %1768 = vrot.lane.b32.xlu0 %v1736, 79
        %v1769 = vpop.permute.xlu0 %1768
        %1770 = vrot.lane.b32.xlu0 %v1737, 79
        %v1771 = vpop.permute.xlu0 %1770
        %1772 = vrot.lane.b32.xlu0 %v1738, 79
        %v1773 = vpop.permute.xlu0 %1772
        %1774 = vrot.lane.b32.xlu0 %v1739, 79
        %v1775 = vpop.permute.xlu0 %1774
        %vm1776 = vcmask 646144
        %v1777 = vsel %vm1776, %v1753, %v1755
        %v1778 = vsel %vm1776, %v1755, %v1757
        %v1779 = vsel %vm1776, %v1757, %v1759
        %v1780 = vsel %vm1776, %v1759, %v1761
        %v1781 = vsel %vm1776, %v1761, %v1763
        %v1782 = vsel %vm1776, %v1765, %v1767
        %v1783 = vsel %vm1776, %v1767, %v1769
        %v1784 = vsel %vm1776, %v1769, %v1771
        %v1785 = vsel %vm1776, %v1771, %v1773
        %v1786 = vsel %vm1776, %v1773, %v1775
        %v1799 = vadd.f32 %v1708, %v1777
        %v1800 = vadd.f32 %v1709, %v1778
        %v1801 = vadd.f32 %v1710, %v1779
        %v1802 = vadd.f32 %v1711, %v1780
        %v1803 = vadd.f32 %v1712, %v1781
        %v1804 = vadd.f32 %v1713, %v1763
        %v1805 = vadd.f32 %v1714, %v1782
        %v1806 = vadd.f32 %v1715, %v1783
        %v1807 = vadd.f32 %v1716, %v1784
        %v1808 = vadd.f32 %v1717, %v1785
        %v1809 = vadd.f32 %v1718, %v1786
        %v1810 = vadd.f32 %v1719, %v1775
        %1811 = vset.pattern.permute.xlu0 8
        %1812 = vperm.xlu0 %1811, %v1150
        %v1813 = vpop.permute.xlu0 %1812
        %1815 = vset.pattern.permute.xlu0 8
        %1816 = vperm.xlu0 %1815, %v1151
        %v1817 = vpop.permute.xlu0 %1816
        %v1819 = vmul.f32 %v1138, %v1813
        %v1820 = vmul.f32 %v1139, %v1813
        %v1821 = vmul.f32 %v1140, %v1813
        %v1822 = vmul.f32 %v1141, %v1813
        %v1823 = vmul.f32 %v1142, %v1813
        %v1824 = vmul.f32 %v1143, %v1813
        %v1825 = vmul.f32 %v1144, %v1817
        %v1826 = vmul.f32 %v1145, %v1817
        %v1827 = vmul.f32 %v1146, %v1817
        %v1828 = vmul.f32 %v1147, %v1817
        %v1829 = vmul.f32 %v1148, %v1817
        %v1830 = vmul.f32 %v1149, %v1817
        %1843 = vrot.lane.b32.xlu0 %v1819, 78
        %v1844 = vpop.permute.xlu0 %1843
        %1845 = vrot.lane.b32.xlu0 %v1820, 78
        %v1846 = vpop.permute.xlu0 %1845
        %1847 = vrot.lane.b32.xlu0 %v1821, 78
        %v1848 = vpop.permute.xlu0 %1847
        %1849 = vrot.lane.b32.xlu0 %v1822, 78
        %v1850 = vpop.permute.xlu0 %1849
        %1851 = vrot.lane.b32.xlu0 %v1823, 78
        %v1852 = vpop.permute.xlu0 %1851
        %1853 = vrot.lane.b32.xlu0 %v1824, 78
        %v1854 = vpop.permute.xlu0 %1853
        %1855 = vrot.lane.b32.xlu0 %v1825, 78
        %v1856 = vpop.permute.xlu0 %1855
        %1857 = vrot.lane.b32.xlu0 %v1826, 78
        %v1858 = vpop.permute.xlu0 %1857
        %1859 = vrot.lane.b32.xlu0 %v1827, 78
        %v1860 = vpop.permute.xlu0 %1859
        %1861 = vrot.lane.b32.xlu0 %v1828, 78
        %v1862 = vpop.permute.xlu0 %1861
        %1863 = vrot.lane.b32.xlu0 %v1829, 78
        %v1864 = vpop.permute.xlu0 %1863
        %1865 = vrot.lane.b32.xlu0 %v1830, 78
        %v1866 = vpop.permute.xlu0 %1865
        %vm1867 = vcmask 637952
        %v1868 = vsel %vm1867, %v1844, %v1846
        %v1869 = vsel %vm1867, %v1846, %v1848
        %v1870 = vsel %vm1867, %v1848, %v1850
        %v1871 = vsel %vm1867, %v1850, %v1852
        %v1872 = vsel %vm1867, %v1852, %v1854
        %v1873 = vsel %vm1867, %v1856, %v1858
        %v1874 = vsel %vm1867, %v1858, %v1860
        %v1875 = vsel %vm1867, %v1860, %v1862
        %v1876 = vsel %vm1867, %v1862, %v1864
        %v1877 = vsel %vm1867, %v1864, %v1866
        %v1890 = vadd.f32 %v1799, %v1868
        %v1891 = vadd.f32 %v1800, %v1869
        %v1892 = vadd.f32 %v1801, %v1870
        %v1893 = vadd.f32 %v1802, %v1871
        %v1894 = vadd.f32 %v1803, %v1872
        %v1895 = vadd.f32 %v1804, %v1854
        %v1896 = vadd.f32 %v1805, %v1873
        %v1897 = vadd.f32 %v1806, %v1874
        %v1898 = vadd.f32 %v1807, %v1875
        %v1899 = vadd.f32 %v1808, %v1876
        %v1900 = vadd.f32 %v1809, %v1877
        %v1901 = vadd.f32 %v1810, %v1866
        %v1902 = vld [vmem:[%s5] sm:$0xff]
        %v1903 = vld [vmem:[%s5 + $0x8] sm:$0xff]
        %1905 = vset.pattern.permute.xlu0 0
        %1906 = vperm.xlu0 %1905, %v1902
        %v1907 = vpop.permute.xlu0 %1906
        %1910 = vset.pattern.permute.xlu0 0
        %1911 = vperm.xlu0 %1910, %v1903
        %v1912 = vpop.permute.xlu0 %1911
        %v1914 = vadd.f32 %v1890, %v1907
        %v1915 = vadd.f32 %v1891, %v1907
        %v1916 = vadd.f32 %v1892, %v1907
        %v1917 = vadd.f32 %v1893, %v1907
        %v1918 = vadd.f32 %v1894, %v1907
        %v1919 = vadd.f32 %v1895, %v1907
        %v1920 = vadd.f32 %v1896, %v1912
        %v1921 = vadd.f32 %v1897, %v1912
        %v1922 = vadd.f32 %v1898, %v1912
        %v1923 = vadd.f32 %v1899, %v1912
        %v1924 = vadd.f32 %v1900, %v1912
        %v1925 = vadd.f32 %v1901, %v1912
        %v1926 = vsel %vm814, 1, 0
        %v1927 = vlaneseq
        %v1928 = vshrl.u32 %v1927, 7
        %v1929 = vsub.s32 0, %v1928
        %v1930 = vrot.slane %v1926, %v1929
        %v1931 = vlaneseq
        %v1932 = vshrl.u32 %v1931, 7
        %v1933 = vsub.s32 1, %v1932
        %v1934 = vrot.slane %v1926, %v1933
        %v1935 = vlaneseq
        %v1936 = vshrl.u32 %v1935, 7
        %v1937 = vsub.s32 2, %v1936
        %v1938 = vrot.slane %v1926, %v1937
        %v1939 = vlaneseq
        %v1940 = vshrl.u32 %v1939, 7
        %v1941 = vsub.s32 3, %v1940
        %v1942 = vrot.slane %v1926, %v1941
        %v1943 = vlaneseq
        %v1944 = vshrl.u32 %v1943, 7
        %v1945 = vsub.s32 4, %v1944
        %v1946 = vrot.slane %v1926, %v1945
        %vm1947 = vcmp.eq.s32.totalorder %v1930, 1
        %vm1948 = vcmp.eq.s32.totalorder %v1934, 1
        %vm1949 = vcmp.eq.s32.totalorder %v1938, 1
        %vm1950 = vcmp.eq.s32.totalorder %v1942, 1
        %vm1951 = vcmp.eq.s32.totalorder %v1946, 1
        %1964 = vrot.lane.b32.xlu0 %v1914, 53
        %v1965 = vpop.permute.xlu0 %1964
        %1966 = vrot.lane.b32.xlu0 %v1915, 53
        %v1967 = vpop.permute.xlu0 %1966
        %1968 = vrot.lane.b32.xlu0 %v1916, 53
        %v1969 = vpop.permute.xlu0 %1968
        %1970 = vrot.lane.b32.xlu0 %v1917, 53
        %v1971 = vpop.permute.xlu0 %1970
        %1972 = vrot.lane.b32.xlu0 %v1918, 53
        %v1973 = vpop.permute.xlu0 %1972
        %1974 = vrot.lane.b32.xlu0 %v1919, 53
        %v1975 = vpop.permute.xlu0 %1974
        %1976 = vrot.lane.b32.xlu0 %v1920, 53
        %v1977 = vpop.permute.xlu0 %1976
        %1978 = vrot.lane.b32.xlu0 %v1921, 53
        %v1979 = vpop.permute.xlu0 %1978
        %1980 = vrot.lane.b32.xlu0 %v1922, 53
        %v1981 = vpop.permute.xlu0 %1980
        %1982 = vrot.lane.b32.xlu0 %v1923, 53
        %v1983 = vpop.permute.xlu0 %1982
        %1984 = vrot.lane.b32.xlu0 %v1924, 53
        %v1985 = vpop.permute.xlu0 %1984
        %1986 = vrot.lane.b32.xlu0 %v1925, 53
        %v1987 = vpop.permute.xlu0 %1986
        %vm1988 = vcmask 433152
        %v1989 = vsel %vm1988, %v1965, %v1967
        %v1990 = vsel %vm1988, %v1967, %v1969
        %v1991 = vsel %vm1988, %v1969, %v1971
        %v1992 = vsel %vm1988, %v1971, %v1973
        %v1993 = vsel %vm1988, %v1973, %v1975
        %v1994 = vsel %vm1988, %v1977, %v1979
        %v1995 = vsel %vm1988, %v1979, %v1981
        %v1996 = vsel %vm1988, %v1981, %v1983
        %v1997 = vsel %vm1988, %v1983, %v1985
        %v1998 = vsel %vm1988, %v1985, %v1987
        %v2009 = vsel %vm1947, %v1989, 0.0
        %v2010 = vsel %vm1948, %v1990, 0.0
        %v2011 = vsel %vm1949, %v1991, 0.0
        %v2012 = vsel %vm1950, %v1992, 0.0
        %v2013 = vsel %vm1951, %v1993, 0.0
        %v2014 = vsel %vm1947, %v1994, 0.0
        %v2015 = vsel %vm1948, %v1995, 0.0
        %v2016 = vsel %vm1949, %v1996, 0.0
        %v2017 = vsel %vm1950, %v1997, 0.0
        %v2018 = vsel %vm1951, %v1998, 0.0
        %v2019 = vadd.f32 %v2009, %v2010
        %v2020 = vadd.f32 %v2019, %v2011
        %v2021 = vadd.f32 %v2020, %v2012
        %vm2022 = vcmask 523264
        %v2023 = vsel %vm2022, %v2013, 0.0
        %v2024 = vadd.f32 %v2021, %v2023
        %2025 = vadd.xlane.f32.xlu0 %v2024
        %v2026 = vpop.xlane.xlu0 %2025
        %v2027 = vadd.f32 %v2014, %v2015
        %v2028 = vadd.f32 %v2027, %v2016
        %v2029 = vadd.f32 %v2028, %v2017
        %v2030 = vsel %vm2022, %v2018, 0.0
        %v2031 = vadd.f32 %v2029, %v2030
        %2032 = vadd.xlane.f32.xlu0 %v2031
        %v2033 = vpop.xlane.xlu0 %2032
        %v2034 = vmul.f32 %v2009, %v1989
        %v2035 = vmul.f32 %v2010, %v1990
        %v2036 = vmul.f32 %v2011, %v1991
        %v2037 = vmul.f32 %v2012, %v1992
        %v2038 = vmul.f32 %v2013, %v1993
        %v2039 = vmul.f32 %v2014, %v1994
        %v2040 = vmul.f32 %v2015, %v1995
        %v2041 = vmul.f32 %v2016, %v1996
        %v2042 = vmul.f32 %v2017, %v1997
        %v2043 = vmul.f32 %v2018, %v1998
        %v2044 = vadd.f32 %v2034, %v2035
        %v2045 = vadd.f32 %v2044, %v2036
        %v2046 = vadd.f32 %v2045, %v2037
        %v2047 = vsel %vm2022, %v2038, 0.0
        %v2048 = vadd.f32 %v2046, %v2047
        %2049 = vadd.xlane.f32.xlu0 %v2048
        %v2050 = vpop.xlane.xlu0 %2049
        %v2051 = vadd.f32 %v2039, %v2040
        %v2052 = vadd.f32 %v2051, %v2041
        %v2053 = vadd.f32 %v2052, %v2042
        %v2054 = vsel %vm2022, %v2043, 0.0
        %v2055 = vadd.f32 %v2053, %v2054
        %2056 = vadd.xlane.f32.xlu0 %v2055
        %v2057 = vpop.xlane.xlu0 %2056
        %v2058 = vld [vmem:[%s6] sm:$0xff]
        %v2059 = vld [vmem:[%s6 + $0x8] sm:$0xff]
        %vm2060 = vcmask 7168
        %v2061 = vsel %vm2060, %v2026, %v2050
        %v2062 = vsel %vm2060, %v2033, %v2057
        %v2064 = vsel %vm838, %v2058, 0
        %v2067 = vsel %vm838, %v2059, 0
        %2069 = vmatprep.subr.mxu0 0.0
        %2070 = vmatpush1.msra.mxu0 %v2061
        %2071 = vmatprep.subr.mxu0 0.0
        %2072 = vmatpush1.msra.mxu0 %v2062
        %2073 = vmatprep.subr.mxu0 0.0
        %2074 = vmatpush1.msra.mxu0 0.0
        %2075 = vmatprep.subr.mxu0 0.0
        %2076 = vmatpush1.msra.mxu0 0.0
        %2077 = vmatprep.subr.mxu0 0.0
        %2078 = vmatpush1.msra.mxu0 0.0
        %2079 = vmatprep.subr.mxu0 0.0
        %2080 = vmatpush1.msra.mxu0 0.0
        %2081 = vmatprep.subr.mxu0 0.0
        %2082 = vmatpush1.msra.mxu0 0.0
        %2083 = vmatprep.subr.mxu0 0.0
        %2084 = vmatpush1.msra.mxu0 0.0
        %2085 = vmatprep.subr.mxu0 0.0
        %2086 = vmatpush1.msra.mxu0 0.0
        %2087 = vmatprep.subr.mxu0 0.0
        %2088 = vmatpush1.msra.mxu0 0.0
        %2089 = vmatprep.subr.mxu0 0.0
        %2090 = vmatpush1.msra.mxu0 0.0
        %2091 = vmatprep.subr.mxu0 0.0
        %2092 = vmatpush1.msra.mxu0 0.0
        %2093 = vmatprep.subr.mxu0 0.0
        %2094 = vmatpush1.msra.mxu0 0.0
        %2095 = vmatprep.subr.mxu0 0.0
        %2096 = vmatpush1.msra.mxu0 0.0
        %2097 = vmatprep.subr.mxu0 0.0
        %2098 = vmatpush1.msra.mxu0 0.0
        %2099 = vmatprep.subr.mxu0 0.0
        %2100 = vmatpush1.msra.mxu0 0.0
        %2101 = vmatprep.subr.mxu0 0.0
        %2102 = vmatpush1.msra.mxu0 0.0
        %2103 = vmatprep.subr.mxu0 0.0
        %2104 = vmatpush1.msra.mxu0 0.0
        %2105 = vmatprep.subr.mxu0 0.0
        %2106 = vmatpush1.msra.mxu0 0.0
        %2107 = vmatprep.subr.mxu0 0.0
        %2108 = vmatpush1.msra.mxu0 0.0
        %2109 = vmatprep.subr.mxu0 0.0
        %2110 = vmatpush1.msra.mxu0 0.0
        %2111 = vmatprep.subr.mxu0 0.0
        %2112 = vmatpush1.msra.mxu0 0.0
        %2113 = vmatprep.subr.mxu0 0.0
        %2114 = vmatpush1.msra.mxu0 0.0
        %2115 = vmatprep.subr.mxu0 0.0
        %2116 = vmatpush1.msra.mxu0 0.0
        %2117 = vmatprep.subr.mxu0 0.0
        %2118 = vmatpush1.msra.mxu0 0.0
        %2119 = vmatprep.subr.mxu0 0.0
        %2120 = vmatpush1.msra.mxu0 0.0
        %2121 = vmatprep.subr.mxu0 0.0
        %2122 = vmatpush1.msra.mxu0 0.0
        %2123 = vmatprep.subr.mxu0 0.0
        %2124 = vmatpush1.msra.mxu0 0.0
        %2125 = vmatprep.subr.mxu0 0.0
        %2126 = vmatpush1.msra.mxu0 0.0
        %2127 = vmatprep.subr.mxu0 0.0
        %2128 = vmatpush1.msra.mxu0 0.0
        %2129 = vmatprep.subr.mxu0 0.0
        %2130 = vmatpush1.msra.mxu0 0.0
        %2131 = vmatprep.subr.mxu0 0.0
        %2132 = vmatpush1.msra.mxu0 0.0
        %2133 = vmatprep.mubr.f32.mxu0 0.0
        %2134 = vmatmul.mubr.f32.gmra.mrb[0].mxu0 %v2064
        %v2135 = vpop.f32.mrb[0].mxu0
        %v2136 = vadd.f32 0.0, %v2135
        %v2137 = vpop.f32.mrb[0].mxu0
        %2138 = vmatprep.mubr.f32.mxu0 0.0
        %2139 = vmatmul.mubr.f32.gmra.mrb[0].mxu0 %v2067
        %v2140 = vpop.f32.mrb[0].mxu0
        %v2141 = vadd.f32 0.0, %v2140
        %v2142 = vpop.f32.mrb[0].mxu0
        %2143 = vdwg.mxu0
        %v2144 = vmul.f32 %v2136, %v2136
        %v2145 = vmul.f32 %v2141, %v2141
        %2148 = vrot.lane.b32.xlu0 %v2144, 1
        %v2149 = vpop.permute.xlu0 %2148
        %2150 = vrot.lane.b32.xlu0 %v2145, 1
        %v2151 = vpop.permute.xlu0 %2150
        %v2154 = vsub.f32 %v2136, %v2149
        %v2155 = vsub.f32 %v2141, %v2151
        %v2156 = vmax.f32 %v2154, 0.0
        %v2157 = vmax.f32 %v2155, 0.0
        %2159 = vset.pattern.permute.xlu0 0
        %2160 = vperm.xlu0 %2159, %v2136
        %v2161 = vpop.permute.xlu0 %2160
        %2164 = vset.pattern.permute.xlu0 0
        %2165 = vperm.xlu0 %2164, %v2141
        %v2166 = vpop.permute.xlu0 %2165
        %v2168 = vsub.f32 %v1914, %v2161
        %v2169 = vsub.f32 %v1915, %v2161
        %v2170 = vsub.f32 %v1916, %v2161
        %v2171 = vsub.f32 %v1917, %v2161
        %v2172 = vsub.f32 %v1918, %v2161
        %v2173 = vsub.f32 %v1919, %v2161
        %v2174 = vsub.f32 %v1920, %v2166
        %v2175 = vsub.f32 %v1921, %v2166
        %v2176 = vsub.f32 %v1922, %v2166
        %v2177 = vsub.f32 %v1923, %v2166
        %v2178 = vsub.f32 %v1924, %v2166
        %v2179 = vsub.f32 %v1925, %v2166
        %v2180 = vadd.f32 %v2156, 1e-05
        %v2181 = vadd.f32 %v2157, 1e-05
        %v2182 = vrsqrt.pop %v2180
        %v2183 = vrsqrt.pop %v2181
        %v2184 = vld [vmem:[%s7] sm:$0xff]
        %v2185 = vld [vmem:[%s7 + $0x8] sm:$0xff]
        %2188 = vrot.lane.b32.xlu0 %v2184, 1
        %v2189 = vpop.permute.xlu0 %2188
        %2190 = vrot.lane.b32.xlu0 %v2185, 1
        %v2191 = vpop.permute.xlu0 %2190
        %v2194 = vmul.f32 %v2182, %v2189
        %v2195 = vmul.f32 %v2183, %v2191
        %2197 = vset.pattern.permute.xlu0 1
        %2198 = vperm.xlu0 %2197, %v2194
        %v2199 = vpop.permute.xlu0 %2198
        %2202 = vset.pattern.permute.xlu0 1
        %2203 = vperm.xlu0 %2202, %v2195
        %v2204 = vpop.permute.xlu0 %2203
        %v2206 = vmul.f32 %v2168, %v2199
        %v2207 = vmul.f32 %v2169, %v2199
        %v2208 = vmul.f32 %v2170, %v2199
        %v2209 = vmul.f32 %v2171, %v2199
        %v2210 = vmul.f32 %v2172, %v2199
        %v2211 = vmul.f32 %v2173, %v2199
        %v2212 = vmul.f32 %v2174, %v2204
        %v2213 = vmul.f32 %v2175, %v2204
        %v2214 = vmul.f32 %v2176, %v2204
        %v2215 = vmul.f32 %v2177, %v2204
        %v2216 = vmul.f32 %v2178, %v2204
        %v2217 = vmul.f32 %v2179, %v2204
        %v2218 = vld [vmem:[%s8] sm:$0xff]
        %v2219 = vld [vmem:[%s8 + $0x8] sm:$0xff]
        %2221 = vset.pattern.permute.xlu0 0
        %2222 = vperm.xlu0 %2221, %v2218
        %v2223 = vpop.permute.xlu0 %2222
        %2226 = vset.pattern.permute.xlu0 0
        %2227 = vperm.xlu0 %2226, %v2219
        %v2228 = vpop.permute.xlu0 %2227
        %v2230 = vadd.f32 %v2206, %v2223
        %v2231 = vadd.f32 %v2207, %v2223
        %v2232 = vadd.f32 %v2208, %v2223
        %v2233 = vadd.f32 %v2209, %v2223
        %v2234 = vadd.f32 %v2210, %v2223
        %v2235 = vadd.f32 %v2211, %v2223
        %v2236 = vadd.f32 %v2212, %v2228
        %v2237 = vadd.f32 %v2213, %v2228
        %v2238 = vadd.f32 %v2214, %v2228
        %v2239 = vadd.f32 %v2215, %v2228
        %v2240 = vadd.f32 %v2216, %v2228
        %v2241 = vadd.f32 %v2217, %v2228
        %v2242 = vsub.f32 0.0, %v2230
        %v2243 = vsub.f32 0.0, %v2231
        %v2244 = vsub.f32 0.0, %v2232
        %v2245 = vsub.f32 0.0, %v2233
        %v2246 = vsub.f32 0.0, %v2234
        %v2247 = vsub.f32 0.0, %v2235
        %v2248 = vsub.f32 0.0, %v2236
        %v2249 = vsub.f32 0.0, %v2237
        %v2250 = vsub.f32 0.0, %v2238
        %v2251 = vsub.f32 0.0, %v2239
        %v2252 = vsub.f32 0.0, %v2240
        %v2253 = vsub.f32 0.0, %v2241
        %v2254 = vmul.f32 %v2242, 1.442695
        %v2255 = vpow.pop %v2254
        %v2256 = vmul.f32 %v2243, 1.442695
        %v2257 = vpow.pop %v2256
        %v2258 = vmul.f32 %v2244, 1.442695
        %v2259 = vpow.pop %v2258
        %v2260 = vmul.f32 %v2245, 1.442695
        %v2261 = vpow.pop %v2260
        %v2262 = vmul.f32 %v2246, 1.442695
        %v2263 = vpow.pop %v2262
        %v2264 = vmul.f32 %v2247, 1.442695
        %v2265 = vpow.pop %v2264
        %v2266 = vmul.f32 %v2248, 1.442695
        %v2267 = vpow.pop %v2266
        %v2268 = vmul.f32 %v2249, 1.442695
        %v2269 = vpow.pop %v2268
        %v2270 = vmul.f32 %v2250, 1.442695
        %v2271 = vpow.pop %v2270
        %v2272 = vmul.f32 %v2251, 1.442695
        %v2273 = vpow.pop %v2272
        %v2274 = vmul.f32 %v2252, 1.442695
        %v2275 = vpow.pop %v2274
        %v2276 = vmul.f32 %v2253, 1.442695
        %v2277 = vpow.pop %v2276
        %v2278 = vadd.f32 %v2255, 1.0
        %v2279 = vadd.f32 %v2257, 1.0
        %v2280 = vadd.f32 %v2259, 1.0
        %v2281 = vadd.f32 %v2261, 1.0
        %v2282 = vadd.f32 %v2263, 1.0
        %v2283 = vadd.f32 %v2265, 1.0
        %v2284 = vadd.f32 %v2267, 1.0
        %v2285 = vadd.f32 %v2269, 1.0
        %v2286 = vadd.f32 %v2271, 1.0
        %v2287 = vadd.f32 %v2273, 1.0
        %v2288 = vadd.f32 %v2275, 1.0
        %v2289 = vadd.f32 %v2277, 1.0
        %v2290 = vrcp.pop %v2278
        %v2291 = vrcp.pop %v2279
        %v2292 = vrcp.pop %v2280
        %v2293 = vrcp.pop %v2281
        %v2294 = vrcp.pop %v2282
        %v2295 = vrcp.pop %v2283
        %v2296 = vrcp.pop %v2284
        %v2297 = vrcp.pop %v2285
        %v2298 = vrcp.pop %v2286
        %v2299 = vrcp.pop %v2287
        %v2300 = vrcp.pop %v2288
        %v2301 = vrcp.pop %v2289
        %v2302 = vmul.f32 %v2230, %v2290
        %v2303 = vmul.f32 %v2231, %v2291
        %v2304 = vmul.f32 %v2232, %v2292
        %v2305 = vmul.f32 %v2233, %v2293
        %v2306 = vmul.f32 %v2234, %v2294
        %v2307 = vmul.f32 %v2235, %v2295
        %v2308 = vmul.f32 %v2236, %v2296
        %v2309 = vmul.f32 %v2237, %v2297
        %v2310 = vmul.f32 %v2238, %v2298
        %v2311 = vmul.f32 %v2239, %v2299
        %v2312 = vmul.f32 %v2240, %v2300
        %v2313 = vmul.f32 %v2241, %v2301
        %2326 = vrot.lane.b32.xlu0 %v2302, 53
        %v2327 = vpop.permute.xlu0 %2326
        %2328 = vrot.lane.b32.xlu0 %v2303, 53
        %v2329 = vpop.permute.xlu0 %2328
        %2330 = vrot.lane.b32.xlu0 %v2304, 53
        %v2331 = vpop.permute.xlu0 %2330
        %2332 = vrot.lane.b32.xlu0 %v2305, 53
        %v2333 = vpop.permute.xlu0 %2332
        %2334 = vrot.lane.b32.xlu0 %v2306, 53
        %v2335 = vpop.permute.xlu0 %2334
        %2336 = vrot.lane.b32.xlu0 %v2307, 53
        %v2337 = vpop.permute.xlu0 %2336
        %2338 = vrot.lane.b32.xlu0 %v2308, 53
        %v2339 = vpop.permute.xlu0 %2338
        %2340 = vrot.lane.b32.xlu0 %v2309, 53
        %v2341 = vpop.permute.xlu0 %2340
        %2342 = vrot.lane.b32.xlu0 %v2310, 53
        %v2343 = vpop.permute.xlu0 %2342
        %2344 = vrot.lane.b32.xlu0 %v2311, 53
        %v2345 = vpop.permute.xlu0 %2344
        %2346 = vrot.lane.b32.xlu0 %v2312, 53
        %v2347 = vpop.permute.xlu0 %2346
        %2348 = vrot.lane.b32.xlu0 %v2313, 53
        %v2349 = vpop.permute.xlu0 %2348
        %v2350 = vsel %vm1988, %v2327, %v2329
        %v2351 = vsel %vm1988, %v2329, %v2331
        %v2352 = vsel %vm1988, %v2331, %v2333
        %v2353 = vsel %vm1988, %v2333, %v2335
        %v2354 = vsel %vm1988, %v2335, %v2337
        %v2355 = vsel %vm1988, %v2339, %v2341
        %v2356 = vsel %vm1988, %v2341, %v2343
        %v2357 = vsel %vm1988, %v2343, %v2345
        %v2358 = vsel %vm1988, %v2345, %v2347
        %v2359 = vsel %vm1988, %v2347, %v2349
        %v2370 = vsel %vm1947, %v2350, 0.0
        %v2371 = vsel %vm1948, %v2351, 0.0
        %v2372 = vsel %vm1949, %v2352, 0.0
        %v2373 = vsel %vm1950, %v2353, 0.0
        %v2374 = vsel %vm1951, %v2354, 0.0
        %v2375 = vsel %vm1947, %v2355, 0.0
        %v2376 = vsel %vm1948, %v2356, 0.0
        %v2377 = vsel %vm1949, %v2357, 0.0
        %v2378 = vsel %vm1950, %v2358, 0.0
        %v2379 = vsel %vm1951, %v2359, 0.0
        %2390 = vrot.lane.b32.xlu0 %v2370, 100
        %v2391 = vpop.permute.xlu0 %2390
        %2392 = vrot.lane.b32.xlu0 %v2371, 100
        %v2393 = vpop.permute.xlu0 %2392
        %2394 = vrot.lane.b32.xlu0 %v2372, 100
        %v2395 = vpop.permute.xlu0 %2394
        %2396 = vrot.lane.b32.xlu0 %v2373, 100
        %v2397 = vpop.permute.xlu0 %2396
        %2398 = vrot.lane.b32.xlu0 %v2374, 100
        %v2399 = vpop.permute.xlu0 %2398
        %2400 = vrot.lane.b32.xlu0 %v2375, 100
        %v2401 = vpop.permute.xlu0 %2400
        %2402 = vrot.lane.b32.xlu0 %v2376, 100
        %v2403 = vpop.permute.xlu0 %2402
        %2404 = vrot.lane.b32.xlu0 %v2377, 100
        %v2405 = vpop.permute.xlu0 %2404
        %2406 = vrot.lane.b32.xlu0 %v2378, 100
        %v2407 = vpop.permute.xlu0 %2406
        %2408 = vrot.lane.b32.xlu0 %v2379, 100
        %v2409 = vpop.permute.xlu0 %2408
        %v2410 = vsel %vm815, %v2391, %v2393
        %v2411 = vsel %vm815, %v2393, %v2395
        %v2412 = vsel %vm815, %v2395, %v2397
        %v2413 = vsel %vm815, %v2397, %v2399
        %v2414 = vsel %vm815, %v2401, %v2403
        %v2415 = vsel %vm815, %v2403, %v2405
        %v2416 = vsel %vm815, %v2405, %v2407
        %v2417 = vsel %vm815, %v2407, %v2409
        %2430 = vst.msk [vmem:[#allocation2] sm:$0xff] %vm1124, %v2391
        %2431 = vst [vmem:[#allocation2 + $0x8] sm:$0xff] %v2410
        %2432 = vst [vmem:[#allocation2 + $0x10] sm:$0xff] %v2411
        %2433 = vst [vmem:[#allocation2 + $0x18] sm:$0xff] %v2412
        %2434 = vst [vmem:[#allocation2 + $0x20] sm:$0xff] %v2413
        %2435 = vst.msk [vmem:[#allocation2 + $0x28] sm:$0xff] %vm1130, %v2399
        %2436 = vst.msk [vmem:[#allocation2 + $0x38] sm:$0xff] %vm1124, %v2401
        %2437 = vst [vmem:[#allocation2 + $0x40] sm:$0xff] %v2414
        %2438 = vst [vmem:[#allocation2 + $0x48] sm:$0xff] %v2415
        %2439 = vst [vmem:[#allocation2 + $0x50] sm:$0xff] %v2416
        %2440 = vst [vmem:[#allocation2 + $0x58] sm:$0xff] %v2417
        %2441 = vst.msk [vmem:[#allocation2 + $0x60] sm:$0xff] %vm1130, %v2409
        %v2442 = vld [vmem:[#allocation2] sm:$0xff]
        %v2443 = vld [vmem:[#allocation2 + $0x8] sm:$0xff]
        %v2444 = vld [vmem:[#allocation2 + $0x10] sm:$0xff]
        %v2445 = vld [vmem:[#allocation2 + $0x18] sm:$0xff]
        %v2446 = vld [vmem:[#allocation2 + $0x20] sm:$0xff]
        %v2447 = vld [vmem:[#allocation2 + $0x28] sm:$0xff]
        %v2448 = vld [vmem:[#allocation2 + $0x38] sm:$0xff]
        %v2449 = vld [vmem:[#allocation2 + $0x40] sm:$0xff]
        %v2450 = vld [vmem:[#allocation2 + $0x48] sm:$0xff]
        %v2451 = vld [vmem:[#allocation2 + $0x50] sm:$0xff]
        %v2452 = vld [vmem:[#allocation2 + $0x58] sm:$0xff]
        %v2453 = vld [vmem:[#allocation2 + $0x60] sm:$0xff]
        %v2454 = vld [vmem:[%s9] sm:$0xff]
        %v2455 = vld [vmem:[%s9 + $0x8] sm:$0xff]
        %2457 = vset.pattern.permute.xlu0 0
        %2458 = vperm.xlu0 %2457, %v2454
        %v2459 = vpop.permute.xlu0 %2458
        %2462 = vset.pattern.permute.xlu0 0
        %2463 = vperm.xlu0 %2462, %v2455
        %v2464 = vpop.permute.xlu0 %2463
        %v2466 = vmul.f32 %v2442, %v2459
        %v2467 = vmul.f32 %v2443, %v2459
        %v2468 = vmul.f32 %v2444, %v2459
        %v2469 = vmul.f32 %v2445, %v2459
        %v2470 = vmul.f32 %v2446, %v2459
        %v2471 = vmul.f32 %v2447, %v2459
        %v2472 = vmul.f32 %v2448, %v2464
        %v2473 = vmul.f32 %v2449, %v2464
        %v2474 = vmul.f32 %v2450, %v2464
        %v2475 = vmul.f32 %v2451, %v2464
        %v2476 = vmul.f32 %v2452, %v2464
        %v2477 = vmul.f32 %v2453, %v2464
        %2478 = vset.pattern.permute.xlu0 1
        %2479 = vperm.xlu0 %2478, %v2454
        %v2480 = vpop.permute.xlu0 %2479
        %2482 = vset.pattern.permute.xlu0 1
        %2483 = vperm.xlu0 %2482, %v2455
        %v2484 = vpop.permute.xlu0 %2483
        %v2486 = vmul.f32 %v2442, %v2480
        %v2487 = vmul.f32 %v2443, %v2480
        %v2488 = vmul.f32 %v2444, %v2480
        %v2489 = vmul.f32 %v2445, %v2480
        %v2490 = vmul.f32 %v2446, %v2480
        %v2491 = vmul.f32 %v2447, %v2480
        %v2492 = vmul.f32 %v2448, %v2484
        %v2493 = vmul.f32 %v2449, %v2484
        %v2494 = vmul.f32 %v2450, %v2484
        %v2495 = vmul.f32 %v2451, %v2484
        %v2496 = vmul.f32 %v2452, %v2484
        %v2497 = vmul.f32 %v2453, %v2484
        %2510 = vrot.lane.b32.xlu0 %v2486, 127
        %v2511 = vpop.permute.xlu0 %2510
        %2512 = vrot.lane.b32.xlu0 %v2487, 127
        %v2513 = vpop.permute.xlu0 %2512
        %2514 = vrot.lane.b32.xlu0 %v2488, 127
        %v2515 = vpop.permute.xlu0 %2514
        %2516 = vrot.lane.b32.xlu0 %v2489, 127
        %v2517 = vpop.permute.xlu0 %2516
        %2518 = vrot.lane.b32.xlu0 %v2490, 127
        %v2519 = vpop.permute.xlu0 %2518
        %2520 = vrot.lane.b32.xlu0 %v2491, 127
        %v2521 = vpop.permute.xlu0 %2520
        %2522 = vrot.lane.b32.xlu0 %v2492, 127
        %v2523 = vpop.permute.xlu0 %2522
        %2524 = vrot.lane.b32.xlu0 %v2493, 127
        %v2525 = vpop.permute.xlu0 %2524
        %2526 = vrot.lane.b32.xlu0 %v2494, 127
        %v2527 = vpop.permute.xlu0 %2526
        %2528 = vrot.lane.b32.xlu0 %v2495, 127
        %v2529 = vpop.permute.xlu0 %2528
        %2530 = vrot.lane.b32.xlu0 %v2496, 127
        %v2531 = vpop.permute.xlu0 %2530
        %2532 = vrot.lane.b32.xlu0 %v2497, 127
        %v2533 = vpop.permute.xlu0 %2532
        %v2534 = vsel %vm1230, %v2511, %v2513
        %v2535 = vsel %vm1230, %v2513, %v2515
        %v2536 = vsel %vm1230, %v2515, %v2517
        %v2537 = vsel %vm1230, %v2517, %v2519
        %v2538 = vsel %vm1230, %v2519, %v2521
        %v2539 = vsel %vm1230, %v2523, %v2525
        %v2540 = vsel %vm1230, %v2525, %v2527
        %v2541 = vsel %vm1230, %v2527, %v2529
        %v2542 = vsel %vm1230, %v2529, %v2531
        %v2543 = vsel %vm1230, %v2531, %v2533
        %v2556 = vadd.f32 %v2466, %v2534
        %v2557 = vadd.f32 %v2467, %v2535
        %v2558 = vadd.f32 %v2468, %v2536
        %v2559 = vadd.f32 %v2469, %v2537
        %v2560 = vadd.f32 %v2470, %v2538
        %v2561 = vadd.f32 %v2471, %v2521
        %v2562 = vadd.f32 %v2472, %v2539
        %v2563 = vadd.f32 %v2473, %v2540
        %v2564 = vadd.f32 %v2474, %v2541
        %v2565 = vadd.f32 %v2475, %v2542
        %v2566 = vadd.f32 %v2476, %v2543
        %v2567 = vadd.f32 %v2477, %v2533
        %2568 = vset.pattern.permute.xlu0 2
        %2569 = vperm.xlu0 %2568, %v2454
        %v2570 = vpop.permute.xlu0 %2569
        %2572 = vset.pattern.permute.xlu0 2
        %2573 = vperm.xlu0 %2572, %v2455
        %v2574 = vpop.permute.xlu0 %2573
        %v2576 = vmul.f32 %v2442, %v2570
        %v2577 = vmul.f32 %v2443, %v2570
        %v2578 = vmul.f32 %v2444, %v2570
        %v2579 = vmul.f32 %v2445, %v2570
        %v2580 = vmul.f32 %v2446, %v2570
        %v2581 = vmul.f32 %v2447, %v2570
        %v2582 = vmul.f32 %v2448, %v2574
        %v2583 = vmul.f32 %v2449, %v2574
        %v2584 = vmul.f32 %v2450, %v2574
        %v2585 = vmul.f32 %v2451, %v2574
        %v2586 = vmul.f32 %v2452, %v2574
        %v2587 = vmul.f32 %v2453, %v2574
        %2600 = vrot.lane.b32.xlu0 %v2576, 126
        %v2601 = vpop.permute.xlu0 %2600
        %2602 = vrot.lane.b32.xlu0 %v2577, 126
        %v2603 = vpop.permute.xlu0 %2602
        %2604 = vrot.lane.b32.xlu0 %v2578, 126
        %v2605 = vpop.permute.xlu0 %2604
        %2606 = vrot.lane.b32.xlu0 %v2579, 126
        %v2607 = vpop.permute.xlu0 %2606
        %2608 = vrot.lane.b32.xlu0 %v2580, 126
        %v2609 = vpop.permute.xlu0 %2608
        %2610 = vrot.lane.b32.xlu0 %v2581, 126
        %v2611 = vpop.permute.xlu0 %2610
        %2612 = vrot.lane.b32.xlu0 %v2582, 126
        %v2613 = vpop.permute.xlu0 %2612
        %2614 = vrot.lane.b32.xlu0 %v2583, 126
        %v2615 = vpop.permute.xlu0 %2614
        %2616 = vrot.lane.b32.xlu0 %v2584, 126
        %v2617 = vpop.permute.xlu0 %2616
        %2618 = vrot.lane.b32.xlu0 %v2585, 126
        %v2619 = vpop.permute.xlu0 %2618
        %2620 = vrot.lane.b32.xlu0 %v2586, 126
        %v2621 = vpop.permute.xlu0 %2620
        %2622 = vrot.lane.b32.xlu0 %v2587, 126
        %v2623 = vpop.permute.xlu0 %2622
        %v2624 = vsel %vm1321, %v2601, %v2603
        %v2625 = vsel %vm1321, %v2603, %v2605
        %v2626 = vsel %vm1321, %v2605, %v2607
        %v2627 = vsel %vm1321, %v2607, %v2609
        %v2628 = vsel %vm1321, %v2609, %v2611
        %v2629 = vsel %vm1321, %v2613, %v2615
        %v2630 = vsel %vm1321, %v2615, %v2617
        %v2631 = vsel %vm1321, %v2617, %v2619
        %v2632 = vsel %vm1321, %v2619, %v2621
        %v2633 = vsel %vm1321, %v2621, %v2623
        %v2646 = vadd.f32 %v2556, %v2624
        %v2647 = vadd.f32 %v2557, %v2625
        %v2648 = vadd.f32 %v2558, %v2626
        %v2649 = vadd.f32 %v2559, %v2627
        %v2650 = vadd.f32 %v2560, %v2628
        %v2651 = vadd.f32 %v2561, %v2611
        %v2652 = vadd.f32 %v2562, %v2629
        %v2653 = vadd.f32 %v2563, %v2630
        %v2654 = vadd.f32 %v2564, %v2631
        %v2655 = vadd.f32 %v2565, %v2632
        %v2656 = vadd.f32 %v2566, %v2633
        %v2657 = vadd.f32 %v2567, %v2623
        %2658 = vset.pattern.permute.xlu0 3
        %2659 = vperm.xlu0 %2658, %v2454
        %v2660 = vpop.permute.xlu0 %2659
        %2662 = vset.pattern.permute.xlu0 3
        %2663 = vperm.xlu0 %2662, %v2455
        %v2664 = vpop.permute.xlu0 %2663
        %v2666 = vmul.f32 %v2442, %v2660
        %v2667 = vmul.f32 %v2443, %v2660
        %v2668 = vmul.f32 %v2444, %v2660
        %v2669 = vmul.f32 %v2445, %v2660
        %v2670 = vmul.f32 %v2446, %v2660
        %v2671 = vmul.f32 %v2447, %v2660
        %v2672 = vmul.f32 %v2448, %v2664
        %v2673 = vmul.f32 %v2449, %v2664
        %v2674 = vmul.f32 %v2450, %v2664
        %v2675 = vmul.f32 %v2451, %v2664
        %v2676 = vmul.f32 %v2452, %v2664
        %v2677 = vmul.f32 %v2453, %v2664
        %2690 = vrot.lane.b32.xlu0 %v2666, 104
        %v2691 = vpop.permute.xlu0 %2690
        %2692 = vrot.lane.b32.xlu0 %v2667, 104
        %v2693 = vpop.permute.xlu0 %2692
        %2694 = vrot.lane.b32.xlu0 %v2668, 104
        %v2695 = vpop.permute.xlu0 %2694
        %2696 = vrot.lane.b32.xlu0 %v2669, 104
        %v2697 = vpop.permute.xlu0 %2696
        %2698 = vrot.lane.b32.xlu0 %v2670, 104
        %v2699 = vpop.permute.xlu0 %2698
        %2700 = vrot.lane.b32.xlu0 %v2671, 104
        %v2701 = vpop.permute.xlu0 %2700
        %2702 = vrot.lane.b32.xlu0 %v2672, 104
        %v2703 = vpop.permute.xlu0 %2702
        %2704 = vrot.lane.b32.xlu0 %v2673, 104
        %v2705 = vpop.permute.xlu0 %2704
        %2706 = vrot.lane.b32.xlu0 %v2674, 104
        %v2707 = vpop.permute.xlu0 %2706
        %2708 = vrot.lane.b32.xlu0 %v2675, 104
        %v2709 = vpop.permute.xlu0 %2708
        %2710 = vrot.lane.b32.xlu0 %v2676, 104
        %v2711 = vpop.permute.xlu0 %2710
        %2712 = vrot.lane.b32.xlu0 %v2677, 104
        %v2713 = vpop.permute.xlu0 %2712
        %v2714 = vsel %vm1412, %v2691, %v2693
        %v2715 = vsel %vm1412, %v2693, %v2695
        %v2716 = vsel %vm1412, %v2695, %v2697
        %v2717 = vsel %vm1412, %v2697, %v2699
        %v2718 = vsel %vm1412, %v2699, %v2701
        %v2719 = vsel %vm1412, %v2703, %v2705
        %v2720 = vsel %vm1412, %v2705, %v2707
        %v2721 = vsel %vm1412, %v2707, %v2709
        %v2722 = vsel %vm1412, %v2709, %v2711
        %v2723 = vsel %vm1412, %v2711, %v2713
        %v2736 = vadd.f32 %v2646, %v2714
        %v2737 = vadd.f32 %v2647, %v2715
        %v2738 = vadd.f32 %v2648, %v2716
        %v2739 = vadd.f32 %v2649, %v2717
        %v2740 = vadd.f32 %v2650, %v2718
        %v2741 = vadd.f32 %v2651, %v2701
        %v2742 = vadd.f32 %v2652, %v2719
        %v2743 = vadd.f32 %v2653, %v2720
        %v2744 = vadd.f32 %v2654, %v2721
        %v2745 = vadd.f32 %v2655, %v2722
        %v2746 = vadd.f32 %v2656, %v2723
        %v2747 = vadd.f32 %v2657, %v2713
        %2748 = vset.pattern.permute.xlu0 4
        %2749 = vperm.xlu0 %2748, %v2454
        %v2750 = vpop.permute.xlu0 %2749
        %2752 = vset.pattern.permute.xlu0 4
        %2753 = vperm.xlu0 %2752, %v2455
        %v2754 = vpop.permute.xlu0 %2753
        %v2756 = vmul.f32 %v2442, %v2750
        %v2757 = vmul.f32 %v2443, %v2750
        %v2758 = vmul.f32 %v2444, %v2750
        %v2759 = vmul.f32 %v2445, %v2750
        %v2760 = vmul.f32 %v2446, %v2750
        %v2761 = vmul.f32 %v2447, %v2750
        %v2762 = vmul.f32 %v2448, %v2754
        %v2763 = vmul.f32 %v2449, %v2754
        %v2764 = vmul.f32 %v2450, %v2754
        %v2765 = vmul.f32 %v2451, %v2754
        %v2766 = vmul.f32 %v2452, %v2754
        %v2767 = vmul.f32 %v2453, %v2754
        %2780 = vrot.lane.b32.xlu0 %v2756, 103
        %v2781 = vpop.permute.xlu0 %2780
        %2782 = vrot.lane.b32.xlu0 %v2757, 103
        %v2783 = vpop.permute.xlu0 %2782
        %2784 = vrot.lane.b32.xlu0 %v2758, 103
        %v2785 = vpop.permute.xlu0 %2784
        %2786 = vrot.lane.b32.xlu0 %v2759, 103
        %v2787 = vpop.permute.xlu0 %2786
        %2788 = vrot.lane.b32.xlu0 %v2760, 103
        %v2789 = vpop.permute.xlu0 %2788
        %2790 = vrot.lane.b32.xlu0 %v2761, 103
        %v2791 = vpop.permute.xlu0 %2790
        %2792 = vrot.lane.b32.xlu0 %v2762, 103
        %v2793 = vpop.permute.xlu0 %2792
        %2794 = vrot.lane.b32.xlu0 %v2763, 103
        %v2795 = vpop.permute.xlu0 %2794
        %2796 = vrot.lane.b32.xlu0 %v2764, 103
        %v2797 = vpop.permute.xlu0 %2796
        %2798 = vrot.lane.b32.xlu0 %v2765, 103
        %v2799 = vpop.permute.xlu0 %2798
        %2800 = vrot.lane.b32.xlu0 %v2766, 103
        %v2801 = vpop.permute.xlu0 %2800
        %2802 = vrot.lane.b32.xlu0 %v2767, 103
        %v2803 = vpop.permute.xlu0 %2802
        %v2804 = vsel %vm1503, %v2781, %v2783
        %v2805 = vsel %vm1503, %v2783, %v2785
        %v2806 = vsel %vm1503, %v2785, %v2787
        %v2807 = vsel %vm1503, %v2787, %v2789
        %v2808 = vsel %vm1503, %v2789, %v2791
        %v2809 = vsel %vm1503, %v2793, %v2795
        %v2810 = vsel %vm1503, %v2795, %v2797
        %v2811 = vsel %vm1503, %v2797, %v2799
        %v2812 = vsel %vm1503, %v2799, %v2801
        %v2813 = vsel %vm1503, %v2801, %v2803
        %v2826 = vadd.f32 %v2736, %v2804
        %v2827 = vadd.f32 %v2737, %v2805
        %v2828 = vadd.f32 %v2738, %v2806
        %v2829 = vadd.f32 %v2739, %v2807
        %v2830 = vadd.f32 %v2740, %v2808
        %v2831 = vadd.f32 %v2741, %v2791
        %v2832 = vadd.f32 %v2742, %v2809
        %v2833 = vadd.f32 %v2743, %v2810
        %v2834 = vadd.f32 %v2744, %v2811
        %v2835 = vadd.f32 %v2745, %v2812
        %v2836 = vadd.f32 %v2746, %v2813
        %v2837 = vadd.f32 %v2747, %v2803
        %2838 = vset.pattern.permute.xlu0 5
        %2839 = vperm.xlu0 %2838, %v2454
        %v2840 = vpop.permute.xlu0 %2839
        %2842 = vset.pattern.permute.xlu0 5
        %2843 = vperm.xlu0 %2842, %v2455
        %v2844 = vpop.permute.xlu0 %2843
        %v2846 = vmul.f32 %v2442, %v2840
        %v2847 = vmul.f32 %v2443, %v2840
        %v2848 = vmul.f32 %v2444, %v2840
        %v2849 = vmul.f32 %v2445, %v2840
        %v2850 = vmul.f32 %v2446, %v2840
        %v2851 = vmul.f32 %v2447, %v2840
        %v2852 = vmul.f32 %v2448, %v2844
        %v2853 = vmul.f32 %v2449, %v2844
        %v2854 = vmul.f32 %v2450, %v2844
        %v2855 = vmul.f32 %v2451, %v2844
        %v2856 = vmul.f32 %v2452, %v2844
        %v2857 = vmul.f32 %v2453, %v2844
        %2870 = vrot.lane.b32.xlu0 %v2846, 102
        %v2871 = vpop.permute.xlu0 %2870
        %2872 = vrot.lane.b32.xlu0 %v2847, 102
        %v2873 = vpop.permute.xlu0 %2872
        %2874 = vrot.lane.b32.xlu0 %v2848, 102
        %v2875 = vpop.permute.xlu0 %2874
        %2876 = vrot.lane.b32.xlu0 %v2849, 102
        %v2877 = vpop.permute.xlu0 %2876
        %2878 = vrot.lane.b32.xlu0 %v2850, 102
        %v2879 = vpop.permute.xlu0 %2878
        %2880 = vrot.lane.b32.xlu0 %v2851, 102
        %v2881 = vpop.permute.xlu0 %2880
        %2882 = vrot.lane.b32.xlu0 %v2852, 102
        %v2883 = vpop.permute.xlu0 %2882
        %2884 = vrot.lane.b32.xlu0 %v2853, 102
        %v2885 = vpop.permute.xlu0 %2884
        %2886 = vrot.lane.b32.xlu0 %v2854, 102
        %v2887 = vpop.permute.xlu0 %2886
        %2888 = vrot.lane.b32.xlu0 %v2855, 102
        %v2889 = vpop.permute.xlu0 %2888
        %2890 = vrot.lane.b32.xlu0 %v2856, 102
        %v2891 = vpop.permute.xlu0 %2890
        %2892 = vrot.lane.b32.xlu0 %v2857, 102
        %v2893 = vpop.permute.xlu0 %2892
        %v2894 = vsel %vm1594, %v2871, %v2873
        %v2895 = vsel %vm1594, %v2873, %v2875
        %v2896 = vsel %vm1594, %v2875, %v2877
        %v2897 = vsel %vm1594, %v2877, %v2879
        %v2898 = vsel %vm1594, %v2879, %v2881
        %v2899 = vsel %vm1594, %v2883, %v2885
        %v2900 = vsel %vm1594, %v2885, %v2887
        %v2901 = vsel %vm1594, %v2887, %v2889
        %v2902 = vsel %vm1594, %v2889, %v2891
        %v2903 = vsel %vm1594, %v2891, %v2893
        %v2916 = vadd.f32 %v2826, %v2894
        %v2917 = vadd.f32 %v2827, %v2895
        %v2918 = vadd.f32 %v2828, %v2896
        %v2919 = vadd.f32 %v2829, %v2897
        %v2920 = vadd.f32 %v2830, %v2898
        %v2921 = vadd.f32 %v2831, %v2881
        %v2922 = vadd.f32 %v2832, %v2899
        %v2923 = vadd.f32 %v2833, %v2900
        %v2924 = vadd.f32 %v2834, %v2901
        %v2925 = vadd.f32 %v2835, %v2902
        %v2926 = vadd.f32 %v2836, %v2903
        %v2927 = vadd.f32 %v2837, %v2893
        %2928 = vset.pattern.permute.xlu0 6
        %2929 = vperm.xlu0 %2928, %v2454
        %v2930 = vpop.permute.xlu0 %2929
        %2932 = vset.pattern.permute.xlu0 6
        %2933 = vperm.xlu0 %2932, %v2455
        %v2934 = vpop.permute.xlu0 %2933
        %v2936 = vmul.f32 %v2442, %v2930
        %v2937 = vmul.f32 %v2443, %v2930
        %v2938 = vmul.f32 %v2444, %v2930
        %v2939 = vmul.f32 %v2445, %v2930
        %v2940 = vmul.f32 %v2446, %v2930
        %v2941 = vmul.f32 %v2447, %v2930
        %v2942 = vmul.f32 %v2448, %v2934
        %v2943 = vmul.f32 %v2449, %v2934
        %v2944 = vmul.f32 %v2450, %v2934
        %v2945 = vmul.f32 %v2451, %v2934
        %v2946 = vmul.f32 %v2452, %v2934
        %v2947 = vmul.f32 %v2453, %v2934
        %2960 = vrot.lane.b32.xlu0 %v2936, 80
        %v2961 = vpop.permute.xlu0 %2960
        %2962 = vrot.lane.b32.xlu0 %v2937, 80
        %v2963 = vpop.permute.xlu0 %2962
        %2964 = vrot.lane.b32.xlu0 %v2938, 80
        %v2965 = vpop.permute.xlu0 %2964
        %2966 = vrot.lane.b32.xlu0 %v2939, 80
        %v2967 = vpop.permute.xlu0 %2966
        %2968 = vrot.lane.b32.xlu0 %v2940, 80
        %v2969 = vpop.permute.xlu0 %2968
        %2970 = vrot.lane.b32.xlu0 %v2941, 80
        %v2971 = vpop.permute.xlu0 %2970
        %2972 = vrot.lane.b32.xlu0 %v2942, 80
        %v2973 = vpop.permute.xlu0 %2972
        %2974 = vrot.lane.b32.xlu0 %v2943, 80
        %v2975 = vpop.permute.xlu0 %2974
        %2976 = vrot.lane.b32.xlu0 %v2944, 80
        %v2977 = vpop.permute.xlu0 %2976
        %2978 = vrot.lane.b32.xlu0 %v2945, 80
        %v2979 = vpop.permute.xlu0 %2978
        %2980 = vrot.lane.b32.xlu0 %v2946, 80
        %v2981 = vpop.permute.xlu0 %2980
        %2982 = vrot.lane.b32.xlu0 %v2947, 80
        %v2983 = vpop.permute.xlu0 %2982
        %v2984 = vsel %vm1685, %v2961, %v2963
        %v2985 = vsel %vm1685, %v2963, %v2965
        %v2986 = vsel %vm1685, %v2965, %v2967
        %v2987 = vsel %vm1685, %v2967, %v2969
        %v2988 = vsel %vm1685, %v2969, %v2971
        %v2989 = vsel %vm1685, %v2973, %v2975
        %v2990 = vsel %vm1685, %v2975, %v2977
        %v2991 = vsel %vm1685, %v2977, %v2979
        %v2992 = vsel %vm1685, %v2979, %v2981
        %v2993 = vsel %vm1685, %v2981, %v2983
        %v3006 = vadd.f32 %v2916, %v2984
        %v3007 = vadd.f32 %v2917, %v2985
        %v3008 = vadd.f32 %v2918, %v2986
        %v3009 = vadd.f32 %v2919, %v2987
        %v3010 = vadd.f32 %v2920, %v2988
        %v3011 = vadd.f32 %v2921, %v2971
        %v3012 = vadd.f32 %v2922, %v2989
        %v3013 = vadd.f32 %v2923, %v2990
        %v3014 = vadd.f32 %v2924, %v2991
        %v3015 = vadd.f32 %v2925, %v2992
        %v3016 = vadd.f32 %v2926, %v2993
        %v3017 = vadd.f32 %v2927, %v2983
        %3018 = vset.pattern.permute.xlu0 7
        %3019 = vperm.xlu0 %3018, %v2454
        %v3020 = vpop.permute.xlu0 %3019
        %3022 = vset.pattern.permute.xlu0 7
        %3023 = vperm.xlu0 %3022, %v2455
        %v3024 = vpop.permute.xlu0 %3023
        %v3026 = vmul.f32 %v2442, %v3020
        %v3027 = vmul.f32 %v2443, %v3020
        %v3028 = vmul.f32 %v2444, %v3020
        %v3029 = vmul.f32 %v2445, %v3020
        %v3030 = vmul.f32 %v2446, %v3020
        %v3031 = vmul.f32 %v2447, %v3020
        %v3032 = vmul.f32 %v2448, %v3024
        %v3033 = vmul.f32 %v2449, %v3024
        %v3034 = vmul.f32 %v2450, %v3024
        %v3035 = vmul.f32 %v2451, %v3024
        %v3036 = vmul.f32 %v2452, %v3024
        %v3037 = vmul.f32 %v2453, %v3024
        %3050 = vrot.lane.b32.xlu0 %v3026, 79
        %v3051 = vpop.permute.xlu0 %3050
        %3052 = vrot.lane.b32.xlu0 %v3027, 79
        %v3053 = vpop.permute.xlu0 %3052
        %3054 = vrot.lane.b32.xlu0 %v3028, 79
        %v3055 = vpop.permute.xlu0 %3054
        %3056 = vrot.lane.b32.xlu0 %v3029, 79
        %v3057 = vpop.permute.xlu0 %3056
        %3058 = vrot.lane.b32.xlu0 %v3030, 79
        %v3059 = vpop.permute.xlu0 %3058
        %3060 = vrot.lane.b32.xlu0 %v3031, 79
        %v3061 = vpop.permute.xlu0 %3060
        %3062 = vrot.lane.b32.xlu0 %v3032, 79
        %v3063 = vpop.permute.xlu0 %3062
        %3064 = vrot.lane.b32.xlu0 %v3033, 79
        %v3065 = vpop.permute.xlu0 %3064
        %3066 = vrot.lane.b32.xlu0 %v3034, 79
        %v3067 = vpop.permute.xlu0 %3066
        %3068 = vrot.lane.b32.xlu0 %v3035, 79
        %v3069 = vpop.permute.xlu0 %3068
        %3070 = vrot.lane.b32.xlu0 %v3036, 79
        %v3071 = vpop.permute.xlu0 %3070
        %3072 = vrot.lane.b32.xlu0 %v3037, 79
        %v3073 = vpop.permute.xlu0 %3072
        %v3074 = vsel %vm1776, %v3051, %v3053
        %v3075 = vsel %vm1776, %v3053, %v3055
        %v3076 = vsel %vm1776, %v3055, %v3057
        %v3077 = vsel %vm1776, %v3057, %v3059
        %v3078 = vsel %vm1776, %v3059, %v3061
        %v3079 = vsel %vm1776, %v3063, %v3065
        %v3080 = vsel %vm1776, %v3065, %v3067
        %v3081 = vsel %vm1776, %v3067, %v3069
        %v3082 = vsel %vm1776, %v3069, %v3071
        %v3083 = vsel %vm1776, %v3071, %v3073
        %v3096 = vadd.f32 %v3006, %v3074
        %v3097 = vadd.f32 %v3007, %v3075
        %v3098 = vadd.f32 %v3008, %v3076
        %v3099 = vadd.f32 %v3009, %v3077
        %v3100 = vadd.f32 %v3010, %v3078
        %v3101 = vadd.f32 %v3011, %v3061
        %v3102 = vadd.f32 %v3012, %v3079
        %v3103 = vadd.f32 %v3013, %v3080
        %v3104 = vadd.f32 %v3014, %v3081
        %v3105 = vadd.f32 %v3015, %v3082
        %v3106 = vadd.f32 %v3016, %v3083
        %v3107 = vadd.f32 %v3017, %v3073
        %3108 = vset.pattern.permute.xlu0 8
        %3109 = vperm.xlu0 %3108, %v2454
        %v3110 = vpop.permute.xlu0 %3109
        %3112 = vset.pattern.permute.xlu0 8
        %3113 = vperm.xlu0 %3112, %v2455
        %v3114 = vpop.permute.xlu0 %3113
        %v3116 = vmul.f32 %v2442, %v3110
        %v3117 = vmul.f32 %v2443, %v3110
        %v3118 = vmul.f32 %v2444, %v3110
        %v3119 = vmul.f32 %v2445, %v3110
        %v3120 = vmul.f32 %v2446, %v3110
        %v3121 = vmul.f32 %v2447, %v3110
        %v3122 = vmul.f32 %v2448, %v3114
        %v3123 = vmul.f32 %v2449, %v3114
        %v3124 = vmul.f32 %v2450, %v3114
        %v3125 = vmul.f32 %v2451, %v3114
        %v3126 = vmul.f32 %v2452, %v3114
        %v3127 = vmul.f32 %v2453, %v3114
        %3140 = vrot.lane.b32.xlu0 %v3116, 78
        %v3141 = vpop.permute.xlu0 %3140
        %3142 = vrot.lane.b32.xlu0 %v3117, 78
        %v3143 = vpop.permute.xlu0 %3142
        %3144 = vrot.lane.b32.xlu0 %v3118, 78
        %v3145 = vpop.permute.xlu0 %3144
        %3146 = vrot.lane.b32.xlu0 %v3119, 78
        %v3147 = vpop.permute.xlu0 %3146
        %3148 = vrot.lane.b32.xlu0 %v3120, 78
        %v3149 = vpop.permute.xlu0 %3148
        %3150 = vrot.lane.b32.xlu0 %v3121, 78
        %v3151 = vpop.permute.xlu0 %3150
        %3152 = vrot.lane.b32.xlu0 %v3122, 78
        %v3153 = vpop.permute.xlu0 %3152
        %3154 = vrot.lane.b32.xlu0 %v3123, 78
        %v3155 = vpop.permute.xlu0 %3154
        %3156 = vrot.lane.b32.xlu0 %v3124, 78
        %v3157 = vpop.permute.xlu0 %3156
        %3158 = vrot.lane.b32.xlu0 %v3125, 78
        %v3159 = vpop.permute.xlu0 %3158
        %3160 = vrot.lane.b32.xlu0 %v3126, 78
        %v3161 = vpop.permute.xlu0 %3160
        %3162 = vrot.lane.b32.xlu0 %v3127, 78
        %v3163 = vpop.permute.xlu0 %3162
        %v3164 = vsel %vm1867, %v3141, %v3143
        %v3165 = vsel %vm1867, %v3143, %v3145
        %v3166 = vsel %vm1867, %v3145, %v3147
        %v3167 = vsel %vm1867, %v3147, %v3149
        %v3168 = vsel %vm1867, %v3149, %v3151
        %v3169 = vsel %vm1867, %v3153, %v3155
        %v3170 = vsel %vm1867, %v3155, %v3157
        %v3171 = vsel %vm1867, %v3157, %v3159
        %v3172 = vsel %vm1867, %v3159, %v3161
        %v3173 = vsel %vm1867, %v3161, %v3163
        %v3186 = vadd.f32 %v3096, %v3164
        %v3187 = vadd.f32 %v3097, %v3165
        %v3188 = vadd.f32 %v3098, %v3166
        %v3189 = vadd.f32 %v3099, %v3167
        %v3190 = vadd.f32 %v3100, %v3168
        %v3191 = vadd.f32 %v3101, %v3151
        %v3192 = vadd.f32 %v3102, %v3169
        %v3193 = vadd.f32 %v3103, %v3170
        %v3194 = vadd.f32 %v3104, %v3171
        %v3195 = vadd.f32 %v3105, %v3172
        %v3196 = vadd.f32 %v3106, %v3173
        %v3197 = vadd.f32 %v3107, %v3163
        %v3198 = vld [vmem:[%s10] sm:$0xff]
        %v3199 = vld [vmem:[%s10 + $0x8] sm:$0xff]
        %3201 = vset.pattern.permute.xlu0 0
        %3202 = vperm.xlu0 %3201, %v3198
        %v3203 = vpop.permute.xlu0 %3202
        %3206 = vset.pattern.permute.xlu0 0
        %3207 = vperm.xlu0 %3206, %v3199
        %v3208 = vpop.permute.xlu0 %3207
        %v3210 = vadd.f32 %v3186, %v3203
        %v3211 = vadd.f32 %v3187, %v3203
        %v3212 = vadd.f32 %v3188, %v3203
        %v3213 = vadd.f32 %v3189, %v3203
        %v3214 = vadd.f32 %v3190, %v3203
        %v3215 = vadd.f32 %v3191, %v3203
        %v3216 = vadd.f32 %v3192, %v3208
        %v3217 = vadd.f32 %v3193, %v3208
        %v3218 = vadd.f32 %v3194, %v3208
        %v3219 = vadd.f32 %v3195, %v3208
        %v3220 = vadd.f32 %v3196, %v3208
        %v3221 = vadd.f32 %v3197, %v3208
        %v3222 = vld [vmem:[#allocation2] sm:$0xff]
        %v3223 = vld [vmem:[#allocation2 + $0x8] sm:$0xff]
        %v3224 = vld [vmem:[#allocation2 + $0x10] sm:$0xff]
        %v3225 = vld [vmem:[#allocation2 + $0x18] sm:$0xff]
        %v3226 = vld [vmem:[#allocation2 + $0x20] sm:$0xff]
        %v3227 = vld [vmem:[#allocation2 + $0x38] sm:$0xff]
        %v3228 = vld [vmem:[#allocation2 + $0x40] sm:$0xff]
        %v3229 = vld [vmem:[#allocation2 + $0x48] sm:$0xff]
        %v3230 = vld [vmem:[#allocation2 + $0x50] sm:$0xff]
        %v3231 = vld [vmem:[#allocation2 + $0x58] sm:$0xff]
        %v3232 = vld [vmem:[%s11] sm:$0xff]
        %v3233 = vld [vmem:[%s11 + $0x8] sm:$0xff]
        %3235 = vset.pattern.permute.xlu0 0
        %3236 = vperm.xlu0 %3235, %v3232
        %v3237 = vpop.permute.xlu0 %3236
        %3240 = vset.pattern.permute.xlu0 0
        %3241 = vperm.xlu0 %3240, %v3233
        %v3242 = vpop.permute.xlu0 %3241
        %v3244 = vmul.f32 %v3222, %v3237
        %v3245 = vmul.f32 %v3223, %v3237
        %v3246 = vmul.f32 %v3224, %v3237
        %v3247 = vmul.f32 %v3225, %v3237
        %v3248 = vmul.f32 %v3226, %v3237
        %v3249 = vmul.f32 %v3227, %v3242
        %v3250 = vmul.f32 %v3228, %v3242
        %v3251 = vmul.f32 %v3229, %v3242
        %v3252 = vmul.f32 %v3230, %v3242
        %v3253 = vmul.f32 %v3231, %v3242
        %3254 = vset.pattern.permute.xlu0 1
        %3255 = vperm.xlu0 %3254, %v3232
        %v3256 = vpop.permute.xlu0 %3255
        %3258 = vset.pattern.permute.xlu0 1
        %3259 = vperm.xlu0 %3258, %v3233
        %v3260 = vpop.permute.xlu0 %3259
        %v3262 = vmul.f32 %v3222, %v3256
        %v3263 = vmul.f32 %v3223, %v3256
        %v3264 = vmul.f32 %v3224, %v3256
        %v3265 = vmul.f32 %v3225, %v3256
        %v3266 = vmul.f32 %v3226, %v3256
        %v3267 = vmul.f32 %v3227, %v3260
        %v3268 = vmul.f32 %v3228, %v3260
        %v3269 = vmul.f32 %v3229, %v3260
        %v3270 = vmul.f32 %v3230, %v3260
        %v3271 = vmul.f32 %v3231, %v3260
        %3282 = vrot.lane.b32.xlu0 %v3262, 126
        %v3283 = vpop.permute.xlu0 %3282
        %3284 = vrot.lane.b32.xlu0 %v3263, 126
        %v3285 = vpop.permute.xlu0 %3284
        %3286 = vrot.lane.b32.xlu0 %v3264, 126
        %v3287 = vpop.permute.xlu0 %3286
        %3288 = vrot.lane.b32.xlu0 %v3265, 126
        %v3289 = vpop.permute.xlu0 %3288
        %3290 = vrot.lane.b32.xlu0 %v3266, 126
        %v3291 = vpop.permute.xlu0 %3290
        %3292 = vrot.lane.b32.xlu0 %v3267, 126
        %v3293 = vpop.permute.xlu0 %3292
        %3294 = vrot.lane.b32.xlu0 %v3268, 126
        %v3295 = vpop.permute.xlu0 %3294
        %3296 = vrot.lane.b32.xlu0 %v3269, 126
        %v3297 = vpop.permute.xlu0 %3296
        %3298 = vrot.lane.b32.xlu0 %v3270, 126
        %v3299 = vpop.permute.xlu0 %3298
        %3300 = vrot.lane.b32.xlu0 %v3271, 126
        %v3301 = vpop.permute.xlu0 %3300
        %v3302 = vsel %vm1321, %v3283, %v3285
        %v3303 = vsel %vm1321, %v3285, %v3287
        %v3304 = vsel %vm1321, %v3287, %v3289
        %v3305 = vsel %vm1321, %v3289, %v3291
        %v3306 = vsel %vm1321, %v3293, %v3295
        %v3307 = vsel %vm1321, %v3295, %v3297
        %v3308 = vsel %vm1321, %v3297, %v3299
        %v3309 = vsel %vm1321, %v3299, %v3301
        %v3320 = vadd.f32 %v3244, %v3302
        %v3321 = vadd.f32 %v3245, %v3303
        %v3322 = vadd.f32 %v3246, %v3304
        %v3323 = vadd.f32 %v3247, %v3305
        %v3324 = vadd.f32 %v3248, %v3291
        %v3325 = vadd.f32 %v3249, %v3306
        %v3326 = vadd.f32 %v3250, %v3307
        %v3327 = vadd.f32 %v3251, %v3308
        %v3328 = vadd.f32 %v3252, %v3309
        %v3329 = vadd.f32 %v3253, %v3301
        %3330 = vset.pattern.permute.xlu0 2
        %3331 = vperm.xlu0 %3330, %v3232
        %v3332 = vpop.permute.xlu0 %3331
        %3334 = vset.pattern.permute.xlu0 2
        %3335 = vperm.xlu0 %3334, %v3233
        %v3336 = vpop.permute.xlu0 %3335
        %v3338 = vmul.f32 %v3222, %v3332
        %v3339 = vmul.f32 %v3223, %v3332
        %v3340 = vmul.f32 %v3224, %v3332
        %v3341 = vmul.f32 %v3225, %v3332
        %v3342 = vmul.f32 %v3226, %v3332
        %v3343 = vmul.f32 %v3227, %v3336
        %v3344 = vmul.f32 %v3228, %v3336
        %v3345 = vmul.f32 %v3229, %v3336
        %v3346 = vmul.f32 %v3230, %v3336
        %v3347 = vmul.f32 %v3231, %v3336
        %3358 = vrot.lane.b32.xlu0 %v3338, 124
        %v3359 = vpop.permute.xlu0 %3358
        %3360 = vrot.lane.b32.xlu0 %v3339, 124
        %v3361 = vpop.permute.xlu0 %3360
        %3362 = vrot.lane.b32.xlu0 %v3340, 124
        %v3363 = vpop.permute.xlu0 %3362
        %3364 = vrot.lane.b32.xlu0 %v3341, 124
        %v3365 = vpop.permute.xlu0 %3364
        %3366 = vrot.lane.b32.xlu0 %v3342, 124
        %v3367 = vpop.permute.xlu0 %3366
        %3368 = vrot.lane.b32.xlu0 %v3343, 124
        %v3369 = vpop.permute.xlu0 %3368
        %3370 = vrot.lane.b32.xlu0 %v3344, 124
        %v3371 = vpop.permute.xlu0 %3370
        %3372 = vrot.lane.b32.xlu0 %v3345, 124
        %v3373 = vpop.permute.xlu0 %3372
        %3374 = vrot.lane.b32.xlu0 %v3346, 124
        %v3375 = vpop.permute.xlu0 %3374
        %3376 = vrot.lane.b32.xlu0 %v3347, 124
        %v3377 = vpop.permute.xlu0 %3376
        %vm3378 = vcmask 1014784
        %v3379 = vsel %vm3378, %v3359, %v3361
        %v3380 = vsel %vm3378, %v3361, %v3363
        %v3381 = vsel %vm3378, %v3363, %v3365
        %v3382 = vsel %vm3378, %v3365, %v3367
        %v3383 = vsel %vm3378, %v3369, %v3371
        %v3384 = vsel %vm3378, %v3371, %v3373
        %v3385 = vsel %vm3378, %v3373, %v3375
        %v3386 = vsel %vm3378, %v3375, %v3377
        %v3397 = vadd.f32 %v3320, %v3379
        %v3398 = vadd.f32 %v3321, %v3380
        %v3399 = vadd.f32 %v3322, %v3381
        %v3400 = vadd.f32 %v3323, %v3382
        %v3401 = vadd.f32 %v3324, %v3367
        %v3402 = vadd.f32 %v3325, %v3383
        %v3403 = vadd.f32 %v3326, %v3384
        %v3404 = vadd.f32 %v3327, %v3385
        %v3405 = vadd.f32 %v3328, %v3386
        %v3406 = vadd.f32 %v3329, %v3377
        %3407 = vset.pattern.permute.xlu0 3
        %3408 = vperm.xlu0 %3407, %v3232
        %v3409 = vpop.permute.xlu0 %3408
        %3411 = vset.pattern.permute.xlu0 3
        %3412 = vperm.xlu0 %3411, %v3233
        %v3413 = vpop.permute.xlu0 %3412
        %v3415 = vmul.f32 %v3222, %v3409
        %v3416 = vmul.f32 %v3223, %v3409
        %v3417 = vmul.f32 %v3224, %v3409
        %v3418 = vmul.f32 %v3225, %v3409
        %v3419 = vmul.f32 %v3226, %v3409
        %v3420 = vmul.f32 %v3227, %v3413
        %v3421 = vmul.f32 %v3228, %v3413
        %v3422 = vmul.f32 %v3229, %v3413
        %v3423 = vmul.f32 %v3230, %v3413
        %v3424 = vmul.f32 %v3231, %v3413
        %3435 = vrot.lane.b32.xlu0 %v3415, 122
        %v3436 = vpop.permute.xlu0 %3435
        %3437 = vrot.lane.b32.xlu0 %v3416, 122
        %v3438 = vpop.permute.xlu0 %3437
        %3439 = vrot.lane.b32.xlu0 %v3417, 122
        %v3440 = vpop.permute.xlu0 %3439
        %3441 = vrot.lane.b32.xlu0 %v3418, 122
        %v3442 = vpop.permute.xlu0 %3441
        %3443 = vrot.lane.b32.xlu0 %v3419, 122
        %v3444 = vpop.permute.xlu0 %3443
        %3445 = vrot.lane.b32.xlu0 %v3420, 122
        %v3446 = vpop.permute.xlu0 %3445
        %3447 = vrot.lane.b32.xlu0 %v3421, 122
        %v3448 = vpop.permute.xlu0 %3447
        %3449 = vrot.lane.b32.xlu0 %v3422, 122
        %v3450 = vpop.permute.xlu0 %3449
        %3451 = vrot.lane.b32.xlu0 %v3423, 122
        %v3452 = vpop.permute.xlu0 %3451
        %3453 = vrot.lane.b32.xlu0 %v3424, 122
        %v3454 = vpop.permute.xlu0 %3453
        %vm3455 = vcmask 998400
        %v3456 = vsel %vm3455, %v3436, %v3438
        %v3457 = vsel %vm3455, %v3438, %v3440
        %v3458 = vsel %vm3455, %v3440, %v3442
        %v3459 = vsel %vm3455, %v3442, %v3444
        %v3460 = vsel %vm3455, %v3446, %v3448
        %v3461 = vsel %vm3455, %v3448, %v3450
        %v3462 = vsel %vm3455, %v3450, %v3452
        %v3463 = vsel %vm3455, %v3452, %v3454
        %v3474 = vadd.f32 %v3397, %v3456
        %v3475 = vadd.f32 %v3398, %v3457
        %v3476 = vadd.f32 %v3399, %v3458
        %v3477 = vadd.f32 %v3400, %v3459
        %v3478 = vadd.f32 %v3401, %v3444
        %v3479 = vadd.f32 %v3402, %v3460
        %v3480 = vadd.f32 %v3403, %v3461
        %v3481 = vadd.f32 %v3404, %v3462
        %v3482 = vadd.f32 %v3405, %v3463
        %v3483 = vadd.f32 %v3406, %v3454
        %3484 = vset.pattern.permute.xlu0 4
        %3485 = vperm.xlu0 %3484, %v3232
        %v3486 = vpop.permute.xlu0 %3485
        %3488 = vset.pattern.permute.xlu0 4
        %3489 = vperm.xlu0 %3488, %v3233
        %v3490 = vpop.permute.xlu0 %3489
        %v3492 = vmul.f32 %v3222, %v3486
        %v3493 = vmul.f32 %v3223, %v3486
        %v3494 = vmul.f32 %v3224, %v3486
        %v3495 = vmul.f32 %v3225, %v3486
        %v3496 = vmul.f32 %v3226, %v3486
        %v3497 = vmul.f32 %v3227, %v3490
        %v3498 = vmul.f32 %v3228, %v3490
        %v3499 = vmul.f32 %v3229, %v3490
        %v3500 = vmul.f32 %v3230, %v3490
        %v3501 = vmul.f32 %v3231, %v3490
        %3512 = vrot.lane.b32.xlu0 %v3492, 120
        %v3513 = vpop.permute.xlu0 %3512
        %3514 = vrot.lane.b32.xlu0 %v3493, 120
        %v3515 = vpop.permute.xlu0 %3514
        %3516 = vrot.lane.b32.xlu0 %v3494, 120
        %v3517 = vpop.permute.xlu0 %3516
        %3518 = vrot.lane.b32.xlu0 %v3495, 120
        %v3519 = vpop.permute.xlu0 %3518
        %3520 = vrot.lane.b32.xlu0 %v3496, 120
        %v3521 = vpop.permute.xlu0 %3520
        %3522 = vrot.lane.b32.xlu0 %v3497, 120
        %v3523 = vpop.permute.xlu0 %3522
        %3524 = vrot.lane.b32.xlu0 %v3498, 120
        %v3525 = vpop.permute.xlu0 %3524
        %3526 = vrot.lane.b32.xlu0 %v3499, 120
        %v3527 = vpop.permute.xlu0 %3526
        %3528 = vrot.lane.b32.xlu0 %v3500, 120
        %v3529 = vpop.permute.xlu0 %3528
        %3530 = vrot.lane.b32.xlu0 %v3501, 120
        %v3531 = vpop.permute.xlu0 %3530
        %vm3532 = vcmask 982016
        %v3533 = vsel %vm3532, %v3513, %v3515
        %v3534 = vsel %vm3532, %v3515, %v3517
        %v3535 = vsel %vm3532, %v3517, %v3519
        %v3536 = vsel %vm3532, %v3519, %v3521
        %v3537 = vsel %vm3532, %v3523, %v3525
        %v3538 = vsel %vm3532, %v3525, %v3527
        %v3539 = vsel %vm3532, %v3527, %v3529
        %v3540 = vsel %vm3532, %v3529, %v3531
        %v3551 = vadd.f32 %v3474, %v3533
        %v3552 = vadd.f32 %v3475, %v3534
        %v3553 = vadd.f32 %v3476, %v3535
        %v3554 = vadd.f32 %v3477, %v3536
        %v3555 = vadd.f32 %v3478, %v3521
        %v3556 = vadd.f32 %v3479, %v3537
        %v3557 = vadd.f32 %v3480, %v3538
        %v3558 = vadd.f32 %v3481, %v3539
        %v3559 = vadd.f32 %v3482, %v3540
        %v3560 = vadd.f32 %v3483, %v3531
        %3561 = vset.pattern.permute.xlu0 5
        %3562 = vperm.xlu0 %3561, %v3232
        %v3563 = vpop.permute.xlu0 %3562
        %3565 = vset.pattern.permute.xlu0 5
        %3566 = vperm.xlu0 %3565, %v3233
        %v3567 = vpop.permute.xlu0 %3566
        %v3569 = vmul.f32 %v3222, %v3563
        %v3570 = vmul.f32 %v3223, %v3563
        %v3571 = vmul.f32 %v3224, %v3563
        %v3572 = vmul.f32 %v3225, %v3563
        %v3573 = vmul.f32 %v3226, %v3563
        %v3574 = vmul.f32 %v3227, %v3567
        %v3575 = vmul.f32 %v3228, %v3567
        %v3576 = vmul.f32 %v3229, %v3567
        %v3577 = vmul.f32 %v3230, %v3567
        %v3578 = vmul.f32 %v3231, %v3567
        %3589 = vrot.lane.b32.xlu0 %v3569, 80
        %v3590 = vpop.permute.xlu0 %3589
        %3591 = vrot.lane.b32.xlu0 %v3570, 80
        %v3592 = vpop.permute.xlu0 %3591
        %3593 = vrot.lane.b32.xlu0 %v3571, 80
        %v3594 = vpop.permute.xlu0 %3593
        %3595 = vrot.lane.b32.xlu0 %v3572, 80
        %v3596 = vpop.permute.xlu0 %3595
        %3597 = vrot.lane.b32.xlu0 %v3573, 80
        %v3598 = vpop.permute.xlu0 %3597
        %3599 = vrot.lane.b32.xlu0 %v3574, 80
        %v3600 = vpop.permute.xlu0 %3599
        %3601 = vrot.lane.b32.xlu0 %v3575, 80
        %v3602 = vpop.permute.xlu0 %3601
        %3603 = vrot.lane.b32.xlu0 %v3576, 80
        %v3604 = vpop.permute.xlu0 %3603
        %3605 = vrot.lane.b32.xlu0 %v3577, 80
        %v3606 = vpop.permute.xlu0 %3605
        %3607 = vrot.lane.b32.xlu0 %v3578, 80
        %v3608 = vpop.permute.xlu0 %3607
        %v3609 = vsel %vm1685, %v3590, %v3592
        %v3610 = vsel %vm1685, %v3592, %v3594
        %v3611 = vsel %vm1685, %v3594, %v3596
        %v3612 = vsel %vm1685, %v3596, %v3598
        %v3613 = vsel %vm1685, %v3600, %v3602
        %v3614 = vsel %vm1685, %v3602, %v3604
        %v3615 = vsel %vm1685, %v3604, %v3606
        %v3616 = vsel %vm1685, %v3606, %v3608
        %v3627 = vadd.f32 %v3551, %v3609
        %v3628 = vadd.f32 %v3552, %v3610
        %v3629 = vadd.f32 %v3553, %v3611
        %v3630 = vadd.f32 %v3554, %v3612
        %v3631 = vadd.f32 %v3555, %v3598
        %v3632 = vadd.f32 %v3556, %v3613
        %v3633 = vadd.f32 %v3557, %v3614
        %v3634 = vadd.f32 %v3558, %v3615
        %v3635 = vadd.f32 %v3559, %v3616
        %v3636 = vadd.f32 %v3560, %v3608
        %3637 = vset.pattern.permute.xlu0 6
        %3638 = vperm.xlu0 %3637, %v3232
        %v3639 = vpop.permute.xlu0 %3638
        %3641 = vset.pattern.permute.xlu0 6
        %3642 = vperm.xlu0 %3641, %v3233
        %v3643 = vpop.permute.xlu0 %3642
        %v3645 = vmul.f32 %v3222, %v3639
        %v3646 = vmul.f32 %v3223, %v3639
        %v3647 = vmul.f32 %v3224, %v3639
        %v3648 = vmul.f32 %v3225, %v3639
        %v3649 = vmul.f32 %v3226, %v3639
        %v3650 = vmul.f32 %v3227, %v3643
        %v3651 = vmul.f32 %v3228, %v3643
        %v3652 = vmul.f32 %v3229, %v3643
        %v3653 = vmul.f32 %v3230, %v3643
        %v3654 = vmul.f32 %v3231, %v3643
        %3665 = vrot.lane.b32.xlu0 %v3645, 78
        %v3666 = vpop.permute.xlu0 %3665
        %3667 = vrot.lane.b32.xlu0 %v3646, 78
        %v3668 = vpop.permute.xlu0 %3667
        %3669 = vrot.lane.b32.xlu0 %v3647, 78
        %v3670 = vpop.permute.xlu0 %3669
        %3671 = vrot.lane.b32.xlu0 %v3648, 78
        %v3672 = vpop.permute.xlu0 %3671
        %3673 = vrot.lane.b32.xlu0 %v3649, 78
        %v3674 = vpop.permute.xlu0 %3673
        %3675 = vrot.lane.b32.xlu0 %v3650, 78
        %v3676 = vpop.permute.xlu0 %3675
        %3677 = vrot.lane.b32.xlu0 %v3651, 78
        %v3678 = vpop.permute.xlu0 %3677
        %3679 = vrot.lane.b32.xlu0 %v3652, 78
        %v3680 = vpop.permute.xlu0 %3679
        %3681 = vrot.lane.b32.xlu0 %v3653, 78
        %v3682 = vpop.permute.xlu0 %3681
        %3683 = vrot.lane.b32.xlu0 %v3654, 78
        %v3684 = vpop.permute.xlu0 %3683
        %v3685 = vsel %vm1867, %v3666, %v3668
        %v3686 = vsel %vm1867, %v3668, %v3670
        %v3687 = vsel %vm1867, %v3670, %v3672
        %v3688 = vsel %vm1867, %v3672, %v3674
        %v3689 = vsel %vm1867, %v3676, %v3678
        %v3690 = vsel %vm1867, %v3678, %v3680
        %v3691 = vsel %vm1867, %v3680, %v3682
        %v3692 = vsel %vm1867, %v3682, %v3684
        %v3703 = vadd.f32 %v3627, %v3685
        %v3704 = vadd.f32 %v3628, %v3686
        %v3705 = vadd.f32 %v3629, %v3687
        %v3706 = vadd.f32 %v3630, %v3688
        %v3707 = vadd.f32 %v3631, %v3674
        %v3708 = vadd.f32 %v3632, %v3689
        %v3709 = vadd.f32 %v3633, %v3690
        %v3710 = vadd.f32 %v3634, %v3691
        %v3711 = vadd.f32 %v3635, %v3692
        %v3712 = vadd.f32 %v3636, %v3684
        %3713 = vset.pattern.permute.xlu0 7
        %3714 = vperm.xlu0 %3713, %v3232
        %v3715 = vpop.permute.xlu0 %3714
        %3717 = vset.pattern.permute.xlu0 7
        %3718 = vperm.xlu0 %3717, %v3233
        %v3719 = vpop.permute.xlu0 %3718
        %v3721 = vmul.f32 %v3222, %v3715
        %v3722 = vmul.f32 %v3223, %v3715
        %v3723 = vmul.f32 %v3224, %v3715
        %v3724 = vmul.f32 %v3225, %v3715
        %v3725 = vmul.f32 %v3226, %v3715
        %v3726 = vmul.f32 %v3227, %v3719
        %v3727 = vmul.f32 %v3228, %v3719
        %v3728 = vmul.f32 %v3229, %v3719
        %v3729 = vmul.f32 %v3230, %v3719
        %v3730 = vmul.f32 %v3231, %v3719
        %3741 = vrot.lane.b32.xlu0 %v3721, 76
        %v3742 = vpop.permute.xlu0 %3741
        %3743 = vrot.lane.b32.xlu0 %v3722, 76
        %v3744 = vpop.permute.xlu0 %3743
        %3745 = vrot.lane.b32.xlu0 %v3723, 76
        %v3746 = vpop.permute.xlu0 %3745
        %3747 = vrot.lane.b32.xlu0 %v3724, 76
        %v3748 = vpop.permute.xlu0 %3747
        %3749 = vrot.lane.b32.xlu0 %v3725, 76
        %v3750 = vpop.permute.xlu0 %3749
        %3751 = vrot.lane.b32.xlu0 %v3726, 76
        %v3752 = vpop.permute.xlu0 %3751
        %3753 = vrot.lane.b32.xlu0 %v3727, 76
        %v3754 = vpop.permute.xlu0 %3753
        %3755 = vrot.lane.b32.xlu0 %v3728, 76
        %v3756 = vpop.permute.xlu0 %3755
        %3757 = vrot.lane.b32.xlu0 %v3729, 76
        %v3758 = vpop.permute.xlu0 %3757
        %3759 = vrot.lane.b32.xlu0 %v3730, 76
        %v3760 = vpop.permute.xlu0 %3759
        %vm3761 = vcmask 621568
        %v3762 = vsel %vm3761, %v3742, %v3744
        %v3763 = vsel %vm3761, %v3744, %v3746
        %v3764 = vsel %vm3761, %v3746, %v3748
        %v3765 = vsel %vm3761, %v3748, %v3750
        %v3766 = vsel %vm3761, %v3752, %v3754
        %v3767 = vsel %vm3761, %v3754, %v3756
        %v3768 = vsel %vm3761, %v3756, %v3758
        %v3769 = vsel %vm3761, %v3758, %v3760
        %v3780 = vadd.f32 %v3703, %v3762
        %v3781 = vadd.f32 %v3704, %v3763
        %v3782 = vadd.f32 %v3705, %v3764
        %v3783 = vadd.f32 %v3706, %v3765
        %v3784 = vadd.f32 %v3707, %v3750
        %v3785 = vadd.f32 %v3708, %v3766
        %v3786 = vadd.f32 %v3709, %v3767
        %v3787 = vadd.f32 %v3710, %v3768
        %v3788 = vadd.f32 %v3711, %v3769
        %v3789 = vadd.f32 %v3712, %v3760
        %3790 = vset.pattern.permute.xlu0 8
        %3791 = vperm.xlu0 %3790, %v3232
        %v3792 = vpop.permute.xlu0 %3791
        %3794 = vset.pattern.permute.xlu0 8
        %3795 = vperm.xlu0 %3794, %v3233
        %v3796 = vpop.permute.xlu0 %3795
        %v3798 = vmul.f32 %v3222, %v3792
        %v3799 = vmul.f32 %v3223, %v3792
        %v3800 = vmul.f32 %v3224, %v3792
        %v3801 = vmul.f32 %v3225, %v3792
        %v3802 = vmul.f32 %v3226, %v3792
        %v3803 = vmul.f32 %v3227, %v3796
        %v3804 = vmul.f32 %v3228, %v3796
        %v3805 = vmul.f32 %v3229, %v3796
        %v3806 = vmul.f32 %v3230, %v3796
        %v3807 = vmul.f32 %v3231, %v3796
        %3818 = vrot.lane.b32.xlu0 %v3798, 74
        %v3819 = vpop.permute.xlu0 %3818
        %3820 = vrot.lane.b32.xlu0 %v3799, 74
        %v3821 = vpop.permute.xlu0 %3820
        %3822 = vrot.lane.b32.xlu0 %v3800, 74
        %v3823 = vpop.permute.xlu0 %3822
        %3824 = vrot.lane.b32.xlu0 %v3801, 74
        %v3825 = vpop.permute.xlu0 %3824
        %3826 = vrot.lane.b32.xlu0 %v3802, 74
        %v3827 = vpop.permute.xlu0 %3826
        %3828 = vrot.lane.b32.xlu0 %v3803, 74
        %v3829 = vpop.permute.xlu0 %3828
        %3830 = vrot.lane.b32.xlu0 %v3804, 74
        %v3831 = vpop.permute.xlu0 %3830
        %3832 = vrot.lane.b32.xlu0 %v3805, 74
        %v3833 = vpop.permute.xlu0 %3832
        %3834 = vrot.lane.b32.xlu0 %v3806, 74
        %v3835 = vpop.permute.xlu0 %3834
        %3836 = vrot.lane.b32.xlu0 %v3807, 74
        %v3837 = vpop.permute.xlu0 %3836
        %vm3838 = vcmask 605184
        %v3839 = vsel %vm3838, %v3819, %v3821
        %v3840 = vsel %vm3838, %v3821, %v3823
        %v3841 = vsel %vm3838, %v3823, %v3825
        %v3842 = vsel %vm3838, %v3825, %v3827
        %v3843 = vsel %vm3838, %v3829, %v3831
        %v3844 = vsel %vm3838, %v3831, %v3833
        %v3845 = vsel %vm3838, %v3833, %v3835
        %v3846 = vsel %vm3838, %v3835, %v3837
        %v3857 = vadd.f32 %v3780, %v3839
        %v3858 = vadd.f32 %v3781, %v3840
        %v3859 = vadd.f32 %v3782, %v3841
        %v3860 = vadd.f32 %v3783, %v3842
        %v3861 = vadd.f32 %v3784, %v3827
        %v3862 = vadd.f32 %v3785, %v3843
        %v3863 = vadd.f32 %v3786, %v3844
        %v3864 = vadd.f32 %v3787, %v3845
        %v3865 = vadd.f32 %v3788, %v3846
        %v3866 = vadd.f32 %v3789, %v3837
        %3867 = vset.pattern.permute.xlu0 9
        %3868 = vperm.xlu0 %3867, %v3232
        %v3869 = vpop.permute.xlu0 %3868
        %3871 = vset.pattern.permute.xlu0 9
        %3872 = vperm.xlu0 %3871, %v3233
        %v3873 = vpop.permute.xlu0 %3872
        %v3875 = vmul.f32 %v3222, %v3869
        %v3876 = vmul.f32 %v3223, %v3869
        %v3877 = vmul.f32 %v3224, %v3869
        %v3878 = vmul.f32 %v3225, %v3869
        %v3879 = vmul.f32 %v3226, %v3869
        %v3880 = vmul.f32 %v3227, %v3873
        %v3881 = vmul.f32 %v3228, %v3873
        %v3882 = vmul.f32 %v3229, %v3873
        %v3883 = vmul.f32 %v3230, %v3873
        %v3884 = vmul.f32 %v3231, %v3873
        %3895 = vrot.lane.b32.xlu0 %v3875, 72
        %v3896 = vpop.permute.xlu0 %3895
        %3897 = vrot.lane.b32.xlu0 %v3876, 72
        %v3898 = vpop.permute.xlu0 %3897
        %3899 = vrot.lane.b32.xlu0 %v3877, 72
        %v3900 = vpop.permute.xlu0 %3899
        %3901 = vrot.lane.b32.xlu0 %v3878, 72
        %v3902 = vpop.permute.xlu0 %3901
        %3903 = vrot.lane.b32.xlu0 %v3879, 72
        %v3904 = vpop.permute.xlu0 %3903
        %3905 = vrot.lane.b32.xlu0 %v3880, 72
        %v3906 = vpop.permute.xlu0 %3905
        %3907 = vrot.lane.b32.xlu0 %v3881, 72
        %v3908 = vpop.permute.xlu0 %3907
        %3909 = vrot.lane.b32.xlu0 %v3882, 72
        %v3910 = vpop.permute.xlu0 %3909
        %3911 = vrot.lane.b32.xlu0 %v3883, 72
        %v3912 = vpop.permute.xlu0 %3911
        %3913 = vrot.lane.b32.xlu0 %v3884, 72
        %v3914 = vpop.permute.xlu0 %3913
        %vm3915 = vcmask 588800
        %v3916 = vsel %vm3915, %v3896, %v3898
        %v3917 = vsel %vm3915, %v3898, %v3900
        %v3918 = vsel %vm3915, %v3900, %v3902
        %v3919 = vsel %vm3915, %v3902, %v3904
        %v3920 = vsel %vm3915, %v3906, %v3908
        %v3921 = vsel %vm3915, %v3908, %v3910
        %v3922 = vsel %vm3915, %v3910, %v3912
        %v3923 = vsel %vm3915, %v3912, %v3914
        %v3934 = vadd.f32 %v3857, %v3916
        %v3935 = vadd.f32 %v3858, %v3917
        %v3936 = vadd.f32 %v3859, %v3918
        %v3937 = vadd.f32 %v3860, %v3919
        %v3938 = vadd.f32 %v3861, %v3904
        %v3939 = vadd.f32 %v3862, %v3920
        %v3940 = vadd.f32 %v3863, %v3921
        %v3941 = vadd.f32 %v3864, %v3922
        %v3942 = vadd.f32 %v3865, %v3923
        %v3943 = vadd.f32 %v3866, %v3914
        %3944 = vset.pattern.permute.xlu0 10
        %3945 = vperm.xlu0 %3944, %v3232
        %v3946 = vpop.permute.xlu0 %3945
        %3948 = vset.pattern.permute.xlu0 10
        %3949 = vperm.xlu0 %3948, %v3233
        %v3950 = vpop.permute.xlu0 %3949
        %v3952 = vmul.f32 %v2442, %v3946
        %v3953 = vmul.f32 %v2443, %v3946
        %v3954 = vmul.f32 %v2444, %v3946
        %v3955 = vmul.f32 %v2445, %v3946
        %v3956 = vmul.f32 %v2446, %v3946
        %v3957 = vmul.f32 %v2447, %v3946
        %v3958 = vmul.f32 %v2448, %v3950
        %v3959 = vmul.f32 %v2449, %v3950
        %v3960 = vmul.f32 %v2450, %v3950
        %v3961 = vmul.f32 %v2451, %v3950
        %v3962 = vmul.f32 %v2452, %v3950
        %v3963 = vmul.f32 %v2453, %v3950
        %3976 = vrot.lane.b32.xlu0 %v3952, 32
        %v3977 = vpop.permute.xlu0 %3976
        %3978 = vrot.lane.b32.xlu0 %v3953, 32
        %v3979 = vpop.permute.xlu0 %3978
        %3980 = vrot.lane.b32.xlu0 %v3954, 32
        %v3981 = vpop.permute.xlu0 %3980
        %3982 = vrot.lane.b32.xlu0 %v3955, 32
        %v3983 = vpop.permute.xlu0 %3982
        %3984 = vrot.lane.b32.xlu0 %v3956, 32
        %v3985 = vpop.permute.xlu0 %3984
        %3986 = vrot.lane.b32.xlu0 %v3957, 32
        %v3987 = vpop.permute.xlu0 %3986
        %3988 = vrot.lane.b32.xlu0 %v3958, 32
        %v3989 = vpop.permute.xlu0 %3988
        %3990 = vrot.lane.b32.xlu0 %v3959, 32
        %v3991 = vpop.permute.xlu0 %3990
        %3992 = vrot.lane.b32.xlu0 %v3960, 32
        %v3993 = vpop.permute.xlu0 %3992
        %3994 = vrot.lane.b32.xlu0 %v3961, 32
        %v3995 = vpop.permute.xlu0 %3994
        %3996 = vrot.lane.b32.xlu0 %v3962, 32
        %v3997 = vpop.permute.xlu0 %3996
        %3998 = vrot.lane.b32.xlu0 %v3963, 32
        %v3999 = vpop.permute.xlu0 %3998
        %vm4000 = vcmask 261120
        %v4001 = vsel %vm4000, %v3977, %v3979
        %v4002 = vsel %vm4000, %v3979, %v3981
        %v4003 = vsel %vm4000, %v3981, %v3983
        %v4004 = vsel %vm4000, %v3983, %v3985
        %v4005 = vsel %vm4000, %v3985, %v3987
        %v4006 = vsel %vm4000, %v3989, %v3991
        %v4007 = vsel %vm4000, %v3991, %v3993
        %v4008 = vsel %vm4000, %v3993, %v3995
        %v4009 = vsel %vm4000, %v3995, %v3997
        %v4010 = vsel %vm4000, %v3997, %v3999
        %v4021 = vadd.f32 %v3934, %v4001
        %v4022 = vadd.f32 %v3935, %v4002
        %v4023 = vadd.f32 %v3936, %v4003
        %v4024 = vadd.f32 %v3937, %v4004
        %v4025 = vadd.f32 %v3938, %v4005
        %v4026 = vadd.f32 %v3939, %v4006
        %v4027 = vadd.f32 %v3940, %v4007
        %v4028 = vadd.f32 %v3941, %v4008
        %v4029 = vadd.f32 %v3942, %v4009
        %v4030 = vadd.f32 %v3943, %v4010
        %4031 = vset.pattern.permute.xlu0 11
        %4032 = vperm.xlu0 %4031, %v3232
        %v4033 = vpop.permute.xlu0 %4032
        %4035 = vset.pattern.permute.xlu0 11
        %4036 = vperm.xlu0 %4035, %v3233
        %v4037 = vpop.permute.xlu0 %4036
        %v4039 = vmul.f32 %v2442, %v4033
        %v4040 = vmul.f32 %v2443, %v4033
        %v4041 = vmul.f32 %v2444, %v4033
        %v4042 = vmul.f32 %v2445, %v4033
        %v4043 = vmul.f32 %v2446, %v4033
        %v4044 = vmul.f32 %v2447, %v4033
        %v4045 = vmul.f32 %v2448, %v4037
        %v4046 = vmul.f32 %v2449, %v4037
        %v4047 = vmul.f32 %v2450, %v4037
        %v4048 = vmul.f32 %v2451, %v4037
        %v4049 = vmul.f32 %v2452, %v4037
        %v4050 = vmul.f32 %v2453, %v4037
        %4063 = vrot.lane.b32.xlu0 %v4039, 30
        %v4064 = vpop.permute.xlu0 %4063
        %4065 = vrot.lane.b32.xlu0 %v4040, 30
        %v4066 = vpop.permute.xlu0 %4065
        %4067 = vrot.lane.b32.xlu0 %v4041, 30
        %v4068 = vpop.permute.xlu0 %4067
        %4069 = vrot.lane.b32.xlu0 %v4042, 30
        %v4070 = vpop.permute.xlu0 %4069
        %4071 = vrot.lane.b32.xlu0 %v4043, 30
        %v4072 = vpop.permute.xlu0 %4071
        %4073 = vrot.lane.b32.xlu0 %v4044, 30
        %v4074 = vpop.permute.xlu0 %4073
        %4075 = vrot.lane.b32.xlu0 %v4045, 30
        %v4076 = vpop.permute.xlu0 %4075
        %4077 = vrot.lane.b32.xlu0 %v4046, 30
        %v4078 = vpop.permute.xlu0 %4077
        %4079 = vrot.lane.b32.xlu0 %v4047, 30
        %v4080 = vpop.permute.xlu0 %4079
        %4081 = vrot.lane.b32.xlu0 %v4048, 30
        %v4082 = vpop.permute.xlu0 %4081
        %4083 = vrot.lane.b32.xlu0 %v4049, 30
        %v4084 = vpop.permute.xlu0 %4083
        %4085 = vrot.lane.b32.xlu0 %v4050, 30
        %v4086 = vpop.permute.xlu0 %4085
        %vm4087 = vcmask 244736
        %v4088 = vsel %vm4087, %v4064, %v4066
        %v4089 = vsel %vm4087, %v4066, %v4068
        %v4090 = vsel %vm4087, %v4068, %v4070
        %v4091 = vsel %vm4087, %v4070, %v4072
        %v4092 = vsel %vm4087, %v4072, %v4074
        %v4093 = vsel %vm4087, %v4076, %v4078
        %v4094 = vsel %vm4087, %v4078, %v4080
        %v4095 = vsel %vm4087, %v4080, %v4082
        %v4096 = vsel %vm4087, %v4082, %v4084
        %v4097 = vsel %vm4087, %v4084, %v4086
        %v4108 = vadd.f32 %v4021, %v4088
        %v4109 = vadd.f32 %v4022, %v4089
        %v4110 = vadd.f32 %v4023, %v4090
        %v4111 = vadd.f32 %v4024, %v4091
        %v4112 = vadd.f32 %v4025, %v4092
        %v4113 = vadd.f32 %v4026, %v4093
        %v4114 = vadd.f32 %v4027, %v4094
        %v4115 = vadd.f32 %v4028, %v4095
        %v4116 = vadd.f32 %v4029, %v4096
        %v4117 = vadd.f32 %v4030, %v4097
        %4118 = vset.pattern.permute.xlu0 12
        %4119 = vperm.xlu0 %4118, %v3232
        %v4120 = vpop.permute.xlu0 %4119
        %4122 = vset.pattern.permute.xlu0 12
        %4123 = vperm.xlu0 %4122, %v3233
        %v4124 = vpop.permute.xlu0 %4123
        %v4126 = vmul.f32 %v2442, %v4120
        %v4127 = vmul.f32 %v2443, %v4120
        %v4128 = vmul.f32 %v2444, %v4120
        %v4129 = vmul.f32 %v2445, %v4120
        %v4130 = vmul.f32 %v2446, %v4120
        %v4131 = vmul.f32 %v2447, %v4120
        %v4132 = vmul.f32 %v2448, %v4124
        %v4133 = vmul.f32 %v2449, %v4124
        %v4134 = vmul.f32 %v2450, %v4124
        %v4135 = vmul.f32 %v2451, %v4124
        %v4136 = vmul.f32 %v2452, %v4124
        %v4137 = vmul.f32 %v2453, %v4124
        %4150 = vrot.lane.b32.xlu0 %v4126, 28
        %v4151 = vpop.permute.xlu0 %4150
        %4152 = vrot.lane.b32.xlu0 %v4127, 28
        %v4153 = vpop.permute.xlu0 %4152
        %4154 = vrot.lane.b32.xlu0 %v4128, 28
        %v4155 = vpop.permute.xlu0 %4154
        %4156 = vrot.lane.b32.xlu0 %v4129, 28
        %v4157 = vpop.permute.xlu0 %4156
        %4158 = vrot.lane.b32.xlu0 %v4130, 28
        %v4159 = vpop.permute.xlu0 %4158
        %4160 = vrot.lane.b32.xlu0 %v4131, 28
        %v4161 = vpop.permute.xlu0 %4160
        %4162 = vrot.lane.b32.xlu0 %v4132, 28
        %v4163 = vpop.permute.xlu0 %4162
        %4164 = vrot.lane.b32.xlu0 %v4133, 28
        %v4165 = vpop.permute.xlu0 %4164
        %4166 = vrot.lane.b32.xlu0 %v4134, 28
        %v4167 = vpop.permute.xlu0 %4166
        %4168 = vrot.lane.b32.xlu0 %v4135, 28
        %v4169 = vpop.permute.xlu0 %4168
        %4170 = vrot.lane.b32.xlu0 %v4136, 28
        %v4171 = vpop.permute.xlu0 %4170
        %4172 = vrot.lane.b32.xlu0 %v4137, 28
        %v4173 = vpop.permute.xlu0 %4172
        %vm4174 = vcmask 228352
        %v4175 = vsel %vm4174, %v4151, %v4153
        %v4176 = vsel %vm4174, %v4153, %v4155
        %v4177 = vsel %vm4174, %v4155, %v4157
        %v4178 = vsel %vm4174, %v4157, %v4159
        %v4179 = vsel %vm4174, %v4159, %v4161
        %v4180 = vsel %vm4174, %v4163, %v4165
        %v4181 = vsel %vm4174, %v4165, %v4167
        %v4182 = vsel %vm4174, %v4167, %v4169
        %v4183 = vsel %vm4174, %v4169, %v4171
        %v4184 = vsel %vm4174, %v4171, %v4173
        %v4195 = vadd.f32 %v4108, %v4175
        %v4196 = vadd.f32 %v4109, %v4176
        %v4197 = vadd.f32 %v4110, %v4177
        %v4198 = vadd.f32 %v4111, %v4178
        %v4199 = vadd.f32 %v4112, %v4179
        %v4200 = vadd.f32 %v4113, %v4180
        %v4201 = vadd.f32 %v4114, %v4181
        %v4202 = vadd.f32 %v4115, %v4182
        %v4203 = vadd.f32 %v4116, %v4183
        %v4204 = vadd.f32 %v4117, %v4184
        %4205 = vset.pattern.permute.xlu0 13
        %4206 = vperm.xlu0 %4205, %v3232
        %v4207 = vpop.permute.xlu0 %4206
        %4209 = vset.pattern.permute.xlu0 13
        %4210 = vperm.xlu0 %4209, %v3233
        %v4211 = vpop.permute.xlu0 %4210
        %v4213 = vmul.f32 %v2442, %v4207
        %v4214 = vmul.f32 %v2443, %v4207
        %v4215 = vmul.f32 %v2444, %v4207
        %v4216 = vmul.f32 %v2445, %v4207
        %v4217 = vmul.f32 %v2446, %v4207
        %v4218 = vmul.f32 %v2447, %v4207
        %v4219 = vmul.f32 %v2448, %v4211
        %v4220 = vmul.f32 %v2449, %v4211
        %v4221 = vmul.f32 %v2450, %v4211
        %v4222 = vmul.f32 %v2451, %v4211
        %v4223 = vmul.f32 %v2452, %v4211
        %v4224 = vmul.f32 %v2453, %v4211
        %4237 = vrot.lane.b32.xlu0 %v4213, 26
        %v4238 = vpop.permute.xlu0 %4237
        %4239 = vrot.lane.b32.xlu0 %v4214, 26
        %v4240 = vpop.permute.xlu0 %4239
        %4241 = vrot.lane.b32.xlu0 %v4215, 26
        %v4242 = vpop.permute.xlu0 %4241
        %4243 = vrot.lane.b32.xlu0 %v4216, 26
        %v4244 = vpop.permute.xlu0 %4243
        %4245 = vrot.lane.b32.xlu0 %v4217, 26
        %v4246 = vpop.permute.xlu0 %4245
        %4247 = vrot.lane.b32.xlu0 %v4218, 26
        %v4248 = vpop.permute.xlu0 %4247
        %4249 = vrot.lane.b32.xlu0 %v4219, 26
        %v4250 = vpop.permute.xlu0 %4249
        %4251 = vrot.lane.b32.xlu0 %v4220, 26
        %v4252 = vpop.permute.xlu0 %4251
        %4253 = vrot.lane.b32.xlu0 %v4221, 26
        %v4254 = vpop.permute.xlu0 %4253
        %4255 = vrot.lane.b32.xlu0 %v4222, 26
        %v4256 = vpop.permute.xlu0 %4255
        %4257 = vrot.lane.b32.xlu0 %v4223, 26
        %v4258 = vpop.permute.xlu0 %4257
        %4259 = vrot.lane.b32.xlu0 %v4224, 26
        %v4260 = vpop.permute.xlu0 %4259
        %vm4261 = vcmask 211968
        %v4262 = vsel %vm4261, %v4238, %v4240
        %v4263 = vsel %vm4261, %v4240, %v4242
        %v4264 = vsel %vm4261, %v4242, %v4244
        %v4265 = vsel %vm4261, %v4244, %v4246
        %v4266 = vsel %vm4261, %v4246, %v4248
        %v4267 = vsel %vm4261, %v4250, %v4252
        %v4268 = vsel %vm4261, %v4252, %v4254
        %v4269 = vsel %vm4261, %v4254, %v4256
        %v4270 = vsel %vm4261, %v4256, %v4258
        %v4271 = vsel %vm4261, %v4258, %v4260
        %v4282 = vadd.f32 %v4195, %v4262
        %v4283 = vadd.f32 %v4196, %v4263
        %v4284 = vadd.f32 %v4197, %v4264
        %v4285 = vadd.f32 %v4198, %v4265
        %v4286 = vadd.f32 %v4199, %v4266
        %v4287 = vadd.f32 %v4200, %v4267
        %v4288 = vadd.f32 %v4201, %v4268
        %v4289 = vadd.f32 %v4202, %v4269
        %v4290 = vadd.f32 %v4203, %v4270
        %v4291 = vadd.f32 %v4204, %v4271
        %4292 = vset.pattern.permute.xlu0 14
        %4293 = vperm.xlu0 %4292, %v3232
        %v4294 = vpop.permute.xlu0 %4293
        %4296 = vset.pattern.permute.xlu0 14
        %4297 = vperm.xlu0 %4296, %v3233
        %v4298 = vpop.permute.xlu0 %4297
        %v4300 = vmul.f32 %v2442, %v4294
        %v4301 = vmul.f32 %v2443, %v4294
        %v4302 = vmul.f32 %v2444, %v4294
        %v4303 = vmul.f32 %v2445, %v4294
        %v4304 = vmul.f32 %v2446, %v4294
        %v4305 = vmul.f32 %v2447, %v4294
        %v4306 = vmul.f32 %v2448, %v4298
        %v4307 = vmul.f32 %v2449, %v4298
        %v4308 = vmul.f32 %v2450, %v4298
        %v4309 = vmul.f32 %v2451, %v4298
        %v4310 = vmul.f32 %v2452, %v4298
        %v4311 = vmul.f32 %v2453, %v4298
        %4324 = vrot.lane.b32.xlu0 %v4300, 24
        %v4325 = vpop.permute.xlu0 %4324
        %4326 = vrot.lane.b32.xlu0 %v4301, 24
        %v4327 = vpop.permute.xlu0 %4326
        %4328 = vrot.lane.b32.xlu0 %v4302, 24
        %v4329 = vpop.permute.xlu0 %4328
        %4330 = vrot.lane.b32.xlu0 %v4303, 24
        %v4331 = vpop.permute.xlu0 %4330
        %4332 = vrot.lane.b32.xlu0 %v4304, 24
        %v4333 = vpop.permute.xlu0 %4332
        %4334 = vrot.lane.b32.xlu0 %v4305, 24
        %v4335 = vpop.permute.xlu0 %4334
        %4336 = vrot.lane.b32.xlu0 %v4306, 24
        %v4337 = vpop.permute.xlu0 %4336
        %4338 = vrot.lane.b32.xlu0 %v4307, 24
        %v4339 = vpop.permute.xlu0 %4338
        %4340 = vrot.lane.b32.xlu0 %v4308, 24
        %v4341 = vpop.permute.xlu0 %4340
        %4342 = vrot.lane.b32.xlu0 %v4309, 24
        %v4343 = vpop.permute.xlu0 %4342
        %4344 = vrot.lane.b32.xlu0 %v4310, 24
        %v4345 = vpop.permute.xlu0 %4344
        %4346 = vrot.lane.b32.xlu0 %v4311, 24
        %v4347 = vpop.permute.xlu0 %4346
        %vm4348 = vcmask 195584
        %v4349 = vsel %vm4348, %v4325, %v4327
        %v4350 = vsel %vm4348, %v4327, %v4329
        %v4351 = vsel %vm4348, %v4329, %v4331
        %v4352 = vsel %vm4348, %v4331, %v4333
        %v4353 = vsel %vm4348, %v4333, %v4335
        %v4354 = vsel %vm4348, %v4337, %v4339
        %v4355 = vsel %vm4348, %v4339, %v4341
        %v4356 = vsel %vm4348, %v4341, %v4343
        %v4357 = vsel %vm4348, %v4343, %v4345
        %v4358 = vsel %vm4348, %v4345, %v4347
        %v4369 = vadd.f32 %v4282, %v4349
        %v4370 = vadd.f32 %v4283, %v4350
        %v4371 = vadd.f32 %v4284, %v4351
        %v4372 = vadd.f32 %v4285, %v4352
        %v4373 = vadd.f32 %v4286, %v4353
        %v4374 = vadd.f32 %v4287, %v4354
        %v4375 = vadd.f32 %v4288, %v4355
        %v4376 = vadd.f32 %v4289, %v4356
        %v4377 = vadd.f32 %v4290, %v4357
        %v4378 = vadd.f32 %v4291, %v4358
        %4379 = vset.pattern.permute.xlu0 15
        %4380 = vperm.xlu0 %4379, %v3232
        %v4381 = vpop.permute.xlu0 %4380
        %4383 = vset.pattern.permute.xlu0 15
        %4384 = vperm.xlu0 %4383, %v3233
        %v4385 = vpop.permute.xlu0 %4384
        %v4387 = vmul.f32 %v2443, %v4381
        %v4388 = vmul.f32 %v2444, %v4381
        %v4389 = vmul.f32 %v2445, %v4381
        %v4390 = vmul.f32 %v2446, %v4381
        %v4391 = vmul.f32 %v2447, %v4381
        %v4392 = vmul.f32 %v2449, %v4385
        %v4393 = vmul.f32 %v2450, %v4385
        %v4394 = vmul.f32 %v2451, %v4385
        %v4395 = vmul.f32 %v2452, %v4385
        %v4396 = vmul.f32 %v2453, %v4385
        %4407 = vrot.lane.b32.xlu0 %v4387, 112
        %v4408 = vpop.permute.xlu0 %4407
        %4409 = vrot.lane.b32.xlu0 %v4388, 112
        %v4410 = vpop.permute.xlu0 %4409
        %4411 = vrot.lane.b32.xlu0 %v4389, 112
        %v4412 = vpop.permute.xlu0 %4411
        %4413 = vrot.lane.b32.xlu0 %v4390, 112
        %v4414 = vpop.permute.xlu0 %4413
        %4415 = vrot.lane.b32.xlu0 %v4391, 112
        %v4416 = vpop.permute.xlu0 %4415
        %4417 = vrot.lane.b32.xlu0 %v4392, 112
        %v4418 = vpop.permute.xlu0 %4417
        %4419 = vrot.lane.b32.xlu0 %v4393, 112
        %v4420 = vpop.permute.xlu0 %4419
        %4421 = vrot.lane.b32.xlu0 %v4394, 112
        %v4422 = vpop.permute.xlu0 %4421
        %4423 = vrot.lane.b32.xlu0 %v4395, 112
        %v4424 = vpop.permute.xlu0 %4423
        %4425 = vrot.lane.b32.xlu0 %v4396, 112
        %v4426 = vpop.permute.xlu0 %4425
        %vm4427 = vcmask 916480
        %v4428 = vsel %vm4427, %v4408, %v4410
        %v4429 = vsel %vm4427, %v4410, %v4412
        %v4430 = vsel %vm4427, %v4412, %v4414
        %v4431 = vsel %vm4427, %v4414, %v4416
        %v4432 = vsel %vm4427, %v4418, %v4420
        %v4433 = vsel %vm4427, %v4420, %v4422
        %v4434 = vsel %vm4427, %v4422, %v4424
        %v4435 = vsel %vm4427, %v4424, %v4426
        %v4446 = vadd.f32 %v4369, %v4428
        %v4447 = vadd.f32 %v4370, %v4429
        %v4448 = vadd.f32 %v4371, %v4430
        %v4449 = vadd.f32 %v4372, %v4431
        %v4450 = vadd.f32 %v4373, %v4416
        %v4451 = vadd.f32 %v4374, %v4432
        %v4452 = vadd.f32 %v4375, %v4433
        %v4453 = vadd.f32 %v4376, %v4434
        %v4454 = vadd.f32 %v4377, %v4435
        %v4455 = vadd.f32 %v4378, %v4426
        %4456 = vset.pattern.permute.xlu0 16
        %4457 = vperm.xlu0 %4456, %v3232
        %v4458 = vpop.permute.xlu0 %4457
        %4460 = vset.pattern.permute.xlu0 16
        %4461 = vperm.xlu0 %4460, %v3233
        %v4462 = vpop.permute.xlu0 %4461
        %v4464 = vmul.f32 %v2443, %v4458
        %v4465 = vmul.f32 %v2444, %v4458
        %v4466 = vmul.f32 %v2445, %v4458
        %v4467 = vmul.f32 %v2446, %v4458
        %v4468 = vmul.f32 %v2447, %v4458
        %v4469 = vmul.f32 %v2449, %v4462
        %v4470 = vmul.f32 %v2450, %v4462
        %v4471 = vmul.f32 %v2451, %v4462
        %v4472 = vmul.f32 %v2452, %v4462
        %v4473 = vmul.f32 %v2453, %v4462
        %4484 = vrot.lane.b32.xlu0 %v4464, 110
        %v4485 = vpop.permute.xlu0 %4484
        %4486 = vrot.lane.b32.xlu0 %v4465, 110
        %v4487 = vpop.permute.xlu0 %4486
        %4488 = vrot.lane.b32.xlu0 %v4466, 110
        %v4489 = vpop.permute.xlu0 %4488
        %4490 = vrot.lane.b32.xlu0 %v4467, 110
        %v4491 = vpop.permute.xlu0 %4490
        %4492 = vrot.lane.b32.xlu0 %v4468, 110
        %v4493 = vpop.permute.xlu0 %4492
        %4494 = vrot.lane.b32.xlu0 %v4469, 110
        %v4495 = vpop.permute.xlu0 %4494
        %4496 = vrot.lane.b32.xlu0 %v4470, 110
        %v4497 = vpop.permute.xlu0 %4496
        %4498 = vrot.lane.b32.xlu0 %v4471, 110
        %v4499 = vpop.permute.xlu0 %4498
        %4500 = vrot.lane.b32.xlu0 %v4472, 110
        %v4501 = vpop.permute.xlu0 %4500
        %4502 = vrot.lane.b32.xlu0 %v4473, 110
        %v4503 = vpop.permute.xlu0 %4502
        %vm4504 = vcmask 900096
        %v4505 = vsel %vm4504, %v4485, %v4487
        %v4506 = vsel %vm4504, %v4487, %v4489
        %v4507 = vsel %vm4504, %v4489, %v4491
        %v4508 = vsel %vm4504, %v4491, %v4493
        %v4509 = vsel %vm4504, %v4495, %v4497
        %v4510 = vsel %vm4504, %v4497, %v4499
        %v4511 = vsel %vm4504, %v4499, %v4501
        %v4512 = vsel %vm4504, %v4501, %v4503
        %v4523 = vadd.f32 %v4446, %v4505
        %v4524 = vadd.f32 %v4447, %v4506
        %v4525 = vadd.f32 %v4448, %v4507
        %v4526 = vadd.f32 %v4449, %v4508
        %v4527 = vadd.f32 %v4450, %v4493
        %v4528 = vadd.f32 %v4451, %v4509
        %v4529 = vadd.f32 %v4452, %v4510
        %v4530 = vadd.f32 %v4453, %v4511
        %v4531 = vadd.f32 %v4454, %v4512
        %v4532 = vadd.f32 %v4455, %v4503
        %4533 = vset.pattern.permute.xlu0 17
        %4534 = vperm.xlu0 %4533, %v3232
        %v4535 = vpop.permute.xlu0 %4534
        %4537 = vset.pattern.permute.xlu0 17
        %4538 = vperm.xlu0 %4537, %v3233
        %v4539 = vpop.permute.xlu0 %4538
        %v4541 = vmul.f32 %v2443, %v4535
        %v4542 = vmul.f32 %v2444, %v4535
        %v4543 = vmul.f32 %v2445, %v4535
        %v4544 = vmul.f32 %v2446, %v4535
        %v4545 = vmul.f32 %v2447, %v4535
        %v4546 = vmul.f32 %v2449, %v4539
        %v4547 = vmul.f32 %v2450, %v4539
        %v4548 = vmul.f32 %v2451, %v4539
        %v4549 = vmul.f32 %v2452, %v4539
        %v4550 = vmul.f32 %v2453, %v4539
        %4561 = vrot.lane.b32.xlu0 %v4541, 108
        %v4562 = vpop.permute.xlu0 %4561
        %4563 = vrot.lane.b32.xlu0 %v4542, 108
        %v4564 = vpop.permute.xlu0 %4563
        %4565 = vrot.lane.b32.xlu0 %v4543, 108
        %v4566 = vpop.permute.xlu0 %4565
        %4567 = vrot.lane.b32.xlu0 %v4544, 108
        %v4568 = vpop.permute.xlu0 %4567
        %4569 = vrot.lane.b32.xlu0 %v4545, 108
        %v4570 = vpop.permute.xlu0 %4569
        %4571 = vrot.lane.b32.xlu0 %v4546, 108
        %v4572 = vpop.permute.xlu0 %4571
        %4573 = vrot.lane.b32.xlu0 %v4547, 108
        %v4574 = vpop.permute.xlu0 %4573
        %4575 = vrot.lane.b32.xlu0 %v4548, 108
        %v4576 = vpop.permute.xlu0 %4575
        %4577 = vrot.lane.b32.xlu0 %v4549, 108
        %v4578 = vpop.permute.xlu0 %4577
        %4579 = vrot.lane.b32.xlu0 %v4550, 108
        %v4580 = vpop.permute.xlu0 %4579
        %vm4581 = vcmask 883712
        %v4582 = vsel %vm4581, %v4562, %v4564
        %v4583 = vsel %vm4581, %v4564, %v4566
        %v4584 = vsel %vm4581, %v4566, %v4568
        %v4585 = vsel %vm4581, %v4568, %v4570
        %v4586 = vsel %vm4581, %v4572, %v4574
        %v4587 = vsel %vm4581, %v4574, %v4576
        %v4588 = vsel %vm4581, %v4576, %v4578
        %v4589 = vsel %vm4581, %v4578, %v4580
        %v4600 = vadd.f32 %v4523, %v4582
        %v4601 = vadd.f32 %v4524, %v4583
        %v4602 = vadd.f32 %v4525, %v4584
        %v4603 = vadd.f32 %v4526, %v4585
        %v4604 = vadd.f32 %v4527, %v4570
        %v4605 = vadd.f32 %v4528, %v4586
        %v4606 = vadd.f32 %v4529, %v4587
        %v4607 = vadd.f32 %v4530, %v4588
        %v4608 = vadd.f32 %v4531, %v4589
        %v4609 = vadd.f32 %v4532, %v4580
        %4610 = vset.pattern.permute.xlu0 18
        %4611 = vperm.xlu0 %4610, %v3232
        %v4612 = vpop.permute.xlu0 %4611
        %4614 = vset.pattern.permute.xlu0 18
        %4615 = vperm.xlu0 %4614, %v3233
        %v4616 = vpop.permute.xlu0 %4615
        %v4618 = vmul.f32 %v2443, %v4612
        %v4619 = vmul.f32 %v2444, %v4612
        %v4620 = vmul.f32 %v2445, %v4612
        %v4621 = vmul.f32 %v2446, %v4612
        %v4622 = vmul.f32 %v2447, %v4612
        %v4623 = vmul.f32 %v2449, %v4616
        %v4624 = vmul.f32 %v2450, %v4616
        %v4625 = vmul.f32 %v2451, %v4616
        %v4626 = vmul.f32 %v2452, %v4616
        %v4627 = vmul.f32 %v2453, %v4616
        %4638 = vrot.lane.b32.xlu0 %v4618, 106
        %v4639 = vpop.permute.xlu0 %4638
        %4640 = vrot.lane.b32.xlu0 %v4619, 106
        %v4641 = vpop.permute.xlu0 %4640
        %4642 = vrot.lane.b32.xlu0 %v4620, 106
        %v4643 = vpop.permute.xlu0 %4642
        %4644 = vrot.lane.b32.xlu0 %v4621, 106
        %v4645 = vpop.permute.xlu0 %4644
        %4646 = vrot.lane.b32.xlu0 %v4622, 106
        %v4647 = vpop.permute.xlu0 %4646
        %4648 = vrot.lane.b32.xlu0 %v4623, 106
        %v4649 = vpop.permute.xlu0 %4648
        %4650 = vrot.lane.b32.xlu0 %v4624, 106
        %v4651 = vpop.permute.xlu0 %4650
        %4652 = vrot.lane.b32.xlu0 %v4625, 106
        %v4653 = vpop.permute.xlu0 %4652
        %4654 = vrot.lane.b32.xlu0 %v4626, 106
        %v4655 = vpop.permute.xlu0 %4654
        %4656 = vrot.lane.b32.xlu0 %v4627, 106
        %v4657 = vpop.permute.xlu0 %4656
        %vm4658 = vcmask 867328
        %v4659 = vsel %vm4658, %v4639, %v4641
        %v4660 = vsel %vm4658, %v4641, %v4643
        %v4661 = vsel %vm4658, %v4643, %v4645
        %v4662 = vsel %vm4658, %v4645, %v4647
        %v4663 = vsel %vm4658, %v4649, %v4651
        %v4664 = vsel %vm4658, %v4651, %v4653
        %v4665 = vsel %vm4658, %v4653, %v4655
        %v4666 = vsel %vm4658, %v4655, %v4657
        %v4677 = vadd.f32 %v4600, %v4659
        %v4678 = vadd.f32 %v4601, %v4660
        %v4679 = vadd.f32 %v4602, %v4661
        %v4680 = vadd.f32 %v4603, %v4662
        %v4681 = vadd.f32 %v4604, %v4647
        %v4682 = vadd.f32 %v4605, %v4663
        %v4683 = vadd.f32 %v4606, %v4664
        %v4684 = vadd.f32 %v4607, %v4665
        %v4685 = vadd.f32 %v4608, %v4666
        %v4686 = vadd.f32 %v4609, %v4657
        %4687 = vset.pattern.permute.xlu0 19
        %4688 = vperm.xlu0 %4687, %v3232
        %v4689 = vpop.permute.xlu0 %4688
        %4691 = vset.pattern.permute.xlu0 19
        %4692 = vperm.xlu0 %4691, %v3233
        %v4693 = vpop.permute.xlu0 %4692
        %v4695 = vmul.f32 %v2443, %v4689
        %v4696 = vmul.f32 %v2444, %v4689
        %v4697 = vmul.f32 %v2445, %v4689
        %v4698 = vmul.f32 %v2446, %v4689
        %v4699 = vmul.f32 %v2447, %v4689
        %v4700 = vmul.f32 %v2449, %v4693
        %v4701 = vmul.f32 %v2450, %v4693
        %v4702 = vmul.f32 %v2451, %v4693
        %v4703 = vmul.f32 %v2452, %v4693
        %v4704 = vmul.f32 %v2453, %v4693
        %4715 = vrot.lane.b32.xlu0 %v4695, 104
        %v4716 = vpop.permute.xlu0 %4715
        %4717 = vrot.lane.b32.xlu0 %v4696, 104
        %v4718 = vpop.permute.xlu0 %4717
        %4719 = vrot.lane.b32.xlu0 %v4697, 104
        %v4720 = vpop.permute.xlu0 %4719
        %4721 = vrot.lane.b32.xlu0 %v4698, 104
        %v4722 = vpop.permute.xlu0 %4721
        %4723 = vrot.lane.b32.xlu0 %v4699, 104
        %v4724 = vpop.permute.xlu0 %4723
        %4725 = vrot.lane.b32.xlu0 %v4700, 104
        %v4726 = vpop.permute.xlu0 %4725
        %4727 = vrot.lane.b32.xlu0 %v4701, 104
        %v4728 = vpop.permute.xlu0 %4727
        %4729 = vrot.lane.b32.xlu0 %v4702, 104
        %v4730 = vpop.permute.xlu0 %4729
        %4731 = vrot.lane.b32.xlu0 %v4703, 104
        %v4732 = vpop.permute.xlu0 %4731
        %4733 = vrot.lane.b32.xlu0 %v4704, 104
        %v4734 = vpop.permute.xlu0 %4733
        %v4735 = vsel %vm1412, %v4716, %v4718
        %v4736 = vsel %vm1412, %v4718, %v4720
        %v4737 = vsel %vm1412, %v4720, %v4722
        %v4738 = vsel %vm1412, %v4722, %v4724
        %v4739 = vsel %vm1412, %v4726, %v4728
        %v4740 = vsel %vm1412, %v4728, %v4730
        %v4741 = vsel %vm1412, %v4730, %v4732
        %v4742 = vsel %vm1412, %v4732, %v4734
        %v4753 = vadd.f32 %v4677, %v4735
        %v4754 = vadd.f32 %v4678, %v4736
        %v4755 = vadd.f32 %v4679, %v4737
        %v4756 = vadd.f32 %v4680, %v4738
        %v4757 = vadd.f32 %v4681, %v4724
        %v4758 = vadd.f32 %v4682, %v4739
        %v4759 = vadd.f32 %v4683, %v4740
        %v4760 = vadd.f32 %v4684, %v4741
        %v4761 = vadd.f32 %v4685, %v4742
        %v4762 = vadd.f32 %v4686, %v4734
        %4763 = vset.pattern.permute.xlu0 20
        %4764 = vperm.xlu0 %4763, %v3232
        %v4765 = vpop.permute.xlu0 %4764
        %4767 = vset.pattern.permute.xlu0 20
        %4768 = vperm.xlu0 %4767, %v3233
        %v4769 = vpop.permute.xlu0 %4768
        %v4771 = vmul.f32 %v2443, %v4765
        %v4772 = vmul.f32 %v2444, %v4765
        %v4773 = vmul.f32 %v2445, %v4765
        %v4774 = vmul.f32 %v2446, %v4765
        %v4775 = vmul.f32 %v2447, %v4765
        %v4776 = vmul.f32 %v2449, %v4769
        %v4777 = vmul.f32 %v2450, %v4769
        %v4778 = vmul.f32 %v2451, %v4769
        %v4779 = vmul.f32 %v2452, %v4769
        %v4780 = vmul.f32 %v2453, %v4769
        %4791 = vrot.lane.b32.xlu0 %v4771, 64
        %v4792 = vpop.permute.xlu0 %4791
        %4793 = vrot.lane.b32.xlu0 %v4772, 64
        %v4794 = vpop.permute.xlu0 %4793
        %4795 = vrot.lane.b32.xlu0 %v4773, 64
        %v4796 = vpop.permute.xlu0 %4795
        %4797 = vrot.lane.b32.xlu0 %v4774, 64
        %v4798 = vpop.permute.xlu0 %4797
        %4799 = vrot.lane.b32.xlu0 %v4775, 64
        %v4800 = vpop.permute.xlu0 %4799
        %4801 = vrot.lane.b32.xlu0 %v4776, 64
        %v4802 = vpop.permute.xlu0 %4801
        %4803 = vrot.lane.b32.xlu0 %v4777, 64
        %v4804 = vpop.permute.xlu0 %4803
        %4805 = vrot.lane.b32.xlu0 %v4778, 64
        %v4806 = vpop.permute.xlu0 %4805
        %4807 = vrot.lane.b32.xlu0 %v4779, 64
        %v4808 = vpop.permute.xlu0 %4807
        %4809 = vrot.lane.b32.xlu0 %v4780, 64
        %v4810 = vpop.permute.xlu0 %4809
        %v4811 = vsel %vm2022, %v4792, %v4794
        %v4812 = vsel %vm2022, %v4794, %v4796
        %v4813 = vsel %vm2022, %v4796, %v4798
        %v4814 = vsel %vm2022, %v4798, %v4800
        %v4815 = vsel %vm2022, %v4802, %v4804
        %v4816 = vsel %vm2022, %v4804, %v4806
        %v4817 = vsel %vm2022, %v4806, %v4808
        %v4818 = vsel %vm2022, %v4808, %v4810
        %v4829 = vadd.f32 %v4753, %v4811
        %v4830 = vadd.f32 %v4754, %v4812
        %v4831 = vadd.f32 %v4755, %v4813
        %v4832 = vadd.f32 %v4756, %v4814
        %v4833 = vadd.f32 %v4757, %v4800
        %v4834 = vadd.f32 %v4758, %v4815
        %v4835 = vadd.f32 %v4759, %v4816
        %v4836 = vadd.f32 %v4760, %v4817
        %v4837 = vadd.f32 %v4761, %v4818
        %v4838 = vadd.f32 %v4762, %v4810
        %v4839 = vld [vmem:[#allocation2 + $0x8] sm:$0xff]
        %v4840 = vld [vmem:[#allocation2 + $0x10] sm:$0xff]
        %v4841 = vld [vmem:[#allocation2 + $0x18] sm:$0xff]
        %v4842 = vld [vmem:[#allocation2 + $0x20] sm:$0xff]
        %v4843 = vld [vmem:[#allocation2 + $0x28] sm:$0xff]
        %v4844 = vld [vmem:[#allocation2 + $0x30] sm:$0xff]
        %v4845 = vld [vmem:[#allocation2 + $0x40] sm:$0xff]
        %v4846 = vld [vmem:[#allocation2 + $0x48] sm:$0xff]
        %v4847 = vld [vmem:[#allocation2 + $0x50] sm:$0xff]
        %v4848 = vld [vmem:[#allocation2 + $0x58] sm:$0xff]
        %v4849 = vld [vmem:[#allocation2 + $0x60] sm:$0xff]
        %v4850 = vld [vmem:[#allocation2 + $0x68] sm:$0xff]
        %4851 = vset.pattern.permute.xlu0 21
        %4852 = vperm.xlu0 %4851, %v3232
        %v4853 = vpop.permute.xlu0 %4852
        %4855 = vset.pattern.permute.xlu0 21
        %4856 = vperm.xlu0 %4855, %v3233
        %v4857 = vpop.permute.xlu0 %4856
        %v4859 = vmul.f32 %v4839, %v4853
        %v4860 = vmul.f32 %v4840, %v4853
        %v4861 = vmul.f32 %v4841, %v4853
        %v4862 = vmul.f32 %v4842, %v4853
        %v4863 = vmul.f32 %v4843, %v4853
        %v4864 = vmul.f32 %v4844, %v4853
        %v4865 = vmul.f32 %v4845, %v4857
        %v4866 = vmul.f32 %v4846, %v4857
        %v4867 = vmul.f32 %v4847, %v4857
        %v4868 = vmul.f32 %v4848, %v4857
        %v4869 = vmul.f32 %v4849, %v4857
        %v4870 = vmul.f32 %v4850, %v4857
        %4883 = vrot.lane.b32.xlu0 %v4859, 62
        %v4884 = vpop.permute.xlu0 %4883
        %4885 = vrot.lane.b32.xlu0 %v4860, 62
        %v4886 = vpop.permute.xlu0 %4885
        %4887 = vrot.lane.b32.xlu0 %v4861, 62
        %v4888 = vpop.permute.xlu0 %4887
        %4889 = vrot.lane.b32.xlu0 %v4862, 62
        %v4890 = vpop.permute.xlu0 %4889
        %4891 = vrot.lane.b32.xlu0 %v4863, 62
        %v4892 = vpop.permute.xlu0 %4891
        %4893 = vrot.lane.b32.xlu0 %v4864, 62
        %v4894 = vpop.permute.xlu0 %4893
        %4895 = vrot.lane.b32.xlu0 %v4865, 62
        %v4896 = vpop.permute.xlu0 %4895
        %4897 = vrot.lane.b32.xlu0 %v4866, 62
        %v4898 = vpop.permute.xlu0 %4897
        %4899 = vrot.lane.b32.xlu0 %v4867, 62
        %v4900 = vpop.permute.xlu0 %4899
        %4901 = vrot.lane.b32.xlu0 %v4868, 62
        %v4902 = vpop.permute.xlu0 %4901
        %4903 = vrot.lane.b32.xlu0 %v4869, 62
        %v4904 = vpop.permute.xlu0 %4903
        %4905 = vrot.lane.b32.xlu0 %v4870, 62
        %v4906 = vpop.permute.xlu0 %4905
        %vm4907 = vcmask 506880
        %v4908 = vsel %vm4907, %v4884, %v4886
        %v4909 = vsel %vm4907, %v4886, %v4888
        %v4910 = vsel %vm4907, %v4888, %v4890
        %v4911 = vsel %vm4907, %v4890, %v4892
        %v4912 = vsel %vm4907, %v4892, %v4894
        %v4913 = vsel %vm4907, %v4896, %v4898
        %v4914 = vsel %vm4907, %v4898, %v4900
        %v4915 = vsel %vm4907, %v4900, %v4902
        %v4916 = vsel %vm4907, %v4902, %v4904
        %v4917 = vsel %vm4907, %v4904, %v4906
        %v4928 = vadd.f32 %v4829, %v4908
        %v4929 = vadd.f32 %v4830, %v4909
        %v4930 = vadd.f32 %v4831, %v4910
        %v4931 = vadd.f32 %v4832, %v4911
        %v4932 = vadd.f32 %v4833, %v4912
        %v4933 = vadd.f32 %v4834, %v4913
        %v4934 = vadd.f32 %v4835, %v4914
        %v4935 = vadd.f32 %v4836, %v4915
        %v4936 = vadd.f32 %v4837, %v4916
        %v4937 = vadd.f32 %v4838, %v4917
        %4938 = vset.pattern.permute.xlu0 22
        %4939 = vperm.xlu0 %4938, %v3232
        %v4940 = vpop.permute.xlu0 %4939
        %4942 = vset.pattern.permute.xlu0 22
        %4943 = vperm.xlu0 %4942, %v3233
        %v4944 = vpop.permute.xlu0 %4943
        %v4946 = vmul.f32 %v4839, %v4940
        %v4947 = vmul.f32 %v4840, %v4940
        %v4948 = vmul.f32 %v4841, %v4940
        %v4949 = vmul.f32 %v4842, %v4940
        %v4950 = vmul.f32 %v4843, %v4940
        %v4951 = vmul.f32 %v4844, %v4940
        %v4952 = vmul.f32 %v4845, %v4944
        %v4953 = vmul.f32 %v4846, %v4944
        %v4954 = vmul.f32 %v4847, %v4944
        %v4955 = vmul.f32 %v4848, %v4944
        %v4956 = vmul.f32 %v4849, %v4944
        %v4957 = vmul.f32 %v4850, %v4944
        %4970 = vrot.lane.b32.xlu0 %v4946, 60
        %v4971 = vpop.permute.xlu0 %4970
        %4972 = vrot.lane.b32.xlu0 %v4947, 60
        %v4973 = vpop.permute.xlu0 %4972
        %4974 = vrot.lane.b32.xlu0 %v4948, 60
        %v4975 = vpop.permute.xlu0 %4974
        %4976 = vrot.lane.b32.xlu0 %v4949, 60
        %v4977 = vpop.permute.xlu0 %4976
        %4978 = vrot.lane.b32.xlu0 %v4950, 60
        %v4979 = vpop.permute.xlu0 %4978
        %4980 = vrot.lane.b32.xlu0 %v4951, 60
        %v4981 = vpop.permute.xlu0 %4980
        %4982 = vrot.lane.b32.xlu0 %v4952, 60
        %v4983 = vpop.permute.xlu0 %4982
        %4984 = vrot.lane.b32.xlu0 %v4953, 60
        %v4985 = vpop.permute.xlu0 %4984
        %4986 = vrot.lane.b32.xlu0 %v4954, 60
        %v4987 = vpop.permute.xlu0 %4986
        %4988 = vrot.lane.b32.xlu0 %v4955, 60
        %v4989 = vpop.permute.xlu0 %4988
        %4990 = vrot.lane.b32.xlu0 %v4956, 60
        %v4991 = vpop.permute.xlu0 %4990
        %4992 = vrot.lane.b32.xlu0 %v4957, 60
        %v4993 = vpop.permute.xlu0 %4992
        %vm4994 = vcmask 490496
        %v4995 = vsel %vm4994, %v4971, %v4973
        %v4996 = vsel %vm4994, %v4973, %v4975
        %v4997 = vsel %vm4994, %v4975, %v4977
        %v4998 = vsel %vm4994, %v4977, %v4979
        %v4999 = vsel %vm4994, %v4979, %v4981
        %v5000 = vsel %vm4994, %v4983, %v4985
        %v5001 = vsel %vm4994, %v4985, %v4987
        %v5002 = vsel %vm4994, %v4987, %v4989
        %v5003 = vsel %vm4994, %v4989, %v4991
        %v5004 = vsel %vm4994, %v4991, %v4993
        %v5015 = vadd.f32 %v4928, %v4995
        %v5016 = vadd.f32 %v4929, %v4996
        %v5017 = vadd.f32 %v4930, %v4997
        %v5018 = vadd.f32 %v4931, %v4998
        %v5019 = vadd.f32 %v4932, %v4999
        %v5020 = vadd.f32 %v4933, %v5000
        %v5021 = vadd.f32 %v4934, %v5001
        %v5022 = vadd.f32 %v4935, %v5002
        %v5023 = vadd.f32 %v4936, %v5003
        %v5024 = vadd.f32 %v4937, %v5004
        %5025 = vset.pattern.permute.xlu0 23
        %5026 = vperm.xlu0 %5025, %v3232
        %v5027 = vpop.permute.xlu0 %5026
        %5029 = vset.pattern.permute.xlu0 23
        %5030 = vperm.xlu0 %5029, %v3233
        %v5031 = vpop.permute.xlu0 %5030
        %v5033 = vmul.f32 %v4839, %v5027
        %v5034 = vmul.f32 %v4840, %v5027
        %v5035 = vmul.f32 %v4841, %v5027
        %v5036 = vmul.f32 %v4842, %v5027
        %v5037 = vmul.f32 %v4843, %v5027
        %v5038 = vmul.f32 %v4844, %v5027
        %v5039 = vmul.f32 %v4845, %v5031
        %v5040 = vmul.f32 %v4846, %v5031
        %v5041 = vmul.f32 %v4847, %v5031
        %v5042 = vmul.f32 %v4848, %v5031
        %v5043 = vmul.f32 %v4849, %v5031
        %v5044 = vmul.f32 %v4850, %v5031
        %5057 = vrot.lane.b32.xlu0 %v5033, 58
        %v5058 = vpop.permute.xlu0 %5057
        %5059 = vrot.lane.b32.xlu0 %v5034, 58
        %v5060 = vpop.permute.xlu0 %5059
        %5061 = vrot.lane.b32.xlu0 %v5035, 58
        %v5062 = vpop.permute.xlu0 %5061
        %5063 = vrot.lane.b32.xlu0 %v5036, 58
        %v5064 = vpop.permute.xlu0 %5063
        %5065 = vrot.lane.b32.xlu0 %v5037, 58
        %v5066 = vpop.permute.xlu0 %5065
        %5067 = vrot.lane.b32.xlu0 %v5038, 58
        %v5068 = vpop.permute.xlu0 %5067
        %5069 = vrot.lane.b32.xlu0 %v5039, 58
        %v5070 = vpop.permute.xlu0 %5069
        %5071 = vrot.lane.b32.xlu0 %v5040, 58
        %v5072 = vpop.permute.xlu0 %5071
        %5073 = vrot.lane.b32.xlu0 %v5041, 58
        %v5074 = vpop.permute.xlu0 %5073
        %5075 = vrot.lane.b32.xlu0 %v5042, 58
        %v5076 = vpop.permute.xlu0 %5075
        %5077 = vrot.lane.b32.xlu0 %v5043, 58
        %v5078 = vpop.permute.xlu0 %5077
        %5079 = vrot.lane.b32.xlu0 %v5044, 58
        %v5080 = vpop.permute.xlu0 %5079
        %vm5081 = vcmask 474112
        %v5082 = vsel %vm5081, %v5058, %v5060
        %v5083 = vsel %vm5081, %v5060, %v5062
        %v5084 = vsel %vm5081, %v5062, %v5064
        %v5085 = vsel %vm5081, %v5064, %v5066
        %v5086 = vsel %vm5081, %v5066, %v5068
        %v5087 = vsel %vm5081, %v5070, %v5072
        %v5088 = vsel %vm5081, %v5072, %v5074
        %v5089 = vsel %vm5081, %v5074, %v5076
        %v5090 = vsel %vm5081, %v5076, %v5078
        %v5091 = vsel %vm5081, %v5078, %v5080
        %v5102 = vadd.f32 %v5015, %v5082
        %v5103 = vadd.f32 %v5016, %v5083
        %v5104 = vadd.f32 %v5017, %v5084
        %v5105 = vadd.f32 %v5018, %v5085
        %v5106 = vadd.f32 %v5019, %v5086
        %v5107 = vadd.f32 %v5020, %v5087
        %v5108 = vadd.f32 %v5021, %v5088
        %v5109 = vadd.f32 %v5022, %v5089
        %v5110 = vadd.f32 %v5023, %v5090
        %v5111 = vadd.f32 %v5024, %v5091
        %5112 = vset.pattern.permute.xlu0 24
        %5113 = vperm.xlu0 %5112, %v3232
        %v5114 = vpop.permute.xlu0 %5113
        %5116 = vset.pattern.permute.xlu0 24
        %5117 = vperm.xlu0 %5116, %v3233
        %v5118 = vpop.permute.xlu0 %5117
        %v5120 = vmul.f32 %v4839, %v5114
        %v5121 = vmul.f32 %v4840, %v5114
        %v5122 = vmul.f32 %v4841, %v5114
        %v5123 = vmul.f32 %v4842, %v5114
        %v5124 = vmul.f32 %v4843, %v5114
        %v5125 = vmul.f32 %v4844, %v5114
        %v5126 = vmul.f32 %v4845, %v5118
        %v5127 = vmul.f32 %v4846, %v5118
        %v5128 = vmul.f32 %v4847, %v5118
        %v5129 = vmul.f32 %v4848, %v5118
        %v5130 = vmul.f32 %v4849, %v5118
        %v5131 = vmul.f32 %v4850, %v5118
        %5144 = vrot.lane.b32.xlu0 %v5120, 56
        %v5145 = vpop.permute.xlu0 %5144
        %5146 = vrot.lane.b32.xlu0 %v5121, 56
        %v5147 = vpop.permute.xlu0 %5146
        %5148 = vrot.lane.b32.xlu0 %v5122, 56
        %v5149 = vpop.permute.xlu0 %5148
        %5150 = vrot.lane.b32.xlu0 %v5123, 56
        %v5151 = vpop.permute.xlu0 %5150
        %5152 = vrot.lane.b32.xlu0 %v5124, 56
        %v5153 = vpop.permute.xlu0 %5152
        %5154 = vrot.lane.b32.xlu0 %v5125, 56
        %v5155 = vpop.permute.xlu0 %5154
        %5156 = vrot.lane.b32.xlu0 %v5126, 56
        %v5157 = vpop.permute.xlu0 %5156
        %5158 = vrot.lane.b32.xlu0 %v5127, 56
        %v5159 = vpop.permute.xlu0 %5158
        %5160 = vrot.lane.b32.xlu0 %v5128, 56
        %v5161 = vpop.permute.xlu0 %5160
        %5162 = vrot.lane.b32.xlu0 %v5129, 56
        %v5163 = vpop.permute.xlu0 %5162
        %5164 = vrot.lane.b32.xlu0 %v5130, 56
        %v5165 = vpop.permute.xlu0 %5164
        %5166 = vrot.lane.b32.xlu0 %v5131, 56
        %v5167 = vpop.permute.xlu0 %5166
        %vm5168 = vcmask 457728
        %v5169 = vsel %vm5168, %v5145, %v5147
        %v5170 = vsel %vm5168, %v5147, %v5149
        %v5171 = vsel %vm5168, %v5149, %v5151
        %v5172 = vsel %vm5168, %v5151, %v5153
        %v5173 = vsel %vm5168, %v5153, %v5155
        %v5174 = vsel %vm5168, %v5157, %v5159
        %v5175 = vsel %vm5168, %v5159, %v5161
        %v5176 = vsel %vm5168, %v5161, %v5163
        %v5177 = vsel %vm5168, %v5163, %v5165
        %v5178 = vsel %vm5168, %v5165, %v5167
        %v5189 = vadd.f32 %v5102, %v5169
        %v5190 = vadd.f32 %v5103, %v5170
        %v5191 = vadd.f32 %v5104, %v5171
        %v5192 = vadd.f32 %v5105, %v5172
        %v5193 = vadd.f32 %v5106, %v5173
        %v5194 = vadd.f32 %v5107, %v5174
        %v5195 = vadd.f32 %v5108, %v5175
        %v5196 = vadd.f32 %v5109, %v5176
        %v5197 = vadd.f32 %v5110, %v5177
        %v5198 = vadd.f32 %v5111, %v5178
        %v5199 = vld [vmem:[%s12] sm:$0xff]
        %v5200 = vld [vmem:[%s12 + $0x8] sm:$0xff]
        %5202 = vset.pattern.permute.xlu0 0
        %5203 = vperm.xlu0 %5202, %v5199
        %v5204 = vpop.permute.xlu0 %5203
        %5207 = vset.pattern.permute.xlu0 0
        %5208 = vperm.xlu0 %5207, %v5200
        %v5209 = vpop.permute.xlu0 %5208
        %v5211 = vadd.f32 %v5189, %v5204
        %v5212 = vadd.f32 %v5190, %v5204
        %v5213 = vadd.f32 %v5191, %v5204
        %v5214 = vadd.f32 %v5192, %v5204
        %v5215 = vadd.f32 %v5193, %v5204
        %v5216 = vadd.f32 %v5194, %v5209
        %v5217 = vadd.f32 %v5195, %v5209
        %v5218 = vadd.f32 %v5196, %v5209
        %v5219 = vadd.f32 %v5197, %v5209
        %v5220 = vadd.f32 %v5198, %v5209
        %5231 = vrot.lane.b32.xlu0 %v5211, 75
        %v5232 = vpop.permute.xlu0 %5231
        %5233 = vrot.lane.b32.xlu0 %v5212, 75
        %v5234 = vpop.permute.xlu0 %5233
        %5235 = vrot.lane.b32.xlu0 %v5213, 75
        %v5236 = vpop.permute.xlu0 %5235
        %5237 = vrot.lane.b32.xlu0 %v5214, 75
        %v5238 = vpop.permute.xlu0 %5237
        %5239 = vrot.lane.b32.xlu0 %v5215, 75
        %v5240 = vpop.permute.xlu0 %5239
        %5241 = vrot.lane.b32.xlu0 %v5216, 75
        %v5242 = vpop.permute.xlu0 %5241
        %5243 = vrot.lane.b32.xlu0 %v5217, 75
        %v5244 = vpop.permute.xlu0 %5243
        %5245 = vrot.lane.b32.xlu0 %v5218, 75
        %v5246 = vpop.permute.xlu0 %5245
        %5247 = vrot.lane.b32.xlu0 %v5219, 75
        %v5248 = vpop.permute.xlu0 %5247
        %5249 = vrot.lane.b32.xlu0 %v5220, 75
        %v5250 = vpop.permute.xlu0 %5249
        %vm5251 = vcmask 613376
        %v5252 = vsel %vm5251, %v5232, %v5234
        %v5253 = vsel %vm5251, %v5234, %v5236
        %v5254 = vsel %vm5251, %v5236, %v5238
        %v5255 = vsel %vm5251, %v5238, %v5240
        %v5256 = vsel %vm5251, %v5242, %v5244
        %v5257 = vsel %vm5251, %v5244, %v5246
        %v5258 = vsel %vm5251, %v5246, %v5248
        %v5259 = vsel %vm5251, %v5248, %v5250
        %v5272 = vadd.f32 %v3210, %v5232
        %v5273 = vadd.f32 %v3211, %v5252
        %v5274 = vadd.f32 %v3212, %v5253
        %v5275 = vadd.f32 %v3213, %v5254
        %v5276 = vadd.f32 %v3214, %v5255
        %v5277 = vadd.f32 %v3215, %v5240
        %v5278 = vadd.f32 %v3216, %v5242
        %v5279 = vadd.f32 %v3217, %v5256
        %v5280 = vadd.f32 %v3218, %v5257
        %v5281 = vadd.f32 %v3219, %v5258
        %v5282 = vadd.f32 %v3220, %v5259
        %v5283 = vadd.f32 %v3221, %v5250
        %5296 = vrot.lane.b32.xlu0 %v5272, 53
        %v5297 = vpop.permute.xlu0 %5296
        %5298 = vrot.lane.b32.xlu0 %v5273, 53
        %v5299 = vpop.permute.xlu0 %5298
        %5300 = vrot.lane.b32.xlu0 %v5274, 53
        %v5301 = vpop.permute.xlu0 %5300
        %5302 = vrot.lane.b32.xlu0 %v5275, 53
        %v5303 = vpop.permute.xlu0 %5302
        %5304 = vrot.lane.b32.xlu0 %v5276, 53
        %v5305 = vpop.permute.xlu0 %5304
        %5306 = vrot.lane.b32.xlu0 %v5277, 53
        %v5307 = vpop.permute.xlu0 %5306
        %5308 = vrot.lane.b32.xlu0 %v5278, 53
        %v5309 = vpop.permute.xlu0 %5308
        %5310 = vrot.lane.b32.xlu0 %v5279, 53
        %v5311 = vpop.permute.xlu0 %5310
        %5312 = vrot.lane.b32.xlu0 %v5280, 53
        %v5313 = vpop.permute.xlu0 %5312
        %5314 = vrot.lane.b32.xlu0 %v5281, 53
        %v5315 = vpop.permute.xlu0 %5314
        %5316 = vrot.lane.b32.xlu0 %v5282, 53
        %v5317 = vpop.permute.xlu0 %5316
        %5318 = vrot.lane.b32.xlu0 %v5283, 53
        %v5319 = vpop.permute.xlu0 %5318
        %v5320 = vsel %vm1988, %v5297, %v5299
        %v5321 = vsel %vm1988, %v5299, %v5301
        %v5322 = vsel %vm1988, %v5301, %v5303
        %v5323 = vsel %vm1988, %v5303, %v5305
        %v5324 = vsel %vm1988, %v5305, %v5307
        %v5325 = vsel %vm1988, %v5309, %v5311
        %v5326 = vsel %vm1988, %v5311, %v5313
        %v5327 = vsel %vm1988, %v5313, %v5315
        %v5328 = vsel %vm1988, %v5315, %v5317
        %v5329 = vsel %vm1988, %v5317, %v5319
        %v5340 = vsel %vm1947, %v5320, 0.0
        %v5341 = vsel %vm1948, %v5321, 0.0
        %v5342 = vsel %vm1949, %v5322, 0.0
        %v5343 = vsel %vm1950, %v5323, 0.0
        %v5344 = vsel %vm1951, %v5324, 0.0
        %v5345 = vsel %vm1947, %v5325, 0.0
        %v5346 = vsel %vm1948, %v5326, 0.0
        %v5347 = vsel %vm1949, %v5327, 0.0
        %v5348 = vsel %vm1950, %v5328, 0.0
        %v5349 = vsel %vm1951, %v5329, 0.0
        %v5350 = vadd.f32 %v5340, %v5341
        %v5351 = vadd.f32 %v5350, %v5342
        %v5352 = vadd.f32 %v5351, %v5343
        %v5353 = vsel %vm2022, %v5344, 0.0
        %v5354 = vadd.f32 %v5352, %v5353
        %5355 = vadd.xlane.f32.xlu0 %v5354
        %v5356 = vpop.xlane.xlu0 %5355
        %v5357 = vadd.f32 %v5345, %v5346
        %v5358 = vadd.f32 %v5357, %v5347
        %v5359 = vadd.f32 %v5358, %v5348
        %v5360 = vsel %vm2022, %v5349, 0.0
        %v5361 = vadd.f32 %v5359, %v5360
        %5362 = vadd.xlane.f32.xlu0 %v5361
        %v5363 = vpop.xlane.xlu0 %5362
        %v5364 = vmul.f32 %v5340, %v5320
        %v5365 = vmul.f32 %v5341, %v5321
        %v5366 = vmul.f32 %v5342, %v5322
        %v5367 = vmul.f32 %v5343, %v5323
        %v5368 = vmul.f32 %v5344, %v5324
        %v5369 = vmul.f32 %v5345, %v5325
        %v5370 = vmul.f32 %v5346, %v5326
        %v5371 = vmul.f32 %v5347, %v5327
        %v5372 = vmul.f32 %v5348, %v5328
        %v5373 = vmul.f32 %v5349, %v5329
        %v5374 = vadd.f32 %v5364, %v5365
        %v5375 = vadd.f32 %v5374, %v5366
        %v5376 = vadd.f32 %v5375, %v5367
        %v5377 = vsel %vm2022, %v5368, 0.0
        %v5378 = vadd.f32 %v5376, %v5377
        %5379 = vadd.xlane.f32.xlu0 %v5378
        %v5380 = vpop.xlane.xlu0 %5379
        %v5381 = vadd.f32 %v5369, %v5370
        %v5382 = vadd.f32 %v5381, %v5371
        %v5383 = vadd.f32 %v5382, %v5372
        %v5384 = vsel %vm2022, %v5373, 0.0
        %v5385 = vadd.f32 %v5383, %v5384
        %5386 = vadd.xlane.f32.xlu0 %v5385
        %v5387 = vpop.xlane.xlu0 %5386
        %v5388 = vld [vmem:[%s13] sm:$0xff]
        %v5389 = vld [vmem:[%s13 + $0x8] sm:$0xff]
        %v5390 = vsel %vm2060, %v5356, %v5380
        %v5391 = vsel %vm2060, %v5363, %v5387
        %v5393 = vsel %vm838, %v5388, 0
        %v5396 = vsel %vm838, %v5389, 0
        %5398 = vmatprep.subr.mxu0 0.0
        %5399 = vmatpush1.msra.mxu0 %v5390
        %5400 = vmatprep.subr.mxu0 0.0
        %5401 = vmatpush1.msra.mxu0 %v5391
        %5402 = vmatprep.subr.mxu0 0.0
        %5403 = vmatpush1.msra.mxu0 0.0
        %5404 = vmatprep.subr.mxu0 0.0
        %5405 = vmatpush1.msra.mxu0 0.0
        %5406 = vmatprep.subr.mxu0 0.0
        %5407 = vmatpush1.msra.mxu0 0.0
        %5408 = vmatprep.subr.mxu0 0.0
        %5409 = vmatpush1.msra.mxu0 0.0
        %5410 = vmatprep.subr.mxu0 0.0
        %5411 = vmatpush1.msra.mxu0 0.0
        %5412 = vmatprep.subr.mxu0 0.0
        %5413 = vmatpush1.msra.mxu0 0.0
        %5414 = vmatprep.subr.mxu0 0.0
        %5415 = vmatpush1.msra.mxu0 0.0
        %5416 = vmatprep.subr.mxu0 0.0
        %5417 = vmatpush1.msra.mxu0 0.0
        %5418 = vmatprep.subr.mxu0 0.0
        %5419 = vmatpush1.msra.mxu0 0.0
        %5420 = vmatprep.subr.mxu0 0.0
        %5421 = vmatpush1.msra.mxu0 0.0
        %5422 = vmatprep.subr.mxu0 0.0
        %5423 = vmatpush1.msra.mxu0 0.0
        %5424 = vmatprep.subr.mxu0 0.0
        %5425 = vmatpush1.msra.mxu0 0.0
        %5426 = vmatprep.subr.mxu0 0.0
        %5427 = vmatpush1.msra.mxu0 0.0
        %5428 = vmatprep.subr.mxu0 0.0
        %5429 = vmatpush1.msra.mxu0 0.0
        %5430 = vmatprep.subr.mxu0 0.0
        %5431 = vmatpush1.msra.mxu0 0.0
        %5432 = vmatprep.subr.mxu0 0.0
        %5433 = vmatpush1.msra.mxu0 0.0
        %5434 = vmatprep.subr.mxu0 0.0
        %5435 = vmatpush1.msra.mxu0 0.0
        %5436 = vmatprep.subr.mxu0 0.0
        %5437 = vmatpush1.msra.mxu0 0.0
        %5438 = vmatprep.subr.mxu0 0.0
        %5439 = vmatpush1.msra.mxu0 0.0
        %5440 = vmatprep.subr.mxu0 0.0
        %5441 = vmatpush1.msra.mxu0 0.0
        %5442 = vmatprep.subr.mxu0 0.0
        %5443 = vmatpush1.msra.mxu0 0.0
        %5444 = vmatprep.subr.mxu0 0.0
        %5445 = vmatpush1.msra.mxu0 0.0
        %5446 = vmatprep.subr.mxu0 0.0
        %5447 = vmatpush1.msra.mxu0 0.0
        %5448 = vmatprep.subr.mxu0 0.0
        %5449 = vmatpush1.msra.mxu0 0.0
        %5450 = vmatprep.subr.mxu0 0.0
        %5451 = vmatpush1.msra.mxu0 0.0
        %5452 = vmatprep.subr.mxu0 0.0
        %5453 = vmatpush1.msra.mxu0 0.0
        %5454 = vmatprep.subr.mxu0 0.0
        %5455 = vmatpush1.msra.mxu0 0.0
        %5456 = vmatprep.subr.mxu0 0.0
        %5457 = vmatpush1.msra.mxu0 0.0
        %5458 = vmatprep.subr.mxu0 0.0
        %5459 = vmatpush1.msra.mxu0 0.0
        %5460 = vmatprep.subr.mxu0 0.0
        %5461 = vmatpush1.msra.mxu0 0.0
        %5462 = vmatprep.mubr.f32.mxu0 0.0
        %5463 = vmatmul.mubr.f32.gmra.mrb[0].mxu0 %v5393
        %v5464 = vpop.f32.mrb[0].mxu0
        %v5465 = vadd.f32 0.0, %v5464
        %v5466 = vpop.f32.mrb[0].mxu0
        %5467 = vmatprep.mubr.f32.mxu0 0.0
        %5468 = vmatmul.mubr.f32.gmra.mrb[0].mxu0 %v5396
        %v5469 = vpop.f32.mrb[0].mxu0
        %v5470 = vadd.f32 0.0, %v5469
        %v5471 = vpop.f32.mrb[0].mxu0
        %5472 = vdwg.mxu0
        %v5473 = vmul.f32 %v5465, %v5465
        %v5474 = vmul.f32 %v5470, %v5470
        %5477 = vrot.lane.b32.xlu0 %v5473, 1
        %v5478 = vpop.permute.xlu0 %5477
        %5479 = vrot.lane.b32.xlu0 %v5474, 1
        %v5480 = vpop.permute.xlu0 %5479
        %v5483 = vsub.f32 %v5465, %v5478
        %v5484 = vsub.f32 %v5470, %v5480
        %v5485 = vmax.f32 %v5483, 0.0
        %v5486 = vmax.f32 %v5484, 0.0
        %5488 = vset.pattern.permute.xlu0 0
        %5489 = vperm.xlu0 %5488, %v5465
        %v5490 = vpop.permute.xlu0 %5489
        %5493 = vset.pattern.permute.xlu0 0
        %5494 = vperm.xlu0 %5493, %v5470
        %v5495 = vpop.permute.xlu0 %5494
        %v5497 = vsub.f32 %v5272, %v5490
        %v5498 = vsub.f32 %v5273, %v5490
        %v5499 = vsub.f32 %v5274, %v5490
        %v5500 = vsub.f32 %v5275, %v5490
        %v5501 = vsub.f32 %v5276, %v5490
        %v5502 = vsub.f32 %v5277, %v5490
        %v5503 = vsub.f32 %v5278, %v5495
        %v5504 = vsub.f32 %v5279, %v5495
        %v5505 = vsub.f32 %v5280, %v5495
        %v5506 = vsub.f32 %v5281, %v5495
        %v5507 = vsub.f32 %v5282, %v5495
        %v5508 = vsub.f32 %v5283, %v5495
        %v5509 = vadd.f32 %v5485, 1e-05
        %v5510 = vadd.f32 %v5486, 1e-05
        %v5511 = vrsqrt.pop %v5509
        %v5512 = vrsqrt.pop %v5510
        %v5513 = vld [vmem:[%s14] sm:$0xff]
        %v5514 = vld [vmem:[%s14 + $0x8] sm:$0xff]
        %5517 = vrot.lane.b32.xlu0 %v5513, 1
        %v5518 = vpop.permute.xlu0 %5517
        %5519 = vrot.lane.b32.xlu0 %v5514, 1
        %v5520 = vpop.permute.xlu0 %5519
        %v5523 = vmul.f32 %v5511, %v5518
        %v5524 = vmul.f32 %v5512, %v5520
        %5526 = vset.pattern.permute.xlu0 1
        %5527 = vperm.xlu0 %5526, %v5523
        %v5528 = vpop.permute.xlu0 %5527
        %5531 = vset.pattern.permute.xlu0 1
        %5532 = vperm.xlu0 %5531, %v5524
        %v5533 = vpop.permute.xlu0 %5532
        %v5535 = vmul.f32 %v5497, %v5528
        %v5536 = vmul.f32 %v5498, %v5528
        %v5537 = vmul.f32 %v5499, %v5528
        %v5538 = vmul.f32 %v5500, %v5528
        %v5539 = vmul.f32 %v5501, %v5528
        %v5540 = vmul.f32 %v5502, %v5528
        %v5541 = vmul.f32 %v5503, %v5533
        %v5542 = vmul.f32 %v5504, %v5533
        %v5543 = vmul.f32 %v5505, %v5533
        %v5544 = vmul.f32 %v5506, %v5533
        %v5545 = vmul.f32 %v5507, %v5533
        %v5546 = vmul.f32 %v5508, %v5533
        %v5547 = vld [vmem:[%s15] sm:$0xff]
        %v5548 = vld [vmem:[%s15 + $0x8] sm:$0xff]
        %5550 = vset.pattern.permute.xlu0 0
        %5551 = vperm.xlu0 %5550, %v5547
        %v5552 = vpop.permute.xlu0 %5551
        %5555 = vset.pattern.permute.xlu0 0
        %5556 = vperm.xlu0 %5555, %v5548
        %v5557 = vpop.permute.xlu0 %5556
        %v5559 = vadd.f32 %v5535, %v5552
        %v5560 = vadd.f32 %v5536, %v5552
        %v5561 = vadd.f32 %v5537, %v5552
        %v5562 = vadd.f32 %v5538, %v5552
        %v5563 = vadd.f32 %v5539, %v5552
        %v5564 = vadd.f32 %v5540, %v5552
        %v5565 = vadd.f32 %v5541, %v5557
        %v5566 = vadd.f32 %v5542, %v5557
        %v5567 = vadd.f32 %v5543, %v5557
        %v5568 = vadd.f32 %v5544, %v5557
        %v5569 = vadd.f32 %v5545, %v5557
        %v5570 = vadd.f32 %v5546, %v5557
        %v5571 = vsub.f32 0.0, %v5559
        %v5572 = vsub.f32 0.0, %v5560
        %v5573 = vsub.f32 0.0, %v5561
        %v5574 = vsub.f32 0.0, %v5562
        %v5575 = vsub.f32 0.0, %v5563
        %v5576 = vsub.f32 0.0, %v5564
        %v5577 = vsub.f32 0.0, %v5565
        %v5578 = vsub.f32 0.0, %v5566
        %v5579 = vsub.f32 0.0, %v5567
        %v5580 = vsub.f32 0.0, %v5568
        %v5581 = vsub.f32 0.0, %v5569
        %v5582 = vsub.f32 0.0, %v5570
        %v5583 = vmul.f32 %v5571, 1.442695
        %v5584 = vpow.pop %v5583
        %v5585 = vmul.f32 %v5572, 1.442695
        %v5586 = vpow.pop %v5585
        %v5587 = vmul.f32 %v5573, 1.442695
        %v5588 = vpow.pop %v5587
        %v5589 = vmul.f32 %v5574, 1.442695
        %v5590 = vpow.pop %v5589
        %v5591 = vmul.f32 %v5575, 1.442695
        %v5592 = vpow.pop %v5591
        %v5593 = vmul.f32 %v5576, 1.442695
        %v5594 = vpow.pop %v5593
        %v5595 = vmul.f32 %v5577, 1.442695
        %v5596 = vpow.pop %v5595
        %v5597 = vmul.f32 %v5578, 1.442695
        %v5598 = vpow.pop %v5597
        %v5599 = vmul.f32 %v5579, 1.442695
        %v5600 = vpow.pop %v5599
        %v5601 = vmul.f32 %v5580, 1.442695
        %v5602 = vpow.pop %v5601
        %v5603 = vmul.f32 %v5581, 1.442695
        %v5604 = vpow.pop %v5603
        %v5605 = vmul.f32 %v5582, 1.442695
        %v5606 = vpow.pop %v5605
        %v5607 = vadd.f32 %v5584, 1.0
        %v5608 = vadd.f32 %v5586, 1.0
        %v5609 = vadd.f32 %v5588, 1.0
        %v5610 = vadd.f32 %v5590, 1.0
        %v5611 = vadd.f32 %v5592, 1.0
        %v5612 = vadd.f32 %v5594, 1.0
        %v5613 = vadd.f32 %v5596, 1.0
        %v5614 = vadd.f32 %v5598, 1.0
        %v5615 = vadd.f32 %v5600, 1.0
        %v5616 = vadd.f32 %v5602, 1.0
        %v5617 = vadd.f32 %v5604, 1.0
        %v5618 = vadd.f32 %v5606, 1.0
        %v5619 = vrcp.pop %v5607
        %v5620 = vrcp.pop %v5608
        %v5621 = vrcp.pop %v5609
        %v5622 = vrcp.pop %v5610
        %v5623 = vrcp.pop %v5611
        %v5624 = vrcp.pop %v5612
        %v5625 = vrcp.pop %v5613
        %v5626 = vrcp.pop %v5614
        %v5627 = vrcp.pop %v5615
        %v5628 = vrcp.pop %v5616
        %v5629 = vrcp.pop %v5617
        %v5630 = vrcp.pop %v5618
        %v5631 = vmul.f32 %v5559, %v5619
        %v5632 = vmul.f32 %v5560, %v5620
        %v5633 = vmul.f32 %v5561, %v5621
        %v5634 = vmul.f32 %v5562, %v5622
        %v5635 = vmul.f32 %v5563, %v5623
        %v5636 = vmul.f32 %v5564, %v5624
        %v5637 = vmul.f32 %v5565, %v5625
        %v5638 = vmul.f32 %v5566, %v5626
        %v5639 = vmul.f32 %v5567, %v5627
        %v5640 = vmul.f32 %v5568, %v5628
        %v5641 = vmul.f32 %v5569, %v5629
        %v5642 = vmul.f32 %v5570, %v5630
        %v5643 = vld [vmem:[%s16] sm:$0xff]
        %v5644 = vld [vmem:[%s16 + $0x8] sm:$0xff]
        %v5645 = vld [vmem:[%s17] sm:$0xff]
        %v5646 = vld [vmem:[%s17 + $0x8] sm:$0xff]
        %5648 = vset.pattern.permute.xlu0 0
        %5649 = vperm.xlu0 %5648, %v5645
        %v5650 = vpop.permute.xlu0 %5649
        %5653 = vset.pattern.permute.xlu0 0
        %5654 = vperm.xlu0 %5653, %v5646
        %v5655 = vpop.permute.xlu0 %5654
        %5669 = vrot.lane.b32.xlu0 %v5631, 53
        %v5670 = vpop.permute.xlu0 %5669
        %5671 = vrot.lane.b32.xlu0 %v5632, 53
        %v5672 = vpop.permute.xlu0 %5671
        %5673 = vrot.lane.b32.xlu0 %v5633, 53
        %v5674 = vpop.permute.xlu0 %5673
        %5675 = vrot.lane.b32.xlu0 %v5634, 53
        %v5676 = vpop.permute.xlu0 %5675
        %5677 = vrot.lane.b32.xlu0 %v5635, 53
        %v5678 = vpop.permute.xlu0 %5677
        %5679 = vrot.lane.b32.xlu0 %v5636, 53
        %v5680 = vpop.permute.xlu0 %5679
        %5681 = vrot.lane.b32.xlu0 %v5637, 53
        %v5682 = vpop.permute.xlu0 %5681
        %5683 = vrot.lane.b32.xlu0 %v5638, 53
        %v5684 = vpop.permute.xlu0 %5683
        %5685 = vrot.lane.b32.xlu0 %v5639, 53
        %v5686 = vpop.permute.xlu0 %5685
        %5687 = vrot.lane.b32.xlu0 %v5640, 53
        %v5688 = vpop.permute.xlu0 %5687
        %5689 = vrot.lane.b32.xlu0 %v5641, 53
        %v5690 = vpop.permute.xlu0 %5689
        %5691 = vrot.lane.b32.xlu0 %v5642, 53
        %v5692 = vpop.permute.xlu0 %5691
        %v5693 = vsel %vm1988, %v5670, %v5672
        %v5694 = vsel %vm1988, %v5672, %v5674
        %v5695 = vsel %vm1988, %v5674, %v5676
        %v5696 = vsel %vm1988, %v5676, %v5678
        %v5697 = vsel %vm1988, %v5678, %v5680
        %v5698 = vsel %vm1988, %v5682, %v5684
        %v5699 = vsel %vm1988, %v5684, %v5686
        %v5700 = vsel %vm1988, %v5686, %v5688
        %v5701 = vsel %vm1988, %v5688, %v5690
        %v5702 = vsel %vm1988, %v5690, %v5692
        %v5714 = vsel %vm838, %v5643, 0
        %v5717 = vsel %vm838, %v5644, 0
        %5719 = vmatprep.subr.mxu0 %v5694
        %5720 = vmatpush1.msra.mxu0 %v5693
        %5721 = vmatprep.subr.mxu0 %v5699
        %5722 = vmatpush1.msra.mxu0 %v5698
        %5723 = vmatprep.subr.mxu0 0.0
        %5724 = vmatpush1.msra.mxu0 0.0
        %5725 = vmatprep.subr.mxu0 0.0
        %5726 = vmatpush1.msra.mxu0 0.0
        %5727 = vmatprep.subr.mxu0 0.0
        %5728 = vmatpush1.msra.mxu0 0.0
        %5729 = vmatprep.subr.mxu0 0.0
        %5730 = vmatpush1.msra.mxu0 0.0
        %5731 = vmatprep.subr.mxu0 0.0
        %5732 = vmatpush1.msra.mxu0 0.0
        %5733 = vmatprep.subr.mxu0 0.0
        %5734 = vmatpush1.msra.mxu0 0.0
        %5735 = vmatprep.subr.mxu0 0.0
        %5736 = vmatpush1.msra.mxu0 0.0
        %5737 = vmatprep.subr.mxu0 0.0
        %5738 = vmatpush1.msra.mxu0 0.0
        %5739 = vmatprep.subr.mxu0 0.0
        %5740 = vmatpush1.msra.mxu0 0.0
        %5741 = vmatprep.subr.mxu0 0.0
        %5742 = vmatpush1.msra.mxu0 0.0
        %5743 = vmatprep.subr.mxu0 0.0
        %5744 = vmatpush1.msra.mxu0 0.0
        %5745 = vmatprep.subr.mxu0 0.0
        %5746 = vmatpush1.msra.mxu0 0.0
        %5747 = vmatprep.subr.mxu0 0.0
        %5748 = vmatpush1.msra.mxu0 0.0
        %5749 = vmatprep.subr.mxu0 0.0
        %5750 = vmatpush1.msra.mxu0 0.0
        %5751 = vmatprep.subr.mxu0 0.0
        %5752 = vmatpush1.msra.mxu0 0.0
        %5753 = vmatprep.subr.mxu0 0.0
        %5754 = vmatpush1.msra.mxu0 0.0
        %5755 = vmatprep.subr.mxu0 0.0
        %5756 = vmatpush1.msra.mxu0 0.0
        %5757 = vmatprep.subr.mxu0 0.0
        %5758 = vmatpush1.msra.mxu0 0.0
        %5759 = vmatprep.subr.mxu0 0.0
        %5760 = vmatpush1.msra.mxu0 0.0
        %5761 = vmatprep.subr.mxu0 0.0
        %5762 = vmatpush1.msra.mxu0 0.0
        %5763 = vmatprep.subr.mxu0 0.0
        %5764 = vmatpush1.msra.mxu0 0.0
        %5765 = vmatprep.subr.mxu0 0.0
        %5766 = vmatpush1.msra.mxu0 0.0
        %5767 = vmatprep.subr.mxu0 0.0
        %5768 = vmatpush1.msra.mxu0 0.0
        %5769 = vmatprep.subr.mxu0 0.0
        %5770 = vmatpush1.msra.mxu0 0.0
        %5771 = vmatprep.subr.mxu0 0.0
        %5772 = vmatpush1.msra.mxu0 0.0
        %5773 = vmatprep.subr.mxu0 0.0
        %5774 = vmatpush1.msra.mxu0 0.0
        %5775 = vmatprep.subr.mxu0 0.0
        %5776 = vmatpush1.msra.mxu0 0.0
        %5777 = vmatprep.subr.mxu0 0.0
        %5778 = vmatpush1.msra.mxu0 0.0
        %5779 = vmatprep.subr.mxu0 0.0
        %5780 = vmatpush1.msra.mxu0 0.0
        %5781 = vmatprep.subr.mxu0 0.0
        %5782 = vmatpush1.msra.mxu0 0.0
        %5783 = vmatprep.mubr.f32.mxu0 0.0
        %5784 = vmatmul.mubr.f32.gmra.mrb[0].mxu0 %v5714
        %v5785 = vpop.f32.mrb[0].mxu0
        %v5786 = vadd.f32 %v5650, %v5785
        %v5787 = vpop.f32.mrb[0].mxu0
        %v5788 = vadd.f32 %v5650, %v5787
        %5789 = vmatprep.mubr.f32.mxu0 0.0
        %5790 = vmatmul.mubr.f32.gmra.mrb[0].mxu0 %v5717
        %v5791 = vpop.f32.mrb[0].mxu0
        %v5792 = vadd.f32 %v5655, %v5791
        %v5793 = vpop.f32.mrb[0].mxu0
        %v5794 = vadd.f32 %v5655, %v5793
        %5795 = vdwg.mxu0
        %5796 = vmatprep.subr.mxu0 %v5696
        %5797 = vmatpush1.msra.mxu0 %v5695
        %5798 = vmatprep.subr.mxu0 %v5701
        %5799 = vmatpush1.msra.mxu0 %v5700
        %5800 = vmatprep.subr.mxu0 0.0
        %5801 = vmatpush1.msra.mxu0 0.0
        %5802 = vmatprep.subr.mxu0 0.0
        %5803 = vmatpush1.msra.mxu0 0.0
        %5804 = vmatprep.subr.mxu0 0.0
        %5805 = vmatpush1.msra.mxu0 0.0
        %5806 = vmatprep.subr.mxu0 0.0
        %5807 = vmatpush1.msra.mxu0 0.0
        %5808 = vmatprep.subr.mxu0 0.0
        %5809 = vmatpush1.msra.mxu0 0.0
        %5810 = vmatprep.subr.mxu0 0.0
        %5811 = vmatpush1.msra.mxu0 0.0
        %5812 = vmatprep.subr.mxu0 0.0
        %5813 = vmatpush1.msra.mxu0 0.0
        %5814 = vmatprep.subr.mxu0 0.0
        %5815 = vmatpush1.msra.mxu0 0.0
        %5816 = vmatprep.subr.mxu0 0.0
        %5817 = vmatpush1.msra.mxu0 0.0
        %5818 = vmatprep.subr.mxu0 0.0
        %5819 = vmatpush1.msra.mxu0 0.0
        %5820 = vmatprep.subr.mxu0 0.0
        %5821 = vmatpush1.msra.mxu0 0.0
        %5822 = vmatprep.subr.mxu0 0.0
        %5823 = vmatpush1.msra.mxu0 0.0
        %5824 = vmatprep.subr.mxu0 0.0
        %5825 = vmatpush1.msra.mxu0 0.0
        %5826 = vmatprep.subr.mxu0 0.0
        %5827 = vmatpush1.msra.mxu0 0.0
        %5828 = vmatprep.subr.mxu0 0.0
        %5829 = vmatpush1.msra.mxu0 0.0
        %5830 = vmatprep.subr.mxu0 0.0
        %5831 = vmatpush1.msra.mxu0 0.0
        %5832 = vmatprep.subr.mxu0 0.0
        %5833 = vmatpush1.msra.mxu0 0.0
        %5834 = vmatprep.subr.mxu0 0.0
        %5835 = vmatpush1.msra.mxu0 0.0
        %5836 = vmatprep.subr.mxu0 0.0
        %5837 = vmatpush1.msra.mxu0 0.0
        %5838 = vmatprep.subr.mxu0 0.0
        %5839 = vmatpush1.msra.mxu0 0.0
        %5840 = vmatprep.subr.mxu0 0.0
        %5841 = vmatpush1.msra.mxu0 0.0
        %5842 = vmatprep.subr.mxu0 0.0
        %5843 = vmatpush1.msra.mxu0 0.0
        %5844 = vmatprep.subr.mxu0 0.0
        %5845 = vmatpush1.msra.mxu0 0.0
        %5846 = vmatprep.subr.mxu0 0.0
        %5847 = vmatpush1.msra.mxu0 0.0
        %5848 = vmatprep.subr.mxu0 0.0
        %5849 = vmatpush1.msra.mxu0 0.0
        %5850 = vmatprep.subr.mxu0 0.0
        %5851 = vmatpush1.msra.mxu0 0.0
        %5852 = vmatprep.subr.mxu0 0.0
        %5853 = vmatpush1.msra.mxu0 0.0
        %5854 = vmatprep.subr.mxu0 0.0
        %5855 = vmatpush1.msra.mxu0 0.0
        %5856 = vmatprep.subr.mxu0 0.0
        %5857 = vmatpush1.msra.mxu0 0.0
        %5858 = vmatprep.subr.mxu0 0.0
        %5859 = vmatpush1.msra.mxu0 0.0
        %5860 = vmatprep.mubr.f32.mxu0 0.0
        %5861 = vmatmul.mubr.f32.gmra.mrb[0].mxu0 %v5714
        %v5862 = vpop.f32.mrb[0].mxu0
        %v5863 = vadd.f32 %v5650, %v5862
        %v5864 = vpop.f32.mrb[0].mxu0
        %v5865 = vadd.f32 %v5650, %v5864
        %5866 = vmatprep.mubr.f32.mxu0 0.0
        %5867 = vmatmul.mubr.f32.gmra.mrb[0].mxu0 %v5717
        %v5868 = vpop.f32.mrb[0].mxu0
        %v5869 = vadd.f32 %v5655, %v5868
        %v5870 = vpop.f32.mrb[0].mxu0
        %v5871 = vadd.f32 %v5655, %v5870
        %5872 = vdwg.mxu0
        %5873 = vmatprep.subr.mxu0 0.0
        %5874 = vmatpush1.msra.mxu0 %v5697
        %5875 = vmatprep.subr.mxu0 0.0
        %5876 = vmatpush1.msra.mxu0 %v5702
        %5877 = vmatprep.subr.mxu0 0.0
        %5878 = vmatpush1.msra.mxu0 0.0
        %5879 = vmatprep.subr.mxu0 0.0
        %5880 = vmatpush1.msra.mxu0 0.0
        %5881 = vmatprep.subr.mxu0 0.0
        %5882 = vmatpush1.msra.mxu0 0.0
        %5883 = vmatprep.subr.mxu0 0.0
        %5884 = vmatpush1.msra.mxu0 0.0
        %5885 = vmatprep.subr.mxu0 0.0
        %5886 = vmatpush1.msra.mxu0 0.0
        %5887 = vmatprep.subr.mxu0 0.0
        %5888 = vmatpush1.msra.mxu0 0.0
        %5889 = vmatprep.subr.mxu0 0.0
        %5890 = vmatpush1.msra.mxu0 0.0
        %5891 = vmatprep.subr.mxu0 0.0
        %5892 = vmatpush1.msra.mxu0 0.0
        %5893 = vmatprep.subr.mxu0 0.0
        %5894 = vmatpush1.msra.mxu0 0.0
        %5895 = vmatprep.subr.mxu0 0.0
        %5896 = vmatpush1.msra.mxu0 0.0
        %5897 = vmatprep.subr.mxu0 0.0
        %5898 = vmatpush1.msra.mxu0 0.0
        %5899 = vmatprep.subr.mxu0 0.0
        %5900 = vmatpush1.msra.mxu0 0.0
        %5901 = vmatprep.subr.mxu0 0.0
        %5902 = vmatpush1.msra.mxu0 0.0
        %5903 = vmatprep.subr.mxu0 0.0
        %5904 = vmatpush1.msra.mxu0 0.0
        %5905 = vmatprep.subr.mxu0 0.0
        %5906 = vmatpush1.msra.mxu0 0.0
        %5907 = vmatprep.subr.mxu0 0.0
        %5908 = vmatpush1.msra.mxu0 0.0
        %5909 = vmatprep.subr.mxu0 0.0
        %5910 = vmatpush1.msra.mxu0 0.0
        %5911 = vmatprep.subr.mxu0 0.0
        %5912 = vmatpush1.msra.mxu0 0.0
        %5913 = vmatprep.subr.mxu0 0.0
        %5914 = vmatpush1.msra.mxu0 0.0
        %5915 = vmatprep.subr.mxu0 0.0
        %5916 = vmatpush1.msra.mxu0 0.0
        %5917 = vmatprep.subr.mxu0 0.0
        %5918 = vmatpush1.msra.mxu0 0.0
        %5919 = vmatprep.subr.mxu0 0.0
        %5920 = vmatpush1.msra.mxu0 0.0
        %5921 = vmatprep.subr.mxu0 0.0
        %5922 = vmatpush1.msra.mxu0 0.0
        %5923 = vmatprep.subr.mxu0 0.0
        %5924 = vmatpush1.msra.mxu0 0.0
        %5925 = vmatprep.subr.mxu0 0.0
        %5926 = vmatpush1.msra.mxu0 0.0
        %5927 = vmatprep.subr.mxu0 0.0
        %5928 = vmatpush1.msra.mxu0 0.0
        %5929 = vmatprep.subr.mxu0 0.0
        %5930 = vmatpush1.msra.mxu0 0.0
        %5931 = vmatprep.subr.mxu0 0.0
        %5932 = vmatpush1.msra.mxu0 0.0
        %5933 = vmatprep.subr.mxu0 0.0
        %5934 = vmatpush1.msra.mxu0 0.0
        %5935 = vmatprep.subr.mxu0 0.0
        %5936 = vmatpush1.msra.mxu0 0.0
        %5937 = vmatprep.mubr.f32.mxu0 0.0
        %5938 = vmatmul.mubr.f32.gmra.mrb[0].mxu0 %v5714
        %v5939 = vpop.f32.mrb[0].mxu0
        %v5940 = vadd.f32 %v5650, %v5939
        %v5941 = vpop.f32.mrb[0].mxu0
        %5942 = vmatprep.mubr.f32.mxu0 0.0
        %5943 = vmatmul.mubr.f32.gmra.mrb[0].mxu0 %v5717
        %v5944 = vpop.f32.mrb[0].mxu0
        %v5945 = vadd.f32 %v5655, %v5944
        %v5946 = vpop.f32.mrb[0].mxu0
        %5947 = vdwg.mxu0
        %v5948 = vsel %vm1947, %v912, 0.0
        %v5949 = vsel %vm1948, %v914, 0.0
        %v5950 = vsel %vm1949, %v989, 0.0
        %v5951 = vsel %vm1950, %v991, 0.0
        %v5952 = vsel %vm1951, %v1066, 0.0
        %v5953 = vsel %vm1947, %v918, 0.0
        %v5954 = vsel %vm1948, %v920, 0.0
        %v5955 = vsel %vm1949, %v995, 0.0
        %v5956 = vsel %vm1950, %v997, 0.0
        %v5957 = vsel %vm1951, %v1071, 0.0
        %v5958 = vadd.f32 %v5948, %v5949
        %v5959 = vadd.f32 %v5958, %v5950
        %v5960 = vadd.f32 %v5959, %v5951
        %v5961 = vsel %vm2022, %v5952, 0.0
        %v5962 = vadd.f32 %v5960, %v5961
        %5963 = vadd.xlane.f32.xlu0 %v5962
        %v5964 = vpop.xlane.xlu0 %5963
        %v5965 = vadd.f32 %v5953, %v5954
        %v5966 = vadd.f32 %v5965, %v5955
        %v5967 = vadd.f32 %v5966, %v5956
        %v5968 = vsel %vm2022, %v5957, 0.0
        %v5969 = vadd.f32 %v5967, %v5968
        %5970 = vadd.xlane.f32.xlu0 %v5969
        %v5971 = vpop.xlane.xlu0 %5970
        %v5972 = vmul.f32 %v5948, %v912
        %v5973 = vmul.f32 %v5949, %v914
        %v5974 = vmul.f32 %v5950, %v989
        %v5975 = vmul.f32 %v5951, %v991
        %v5976 = vmul.f32 %v5952, %v1066
        %v5977 = vmul.f32 %v5953, %v918
        %v5978 = vmul.f32 %v5954, %v920
        %v5979 = vmul.f32 %v5955, %v995
        %v5980 = vmul.f32 %v5956, %v997
        %v5981 = vmul.f32 %v5957, %v1071
        %v5982 = vadd.f32 %v5972, %v5973
        %v5983 = vadd.f32 %v5982, %v5974
        %v5984 = vadd.f32 %v5983, %v5975
        %v5985 = vsel %vm2022, %v5976, 0.0
        %v5986 = vadd.f32 %v5984, %v5985
        %5987 = vadd.xlane.f32.xlu0 %v5986
        %v5988 = vpop.xlane.xlu0 %5987
        %v5989 = vadd.f32 %v5977, %v5978
        %v5990 = vadd.f32 %v5989, %v5979
        %v5991 = vadd.f32 %v5990, %v5980
        %v5992 = vsel %vm2022, %v5981, 0.0
        %v5993 = vadd.f32 %v5991, %v5992
        %5994 = vadd.xlane.f32.xlu0 %v5993
        %v5995 = vpop.xlane.xlu0 %5994
        %v5996 = vld [vmem:[%s18] sm:$0xff]
        %v5997 = vld [vmem:[%s18 + $0x8] sm:$0xff]
        %v5998 = vsel %vm2060, %v5964, %v5988
        %v5999 = vsel %vm2060, %v5971, %v5995
        %v6001 = vsel %vm838, %v5996, 0
        %v6004 = vsel %vm838, %v5997, 0
        %6006 = vmatprep.subr.mxu0 0.0
        %6007 = vmatpush1.msra.mxu0 %v5998
        %6008 = vmatprep.subr.mxu0 0.0
        %6009 = vmatpush1.msra.mxu0 %v5999
        %6010 = vmatprep.subr.mxu0 0.0
        %6011 = vmatpush1.msra.mxu0 0.0
        %6012 = vmatprep.subr.mxu0 0.0
        %6013 = vmatpush1.msra.mxu0 0.0
        %6014 = vmatprep.subr.mxu0 0.0
        %6015 = vmatpush1.msra.mxu0 0.0
        %6016 = vmatprep.subr.mxu0 0.0
        %6017 = vmatpush1.msra.mxu0 0.0
        %6018 = vmatprep.subr.mxu0 0.0
        %6019 = vmatpush1.msra.mxu0 0.0
        %6020 = vmatprep.subr.mxu0 0.0
        %6021 = vmatpush1.msra.mxu0 0.0
        %6022 = vmatprep.subr.mxu0 0.0
        %6023 = vmatpush1.msra.mxu0 0.0
        %6024 = vmatprep.subr.mxu0 0.0
        %6025 = vmatpush1.msra.mxu0 0.0
        %6026 = vmatprep.subr.mxu0 0.0
        %6027 = vmatpush1.msra.mxu0 0.0
        %6028 = vmatprep.subr.mxu0 0.0
        %6029 = vmatpush1.msra.mxu0 0.0
        %6030 = vmatprep.subr.mxu0 0.0
        %6031 = vmatpush1.msra.mxu0 0.0
        %6032 = vmatprep.subr.mxu0 0.0
        %6033 = vmatpush1.msra.mxu0 0.0
        %6034 = vmatprep.subr.mxu0 0.0
        %6035 = vmatpush1.msra.mxu0 0.0
        %6036 = vmatprep.subr.mxu0 0.0
        %6037 = vmatpush1.msra.mxu0 0.0
        %6038 = vmatprep.subr.mxu0 0.0
        %6039 = vmatpush1.msra.mxu0 0.0
        %6040 = vmatprep.subr.mxu0 0.0
        %6041 = vmatpush1.msra.mxu0 0.0
        %6042 = vmatprep.subr.mxu0 0.0
        %6043 = vmatpush1.msra.mxu0 0.0
        %6044 = vmatprep.subr.mxu0 0.0
        %6045 = vmatpush1.msra.mxu0 0.0
        %6046 = vmatprep.subr.mxu0 0.0
        %6047 = vmatpush1.msra.mxu0 0.0
        %6048 = vmatprep.subr.mxu0 0.0
        %6049 = vmatpush1.msra.mxu0 0.0
        %6050 = vmatprep.subr.mxu0 0.0
        %6051 = vmatpush1.msra.mxu0 0.0
        %6052 = vmatprep.subr.mxu0 0.0
        %6053 = vmatpush1.msra.mxu0 0.0
        %6054 = vmatprep.subr.mxu0 0.0
        %6055 = vmatpush1.msra.mxu0 0.0
        %6056 = vmatprep.subr.mxu0 0.0
        %6057 = vmatpush1.msra.mxu0 0.0
        %6058 = vmatprep.subr.mxu0 0.0
        %6059 = vmatpush1.msra.mxu0 0.0
        %6060 = vmatprep.subr.mxu0 0.0
        %6061 = vmatpush1.msra.mxu0 0.0
        %6062 = vmatprep.subr.mxu0 0.0
        %6063 = vmatpush1.msra.mxu0 0.0
        %6064 = vmatprep.subr.mxu0 0.0
        %6065 = vmatpush1.msra.mxu0 0.0
        %6066 = vmatprep.subr.mxu0 0.0
        %6067 = vmatpush1.msra.mxu0 0.0
        %6068 = vmatprep.subr.mxu0 0.0
        %6069 = vmatpush1.msra.mxu0 0.0
        %6070 = vmatprep.mubr.f32.mxu0 0.0
        %6071 = vmatmul.mubr.f32.gmra.mrb[0].mxu0 %v6001
        %v6072 = vpop.f32.mrb[0].mxu0
        %v6073 = vadd.f32 0.0, %v6072
        %v6074 = vpop.f32.mrb[0].mxu0
        %6075 = vmatprep.mubr.f32.mxu0 0.0
        %6076 = vmatmul.mubr.f32.gmra.mrb[0].mxu0 %v6004
        %v6077 = vpop.f32.mrb[0].mxu0
        %v6078 = vadd.f32 0.0, %v6077
        %v6079 = vpop.f32.mrb[0].mxu0
        %6080 = vdwg.mxu0
        %v6081 = vmul.f32 %v6073, %v6073
        %v6082 = vmul.f32 %v6078, %v6078
        %6085 = vrot.lane.b32.xlu0 %v6081, 1
        %v6086 = vpop.permute.xlu0 %6085
        %6087 = vrot.lane.b32.xlu0 %v6082, 1
        %v6088 = vpop.permute.xlu0 %6087
        %v6091 = vsub.f32 %v6073, %v6086
        %v6092 = vsub.f32 %v6078, %v6088
        %v6093 = vmax.f32 %v6091, 0.0
        %v6094 = vmax.f32 %v6092, 0.0
        %6096 = vset.pattern.permute.xlu0 0
        %6097 = vperm.xlu0 %6096, %v6073
        %v6098 = vpop.permute.xlu0 %6097
        %6101 = vset.pattern.permute.xlu0 0
        %6102 = vperm.xlu0 %6101, %v6078
        %v6103 = vpop.permute.xlu0 %6102
        %v6105 = vsub.f32 %v912, %v6098
        %v6106 = vsub.f32 %v914, %v6098
        %v6107 = vsub.f32 %v989, %v6098
        %v6108 = vsub.f32 %v991, %v6098
        %v6109 = vsub.f32 %v1066, %v6098
        %v6110 = vsub.f32 %v918, %v6103
        %v6111 = vsub.f32 %v920, %v6103
        %v6112 = vsub.f32 %v995, %v6103
        %v6113 = vsub.f32 %v997, %v6103
        %v6114 = vsub.f32 %v1071, %v6103
        %v6115 = vadd.f32 %v6093, 1e-05
        %v6116 = vadd.f32 %v6094, 1e-05
        %v6117 = vrsqrt.pop %v6115
        %v6118 = vrsqrt.pop %v6116
        %v6119 = vld [vmem:[%s19] sm:$0xff]
        %v6120 = vld [vmem:[%s19 + $0x8] sm:$0xff]
        %6123 = vrot.lane.b32.xlu0 %v6119, 1
        %v6124 = vpop.permute.xlu0 %6123
        %6125 = vrot.lane.b32.xlu0 %v6120, 1
        %v6126 = vpop.permute.xlu0 %6125
        %v6129 = vmul.f32 %v6117, %v6124
        %v6130 = vmul.f32 %v6118, %v6126
        %6132 = vset.pattern.permute.xlu0 1
        %6133 = vperm.xlu0 %6132, %v6129
        %v6134 = vpop.permute.xlu0 %6133
        %6137 = vset.pattern.permute.xlu0 1
        %6138 = vperm.xlu0 %6137, %v6130
        %v6139 = vpop.permute.xlu0 %6138
        %v6141 = vmul.f32 %v6105, %v6134
        %v6142 = vmul.f32 %v6106, %v6134
        %v6143 = vmul.f32 %v6107, %v6134
        %v6144 = vmul.f32 %v6108, %v6134
        %v6145 = vmul.f32 %v6109, %v6134
        %v6146 = vmul.f32 %v6110, %v6139
        %v6147 = vmul.f32 %v6111, %v6139
        %v6148 = vmul.f32 %v6112, %v6139
        %v6149 = vmul.f32 %v6113, %v6139
        %v6150 = vmul.f32 %v6114, %v6139
        %v6151 = vld [vmem:[%s20] sm:$0xff]
        %v6152 = vld [vmem:[%s20 + $0x8] sm:$0xff]
        %6154 = vset.pattern.permute.xlu0 0
        %6155 = vperm.xlu0 %6154, %v6151
        %v6156 = vpop.permute.xlu0 %6155
        %6159 = vset.pattern.permute.xlu0 0
        %6160 = vperm.xlu0 %6159, %v6152
        %v6161 = vpop.permute.xlu0 %6160
        %v6163 = vadd.f32 %v6141, %v6156
        %v6164 = vadd.f32 %v6142, %v6156
        %v6165 = vadd.f32 %v6143, %v6156
        %v6166 = vadd.f32 %v6144, %v6156
        %v6167 = vadd.f32 %v6145, %v6156
        %v6168 = vadd.f32 %v6146, %v6161
        %v6169 = vadd.f32 %v6147, %v6161
        %v6170 = vadd.f32 %v6148, %v6161
        %v6171 = vadd.f32 %v6149, %v6161
        %v6172 = vadd.f32 %v6150, %v6161
        %v6173 = vsub.f32 0.0, %v6163
        %v6174 = vsub.f32 0.0, %v6164
        %v6175 = vsub.f32 0.0, %v6165
        %v6176 = vsub.f32 0.0, %v6166
        %v6177 = vsub.f32 0.0, %v6167
        %v6178 = vsub.f32 0.0, %v6168
        %v6179 = vsub.f32 0.0, %v6169
        %v6180 = vsub.f32 0.0, %v6170
        %v6181 = vsub.f32 0.0, %v6171
        %v6182 = vsub.f32 0.0, %v6172
        %v6183 = vmul.f32 %v6173, 1.442695
        %v6184 = vpow.pop %v6183
        %v6185 = vmul.f32 %v6174, 1.442695
        %v6186 = vpow.pop %v6185
        %v6187 = vmul.f32 %v6175, 1.442695
        %v6188 = vpow.pop %v6187
        %v6189 = vmul.f32 %v6176, 1.442695
        %v6190 = vpow.pop %v6189
        %v6191 = vmul.f32 %v6177, 1.442695
        %v6192 = vpow.pop %v6191
        %v6193 = vmul.f32 %v6178, 1.442695
        %v6194 = vpow.pop %v6193
        %v6195 = vmul.f32 %v6179, 1.442695
        %v6196 = vpow.pop %v6195
        %v6197 = vmul.f32 %v6180, 1.442695
        %v6198 = vpow.pop %v6197
        %v6199 = vmul.f32 %v6181, 1.442695
        %v6200 = vpow.pop %v6199
        %v6201 = vmul.f32 %v6182, 1.442695
        %v6202 = vpow.pop %v6201
        %v6203 = vadd.f32 %v6184, 1.0
        %v6204 = vadd.f32 %v6186, 1.0
        %v6205 = vadd.f32 %v6188, 1.0
        %v6206 = vadd.f32 %v6190, 1.0
        %v6207 = vadd.f32 %v6192, 1.0
        %v6208 = vadd.f32 %v6194, 1.0
        %v6209 = vadd.f32 %v6196, 1.0
        %v6210 = vadd.f32 %v6198, 1.0
        %v6211 = vadd.f32 %v6200, 1.0
        %v6212 = vadd.f32 %v6202, 1.0
        %v6213 = vrcp.pop %v6203
        %v6214 = vrcp.pop %v6204
        %v6215 = vrcp.pop %v6205
        %v6216 = vrcp.pop %v6206
        %v6217 = vrcp.pop %v6207
        %v6218 = vrcp.pop %v6208
        %v6219 = vrcp.pop %v6209
        %v6220 = vrcp.pop %v6210
        %v6221 = vrcp.pop %v6211
        %v6222 = vrcp.pop %v6212
        %v6223 = vmul.f32 %v6163, %v6213
        %v6224 = vmul.f32 %v6164, %v6214
        %v6225 = vmul.f32 %v6165, %v6215
        %v6226 = vmul.f32 %v6166, %v6216
        %v6227 = vmul.f32 %v6167, %v6217
        %v6228 = vmul.f32 %v6168, %v6218
        %v6229 = vmul.f32 %v6169, %v6219
        %v6230 = vmul.f32 %v6170, %v6220
        %v6231 = vmul.f32 %v6171, %v6221
        %v6232 = vmul.f32 %v6172, %v6222
        %v6233 = vsel %vm1947, %v5786, 0.0
        %v6234 = vsel %vm1948, %v5788, 0.0
        %v6235 = vsel %vm1949, %v5863, 0.0
        %v6236 = vsel %vm1950, %v5865, 0.0
        %v6237 = vsel %vm1951, %v5940, 0.0
        %v6238 = vsel %vm1947, %v5792, 0.0
        %v6239 = vsel %vm1948, %v5794, 0.0
        %v6240 = vsel %vm1949, %v5869, 0.0
        %v6241 = vsel %vm1950, %v5871, 0.0
        %v6242 = vsel %vm1951, %v5945, 0.0
        %v6243 = vadd.f32 %v6233, %v6234
        %v6244 = vadd.f32 %v6243, %v6235
        %v6245 = vadd.f32 %v6244, %v6236
        %v6246 = vsel %vm2022, %v6237, 0.0
        %v6247 = vadd.f32 %v6245, %v6246
        %6248 = vadd.xlane.f32.xlu0 %v6247
        %v6249 = vpop.xlane.xlu0 %6248
        %v6250 = vadd.f32 %v6238, %v6239
        %v6251 = vadd.f32 %v6250, %v6240
        %v6252 = vadd.f32 %v6251, %v6241
        %v6253 = vsel %vm2022, %v6242, 0.0
        %v6254 = vadd.f32 %v6252, %v6253
        %6255 = vadd.xlane.f32.xlu0 %v6254
        %v6256 = vpop.xlane.xlu0 %6255
        %v6257 = vmul.f32 %v6233, %v5786
        %v6258 = vmul.f32 %v6234, %v5788
        %v6259 = vmul.f32 %v6235, %v5863
        %v6260 = vmul.f32 %v6236, %v5865
        %v6261 = vmul.f32 %v6237, %v5940
        %v6262 = vmul.f32 %v6238, %v5792
        %v6263 = vmul.f32 %v6239, %v5794
        %v6264 = vmul.f32 %v6240, %v5869
        %v6265 = vmul.f32 %v6241, %v5871
        %v6266 = vmul.f32 %v6242, %v5945
        %v6267 = vadd.f32 %v6257, %v6258
        %v6268 = vadd.f32 %v6267, %v6259
        %v6269 = vadd.f32 %v6268, %v6260
        %v6270 = vsel %vm2022, %v6261, 0.0
        %v6271 = vadd.f32 %v6269, %v6270
        %6272 = vadd.xlane.f32.xlu0 %v6271
        %v6273 = vpop.xlane.xlu0 %6272
        %v6274 = vadd.f32 %v6262, %v6263
        %v6275 = vadd.f32 %v6274, %v6264
        %v6276 = vadd.f32 %v6275, %v6265
        %v6277 = vsel %vm2022, %v6266, 0.0
        %v6278 = vadd.f32 %v6276, %v6277
        %6279 = vadd.xlane.f32.xlu0 %v6278
        %v6280 = vpop.xlane.xlu0 %6279
        %v6281 = vsel %vm2060, %v6249, %v6273
        %v6282 = vsel %vm2060, %v6256, %v6280
        %6283 = vmatprep.subr.mxu0 0.0
        %6284 = vmatpush1.msra.mxu0 %v6281
        %6285 = vmatprep.subr.mxu0 0.0
        %6286 = vmatpush1.msra.mxu0 %v6282
        %6287 = vmatprep.subr.mxu0 0.0
        %6288 = vmatpush1.msra.mxu0 0.0
        %6289 = vmatprep.subr.mxu0 0.0
        %6290 = vmatpush1.msra.mxu0 0.0
        %6291 = vmatprep.subr.mxu0 0.0
        %6292 = vmatpush1.msra.mxu0 0.0
        %6293 = vmatprep.subr.mxu0 0.0
        %6294 = vmatpush1.msra.mxu0 0.0
        %6295 = vmatprep.subr.mxu0 0.0
        %6296 = vmatpush1.msra.mxu0 0.0
        %6297 = vmatprep.subr.mxu0 0.0
        %6298 = vmatpush1.msra.mxu0 0.0
        %6299 = vmatprep.subr.mxu0 0.0
        %6300 = vmatpush1.msra.mxu0 0.0
        %6301 = vmatprep.subr.mxu0 0.0
        %6302 = vmatpush1.msra.mxu0 0.0
        %6303 = vmatprep.subr.mxu0 0.0
        %6304 = vmatpush1.msra.mxu0 0.0
        %6305 = vmatprep.subr.mxu0 0.0
        %6306 = vmatpush1.msra.mxu0 0.0
        %6307 = vmatprep.subr.mxu0 0.0
        %6308 = vmatpush1.msra.mxu0 0.0
        %6309 = vmatprep.subr.mxu0 0.0
        %6310 = vmatpush1.msra.mxu0 0.0
        %6311 = vmatprep.subr.mxu0 0.0
        %6312 = vmatpush1.msra.mxu0 0.0
        %6313 = vmatprep.subr.mxu0 0.0
        %6314 = vmatpush1.msra.mxu0 0.0
        %6315 = vmatprep.subr.mxu0 0.0
        %6316 = vmatpush1.msra.mxu0 0.0
        %6317 = vmatprep.subr.mxu0 0.0
        %6318 = vmatpush1.msra.mxu0 0.0
        %6319 = vmatprep.subr.mxu0 0.0
        %6320 = vmatpush1.msra.mxu0 0.0
        %6321 = vmatprep.subr.mxu0 0.0
        %6322 = vmatpush1.msra.mxu0 0.0
        %6323 = vmatprep.subr.mxu0 0.0
        %6324 = vmatpush1.msra.mxu0 0.0
        %6325 = vmatprep.subr.mxu0 0.0
        %6326 = vmatpush1.msra.mxu0 0.0
        %6327 = vmatprep.subr.mxu0 0.0
        %6328 = vmatpush1.msra.mxu0 0.0
        %6329 = vmatprep.subr.mxu0 0.0
        %6330 = vmatpush1.msra.mxu0 0.0
        %6331 = vmatprep.subr.mxu0 0.0
        %6332 = vmatpush1.msra.mxu0 0.0
        %6333 = vmatprep.subr.mxu0 0.0
        %6334 = vmatpush1.msra.mxu0 0.0
        %6335 = vmatprep.subr.mxu0 0.0
        %6336 = vmatpush1.msra.mxu0 0.0
        %6337 = vmatprep.subr.mxu0 0.0
        %6338 = vmatpush1.msra.mxu0 0.0
        %6339 = vmatprep.subr.mxu0 0.0
        %6340 = vmatpush1.msra.mxu0 0.0
        %6341 = vmatprep.subr.mxu0 0.0
        %6342 = vmatpush1.msra.mxu0 0.0
        %6343 = vmatprep.subr.mxu0 0.0
        %6344 = vmatpush1.msra.mxu0 0.0
        %6345 = vmatprep.subr.mxu0 0.0
        %6346 = vmatpush1.msra.mxu0 0.0
        %6347 = vmatprep.mubr.f32.mxu0 0.0
        %6348 = vmatmul.mubr.f32.gmra.mrb[0].mxu0 %v6001
        %v6349 = vpop.f32.mrb[0].mxu0
        %v6350 = vadd.f32 0.0, %v6349
        %v6351 = vpop.f32.mrb[0].mxu0
        %6352 = vmatprep.mubr.f32.mxu0 0.0
        %6353 = vmatmul.mubr.f32.gmra.mrb[0].mxu0 %v6004
        %v6354 = vpop.f32.mrb[0].mxu0
        %v6355 = vadd.f32 0.0, %v6354
        %v6356 = vpop.f32.mrb[0].mxu0
        %6357 = vdwg.mxu0
        %v6358 = vmul.f32 %v6350, %v6350
        %v6359 = vmul.f32 %v6355, %v6355
        %6362 = vrot.lane.b32.xlu0 %v6358, 1
        %v6363 = vpop.permute.xlu0 %6362
        %6364 = vrot.lane.b32.xlu0 %v6359, 1
        %v6365 = vpop.permute.xlu0 %6364
        %v6368 = vsub.f32 %v6350, %v6363
        %v6369 = vsub.f32 %v6355, %v6365
        %v6370 = vmax.f32 %v6368, 0.0
        %v6371 = vmax.f32 %v6369, 0.0
        %6373 = vset.pattern.permute.xlu0 0
        %6374 = vperm.xlu0 %6373, %v6350
        %v6375 = vpop.permute.xlu0 %6374
        %6378 = vset.pattern.permute.xlu0 0
        %6379 = vperm.xlu0 %6378, %v6355
        %v6380 = vpop.permute.xlu0 %6379
        %v6382 = vsub.f32 %v5786, %v6375
        %v6383 = vsub.f32 %v5788, %v6375
        %v6384 = vsub.f32 %v5863, %v6375
        %v6385 = vsub.f32 %v5865, %v6375
        %v6386 = vsub.f32 %v5940, %v6375
        %v6387 = vsub.f32 %v5792, %v6380
        %v6388 = vsub.f32 %v5794, %v6380
        %v6389 = vsub.f32 %v5869, %v6380
        %v6390 = vsub.f32 %v5871, %v6380
        %v6391 = vsub.f32 %v5945, %v6380
        %v6392 = vadd.f32 %v6370, 1e-05
        %v6393 = vadd.f32 %v6371, 1e-05
        %v6394 = vrsqrt.pop %v6392
        %v6395 = vrsqrt.pop %v6393
        %v6396 = vld [vmem:[%s21] sm:$0xff]
        %v6397 = vld [vmem:[%s21 + $0x8] sm:$0xff]
        %6400 = vrot.lane.b32.xlu0 %v6396, 1
        %v6401 = vpop.permute.xlu0 %6400
        %6402 = vrot.lane.b32.xlu0 %v6397, 1
        %v6403 = vpop.permute.xlu0 %6402
        %v6406 = vmul.f32 %v6394, %v6401
        %v6407 = vmul.f32 %v6395, %v6403
        %6409 = vset.pattern.permute.xlu0 1
        %6410 = vperm.xlu0 %6409, %v6406
        %v6411 = vpop.permute.xlu0 %6410
        %6414 = vset.pattern.permute.xlu0 1
        %6415 = vperm.xlu0 %6414, %v6407
        %v6416 = vpop.permute.xlu0 %6415
        %v6418 = vmul.f32 %v6382, %v6411
        %v6419 = vmul.f32 %v6383, %v6411
        %v6420 = vmul.f32 %v6384, %v6411
        %v6421 = vmul.f32 %v6385, %v6411
        %v6422 = vmul.f32 %v6386, %v6411
        %v6423 = vmul.f32 %v6387, %v6416
        %v6424 = vmul.f32 %v6388, %v6416
        %v6425 = vmul.f32 %v6389, %v6416
        %v6426 = vmul.f32 %v6390, %v6416
        %v6427 = vmul.f32 %v6391, %v6416
        %v6428 = vld [vmem:[%s22] sm:$0xff]
        %v6429 = vld [vmem:[%s22 + $0x8] sm:$0xff]
        %6431 = vset.pattern.permute.xlu0 0
        %6432 = vperm.xlu0 %6431, %v6428
        %v6433 = vpop.permute.xlu0 %6432
        %6436 = vset.pattern.permute.xlu0 0
        %6437 = vperm.xlu0 %6436, %v6429
        %v6438 = vpop.permute.xlu0 %6437
        %v6440 = vadd.f32 %v6418, %v6433
        %v6441 = vadd.f32 %v6419, %v6433
        %v6442 = vadd.f32 %v6420, %v6433
        %v6443 = vadd.f32 %v6421, %v6433
        %v6444 = vadd.f32 %v6422, %v6433
        %v6445 = vadd.f32 %v6423, %v6438
        %v6446 = vadd.f32 %v6424, %v6438
        %v6447 = vadd.f32 %v6425, %v6438
        %v6448 = vadd.f32 %v6426, %v6438
        %v6449 = vadd.f32 %v6427, %v6438
        %v6450 = vsub.f32 0.0, %v6440
        %v6451 = vsub.f32 0.0, %v6441
        %v6452 = vsub.f32 0.0, %v6442
        %v6453 = vsub.f32 0.0, %v6443
        %v6454 = vsub.f32 0.0, %v6444
        %v6455 = vsub.f32 0.0, %v6445
        %v6456 = vsub.f32 0.0, %v6446
        %v6457 = vsub.f32 0.0, %v6447
        %v6458 = vsub.f32 0.0, %v6448
        %v6459 = vsub.f32 0.0, %v6449
        %v6460 = vmul.f32 %v6450, 1.442695
        %v6461 = vpow.pop %v6460
        %v6462 = vmul.f32 %v6451, 1.442695
        %v6463 = vpow.pop %v6462
        %v6464 = vmul.f32 %v6452, 1.442695
        %v6465 = vpow.pop %v6464
        %v6466 = vmul.f32 %v6453, 1.442695
        %v6467 = vpow.pop %v6466
        %v6468 = vmul.f32 %v6454, 1.442695
        %v6469 = vpow.pop %v6468
        %v6470 = vmul.f32 %v6455, 1.442695
        %v6471 = vpow.pop %v6470
        %v6472 = vmul.f32 %v6456, 1.442695
        %v6473 = vpow.pop %v6472
        %v6474 = vmul.f32 %v6457, 1.442695
        %v6475 = vpow.pop %v6474
        %v6476 = vmul.f32 %v6458, 1.442695
        %v6477 = vpow.pop %v6476
        %v6478 = vmul.f32 %v6459, 1.442695
        %v6479 = vpow.pop %v6478
        %v6480 = vadd.f32 %v6461, 1.0
        %v6481 = vadd.f32 %v6463, 1.0
        %v6482 = vadd.f32 %v6465, 1.0
        %v6483 = vadd.f32 %v6467, 1.0
        %v6484 = vadd.f32 %v6469, 1.0
        %v6485 = vadd.f32 %v6471, 1.0
        %v6486 = vadd.f32 %v6473, 1.0
        %v6487 = vadd.f32 %v6475, 1.0
        %v6488 = vadd.f32 %v6477, 1.0
        %v6489 = vadd.f32 %v6479, 1.0
        %v6490 = vrcp.pop %v6480
        %v6491 = vrcp.pop %v6481
        %v6492 = vrcp.pop %v6482
        %v6493 = vrcp.pop %v6483
        %v6494 = vrcp.pop %v6484
        %v6495 = vrcp.pop %v6485
        %v6496 = vrcp.pop %v6486
        %v6497 = vrcp.pop %v6487
        %v6498 = vrcp.pop %v6488
        %v6499 = vrcp.pop %v6489
        %v6500 = vmul.f32 %v6440, %v6490
        %v6501 = vmul.f32 %v6441, %v6491
        %v6502 = vmul.f32 %v6442, %v6492
        %v6503 = vmul.f32 %v6443, %v6493
        %v6504 = vmul.f32 %v6444, %v6494
        %v6505 = vmul.f32 %v6445, %v6495
        %v6506 = vmul.f32 %v6446, %v6496
        %v6507 = vmul.f32 %v6447, %v6497
        %v6508 = vmul.f32 %v6448, %v6498
        %v6509 = vmul.f32 %v6449, %v6499
        %v6510 = vld [vmem:[%s23] sm:$0xff]
        %v6511 = vld [vmem:[%s23 + $0x8] sm:$0xff]
        %v6512 = vld [vmem:[%s24] sm:$0xff]
        %v6513 = vld [vmem:[%s24 + $0x8] sm:$0xff]
        %v6515 = vsel %vm838, %v6512, 0
        %v6518 = vsel %vm838, %v6513, 0
        %6520 = vmatprep.subr.mxu0 %v6501
        %6521 = vmatpush1.msra.mxu0 %v6500
        %6522 = vmatprep.subr.mxu0 %v6506
        %6523 = vmatpush1.msra.mxu0 %v6505
        %6524 = vmatprep.subr.mxu0 0.0
        %6525 = vmatpush1.msra.mxu0 0.0
        %6526 = vmatprep.subr.mxu0 0.0
        %6527 = vmatpush1.msra.mxu0 0.0
        %6528 = vmatprep.subr.mxu0 0.0
        %6529 = vmatpush1.msra.mxu0 0.0
        %6530 = vmatprep.subr.mxu0 0.0
        %6531 = vmatpush1.msra.mxu0 0.0
        %6532 = vmatprep.subr.mxu0 0.0
        %6533 = vmatpush1.msra.mxu0 0.0
        %6534 = vmatprep.subr.mxu0 0.0
        %6535 = vmatpush1.msra.mxu0 0.0
        %6536 = vmatprep.subr.mxu0 0.0
        %6537 = vmatpush1.msra.mxu0 0.0
        %6538 = vmatprep.subr.mxu0 0.0
        %6539 = vmatpush1.msra.mxu0 0.0
        %6540 = vmatprep.subr.mxu0 0.0
        %6541 = vmatpush1.msra.mxu0 0.0
        %6542 = vmatprep.subr.mxu0 0.0
        %6543 = vmatpush1.msra.mxu0 0.0
        %6544 = vmatprep.subr.mxu0 0.0
        %6545 = vmatpush1.msra.mxu0 0.0
        %6546 = vmatprep.subr.mxu0 0.0
        %6547 = vmatpush1.msra.mxu0 0.0
        %6548 = vmatprep.subr.mxu0 0.0
        %6549 = vmatpush1.msra.mxu0 0.0
        %6550 = vmatprep.subr.mxu0 0.0
        %6551 = vmatpush1.msra.mxu0 0.0
        %6552 = vmatprep.subr.mxu0 0.0
        %6553 = vmatpush1.msra.mxu0 0.0
        %6554 = vmatprep.subr.mxu0 0.0
        %6555 = vmatpush1.msra.mxu0 0.0
        %6556 = vmatprep.subr.mxu0 0.0
        %6557 = vmatpush1.msra.mxu0 0.0
        %6558 = vmatprep.subr.mxu0 0.0
        %6559 = vmatpush1.msra.mxu0 0.0
        %6560 = vmatprep.subr.mxu0 0.0
        %6561 = vmatpush1.msra.mxu0 0.0
        %6562 = vmatprep.subr.mxu0 0.0
        %6563 = vmatpush1.msra.mxu0 0.0
        %6564 = vmatprep.subr.mxu0 0.0
        %6565 = vmatpush1.msra.mxu0 0.0
        %6566 = vmatprep.subr.mxu0 0.0
        %6567 = vmatpush1.msra.mxu0 0.0
        %6568 = vmatprep.subr.mxu0 0.0
        %6569 = vmatpush1.msra.mxu0 0.0
        %6570 = vmatprep.subr.mxu0 0.0
        %6571 = vmatpush1.msra.mxu0 0.0
        %6572 = vmatprep.subr.mxu0 0.0
        %6573 = vmatpush1.msra.mxu0 0.0
        %6574 = vmatprep.subr.mxu0 0.0
        %6575 = vmatpush1.msra.mxu0 0.0
        %6576 = vmatprep.subr.mxu0 0.0
        %6577 = vmatpush1.msra.mxu0 0.0
        %6578 = vmatprep.subr.mxu0 0.0
        %6579 = vmatpush1.msra.mxu0 0.0
        %6580 = vmatprep.subr.mxu0 0.0
        %6581 = vmatpush1.msra.mxu0 0.0
        %6582 = vmatprep.subr.mxu0 0.0
        %6583 = vmatpush1.msra.mxu0 0.0
        %6584 = vmatprep.mubr.f32.mxu0 0.0
        %6585 = vmatmul.mubr.f32.gmra.mrb[0].mxu0 %v6515
        %v6586 = vpop.f32.mrb[0].mxu0
        %v6587 = vadd.f32 0.0, %v6586
        %v6588 = vpop.f32.mrb[0].mxu0
        %v6589 = vadd.f32 0.0, %v6588
        %6590 = vmatprep.mubr.f32.mxu0 0.0
        %6591 = vmatmul.mubr.f32.gmra.mrb[0].mxu0 %v6518
        %v6592 = vpop.f32.mrb[0].mxu0
        %v6593 = vadd.f32 0.0, %v6592
        %v6594 = vpop.f32.mrb[0].mxu0
        %v6595 = vadd.f32 0.0, %v6594
        %6596 = vdwg.mxu0
        %6597 = vmatprep.subr.mxu0 %v6503
        %6598 = vmatpush1.msra.mxu0 %v6502
        %6599 = vmatprep.subr.mxu0 %v6508
        %6600 = vmatpush1.msra.mxu0 %v6507
        %6601 = vmatprep.subr.mxu0 0.0
        %6602 = vmatpush1.msra.mxu0 0.0
        %6603 = vmatprep.subr.mxu0 0.0
        %6604 = vmatpush1.msra.mxu0 0.0
        %6605 = vmatprep.subr.mxu0 0.0
        %6606 = vmatpush1.msra.mxu0 0.0
        %6607 = vmatprep.subr.mxu0 0.0
        %6608 = vmatpush1.msra.mxu0 0.0
        %6609 = vmatprep.subr.mxu0 0.0
        %6610 = vmatpush1.msra.mxu0 0.0
        %6611 = vmatprep.subr.mxu0 0.0
        %6612 = vmatpush1.msra.mxu0 0.0
        %6613 = vmatprep.subr.mxu0 0.0
        %6614 = vmatpush1.msra.mxu0 0.0
        %6615 = vmatprep.subr.mxu0 0.0
        %6616 = vmatpush1.msra.mxu0 0.0
        %6617 = vmatprep.subr.mxu0 0.0
        %6618 = vmatpush1.msra.mxu0 0.0
        %6619 = vmatprep.subr.mxu0 0.0
        %6620 = vmatpush1.msra.mxu0 0.0
        %6621 = vmatprep.subr.mxu0 0.0
        %6622 = vmatpush1.msra.mxu0 0.0
        %6623 = vmatprep.subr.mxu0 0.0
        %6624 = vmatpush1.msra.mxu0 0.0
        %6625 = vmatprep.subr.mxu0 0.0
        %6626 = vmatpush1.msra.mxu0 0.0
        %6627 = vmatprep.subr.mxu0 0.0
        %6628 = vmatpush1.msra.mxu0 0.0
        %6629 = vmatprep.subr.mxu0 0.0
        %6630 = vmatpush1.msra.mxu0 0.0
        %6631 = vmatprep.subr.mxu0 0.0
        %6632 = vmatpush1.msra.mxu0 0.0
        %6633 = vmatprep.subr.mxu0 0.0
        %6634 = vmatpush1.msra.mxu0 0.0
        %6635 = vmatprep.subr.mxu0 0.0
        %6636 = vmatpush1.msra.mxu0 0.0
        %6637 = vmatprep.subr.mxu0 0.0
        %6638 = vmatpush1.msra.mxu0 0.0
        %6639 = vmatprep.subr.mxu0 0.0
        %6640 = vmatpush1.msra.mxu0 0.0
        %6641 = vmatprep.subr.mxu0 0.0
        %6642 = vmatpush1.msra.mxu0 0.0
        %6643 = vmatprep.subr.mxu0 0.0
        %6644 = vmatpush1.msra.mxu0 0.0
        %6645 = vmatprep.subr.mxu0 0.0
        %6646 = vmatpush1.msra.mxu0 0.0
        %6647 = vmatprep.subr.mxu0 0.0
        %6648 = vmatpush1.msra.mxu0 0.0
        %6649 = vmatprep.subr.mxu0 0.0
        %6650 = vmatpush1.msra.mxu0 0.0
        %6651 = vmatprep.subr.mxu0 0.0
        %6652 = vmatpush1.msra.mxu0 0.0
        %6653 = vmatprep.subr.mxu0 0.0
        %6654 = vmatpush1.msra.mxu0 0.0
        %6655 = vmatprep.subr.mxu0 0.0
        %6656 = vmatpush1.msra.mxu0 0.0
        %6657 = vmatprep.subr.mxu0 0.0
        %6658 = vmatpush1.msra.mxu0 0.0
        %6659 = vmatprep.subr.mxu0 0.0
        %6660 = vmatpush1.msra.mxu0 0.0
        %6661 = vmatprep.mubr.f32.mxu0 0.0
        %6662 = vmatmul.mubr.f32.gmra.mrb[0].mxu0 %v6515
        %v6663 = vpop.f32.mrb[0].mxu0
        %v6664 = vadd.f32 0.0, %v6663
        %v6665 = vpop.f32.mrb[0].mxu0
        %v6666 = vadd.f32 0.0, %v6665
        %6667 = vmatprep.mubr.f32.mxu0 0.0
        %6668 = vmatmul.mubr.f32.gmra.mrb[0].mxu0 %v6518
        %v6669 = vpop.f32.mrb[0].mxu0
        %v6670 = vadd.f32 0.0, %v6669
        %v6671 = vpop.f32.mrb[0].mxu0
        %v6672 = vadd.f32 0.0, %v6671
        %6673 = vdwg.mxu0
        %6674 = vmatprep.subr.mxu0 0.0
        %6675 = vmatpush1.msra.mxu0 %v6504
        %6676 = vmatprep.subr.mxu0 0.0
        %6677 = vmatpush1.msra.mxu0 %v6509
        %6678 = vmatprep.subr.mxu0 0.0
        %6679 = vmatpush1.msra.mxu0 0.0
        %6680 = vmatprep.subr.mxu0 0.0
        %6681 = vmatpush1.msra.mxu0 0.0
        %6682 = vmatprep.subr.mxu0 0.0
        %6683 = vmatpush1.msra.mxu0 0.0
        %6684 = vmatprep.subr.mxu0 0.0
        %6685 = vmatpush1.msra.mxu0 0.0
        %6686 = vmatprep.subr.mxu0 0.0
        %6687 = vmatpush1.msra.mxu0 0.0
        %6688 = vmatprep.subr.mxu0 0.0
        %6689 = vmatpush1.msra.mxu0 0.0
        %6690 = vmatprep.subr.mxu0 0.0
        %6691 = vmatpush1.msra.mxu0 0.0
        %6692 = vmatprep.subr.mxu0 0.0
        %6693 = vmatpush1.msra.mxu0 0.0
        %6694 = vmatprep.subr.mxu0 0.0
        %6695 = vmatpush1.msra.mxu0 0.0
        %6696 = vmatprep.subr.mxu0 0.0
        %6697 = vmatpush1.msra.mxu0 0.0
        %6698 = vmatprep.subr.mxu0 0.0
        %6699 = vmatpush1.msra.mxu0 0.0
        %6700 = vmatprep.subr.mxu0 0.0
        %6701 = vmatpush1.msra.mxu0 0.0
        %6702 = vmatprep.subr.mxu0 0.0
        %6703 = vmatpush1.msra.mxu0 0.0
        %6704 = vmatprep.subr.mxu0 0.0
        %6705 = vmatpush1.msra.mxu0 0.0
        %6706 = vmatprep.subr.mxu0 0.0
        %6707 = vmatpush1.msra.mxu0 0.0
        %6708 = vmatprep.subr.mxu0 0.0
        %6709 = vmatpush1.msra.mxu0 0.0
        %6710 = vmatprep.subr.mxu0 0.0
        %6711 = vmatpush1.msra.mxu0 0.0
        %6712 = vmatprep.subr.mxu0 0.0
        %6713 = vmatpush1.msra.mxu0 0.0
        %6714 = vmatprep.subr.mxu0 0.0
        %6715 = vmatpush1.msra.mxu0 0.0
        %6716 = vmatprep.subr.mxu0 0.0
        %6717 = vmatpush1.msra.mxu0 0.0
        %6718 = vmatprep.subr.mxu0 0.0
        %6719 = vmatpush1.msra.mxu0 0.0
        %6720 = vmatprep.subr.mxu0 0.0
        %6721 = vmatpush1.msra.mxu0 0.0
        %6722 = vmatprep.subr.mxu0 0.0
        %6723 = vmatpush1.msra.mxu0 0.0
        %6724 = vmatprep.subr.mxu0 0.0
        %6725 = vmatpush1.msra.mxu0 0.0
        %6726 = vmatprep.subr.mxu0 0.0
        %6727 = vmatpush1.msra.mxu0 0.0
        %6728 = vmatprep.subr.mxu0 0.0
        %6729 = vmatpush1.msra.mxu0 0.0
        %6730 = vmatprep.subr.mxu0 0.0
        %6731 = vmatpush1.msra.mxu0 0.0
        %6732 = vmatprep.subr.mxu0 0.0
        %6733 = vmatpush1.msra.mxu0 0.0
        %6734 = vmatprep.subr.mxu0 0.0
        %6735 = vmatpush1.msra.mxu0 0.0
        %6736 = vmatprep.subr.mxu0 0.0
        %6737 = vmatpush1.msra.mxu0 0.0
        %6738 = vmatprep.mubr.f32.mxu0 0.0
        %6739 = vmatmul.mubr.f32.gmra.mrb[0].mxu0 %v6515
        %v6740 = vpop.f32.mrb[0].mxu0
        %v6741 = vadd.f32 0.0, %v6740
        %v6742 = vpop.f32.mrb[0].mxu0
        %6743 = vmatprep.mubr.f32.mxu0 0.0
        %6744 = vmatmul.mubr.f32.gmra.mrb[0].mxu0 %v6518
        %v6745 = vpop.f32.mrb[0].mxu0
        %v6746 = vadd.f32 0.0, %v6745
        %v6747 = vpop.f32.mrb[0].mxu0
        %6748 = vdwg.mxu0
        %v6750 = vsel %vm838, %v6510, 0
        %v6753 = vsel %vm838, %v6511, 0
        %6755 = vmatprep.subr.mxu0 %v6224
        %6756 = vmatpush1.msra.mxu0 %v6223
        %6757 = vmatprep.subr.mxu0 %v6229
        %6758 = vmatpush1.msra.mxu0 %v6228
        %6759 = vmatprep.subr.mxu0 0.0
        %6760 = vmatpush1.msra.mxu0 0.0
        %6761 = vmatprep.subr.mxu0 0.0
        %6762 = vmatpush1.msra.mxu0 0.0
        %6763 = vmatprep.subr.mxu0 0.0
        %6764 = vmatpush1.msra.mxu0 0.0
        %6765 = vmatprep.subr.mxu0 0.0
        %6766 = vmatpush1.msra.mxu0 0.0
        %6767 = vmatprep.subr.mxu0 0.0
        %6768 = vmatpush1.msra.mxu0 0.0
        %6769 = vmatprep.subr.mxu0 0.0
        %6770 = vmatpush1.msra.mxu0 0.0
        %6771 = vmatprep.subr.mxu0 0.0
        %6772 = vmatpush1.msra.mxu0 0.0
        %6773 = vmatprep.subr.mxu0 0.0
        %6774 = vmatpush1.msra.mxu0 0.0
        %6775 = vmatprep.subr.mxu0 0.0
        %6776 = vmatpush1.msra.mxu0 0.0
        %6777 = vmatprep.subr.mxu0 0.0
        %6778 = vmatpush1.msra.mxu0 0.0
        %6779 = vmatprep.subr.mxu0 0.0
        %6780 = vmatpush1.msra.mxu0 0.0
        %6781 = vmatprep.subr.mxu0 0.0
        %6782 = vmatpush1.msra.mxu0 0.0
        %6783 = vmatprep.subr.mxu0 0.0
        %6784 = vmatpush1.msra.mxu0 0.0
        %6785 = vmatprep.subr.mxu0 0.0
        %6786 = vmatpush1.msra.mxu0 0.0
        %6787 = vmatprep.subr.mxu0 0.0
        %6788 = vmatpush1.msra.mxu0 0.0
        %6789 = vmatprep.subr.mxu0 0.0
        %6790 = vmatpush1.msra.mxu0 0.0
        %6791 = vmatprep.subr.mxu0 0.0
        %6792 = vmatpush1.msra.mxu0 0.0
        %6793 = vmatprep.subr.mxu0 0.0
        %6794 = vmatpush1.msra.mxu0 0.0
        %6795 = vmatprep.subr.mxu0 0.0
        %6796 = vmatpush1.msra.mxu0 0.0
        %6797 = vmatprep.subr.mxu0 0.0
        %6798 = vmatpush1.msra.mxu0 0.0
        %6799 = vmatprep.subr.mxu0 0.0
        %6800 = vmatpush1.msra.mxu0 0.0
        %6801 = vmatprep.subr.mxu0 0.0
        %6802 = vmatpush1.msra.mxu0 0.0
        %6803 = vmatprep.subr.mxu0 0.0
        %6804 = vmatpush1.msra.mxu0 0.0
        %6805 = vmatprep.subr.mxu0 0.0
        %6806 = vmatpush1.msra.mxu0 0.0
        %6807 = vmatprep.subr.mxu0 0.0
        %6808 = vmatpush1.msra.mxu0 0.0
        %6809 = vmatprep.subr.mxu0 0.0
        %6810 = vmatpush1.msra.mxu0 0.0
        %6811 = vmatprep.subr.mxu0 0.0
        %6812 = vmatpush1.msra.mxu0 0.0
        %6813 = vmatprep.subr.mxu0 0.0
        %6814 = vmatpush1.msra.mxu0 0.0
        %6815 = vmatprep.subr.mxu0 0.0
        %6816 = vmatpush1.msra.mxu0 0.0
        %6817 = vmatprep.subr.mxu0 0.0
        %6818 = vmatpush1.msra.mxu0 0.0
        %6819 = vmatprep.mubr.f32.mxu0 0.0
        %6820 = vmatmul.mubr.f32.gmra.mrb[0].mxu0 %v6750
        %v6821 = vpop.f32.mrb[0].mxu0
        %v6822 = vadd.f32 %v6587, %v6821
        %v6823 = vpop.f32.mrb[0].mxu0
        %v6824 = vadd.f32 %v6589, %v6823
        %6825 = vmatprep.mubr.f32.mxu0 0.0
        %6826 = vmatmul.mubr.f32.gmra.mrb[0].mxu0 %v6753
        %v6827 = vpop.f32.mrb[0].mxu0
        %v6828 = vadd.f32 %v6593, %v6827
        %v6829 = vpop.f32.mrb[0].mxu0
        %v6830 = vadd.f32 %v6595, %v6829
        %6831 = vdwg.mxu0
        %6832 = vmatprep.subr.mxu0 %v6226
        %6833 = vmatpush1.msra.mxu0 %v6225
        %6834 = vmatprep.subr.mxu0 %v6231
        %6835 = vmatpush1.msra.mxu0 %v6230
        %6836 = vmatprep.subr.mxu0 0.0
        %6837 = vmatpush1.msra.mxu0 0.0
        %6838 = vmatprep.subr.mxu0 0.0
        %6839 = vmatpush1.msra.mxu0 0.0
        %6840 = vmatprep.subr.mxu0 0.0
        %6841 = vmatpush1.msra.mxu0 0.0
        %6842 = vmatprep.subr.mxu0 0.0
        %6843 = vmatpush1.msra.mxu0 0.0
        %6844 = vmatprep.subr.mxu0 0.0
        %6845 = vmatpush1.msra.mxu0 0.0
        %6846 = vmatprep.subr.mxu0 0.0
        %6847 = vmatpush1.msra.mxu0 0.0
        %6848 = vmatprep.subr.mxu0 0.0
        %6849 = vmatpush1.msra.mxu0 0.0
        %6850 = vmatprep.subr.mxu0 0.0
        %6851 = vmatpush1.msra.mxu0 0.0
        %6852 = vmatprep.subr.mxu0 0.0
        %6853 = vmatpush1.msra.mxu0 0.0
        %6854 = vmatprep.subr.mxu0 0.0
        %6855 = vmatpush1.msra.mxu0 0.0
        %6856 = vmatprep.subr.mxu0 0.0
        %6857 = vmatpush1.msra.mxu0 0.0
        %6858 = vmatprep.subr.mxu0 0.0
        %6859 = vmatpush1.msra.mxu0 0.0
        %6860 = vmatprep.subr.mxu0 0.0
        %6861 = vmatpush1.msra.mxu0 0.0
        %6862 = vmatprep.subr.mxu0 0.0
        %6863 = vmatpush1.msra.mxu0 0.0
        %6864 = vmatprep.subr.mxu0 0.0
        %6865 = vmatpush1.msra.mxu0 0.0
        %6866 = vmatprep.subr.mxu0 0.0
        %6867 = vmatpush1.msra.mxu0 0.0
        %6868 = vmatprep.subr.mxu0 0.0
        %6869 = vmatpush1.msra.mxu0 0.0
        %6870 = vmatprep.subr.mxu0 0.0
        %6871 = vmatpush1.msra.mxu0 0.0
        %6872 = vmatprep.subr.mxu0 0.0
        %6873 = vmatpush1.msra.mxu0 0.0
        %6874 = vmatprep.subr.mxu0 0.0
        %6875 = vmatpush1.msra.mxu0 0.0
        %6876 = vmatprep.subr.mxu0 0.0
        %6877 = vmatpush1.msra.mxu0 0.0
        %6878 = vmatprep.subr.mxu0 0.0
        %6879 = vmatpush1.msra.mxu0 0.0
        %6880 = vmatprep.subr.mxu0 0.0
        %6881 = vmatpush1.msra.mxu0 0.0
        %6882 = vmatprep.subr.mxu0 0.0
        %6883 = vmatpush1.msra.mxu0 0.0
        %6884 = vmatprep.subr.mxu0 0.0
        %6885 = vmatpush1.msra.mxu0 0.0
        %6886 = vmatprep.subr.mxu0 0.0
        %6887 = vmatpush1.msra.mxu0 0.0
        %6888 = vmatprep.subr.mxu0 0.0
        %6889 = vmatpush1.msra.mxu0 0.0
        %6890 = vmatprep.subr.mxu0 0.0
        %6891 = vmatpush1.msra.mxu0 0.0
        %6892 = vmatprep.subr.mxu0 0.0
        %6893 = vmatpush1.msra.mxu0 0.0
        %6894 = vmatprep.subr.mxu0 0.0
        %6895 = vmatpush1.msra.mxu0 0.0
        %6896 = vmatprep.mubr.f32.mxu0 0.0
        %6897 = vmatmul.mubr.f32.gmra.mrb[0].mxu0 %v6750
        %v6898 = vpop.f32.mrb[0].mxu0
        %v6899 = vadd.f32 %v6664, %v6898
        %v6900 = vpop.f32.mrb[0].mxu0
        %v6901 = vadd.f32 %v6666, %v6900
        %6902 = vmatprep.mubr.f32.mxu0 0.0
        %6903 = vmatmul.mubr.f32.gmra.mrb[0].mxu0 %v6753
        %v6904 = vpop.f32.mrb[0].mxu0
        %v6905 = vadd.f32 %v6670, %v6904
        %v6906 = vpop.f32.mrb[0].mxu0
        %v6907 = vadd.f32 %v6672, %v6906
        %6908 = vdwg.mxu0
        %6909 = vmatprep.subr.mxu0 0.0
        %6910 = vmatpush1.msra.mxu0 %v6227
        %6911 = vmatprep.subr.mxu0 0.0
        %6912 = vmatpush1.msra.mxu0 %v6232
        %6913 = vmatprep.subr.mxu0 0.0
        %6914 = vmatpush1.msra.mxu0 0.0
        %6915 = vmatprep.subr.mxu0 0.0
        %6916 = vmatpush1.msra.mxu0 0.0
        %6917 = vmatprep.subr.mxu0 0.0
        %6918 = vmatpush1.msra.mxu0 0.0
        %6919 = vmatprep.subr.mxu0 0.0
        %6920 = vmatpush1.msra.mxu0 0.0
        %6921 = vmatprep.subr.mxu0 0.0
        %6922 = vmatpush1.msra.mxu0 0.0
        %6923 = vmatprep.subr.mxu0 0.0
        %6924 = vmatpush1.msra.mxu0 0.0
        %6925 = vmatprep.subr.mxu0 0.0
        %6926 = vmatpush1.msra.mxu0 0.0
        %6927 = vmatprep.subr.mxu0 0.0
        %6928 = vmatpush1.msra.mxu0 0.0
        %6929 = vmatprep.subr.mxu0 0.0
        %6930 = vmatpush1.msra.mxu0 0.0
        %6931 = vmatprep.subr.mxu0 0.0
        %6932 = vmatpush1.msra.mxu0 0.0
        %6933 = vmatprep.subr.mxu0 0.0
        %6934 = vmatpush1.msra.mxu0 0.0
        %6935 = vmatprep.subr.mxu0 0.0
        %6936 = vmatpush1.msra.mxu0 0.0
        %6937 = vmatprep.subr.mxu0 0.0
        %6938 = vmatpush1.msra.mxu0 0.0
        %6939 = vmatprep.subr.mxu0 0.0
        %6940 = vmatpush1.msra.mxu0 0.0
        %6941 = vmatprep.subr.mxu0 0.0
        %6942 = vmatpush1.msra.mxu0 0.0
        %6943 = vmatprep.subr.mxu0 0.0
        %6944 = vmatpush1.msra.mxu0 0.0
        %6945 = vmatprep.subr.mxu0 0.0
        %6946 = vmatpush1.msra.mxu0 0.0
        %6947 = vmatprep.subr.mxu0 0.0
        %6948 = vmatpush1.msra.mxu0 0.0
        %6949 = vmatprep.subr.mxu0 0.0
        %6950 = vmatpush1.msra.mxu0 0.0
        %6951 = vmatprep.subr.mxu0 0.0
        %6952 = vmatpush1.msra.mxu0 0.0
        %6953 = vmatprep.subr.mxu0 0.0
        %6954 = vmatpush1.msra.mxu0 0.0
        %6955 = vmatprep.subr.mxu0 0.0
        %6956 = vmatpush1.msra.mxu0 0.0
        %6957 = vmatprep.subr.mxu0 0.0
        %6958 = vmatpush1.msra.mxu0 0.0
        %6959 = vmatprep.subr.mxu0 0.0
        %6960 = vmatpush1.msra.mxu0 0.0
        %6961 = vmatprep.subr.mxu0 0.0
        %6962 = vmatpush1.msra.mxu0 0.0
        %6963 = vmatprep.subr.mxu0 0.0
        %6964 = vmatpush1.msra.mxu0 0.0
        %6965 = vmatprep.subr.mxu0 0.0
        %6966 = vmatpush1.msra.mxu0 0.0
        %6967 = vmatprep.subr.mxu0 0.0
        %6968 = vmatpush1.msra.mxu0 0.0
        %6969 = vmatprep.subr.mxu0 0.0
        %6970 = vmatpush1.msra.mxu0 0.0
        %6971 = vmatprep.subr.mxu0 0.0
        %6972 = vmatpush1.msra.mxu0 0.0
        %6973 = vmatprep.mubr.f32.mxu0 0.0
        %6974 = vmatmul.mubr.f32.gmra.mrb[0].mxu0 %v6750
        %v6975 = vpop.f32.mrb[0].mxu0
        %v6976 = vadd.f32 %v6741, %v6975
        %v6977 = vpop.f32.mrb[0].mxu0
        %6978 = vmatprep.mubr.f32.mxu0 0.0
        %6979 = vmatmul.mubr.f32.gmra.mrb[0].mxu0 %v6753
        %v6980 = vpop.f32.mrb[0].mxu0
        %v6981 = vadd.f32 %v6746, %v6980
        %v6982 = vpop.f32.mrb[0].mxu0
        %6983 = vdwg.mxu0
        %v6984 = vld [vmem:[%s25] sm:$0xff]
        %v6985 = vld [vmem:[%s25 + $0x8] sm:$0xff]
        %6987 = vset.pattern.permute.xlu0 0
        %6988 = vperm.xlu0 %6987, %v6984
        %v6989 = vpop.permute.xlu0 %6988
        %6992 = vset.pattern.permute.xlu0 0
        %6993 = vperm.xlu0 %6992, %v6985
        %v6994 = vpop.permute.xlu0 %6993
        %v6996 = vadd.f32 %v6822, %v6989
        %v6997 = vadd.f32 %v6824, %v6989
        %v6998 = vadd.f32 %v6899, %v6989
        %v6999 = vadd.f32 %v6901, %v6989
        %v7000 = vadd.f32 %v6976, %v6989
        %v7001 = vadd.f32 %v6828, %v6994
        %v7002 = vadd.f32 %v6830, %v6994
        %v7003 = vadd.f32 %v6905, %v6994
        %v7004 = vadd.f32 %v6907, %v6994
        %v7005 = vadd.f32 %v6981, %v6994
        %v7006 = vadd.f32 %v6996, %v803
        %v7007 = vadd.f32 %v6997, %v804
        %v7008 = vadd.f32 %v6998, %v805
        %v7009 = vadd.f32 %v6999, %v806
        %v7010 = vadd.f32 %v7000, %v807
        %v7011 = vadd.f32 %v7001, %v808
        %v7012 = vadd.f32 %v7002, %v809
        %v7013 = vadd.f32 %v7003, %v810
        %v7014 = vadd.f32 %v7004, %v811
        %v7015 = vadd.f32 %v7005, %v812
        %7016 = vst [vmem:[%s797] sm:$0xff] %v7006
        %7017 = vst [vmem:[%s797 + $0x8] sm:$0xff] %v7007
        %7018 = vst [vmem:[%s797 + $0x10] sm:$0xff] %v7008
        %7019 = vst [vmem:[%s797 + $0x18] sm:$0xff] %v7009
        %7020 = vst.msk [vmem:[%s797 + $0x20] sm:$0xff] %vm2022, %v7010
        %7021 = vst [vmem:[%s797 + $0x28] sm:$0xff] %v7011
        %7022 = vst [vmem:[%s797 + $0x30] sm:$0xff] %v7012
        %7023 = vst [vmem:[%s797 + $0x38] sm:$0xff] %v7013
        %7024 = vst [vmem:[%s797 + $0x40] sm:$0xff] %v7014
        %7025 = vst.msk [vmem:[%s797 + $0x48] sm:$0xff] %vm2022, %v7015
        %s7026 = sand.u32 %s600, 1
        %s7027 = scalar_lea.sflag [#allocation5], %s7026
        %s7028 = sand.u32 %s600, 1
        %s7029 = smul.addr %s7028, 80
        %s7030 = scalar_lea.vmem [#allocation6], %s7029
        // Predicated region
        $region129: #{tpu_custom_call.1} parent=123 // pred_check
          %p7031 = pneg %p610
        $region130: #{tpu_custom_call.1} parent=123 // pred_check_branch
          %7033 = sbr.rel (%p7031) target = $region132
        $region131: #{tpu_custom_call.1} parent=123 // pred_region
          %s7035 = ssub.s32 1280, 1280
          %7036 = vsyncadd %s7027, %s7035
          %s7037 = smul.addr %s41, 10
          %s7038 = smul.addr %s7037, 128
          %s7039 = scalar_lea.hbm %s26, %s7038
          %s7040 = sshll.u32 %s7030, 4
          %s7041 = int_to_ptr.vmem [resolvable:$true] %s7040
          %7046 = dma.vmem_to_hbm [thread:$0]  %s7041, 1280, %s7039, %s7027, 640, 640, 40
        $region132: #{tpu_custom_call.1} parent=123 // pred_fallthru
          _
      $region124: #{tpu_custom_call.1} parent=5 // pred_fallthru
        _
      %p7047 = scmp.le.s32.totalorder 2, %s36
      // Predicated region
      $region133: #{tpu_custom_call.1} parent=5 // pred_check
        %p7048 = pneg %p7047
      $region134: #{tpu_custom_call.1} parent=5 // pred_check_branch
        %7050 = sbr.rel (%p7048) target = $region136
      $region135: #{tpu_custom_call.1} parent=5 // pred_region
        %s7051 = ssub.s32 %s36, 2
        // Predicated region
        $region137: #{tpu_custom_call.1} parent=135 // pred_check
          %p7052 = pneg %p616
        $region138: #{tpu_custom_call.1} parent=135 // pred_check_branch
          %7054 = sbr.rel (%p7052) target = $region140
        $region139: #{tpu_custom_call.1} parent=135 // pred_region
          %s7055 = sand.u32 %s601, 1
          %s7056 = scalar_lea.sflag [#allocation5], %s7055
          %s7057 = sand.u32 %s601, 1
          %s7058 = smul.addr %s7057, 80
          %s7059 = scalar_lea.vmem [#allocation6], %s7058
          %7060 = dma.done %s7056, 1280
        $region140: #{tpu_custom_call.1} parent=135 // pred_fallthru
          _
      $region136: #{tpu_custom_call.1} parent=5 // pred_fallthru
        _
    $region6: #{tpu_custom_call.1} parent=1 // loop_footer
      %s40 = sadd.s32 1, %s36
    $region7: #{tpu_custom_call.1} parent=1 // loop_footer_branch
      %35 = sbr.rel target = $region3
    $region8: #{tpu_custom_call.1} parent=1 // loop_exit
      _
    %7061 = vsyncpa [#allocation4], 1
    %s7062 = scalar_lea.sflag [#allocation4], 1
    %7063 = vsyncpa %s7062, 1
    %7064 = vsyncpa [#allocation5], 1
    %s7065 = scalar_lea.sflag [#allocation5], 1
    %7066 = vsyncpa %s7065, 1

</llo_original>
